<compile_context>
chip_gen: v7x
topology: tpu7x:2x2x1
jax: 0.10.0
libtpu: 0.0.40
codegen_flags: <defaults>
</compile_context>

<pallas_src>
import jax
import jax.numpy as jnp
from jax.experimental import pallas as pl
from jax.experimental.pallas import tpu as pltpu

# ----------------------------------------------------------------------------
# Config (small shapes consistent with the module's forward)
# ----------------------------------------------------------------------------
B = 2
CHANS = 8
SAMPLES = 1024
KERN_LEN = 16              # conv1 kernel (module default 64; kept small, 'same')
K_SEP = 16                 # separableConv / conv2 kernel length (fixed by module)
F1, D, F2, F3 = 8, 2, 16, 32
F1D = F1 * D
NB_CLASSES = 4
BN_EPS = 1e-5

T1 = SAMPLES               # after conv1 / depthwise (time unchanged)
T2 = T1 // 4               # after avg_pool1 (1,4)
T3 = T2 // 8               # after avg_pool2 (1,8)
T4 = T3 // 8               # after avg_pool3 (1,8) -> attention seq length
FLAT = F3 * T4             # flattened size (= 128)
HID = 128

PAD_L1 = (KERN_LEN - 1) // 2            # torch 'same' left pad for conv1 (=7)
PAD_LS = (K_SEP - 1) // 2               # torch 'same' left pad for K=16 convs
T1P = 1280                               # padded stage-1 width (128-aligned + headroom)
GRP = 4                                  # tap-group size for the stage-1/2 conv
WG = 1152                                # width of pre-shifted slabs (>= 12 + T1)
PAD_OFF = 128                            # aligned data offset inside pad scratch
PAD1_W = 512                             # scratch width for stage-3 padded input
PAD2_W = 256                             # scratch width for stage-4 padded input
ATT_SCALE = float(F3) ** -0.5


def _elu(v):
    return jnp.where(v > 0, v, jnp.exp(jnp.minimum(v, 0.0)) - 1.0)


def _pool_matrix(T, P):
    """(T, T//P) averaging matrix built in-kernel from iota (no HBM constant)."""
    r = jax.lax.broadcasted_iota(jnp.int32, (T, T // P), 0)
    c = jax.lax.broadcasted_iota(jnp.int32, (T, T // P), 1)
    hit = (r >= c * P) & (r < c * P + P)
    return jnp.where(hit, 1.0 / P, 0.0).astype(jnp.float32)


# ----------------------------------------------------------------------------
# Single fused kernel: one grid step == one batch element, all stages in VMEM
# ----------------------------------------------------------------------------
def _fused_kernel(x_ref, dw_ref, a_ref, b12_ref,
                  wsep_ref, b3_ref, wc2_ref, b4_ref,
                  wqkv_ref, bqkv_ref, w1r_ref, b1_ref, w2_ref, b2_ref,
                  o_ref, pad1_ref, pad2_ref):
    f32 = jnp.float32

    # ---- stage 1+2: conv1 (*BN1) -> depthwise (*BN2) -> ELU -> avg_pool(1,4)
    # Algebraically reordered: contract channels first (one small matmul), then
    # the 16 temporal taps with all BN scales folded into the tap coefficients.
    xp = x_ref[0]                                                   # (CHANS, T1P)
    m = jnp.dot(dw_ref[...], xp, preferred_element_type=f32)        # (F1D, T1P)

    # Grouped temporal taps:  acc[:, t] = sum_k a_k * m[:, t+k],  k = 4*g + r.
    # Per-tap scales are constant along time, so scale commutes with the time
    # shift: only GRP-1 pre-shifts + (KERN_LEN/GRP - 1) group shifts are needed
    # instead of KERN_LEN-1 full-slab shifts.
    m_sh = [m[:, r:r + WG] for r in range(GRP)]                     # (F1D, WG) x4
    acc = None
    for gi in range(KERN_LEN // GRP):                               # static unroll
        g = gi * GRP
        wg = a_ref[g] * m_sh[0]
        for r in range(1, GRP):
            wg = wg + a_ref[g + r] * m_sh[r]                        # (F1D, WG)
        term = wg[:, g:g + T1]                                      # (F1D, T1)
        acc = term if acc is None else acc + term
    u = _elu(acc + b12_ref[...])                                    # (F1D, T1)

    # avg_pool(1,4) as 8 aligned (16,128)x(128,32) block matmuls, stored
    # straight into the padded scratch for the next conv stage.
    poolb = _pool_matrix(128, 4)                                    # (128, 32)
    pad1_ref[...] = jnp.zeros((F1D, PAD1_W), f32)
    for j in range(T1 // 128):
        blk = jnp.dot(u[:, 128 * j:128 * (j + 1)], poolb,
                      preferred_element_type=f32)                   # (F1D, 32)
        pad1_ref[:, PAD_OFF + 32 * j: PAD_OFF + 32 * (j + 1)] = blk

    # ---- stage 3: separableConv (*BN3) -> ELU -> avg_pool(1,8)
    pp1 = pad1_ref[...]                                             # (F1D, PAD1_W)
    lo0 = PAD_OFF - PAD_LS
    acc3 = jnp.dot(wsep_ref[0], pp1[:, lo0:lo0 + T2],
                   preferred_element_type=f32)                      # (F2, T2)
    for k in range(1, K_SEP):
        lo = lo0 + k
        acc3 = acc3 + jnp.dot(wsep_ref[k], pp1[:, lo:lo + T2],
                              preferred_element_type=f32)
    y3 = _elu(acc3 + b3_ref[...])                                   # (F2, T2)
    p2 = jnp.dot(y3, _pool_matrix(T2, 8), preferred_element_type=f32)  # (F2, T3)

    pad2_ref[...] = jnp.zeros((F2, PAD2_W), f32)
    pad2_ref[:, PAD_OFF:PAD_OFF + T3] = p2

    # ---- stage 4: conv2 (*BN4) -> ELU -> avg_pool(1,8)
    pp2 = pad2_ref[...]                                             # (F2, PAD2_W)
    acc4 = jnp.dot(wc2_ref[0], pp2[:, lo0:lo0 + T3],
                   preferred_element_type=f32)                      # (F3, T3)
    for k in range(1, K_SEP):
        lo = lo0 + k
        acc4 = acc4 + jnp.dot(wc2_ref[k], pp2[:, lo:lo + T3],
                              preferred_element_type=f32)
    y4 = _elu(acc4 + b4_ref[...])                                   # (F3, T3)
    p3 = jnp.dot(y4, _pool_matrix(T3, 8), preferred_element_type=f32)  # (F3, T4)

    # ---- self-attention over T4 time tokens (fused QKV projection)
    xa = p3.T                                                       # (T4, F3)
    qkv = jnp.dot(xa, wqkv_ref[...], preferred_element_type=f32) + bqkv_ref[...]
    q = qkv[:, 0:F3]
    kk = qkv[:, F3:2 * F3]
    v = qkv[:, 2 * F3:3 * F3]
    s = jnp.dot(q, kk.T, preferred_element_type=f32) * ATT_SCALE    # (T4, T4)
    s = s - jnp.max(s, axis=-1, keepdims=True)
    e = jnp.exp(s)
    att = e / jnp.sum(e, axis=-1, keepdims=True)
    ao = jnp.dot(att, v, preferred_element_type=f32)                # (T4, F3)

    # ---- dense1 -> dense2 -> log_softmax
    # Flatten order of the module (channel-major, c*T4 + t) is folded into the
    # pre-permuted dense1 weight w1r[t, c, :], so no in-kernel reshape is needed.
    h = b1_ref[...]                                                 # (1, HID)
    for t in range(T4):
        h = h + jnp.dot(ao[t:t + 1, :], w1r_ref[t], preferred_element_type=f32)
    logits = jnp.dot(h, w2_ref[...], preferred_element_type=f32) + b2_ref[...]
    mx = jnp.max(logits, axis=-1, keepdims=True)
    lse = jnp.log(jnp.sum(jnp.exp(logits - mx), axis=-1, keepdims=True)) + mx
    o_ref[0] = logits - lse


# ----------------------------------------------------------------------------
# Forward wrapper: pad input, one pallas_call, reshape the tiny output
# ----------------------------------------------------------------------------
@jax.jit
def eegnet_attention_deep_forward(x, fp):
    Bn = x.shape[0]
    xp = jnp.pad(x[:, 0], ((0, 0), (0, 0), (PAD_L1, T1P - SAMPLES - PAD_L1)))

    out = pl.pallas_call(
        _fused_kernel,
        out_shape=jax.ShapeDtypeStruct((Bn, 1, NB_CLASSES), jnp.float32),
        grid_spec=pltpu.PrefetchScalarGridSpec(
            num_scalar_prefetch=0,
            grid=(Bn,),
            in_specs=[
                pl.BlockSpec((1, CHANS, T1P), lambda b: (b, 0, 0)),
                pl.BlockSpec((F1D, CHANS), lambda b: (0, 0)),
                pl.BlockSpec((KERN_LEN, F1D, 1), lambda b: (0, 0, 0)),
                pl.BlockSpec((F1D, 1), lambda b: (0, 0)),
                pl.BlockSpec((K_SEP, F2, F1D), lambda b: (0, 0, 0)),
                pl.BlockSpec((F2, 1), lambda b: (0, 0)),
                pl.BlockSpec((K_SEP, F3, F2), lambda b: (0, 0, 0)),
                pl.BlockSpec((F3, 1), lambda b: (0, 0)),
                pl.BlockSpec((F3, 3 * F3), lambda b: (0, 0)),
                pl.BlockSpec((1, 3 * F3), lambda b: (0, 0)),
                pl.BlockSpec((T4, F3, HID), lambda b: (0, 0, 0)),
                pl.BlockSpec((1, HID), lambda b: (0, 0)),
                pl.BlockSpec((HID, NB_CLASSES), lambda b: (0, 0)),
                pl.BlockSpec((1, NB_CLASSES), lambda b: (0, 0)),
            ],
            out_specs=pl.BlockSpec((1, 1, NB_CLASSES), lambda b: (b, 0, 0)),
            scratch_shapes=[
                pltpu.VMEM((F1D, PAD1_W), jnp.float32),
                pltpu.VMEM((F2, PAD2_W), jnp.float32),
            ],
        ),
        compiler_params=pltpu.CompilerParams(dimension_semantics=("parallel",)),
    )(xp, fp["dwmat"], fp["a_taps"], fp["bias12"],
      fp["wsep"], fp["bias3"], fp["wc2"], fp["bias4"],
      fp["wqkv"], fp["bqkv"], fp["w1r"], fp["b1"], fp["w2"], fp["b2"])
    return out.reshape(Bn, NB_CLASSES)


# ----------------------------------------------------------------------------
# Parameter construction (deterministic, synthetic, module-style layout)
# ----------------------------------------------------------------------------
def make_params(key):
    ks = jax.random.split(key, 18)
    n = lambda k, shp, s=0.1: jax.random.normal(k, shp, jnp.float32) * s

    def bn(k, c):
        k1, k2, k3, k4 = jax.random.split(k, 4)
        gamma = 1.0 + n(k1, (c,))
        beta = n(k2, (c,))
        mean = n(k3, (c,))
        var = jnp.abs(n(k4, (c,))) + 1.0
        scale = gamma / jnp.sqrt(var + BN_EPS)
        shift = beta - mean * scale
        return scale, shift

    p = {}
    p["conv1_w"] = n(ks[0], (F1, KERN_LEN))              # torch (F1,1,1,K) squeezed
    p["bn1_s"], p["bn1_b"] = bn(ks[1], F1)
    p["dw_w"] = n(ks[2], (F1D, CHANS))                   # torch (F1*D,1,Chans,1)
    p["bn2_s"], p["bn2_b"] = bn(ks[3], F1D)
    p["sep_w"] = n(ks[4], (F2, F1D, K_SEP))              # torch (F2,F1*D,1,16)
    p["bn3_s"], p["bn3_b"] = bn(ks[5], F2)
    p["conv2_w"] = n(ks[6], (F3, F2, K_SEP))             # torch (F3,F2,1,16)
    p["bn4_s"], p["bn4_b"] = bn(ks[7], F3)
    p["wq"], p["bq"] = n(ks[8], (F3, F3)), n(ks[9], (F3,))    # (in,out) layout
    p["wk"], p["bk"] = n(ks[10], (F3, F3)), n(ks[11], (F3,))
    p["wv"], p["bv"] = n(ks[12], (F3, F3)), n(ks[13], (F3,))
    p["w1"], p["b1"] = n(ks[14], (FLAT, HID)), n(ks[15], (HID,))
    p["w2"], p["b2"] = n(ks[16], (HID, NB_CLASSES)), n(ks[17], (NB_CLASSES,))
    return p


def fold_params(p):
    """Fold BN scales into conv weights and pre-arrange layouts for the kernel."""
    # conv1+BN1+depthwise+BN2 fusion:  out[fd,t] = sum_k A[fd,k]*m[fd,t+k] + bias
    w1_rep = jnp.repeat(p["conv1_w"], D, axis=0)                 # (F1D, K)
    s1_rep = jnp.repeat(p["bn1_s"], D)
    b1_rep = jnp.repeat(p["bn1_b"], D)
    A = (p["bn2_s"] * s1_rep)[:, None] * w1_rep                  # (F1D, K)
    a_taps = jnp.transpose(A)[:, :, None]                        # (K, F1D, 1)
    dwsum = p["dw_w"].sum(axis=1)
    bias12 = (p["bn2_s"] * b1_rep * dwsum + p["bn2_b"])[:, None]  # (F1D, 1)

    wsep = (p["sep_w"] * p["bn3_s"][:, None, None]).transpose(2, 0, 1)   # (K,F2,F1D)
    bias3 = p["bn3_b"][:, None]
    wc2 = (p["conv2_w"] * p["bn4_s"][:, None, None]).transpose(2, 0, 1)  # (K,F3,F2)
    bias4 = p["bn4_b"][:, None]

    wqkv = jnp.concatenate([p["wq"], p["wk"], p["wv"]], axis=1)  # (F3, 3F3)
    bqkv = jnp.concatenate([p["bq"], p["bk"], p["bv"]])[None, :]  # (1, 3F3)

    # dense1 weight, pre-permuted so that torch's channel-major flatten
    # (index c*T4 + t) is handled without any in-kernel reshape.
    w1r = p["w1"].reshape(F3, T4, HID).transpose(1, 0, 2)        # (T4, F3, HID)

    return dict(
        dwmat=p["dw_w"], a_taps=a_taps, bias12=bias12,
        wsep=wsep, bias3=bias3, wc2=wc2, bias4=bias4,
        wqkv=wqkv, bqkv=bqkv,
        w1r=w1r, b1=p["b1"][None, :], w2=p["w2"], b2=p["b2"][None, :],
    )


# ----------------------------------------------------------------------------
# Pure-JAX reference (unfused, module order) for a numerical cross-check
# ----------------------------------------------------------------------------
@jax.jit
def reference_forward(x, p):
    hi = jax.lax.Precision.HIGHEST
    xp = jnp.pad(x[:, 0], ((0, 0), (0, 0), (PAD_L1, KERN_LEN - 1 - PAD_L1)))
    sh = jnp.stack([xp[:, :, k:k + SAMPLES] for k in range(KERN_LEN)], 0)
    z = jnp.einsum("fk,kbcs->bfcs", p["conv1_w"], sh, precision=hi)
    z = z * p["bn1_s"][None, :, None, None] + p["bn1_b"][None, :, None, None]
    u = jnp.einsum("fdc,bfcs->bfds", p["dw_w"].reshape(F1, D, CHANS), z,
                   precision=hi).reshape(-1, F1D, SAMPLES)
    u = u * p["bn2_s"][None, :, None] + p["bn2_b"][None, :, None]
    u = _elu(u).reshape(-1, F1D, T2, 4).mean(-1)
    up = jnp.pad(u, ((0, 0), (0, 0), (PAD_LS, K_SEP - 1 - PAD_LS)))
    sh = jnp.stack([up[:, :, k:k + T2] for k in range(K_SEP)], 0)
    y = jnp.einsum("fck,kbct->bft", p["sep_w"], sh, precision=hi)
    y = y * p["bn3_s"][None, :, None] + p["bn3_b"][None, :, None]
    y = _elu(y).reshape(-1, F2, T3, 8).mean(-1)
    yp = jnp.pad(y, ((0, 0), (0, 0), (PAD_LS, K_SEP - 1 - PAD_LS)))
    sh = jnp.stack([yp[:, :, k:k + T3] for k in range(K_SEP)], 0)
    w = jnp.einsum("fck,kbct->bft", p["conv2_w"], sh, precision=hi)
    w = w * p["bn4_s"][None, :, None] + p["bn4_b"][None, :, None]
    w = _elu(w).reshape(-1, F3, T4, 8).mean(-1)                      # (B,F3,T4)
    xa = jnp.transpose(w, (0, 2, 1))                                 # (B,T4,F3)
    q = jnp.einsum("btf,fo->bto", xa, p["wq"], precision=hi) + p["bq"]
    kk = jnp.einsum("btf,fo->bto", xa, p["wk"], precision=hi) + p["bk"]
    v = jnp.einsum("btf,fo->bto", xa, p["wv"], precision=hi) + p["bv"]
    s = jnp.einsum("btf,bsf->bts", q, kk, precision=hi) * ATT_SCALE
    a = jax.nn.softmax(s, axis=-1)
    o = jnp.einsum("bts,bsf->btf", a, v, precision=hi)
    flat = jnp.transpose(o, (0, 2, 1)).reshape(-1, FLAT)
    h = jnp.dot(flat, p["w1"], precision=hi) + p["b1"]
    logits = jnp.dot(h, p["w2"], precision=hi) + p["b2"]
    return jax.nn.log_softmax(logits, axis=-1)


# ----------------------------------------------------------------------------
if __name__ == "__main__":
    key = jax.random.PRNGKey(0)
    kx, kp = jax.random.split(key)
    x = jax.random.normal(kx, (B, 1, CHANS, SAMPLES), jnp.float32)
    params = make_params(kp)
    fparams = fold_params(params)

    out = eegnet_attention_deep_forward(x, fparams)
    out = jax.block_until_ready(out)
    assert out.shape == (B, NB_CLASSES)

    ref = jax.block_until_ready(reference_forward(x, params))
    assert float(jnp.max(jnp.abs(out - ref))) < 5e-3

    print("KERNEL_OK")
</pallas_src>

<mosaic_0001>
module attributes {stable_mosaic.version = 11 : i64} {
  func.func @_fused_kernel(%arg0: i32, %arg1: memref<1x8x1280xf32, #tpu.memory_space<vmem>>, %arg2: memref<16x8xf32, #tpu.memory_space<vmem>>, %arg3: memref<16x16x1xf32, #tpu.memory_space<vmem>>, %arg4: memref<16x1xf32, #tpu.memory_space<vmem>>, %arg5: memref<16x16x16xf32, #tpu.memory_space<vmem>>, %arg6: memref<16x1xf32, #tpu.memory_space<vmem>>, %arg7: memref<16x32x16xf32, #tpu.memory_space<vmem>>, %arg8: memref<32x1xf32, #tpu.memory_space<vmem>>, %arg9: memref<32x96xf32, #tpu.memory_space<vmem>>, %arg10: memref<1x96xf32, #tpu.memory_space<vmem>>, %arg11: memref<4x32x128xf32, #tpu.memory_space<vmem>>, %arg12: memref<1x128xf32, #tpu.memory_space<vmem>>, %arg13: memref<128x4xf32, #tpu.memory_space<vmem>>, %arg14: memref<1x4xf32, #tpu.memory_space<vmem>>, %arg15: memref<1x1x4xf32, #tpu.memory_space<vmem>>, %arg16: memref<16x512xf32, #tpu.memory_space<vmem>>, %arg17: memref<16x256xf32, #tpu.memory_space<vmem>>) attributes {dimension_semantics = [#tpu.dimension_semantics<parallel>], iteration_bounds = array<i64: 2>, scalar_prefetch = 0 : i64, scratch_operands = 2 : i64, tpu.core_type = #tpu.core_type<tc>, window_params = [{transform_indices = @transform_0, window_bounds = array<i64: 1, 8, 1280>}, {pipeline_mode = #tpu.pipeline_mode<synchronous>, transform_indices = @transform_1, window_bounds = array<i64: 16, 8>}, {pipeline_mode = #tpu.pipeline_mode<synchronous>, transform_indices = @transform_2, window_bounds = array<i64: 16, 16, 1>}, {pipeline_mode = #tpu.pipeline_mode<synchronous>, transform_indices = @transform_3, window_bounds = array<i64: 16, 1>}, {pipeline_mode = #tpu.pipeline_mode<synchronous>, transform_indices = @transform_4, window_bounds = array<i64: 16, 16, 16>}, {pipeline_mode = #tpu.pipeline_mode<synchronous>, transform_indices = @transform_5, window_bounds = array<i64: 16, 1>}, {pipeline_mode = #tpu.pipeline_mode<synchronous>, transform_indices = @transform_6, window_bounds = array<i64: 16, 32, 16>}, {pipeline_mode = #tpu.pipeline_mode<synchronous>, transform_indices = @transform_7, window_bounds = array<i64: 32, 1>}, {pipeline_mode = #tpu.pipeline_mode<synchronous>, transform_indices = @transform_8, window_bounds = array<i64: 32, 96>}, {pipeline_mode = #tpu.pipeline_mode<synchronous>, transform_indices = @transform_9, window_bounds = array<i64: 1, 96>}, {pipeline_mode = #tpu.pipeline_mode<synchronous>, transform_indices = @transform_10, window_bounds = array<i64: 4, 32, 128>}, {pipeline_mode = #tpu.pipeline_mode<synchronous>, transform_indices = @transform_11, window_bounds = array<i64: 1, 128>}, {pipeline_mode = #tpu.pipeline_mode<synchronous>, transform_indices = @transform_12, window_bounds = array<i64: 128, 4>}, {pipeline_mode = #tpu.pipeline_mode<synchronous>, transform_indices = @transform_13, window_bounds = array<i64: 1, 4>}, {transform_indices = @transform_14, window_bounds = array<i64: 1, 1, 4>}]} {
    %c0 = arith.constant 0 : index
    %c0_0 = arith.constant 0 : index
    %c0_1 = arith.constant 0 : index
    %0 = vector.load %arg1[%c0, %c0_0, %c0_1] : memref<1x8x1280xf32, #tpu.memory_space<vmem>>, vector<1x8x1280xf32>
    %1 = vector.shape_cast %0 : vector<1x8x1280xf32> to vector<8x1280xf32>
    %c0_2 = arith.constant 0 : index
    %c0_3 = arith.constant 0 : index
    %2 = vector.load %arg2[%c0_2, %c0_3] : memref<16x8xf32, #tpu.memory_space<vmem>>, vector<16x8xf32>
    %cst = arith.constant dense<0.000000e+00> : vector<16x1280xf32>
    %3 = tpu.matmul %2, %1, %cst {dimension_numbers = #tpu.dot_dimension_numbers<[1], [0], [0], [1], [0, 0, 1, 1], [], []>} : vector<16x8xf32>, vector<8x1280xf32>, vector<16x1280xf32> -> vector<16x1280xf32>
    %4 = vector.extract_strided_slice %3 {offsets = [0, 0], sizes = [16, 1152], strides = [1, 1]} : vector<16x1280xf32> to vector<16x1152xf32>
    %5 = vector.extract_strided_slice %3 {offsets = [0, 1], sizes = [16, 1152], strides = [1, 1]} : vector<16x1280xf32> to vector<16x1152xf32>
    %6 = vector.extract_strided_slice %3 {offsets = [0, 2], sizes = [16, 1152], strides = [1, 1]} : vector<16x1280xf32> to vector<16x1152xf32>
    %7 = vector.extract_strided_slice %3 {offsets = [0, 3], sizes = [16, 1152], strides = [1, 1]} : vector<16x1280xf32> to vector<16x1152xf32>
    %c0_4 = arith.constant 0 : index
    %c0_5 = arith.constant 0 : index
    %c0_6 = arith.constant 0 : index
    %8 = vector.load %arg3[%c0_4, %c0_5, %c0_6] : memref<16x16x1xf32, #tpu.memory_space<vmem>>, vector<1x16x1xf32>
    %9 = vector.shape_cast %8 : vector<1x16x1xf32> to vector<16x1xf32>
    %10 = vector.broadcast %9 : vector<16x1xf32> to vector<16x1152xf32>
    %11 = arith.mulf %10, %4 : vector<16x1152xf32>
    %c1 = arith.constant 1 : index
    %c0_7 = arith.constant 0 : index
    %c0_8 = arith.constant 0 : index
    %12 = vector.load %arg3[%c1, %c0_7, %c0_8] : memref<16x16x1xf32, #tpu.memory_space<vmem>>, vector<1x16x1xf32>
    %13 = vector.shape_cast %12 : vector<1x16x1xf32> to vector<16x1xf32>
    %14 = vector.broadcast %13 : vector<16x1xf32> to vector<16x1152xf32>
    %15 = arith.mulf %14, %5 : vector<16x1152xf32>
    %16 = arith.addf %11, %15 : vector<16x1152xf32>
    %c2 = arith.constant 2 : index
    %c0_9 = arith.constant 0 : index
    %c0_10 = arith.constant 0 : index
    %17 = vector.load %arg3[%c2, %c0_9, %c0_10] : memref<16x16x1xf32, #tpu.memory_space<vmem>>, vector<1x16x1xf32>
    %18 = vector.shape_cast %17 : vector<1x16x1xf32> to vector<16x1xf32>
    %19 = vector.broadcast %18 : vector<16x1xf32> to vector<16x1152xf32>
    %20 = arith.mulf %19, %6 : vector<16x1152xf32>
    %21 = arith.addf %16, %20 : vector<16x1152xf32>
    %c3 = arith.constant 3 : index
    %c0_11 = arith.constant 0 : index
    %c0_12 = arith.constant 0 : index
    %22 = vector.load %arg3[%c3, %c0_11, %c0_12] : memref<16x16x1xf32, #tpu.memory_space<vmem>>, vector<1x16x1xf32>
    %23 = vector.shape_cast %22 : vector<1x16x1xf32> to vector<16x1xf32>
    %24 = vector.broadcast %23 : vector<16x1xf32> to vector<16x1152xf32>
    %25 = arith.mulf %24, %7 : vector<16x1152xf32>
    %26 = arith.addf %21, %25 : vector<16x1152xf32>
    %27 = vector.extract_strided_slice %26 {offsets = [0, 0], sizes = [16, 1024], strides = [1, 1]} : vector<16x1152xf32> to vector<16x1024xf32>
    %c4 = arith.constant 4 : index
    %c0_13 = arith.constant 0 : index
    %c0_14 = arith.constant 0 : index
    %28 = vector.load %arg3[%c4, %c0_13, %c0_14] : memref<16x16x1xf32, #tpu.memory_space<vmem>>, vector<1x16x1xf32>
    %29 = vector.shape_cast %28 : vector<1x16x1xf32> to vector<16x1xf32>
    %30 = vector.broadcast %29 : vector<16x1xf32> to vector<16x1152xf32>
    %31 = arith.mulf %30, %4 : vector<16x1152xf32>
    %c5 = arith.constant 5 : index
    %c0_15 = arith.constant 0 : index
    %c0_16 = arith.constant 0 : index
    %32 = vector.load %arg3[%c5, %c0_15, %c0_16] : memref<16x16x1xf32, #tpu.memory_space<vmem>>, vector<1x16x1xf32>
    %33 = vector.shape_cast %32 : vector<1x16x1xf32> to vector<16x1xf32>
    %34 = vector.broadcast %33 : vector<16x1xf32> to vector<16x1152xf32>
    %35 = arith.mulf %34, %5 : vector<16x1152xf32>
    %36 = arith.addf %31, %35 : vector<16x1152xf32>
    %c6 = arith.constant 6 : index
    %c0_17 = arith.constant 0 : index
    %c0_18 = arith.constant 0 : index
    %37 = vector.load %arg3[%c6, %c0_17, %c0_18] : memref<16x16x1xf32, #tpu.memory_space<vmem>>, vector<1x16x1xf32>
    %38 = vector.shape_cast %37 : vector<1x16x1xf32> to vector<16x1xf32>
    %39 = vector.broadcast %38 : vector<16x1xf32> to vector<16x1152xf32>
    %40 = arith.mulf %39, %6 : vector<16x1152xf32>
    %41 = arith.addf %36, %40 : vector<16x1152xf32>
    %c7 = arith.constant 7 : index
    %c0_19 = arith.constant 0 : index
    %c0_20 = arith.constant 0 : index
    %42 = vector.load %arg3[%c7, %c0_19, %c0_20] : memref<16x16x1xf32, #tpu.memory_space<vmem>>, vector<1x16x1xf32>
    %43 = vector.shape_cast %42 : vector<1x16x1xf32> to vector<16x1xf32>
    %44 = vector.broadcast %43 : vector<16x1xf32> to vector<16x1152xf32>
    %45 = arith.mulf %44, %7 : vector<16x1152xf32>
    %46 = arith.addf %41, %45 : vector<16x1152xf32>
    %47 = vector.extract_strided_slice %46 {offsets = [0, 4], sizes = [16, 1024], strides = [1, 1]} : vector<16x1152xf32> to vector<16x1024xf32>
    %48 = arith.addf %27, %47 : vector<16x1024xf32>
    %c8 = arith.constant 8 : index
    %c0_21 = arith.constant 0 : index
    %c0_22 = arith.constant 0 : index
    %49 = vector.load %arg3[%c8, %c0_21, %c0_22] : memref<16x16x1xf32, #tpu.memory_space<vmem>>, vector<1x16x1xf32>
    %50 = vector.shape_cast %49 : vector<1x16x1xf32> to vector<16x1xf32>
    %51 = vector.broadcast %50 : vector<16x1xf32> to vector<16x1152xf32>
    %52 = arith.mulf %51, %4 : vector<16x1152xf32>
    %c9 = arith.constant 9 : index
    %c0_23 = arith.constant 0 : index
    %c0_24 = arith.constant 0 : index
    %53 = vector.load %arg3[%c9, %c0_23, %c0_24] : memref<16x16x1xf32, #tpu.memory_space<vmem>>, vector<1x16x1xf32>
    %54 = vector.shape_cast %53 : vector<1x16x1xf32> to vector<16x1xf32>
    %55 = vector.broadcast %54 : vector<16x1xf32> to vector<16x1152xf32>
    %56 = arith.mulf %55, %5 : vector<16x1152xf32>
    %57 = arith.addf %52, %56 : vector<16x1152xf32>
    %c10 = arith.constant 10 : index
    %c0_25 = arith.constant 0 : index
    %c0_26 = arith.constant 0 : index
    %58 = vector.load %arg3[%c10, %c0_25, %c0_26] : memref<16x16x1xf32, #tpu.memory_space<vmem>>, vector<1x16x1xf32>
    %59 = vector.shape_cast %58 : vector<1x16x1xf32> to vector<16x1xf32>
    %60 = vector.broadcast %59 : vector<16x1xf32> to vector<16x1152xf32>
    %61 = arith.mulf %60, %6 : vector<16x1152xf32>
    %62 = arith.addf %57, %61 : vector<16x1152xf32>
    %c11 = arith.constant 11 : index
    %c0_27 = arith.constant 0 : index
    %c0_28 = arith.constant 0 : index
    %63 = vector.load %arg3[%c11, %c0_27, %c0_28] : memref<16x16x1xf32, #tpu.memory_space<vmem>>, vector<1x16x1xf32>
    %64 = vector.shape_cast %63 : vector<1x16x1xf32> to vector<16x1xf32>
    %65 = vector.broadcast %64 : vector<16x1xf32> to vector<16x1152xf32>
    %66 = arith.mulf %65, %7 : vector<16x1152xf32>
    %67 = arith.addf %62, %66 : vector<16x1152xf32>
    %68 = vector.extract_strided_slice %67 {offsets = [0, 8], sizes = [16, 1024], strides = [1, 1]} : vector<16x1152xf32> to vector<16x1024xf32>
    %69 = arith.addf %48, %68 : vector<16x1024xf32>
    %c12 = arith.constant 12 : index
    %c0_29 = arith.constant 0 : index
    %c0_30 = arith.constant 0 : index
    %70 = vector.load %arg3[%c12, %c0_29, %c0_30] : memref<16x16x1xf32, #tpu.memory_space<vmem>>, vector<1x16x1xf32>
    %71 = vector.shape_cast %70 : vector<1x16x1xf32> to vector<16x1xf32>
    %72 = vector.broadcast %71 : vector<16x1xf32> to vector<16x1152xf32>
    %73 = arith.mulf %72, %4 : vector<16x1152xf32>
    %c13 = arith.constant 13 : index
    %c0_31 = arith.constant 0 : index
    %c0_32 = arith.constant 0 : index
    %74 = vector.load %arg3[%c13, %c0_31, %c0_32] : memref<16x16x1xf32, #tpu.memory_space<vmem>>, vector<1x16x1xf32>
    %75 = vector.shape_cast %74 : vector<1x16x1xf32> to vector<16x1xf32>
    %76 = vector.broadcast %75 : vector<16x1xf32> to vector<16x1152xf32>
    %77 = arith.mulf %76, %5 : vector<16x1152xf32>
    %78 = arith.addf %73, %77 : vector<16x1152xf32>
    %c14 = arith.constant 14 : index
    %c0_33 = arith.constant 0 : index
    %c0_34 = arith.constant 0 : index
    %79 = vector.load %arg3[%c14, %c0_33, %c0_34] : memref<16x16x1xf32, #tpu.memory_space<vmem>>, vector<1x16x1xf32>
    %80 = vector.shape_cast %79 : vector<1x16x1xf32> to vector<16x1xf32>
    %81 = vector.broadcast %80 : vector<16x1xf32> to vector<16x1152xf32>
    %82 = arith.mulf %81, %6 : vector<16x1152xf32>
    %83 = arith.addf %78, %82 : vector<16x1152xf32>
    %c15 = arith.constant 15 : index
    %c0_35 = arith.constant 0 : index
    %c0_36 = arith.constant 0 : index
    %84 = vector.load %arg3[%c15, %c0_35, %c0_36] : memref<16x16x1xf32, #tpu.memory_space<vmem>>, vector<1x16x1xf32>
    %85 = vector.shape_cast %84 : vector<1x16x1xf32> to vector<16x1xf32>
    %86 = vector.broadcast %85 : vector<16x1xf32> to vector<16x1152xf32>
    %87 = arith.mulf %86, %7 : vector<16x1152xf32>
    %88 = arith.addf %83, %87 : vector<16x1152xf32>
    %89 = vector.extract_strided_slice %88 {offsets = [0, 12], sizes = [16, 1024], strides = [1, 1]} : vector<16x1152xf32> to vector<16x1024xf32>
    %90 = arith.addf %69, %89 : vector<16x1024xf32>
    %c0_37 = arith.constant 0 : index
    %c0_38 = arith.constant 0 : index
    %91 = vector.load %arg4[%c0_37, %c0_38] : memref<16x1xf32, #tpu.memory_space<vmem>>, vector<16x1xf32>
    %92 = vector.broadcast %91 : vector<16x1xf32> to vector<16x1024xf32>
    %93 = arith.addf %90, %92 : vector<16x1024xf32>
    %cst_39 = arith.constant 0.000000e+00 : f32
    %94 = vector.broadcast %cst_39 : f32 to vector<16x1024xf32>
    %95 = arith.cmpf ogt, %93, %94 : vector<16x1024xf32>
    %cst_40 = arith.constant 0.000000e+00 : f32
    %96 = vector.broadcast %cst_40 : f32 to vector<16x1024xf32>
    %97 = arith.minimumf %93, %96 : vector<16x1024xf32>
    %98 = math.exp %97 : vector<16x1024xf32>
    %cst_41 = arith.constant 1.000000e+00 : f32
    %99 = vector.broadcast %cst_41 : f32 to vector<16x1024xf32>
    %100 = arith.subf %98, %99 : vector<16x1024xf32>
    %101 = arith.select %95, %93, %100 : vector<16x1024xi1>, vector<16x1024xf32>
    %102 = tpu.iota {dimensions = array<i32: 0>} : vector<128x32xi32>
    %103 = tpu.iota {dimensions = array<i32: 1>} : vector<128x32xi32>
    %c4_i32 = arith.constant 4 : i32
    %104 = vector.broadcast %c4_i32 : i32 to vector<128x32xi32>
    %105 = arith.muli %103, %104 : vector<128x32xi32>
    %106 = arith.cmpi sge, %102, %105 : vector<128x32xi32>
    %c4_i32_42 = arith.constant 4 : i32
    %107 = vector.broadcast %c4_i32_42 : i32 to vector<128x32xi32>
    %108 = arith.muli %103, %107 : vector<128x32xi32>
    %c4_i32_43 = arith.constant 4 : i32
    %109 = vector.broadcast %c4_i32_43 : i32 to vector<128x32xi32>
    %110 = arith.addi %108, %109 : vector<128x32xi32>
    %111 = arith.cmpi slt, %102, %110 : vector<128x32xi32>
    %112 = arith.andi %106, %111 : vector<128x32xi1>
    %cst_44 = arith.constant 2.500000e-01 : f32
    %cst_45 = arith.constant 0.000000e+00 : f32
    %113 = vector.broadcast %cst_44 : f32 to vector<128x32xf32>
    %114 = vector.broadcast %cst_45 : f32 to vector<128x32xf32>
    %115 = arith.select %112, %113, %114 : vector<128x32xi1>, vector<128x32xf32>
    %cst_46 = arith.constant 0.000000e+00 : f32
    %116 = vector.broadcast %cst_46 : f32 to vector<16x512xf32>
    %c0_47 = arith.constant 0 : index
    %c0_48 = arith.constant 0 : index
    %117 = vector.load %arg16[%c0_47, %c0_48] : memref<16x512xf32, #tpu.memory_space<vmem>>, vector<16x512xf32>
    tpu.vector_store %arg16[%c0_47, %c0_48], %116 {strides = array<i32>} : memref<16x512xf32, #tpu.memory_space<vmem>>, vector<16x512xf32>,
    %118 = vector.extract_strided_slice %101 {offsets = [0, 0], sizes = [16, 128], strides = [1, 1]} : vector<16x1024xf32> to vector<16x128xf32>
    %cst_49 = arith.constant dense<0.000000e+00> : vector<16x32xf32>
    %119 = tpu.matmul %118, %115, %cst_49 {dimension_numbers = #tpu.dot_dimension_numbers<[1], [0], [0], [1], [0, 0, 1, 1], [], []>} : vector<16x128xf32>, vector<128x32xf32>, vector<16x32xf32> -> vector<16x32xf32>
    %c0_50 = arith.constant 0 : index
    %c128 = arith.constant 128 : index
    %120 = vector.load %arg16[%c0_50, %c128] : memref<16x512xf32, #tpu.memory_space<vmem>>, vector<16x32xf32>
    tpu.vector_store %arg16[%c0_50, %c128], %119 {strides = array<i32>} : memref<16x512xf32, #tpu.memory_space<vmem>>, vector<16x32xf32>,
    %121 = vector.extract_strided_slice %101 {offsets = [0, 128], sizes = [16, 128], strides = [1, 1]} : vector<16x1024xf32> to vector<16x128xf32>
    %cst_51 = arith.constant dense<0.000000e+00> : vector<16x32xf32>
    %122 = tpu.matmul %121, %115, %cst_51 {dimension_numbers = #tpu.dot_dimension_numbers<[1], [0], [0], [1], [0, 0, 1, 1], [], []>} : vector<16x128xf32>, vector<128x32xf32>, vector<16x32xf32> -> vector<16x32xf32>
    %c0_52 = arith.constant 0 : index
    %c160 = arith.constant 160 : index
    %123 = vector.load %arg16[%c0_52, %c160] : memref<16x512xf32, #tpu.memory_space<vmem>>, vector<16x32xf32>
    tpu.vector_store %arg16[%c0_52, %c160], %122 {strides = array<i32>} : memref<16x512xf32, #tpu.memory_space<vmem>>, vector<16x32xf32>,
    %124 = vector.extract_strided_slice %101 {offsets = [0, 256], sizes = [16, 128], strides = [1, 1]} : vector<16x1024xf32> to vector<16x128xf32>
    %cst_53 = arith.constant dense<0.000000e+00> : vector<16x32xf32>
    %125 = tpu.matmul %124, %115, %cst_53 {dimension_numbers = #tpu.dot_dimension_numbers<[1], [0], [0], [1], [0, 0, 1, 1], [], []>} : vector<16x128xf32>, vector<128x32xf32>, vector<16x32xf32> -> vector<16x32xf32>
    %c0_54 = arith.constant 0 : index
    %c192 = arith.constant 192 : index
    %126 = vector.load %arg16[%c0_54, %c192] : memref<16x512xf32, #tpu.memory_space<vmem>>, vector<16x32xf32>
    tpu.vector_store %arg16[%c0_54, %c192], %125 {strides = array<i32>} : memref<16x512xf32, #tpu.memory_space<vmem>>, vector<16x32xf32>,
    %127 = vector.extract_strided_slice %101 {offsets = [0, 384], sizes = [16, 128], strides = [1, 1]} : vector<16x1024xf32> to vector<16x128xf32>
    %cst_55 = arith.constant dense<0.000000e+00> : vector<16x32xf32>
    %128 = tpu.matmul %127, %115, %cst_55 {dimension_numbers = #tpu.dot_dimension_numbers<[1], [0], [0], [1], [0, 0, 1, 1], [], []>} : vector<16x128xf32>, vector<128x32xf32>, vector<16x32xf32> -> vector<16x32xf32>
    %c0_56 = arith.constant 0 : index
    %c224 = arith.constant 224 : index
    %129 = vector.load %arg16[%c0_56, %c224] : memref<16x512xf32, #tpu.memory_space<vmem>>, vector<16x32xf32>
    tpu.vector_store %arg16[%c0_56, %c224], %128 {strides = array<i32>} : memref<16x512xf32, #tpu.memory_space<vmem>>, vector<16x32xf32>,
    %130 = vector.extract_strided_slice %101 {offsets = [0, 512], sizes = [16, 128], strides = [1, 1]} : vector<16x1024xf32> to vector<16x128xf32>
    %cst_57 = arith.constant dense<0.000000e+00> : vector<16x32xf32>
    %131 = tpu.matmul %130, %115, %cst_57 {dimension_numbers = #tpu.dot_dimension_numbers<[1], [0], [0], [1], [0, 0, 1, 1], [], []>} : vector<16x128xf32>, vector<128x32xf32>, vector<16x32xf32> -> vector<16x32xf32>
    %c0_58 = arith.constant 0 : index
    %c256 = arith.constant 256 : index
    %132 = vector.load %arg16[%c0_58, %c256] : memref<16x512xf32, #tpu.memory_space<vmem>>, vector<16x32xf32>
    tpu.vector_store %arg16[%c0_58, %c256], %131 {strides = array<i32>} : memref<16x512xf32, #tpu.memory_space<vmem>>, vector<16x32xf32>,
    %133 = vector.extract_strided_slice %101 {offsets = [0, 640], sizes = [16, 128], strides = [1, 1]} : vector<16x1024xf32> to vector<16x128xf32>
    %cst_59 = arith.constant dense<0.000000e+00> : vector<16x32xf32>
    %134 = tpu.matmul %133, %115, %cst_59 {dimension_numbers = #tpu.dot_dimension_numbers<[1], [0], [0], [1], [0, 0, 1, 1], [], []>} : vector<16x128xf32>, vector<128x32xf32>, vector<16x32xf32> -> vector<16x32xf32>
    %c0_60 = arith.constant 0 : index
    %c288 = arith.constant 288 : index
    %135 = vector.load %arg16[%c0_60, %c288] : memref<16x512xf32, #tpu.memory_space<vmem>>, vector<16x32xf32>
    tpu.vector_store %arg16[%c0_60, %c288], %134 {strides = array<i32>} : memref<16x512xf32, #tpu.memory_space<vmem>>, vector<16x32xf32>,
    %136 = vector.extract_strided_slice %101 {offsets = [0, 768], sizes = [16, 128], strides = [1, 1]} : vector<16x1024xf32> to vector<16x128xf32>
    %cst_61 = arith.constant dense<0.000000e+00> : vector<16x32xf32>
    %137 = tpu.matmul %136, %115, %cst_61 {dimension_numbers = #tpu.dot_dimension_numbers<[1], [0], [0], [1], [0, 0, 1, 1], [], []>} : vector<16x128xf32>, vector<128x32xf32>, vector<16x32xf32> -> vector<16x32xf32>
    %c0_62 = arith.constant 0 : index
    %c320 = arith.constant 320 : index
    %138 = vector.load %arg16[%c0_62, %c320] : memref<16x512xf32, #tpu.memory_space<vmem>>, vector<16x32xf32>
    tpu.vector_store %arg16[%c0_62, %c320], %137 {strides = array<i32>} : memref<16x512xf32, #tpu.memory_space<vmem>>, vector<16x32xf32>,
    %139 = vector.extract_strided_slice %101 {offsets = [0, 896], sizes = [16, 128], strides = [1, 1]} : vector<16x1024xf32> to vector<16x128xf32>
    %cst_63 = arith.constant dense<0.000000e+00> : vector<16x32xf32>
    %140 = tpu.matmul %139, %115, %cst_63 {dimension_numbers = #tpu.dot_dimension_numbers<[1], [0], [0], [1], [0, 0, 1, 1], [], []>} : vector<16x128xf32>, vector<128x32xf32>, vector<16x32xf32> -> vector<16x32xf32>
    %c0_64 = arith.constant 0 : index
    %c352 = arith.constant 352 : index
    %141 = vector.load %arg16[%c0_64, %c352] : memref<16x512xf32, #tpu.memory_space<vmem>>, vector<16x32xf32>
    tpu.vector_store %arg16[%c0_64, %c352], %140 {strides = array<i32>} : memref<16x512xf32, #tpu.memory_space<vmem>>, vector<16x32xf32>,
    %c0_65 = arith.constant 0 : index
    %c0_66 = arith.constant 0 : index
    %142 = vector.load %arg16[%c0_65, %c0_66] : memref<16x512xf32, #tpu.memory_space<vmem>>, vector<16x512xf32>
    %c0_67 = arith.constant 0 : index
    %c0_68 = arith.constant 0 : index
    %c0_69 = arith.constant 0 : index
    %143 = vector.load %arg5[%c0_67, %c0_68, %c0_69] : memref<16x16x16xf32, #tpu.memory_space<vmem>>, vector<1x16x16xf32>
    %144 = vector.shape_cast %143 : vector<1x16x16xf32> to vector<16x16xf32>
    %145 = vector.extract_strided_slice %142 {offsets = [0, 121], sizes = [16, 256], strides = [1, 1]} : vector<16x512xf32> to vector<16x256xf32>
    %cst_70 = arith.constant dense<0.000000e+00> : vector<16x256xf32>
    %146 = tpu.matmul %144, %145, %cst_70 {dimension_numbers = #tpu.dot_dimension_numbers<[1], [0], [0], [1], [0, 0, 1, 1], [], []>} : vector<16x16xf32>, vector<16x256xf32>, vector<16x256xf32> -> vector<16x256xf32>
    %c1_71 = arith.constant 1 : index
    %c0_72 = arith.constant 0 : index
    %c0_73 = arith.constant 0 : index
    %147 = vector.load %arg5[%c1_71, %c0_72, %c0_73] : memref<16x16x16xf32, #tpu.memory_space<vmem>>, vector<1x16x16xf32>
    %148 = vector.shape_cast %147 : vector<1x16x16xf32> to vector<16x16xf32>
    %149 = vector.extract_strided_slice %142 {offsets = [0, 122], sizes = [16, 256], strides = [1, 1]} : vector<16x512xf32> to vector<16x256xf32>
    %cst_74 = arith.constant dense<0.000000e+00> : vector<16x256xf32>
    %150 = tpu.matmul %148, %149, %cst_74 {dimension_numbers = #tpu.dot_dimension_numbers<[1], [0], [0], [1], [0, 0, 1, 1], [], []>} : vector<16x16xf32>, vector<16x256xf32>, vector<16x256xf32> -> vector<16x256xf32>
    %151 = arith.addf %146, %150 : vector<16x256xf32>
    %c2_75 = arith.constant 2 : index
    %c0_76 = arith.constant 0 : index
    %c0_77 = arith.constant 0 : index
    %152 = vector.load %arg5[%c2_75, %c0_76, %c0_77] : memref<16x16x16xf32, #tpu.memory_space<vmem>>, vector<1x16x16xf32>
    %153 = vector.shape_cast %152 : vector<1x16x16xf32> to vector<16x16xf32>
    %154 = vector.extract_strided_slice %142 {offsets = [0, 123], sizes = [16, 256], strides = [1, 1]} : vector<16x512xf32> to vector<16x256xf32>
    %cst_78 = arith.constant dense<0.000000e+00> : vector<16x256xf32>
    %155 = tpu.matmul %153, %154, %cst_78 {dimension_numbers = #tpu.dot_dimension_numbers<[1], [0], [0], [1], [0, 0, 1, 1], [], []>} : vector<16x16xf32>, vector<16x256xf32>, vector<16x256xf32> -> vector<16x256xf32>
    %156 = arith.addf %151, %155 : vector<16x256xf32>
    %c3_79 = arith.constant 3 : index
    %c0_80 = arith.constant 0 : index
    %c0_81 = arith.constant 0 : index
    %157 = vector.load %arg5[%c3_79, %c0_80, %c0_81] : memref<16x16x16xf32, #tpu.memory_space<vmem>>, vector<1x16x16xf32>
    %158 = vector.shape_cast %157 : vector<1x16x16xf32> to vector<16x16xf32>
    %159 = vector.extract_strided_slice %142 {offsets = [0, 124], sizes = [16, 256], strides = [1, 1]} : vector<16x512xf32> to vector<16x256xf32>
    %cst_82 = arith.constant dense<0.000000e+00> : vector<16x256xf32>
    %160 = tpu.matmul %158, %159, %cst_82 {dimension_numbers = #tpu.dot_dimension_numbers<[1], [0], [0], [1], [0, 0, 1, 1], [], []>} : vector<16x16xf32>, vector<16x256xf32>, vector<16x256xf32> -> vector<16x256xf32>
    %161 = arith.addf %156, %160 : vector<16x256xf32>
    %c4_83 = arith.constant 4 : index
    %c0_84 = arith.constant 0 : index
    %c0_85 = arith.constant 0 : index
    %162 = vector.load %arg5[%c4_83, %c0_84, %c0_85] : memref<16x16x16xf32, #tpu.memory_space<vmem>>, vector<1x16x16xf32>
    %163 = vector.shape_cast %162 : vector<1x16x16xf32> to vector<16x16xf32>
    %164 = vector.extract_strided_slice %142 {offsets = [0, 125], sizes = [16, 256], strides = [1, 1]} : vector<16x512xf32> to vector<16x256xf32>
    %cst_86 = arith.constant dense<0.000000e+00> : vector<16x256xf32>
    %165 = tpu.matmul %163, %164, %cst_86 {dimension_numbers = #tpu.dot_dimension_numbers<[1], [0], [0], [1], [0, 0, 1, 1], [], []>} : vector<16x16xf32>, vector<16x256xf32>, vector<16x256xf32> -> vector<16x256xf32>
    %166 = arith.addf %161, %165 : vector<16x256xf32>
    %c5_87 = arith.constant 5 : index
    %c0_88 = arith.constant 0 : index
    %c0_89 = arith.constant 0 : index
    %167 = vector.load %arg5[%c5_87, %c0_88, %c0_89] : memref<16x16x16xf32, #tpu.memory_space<vmem>>, vector<1x16x16xf32>
    %168 = vector.shape_cast %167 : vector<1x16x16xf32> to vector<16x16xf32>
    %169 = vector.extract_strided_slice %142 {offsets = [0, 126], sizes = [16, 256], strides = [1, 1]} : vector<16x512xf32> to vector<16x256xf32>
    %cst_90 = arith.constant dense<0.000000e+00> : vector<16x256xf32>
    %170 = tpu.matmul %168, %169, %cst_90 {dimension_numbers = #tpu.dot_dimension_numbers<[1], [0], [0], [1], [0, 0, 1, 1], [], []>} : vector<16x16xf32>, vector<16x256xf32>, vector<16x256xf32> -> vector<16x256xf32>
    %171 = arith.addf %166, %170 : vector<16x256xf32>
    %c6_91 = arith.constant 6 : index
    %c0_92 = arith.constant 0 : index
    %c0_93 = arith.constant 0 : index
    %172 = vector.load %arg5[%c6_91, %c0_92, %c0_93] : memref<16x16x16xf32, #tpu.memory_space<vmem>>, vector<1x16x16xf32>
    %173 = vector.shape_cast %172 : vector<1x16x16xf32> to vector<16x16xf32>
    %174 = vector.extract_strided_slice %142 {offsets = [0, 127], sizes = [16, 256], strides = [1, 1]} : vector<16x512xf32> to vector<16x256xf32>
    %cst_94 = arith.constant dense<0.000000e+00> : vector<16x256xf32>
    %175 = tpu.matmul %173, %174, %cst_94 {dimension_numbers = #tpu.dot_dimension_numbers<[1], [0], [0], [1], [0, 0, 1, 1], [], []>} : vector<16x16xf32>, vector<16x256xf32>, vector<16x256xf32> -> vector<16x256xf32>
    %176 = arith.addf %171, %175 : vector<16x256xf32>
    %c7_95 = arith.constant 7 : index
    %c0_96 = arith.constant 0 : index
    %c0_97 = arith.constant 0 : index
    %177 = vector.load %arg5[%c7_95, %c0_96, %c0_97] : memref<16x16x16xf32, #tpu.memory_space<vmem>>, vector<1x16x16xf32>
    %178 = vector.shape_cast %177 : vector<1x16x16xf32> to vector<16x16xf32>
    %179 = vector.extract_strided_slice %142 {offsets = [0, 128], sizes = [16, 256], strides = [1, 1]} : vector<16x512xf32> to vector<16x256xf32>
    %cst_98 = arith.constant dense<0.000000e+00> : vector<16x256xf32>
    %180 = tpu.matmul %178, %179, %cst_98 {dimension_numbers = #tpu.dot_dimension_numbers<[1], [0], [0], [1], [0, 0, 1, 1], [], []>} : vector<16x16xf32>, vector<16x256xf32>, vector<16x256xf32> -> vector<16x256xf32>
    %181 = arith.addf %176, %180 : vector<16x256xf32>
    %c8_99 = arith.constant 8 : index
    %c0_100 = arith.constant 0 : index
    %c0_101 = arith.constant 0 : index
    %182 = vector.load %arg5[%c8_99, %c0_100, %c0_101] : memref<16x16x16xf32, #tpu.memory_space<vmem>>, vector<1x16x16xf32>
    %183 = vector.shape_cast %182 : vector<1x16x16xf32> to vector<16x16xf32>
    %184 = vector.extract_strided_slice %142 {offsets = [0, 129], sizes = [16, 256], strides = [1, 1]} : vector<16x512xf32> to vector<16x256xf32>
    %cst_102 = arith.constant dense<0.000000e+00> : vector<16x256xf32>
    %185 = tpu.matmul %183, %184, %cst_102 {dimension_numbers = #tpu.dot_dimension_numbers<[1], [0], [0], [1], [0, 0, 1, 1], [], []>} : vector<16x16xf32>, vector<16x256xf32>, vector<16x256xf32> -> vector<16x256xf32>
    %186 = arith.addf %181, %185 : vector<16x256xf32>
    %c9_103 = arith.constant 9 : index
    %c0_104 = arith.constant 0 : index
    %c0_105 = arith.constant 0 : index
    %187 = vector.load %arg5[%c9_103, %c0_104, %c0_105] : memref<16x16x16xf32, #tpu.memory_space<vmem>>, vector<1x16x16xf32>
    %188 = vector.shape_cast %187 : vector<1x16x16xf32> to vector<16x16xf32>
    %189 = vector.extract_strided_slice %142 {offsets = [0, 130], sizes = [16, 256], strides = [1, 1]} : vector<16x512xf32> to vector<16x256xf32>
    %cst_106 = arith.constant dense<0.000000e+00> : vector<16x256xf32>
    %190 = tpu.matmul %188, %189, %cst_106 {dimension_numbers = #tpu.dot_dimension_numbers<[1], [0], [0], [1], [0, 0, 1, 1], [], []>} : vector<16x16xf32>, vector<16x256xf32>, vector<16x256xf32> -> vector<16x256xf32>
    %191 = arith.addf %186, %190 : vector<16x256xf32>
    %c10_107 = arith.constant 10 : index
    %c0_108 = arith.constant 0 : index
    %c0_109 = arith.constant 0 : index
    %192 = vector.load %arg5[%c10_107, %c0_108, %c0_109] : memref<16x16x16xf32, #tpu.memory_space<vmem>>, vector<1x16x16xf32>
    %193 = vector.shape_cast %192 : vector<1x16x16xf32> to vector<16x16xf32>
    %194 = vector.extract_strided_slice %142 {offsets = [0, 131], sizes = [16, 256], strides = [1, 1]} : vector<16x512xf32> to vector<16x256xf32>
    %cst_110 = arith.constant dense<0.000000e+00> : vector<16x256xf32>
    %195 = tpu.matmul %193, %194, %cst_110 {dimension_numbers = #tpu.dot_dimension_numbers<[1], [0], [0], [1], [0, 0, 1, 1], [], []>} : vector<16x16xf32>, vector<16x256xf32>, vector<16x256xf32> -> vector<16x256xf32>
    %196 = arith.addf %191, %195 : vector<16x256xf32>
    %c11_111 = arith.constant 11 : index
    %c0_112 = arith.constant 0 : index
    %c0_113 = arith.constant 0 : index
    %197 = vector.load %arg5[%c11_111, %c0_112, %c0_113] : memref<16x16x16xf32, #tpu.memory_space<vmem>>, vector<1x16x16xf32>
    %198 = vector.shape_cast %197 : vector<1x16x16xf32> to vector<16x16xf32>
    %199 = vector.extract_strided_slice %142 {offsets = [0, 132], sizes = [16, 256], strides = [1, 1]} : vector<16x512xf32> to vector<16x256xf32>
    %cst_114 = arith.constant dense<0.000000e+00> : vector<16x256xf32>
    %200 = tpu.matmul %198, %199, %cst_114 {dimension_numbers = #tpu.dot_dimension_numbers<[1], [0], [0], [1], [0, 0, 1, 1], [], []>} : vector<16x16xf32>, vector<16x256xf32>, vector<16x256xf32> -> vector<16x256xf32>
    %201 = arith.addf %196, %200 : vector<16x256xf32>
    %c12_115 = arith.constant 12 : index
    %c0_116 = arith.constant 0 : index
    %c0_117 = arith.constant 0 : index
    %202 = vector.load %arg5[%c12_115, %c0_116, %c0_117] : memref<16x16x16xf32, #tpu.memory_space<vmem>>, vector<1x16x16xf32>
    %203 = vector.shape_cast %202 : vector<1x16x16xf32> to vector<16x16xf32>
    %204 = vector.extract_strided_slice %142 {offsets = [0, 133], sizes = [16, 256], strides = [1, 1]} : vector<16x512xf32> to vector<16x256xf32>
    %cst_118 = arith.constant dense<0.000000e+00> : vector<16x256xf32>
    %205 = tpu.matmul %203, %204, %cst_118 {dimension_numbers = #tpu.dot_dimension_numbers<[1], [0], [0], [1], [0, 0, 1, 1], [], []>} : vector<16x16xf32>, vector<16x256xf32>, vector<16x256xf32> -> vector<16x256xf32>
    %206 = arith.addf %201, %205 : vector<16x256xf32>
    %c13_119 = arith.constant 13 : index
    %c0_120 = arith.constant 0 : index
    %c0_121 = arith.constant 0 : index
    %207 = vector.load %arg5[%c13_119, %c0_120, %c0_121] : memref<16x16x16xf32, #tpu.memory_space<vmem>>, vector<1x16x16xf32>
    %208 = vector.shape_cast %207 : vector<1x16x16xf32> to vector<16x16xf32>
    %209 = vector.extract_strided_slice %142 {offsets = [0, 134], sizes = [16, 256], strides = [1, 1]} : vector<16x512xf32> to vector<16x256xf32>
    %cst_122 = arith.constant dense<0.000000e+00> : vector<16x256xf32>
    %210 = tpu.matmul %208, %209, %cst_122 {dimension_numbers = #tpu.dot_dimension_numbers<[1], [0], [0], [1], [0, 0, 1, 1], [], []>} : vector<16x16xf32>, vector<16x256xf32>, vector<16x256xf32> -> vector<16x256xf32>
    %211 = arith.addf %206, %210 : vector<16x256xf32>
    %c14_123 = arith.constant 14 : index
    %c0_124 = arith.constant 0 : index
    %c0_125 = arith.constant 0 : index
    %212 = vector.load %arg5[%c14_123, %c0_124, %c0_125] : memref<16x16x16xf32, #tpu.memory_space<vmem>>, vector<1x16x16xf32>
    %213 = vector.shape_cast %212 : vector<1x16x16xf32> to vector<16x16xf32>
    %214 = vector.extract_strided_slice %142 {offsets = [0, 135], sizes = [16, 256], strides = [1, 1]} : vector<16x512xf32> to vector<16x256xf32>
    %cst_126 = arith.constant dense<0.000000e+00> : vector<16x256xf32>
    %215 = tpu.matmul %213, %214, %cst_126 {dimension_numbers = #tpu.dot_dimension_numbers<[1], [0], [0], [1], [0, 0, 1, 1], [], []>} : vector<16x16xf32>, vector<16x256xf32>, vector<16x256xf32> -> vector<16x256xf32>
    %216 = arith.addf %211, %215 : vector<16x256xf32>
    %c15_127 = arith.constant 15 : index
    %c0_128 = arith.constant 0 : index
    %c0_129 = arith.constant 0 : index
    %217 = vector.load %arg5[%c15_127, %c0_128, %c0_129] : memref<16x16x16xf32, #tpu.memory_space<vmem>>, vector<1x16x16xf32>
    %218 = vector.shape_cast %217 : vector<1x16x16xf32> to vector<16x16xf32>
    %219 = vector.extract_strided_slice %142 {offsets = [0, 136], sizes = [16, 256], strides = [1, 1]} : vector<16x512xf32> to vector<16x256xf32>
    %cst_130 = arith.constant dense<0.000000e+00> : vector<16x256xf32>
    %220 = tpu.matmul %218, %219, %cst_130 {dimension_numbers = #tpu.dot_dimension_numbers<[1], [0], [0], [1], [0, 0, 1, 1], [], []>} : vector<16x16xf32>, vector<16x256xf32>, vector<16x256xf32> -> vector<16x256xf32>
    %221 = arith.addf %216, %220 : vector<16x256xf32>
    %c0_131 = arith.constant 0 : index
    %c0_132 = arith.constant 0 : index
    %222 = vector.load %arg6[%c0_131, %c0_132] : memref<16x1xf32, #tpu.memory_space<vmem>>, vector<16x1xf32>
    %223 = vector.broadcast %222 : vector<16x1xf32> to vector<16x256xf32>
    %224 = arith.addf %221, %223 : vector<16x256xf32>
    %cst_133 = arith.constant 0.000000e+00 : f32
    %225 = vector.broadcast %cst_133 : f32 to vector<16x256xf32>
    %226 = arith.cmpf ogt, %224, %225 : vector<16x256xf32>
    %cst_134 = arith.constant 0.000000e+00 : f32
    %227 = vector.broadcast %cst_134 : f32 to vector<16x256xf32>
    %228 = arith.minimumf %224, %227 : vector<16x256xf32>
    %229 = math.exp %228 : vector<16x256xf32>
    %cst_135 = arith.constant 1.000000e+00 : f32
    %230 = vector.broadcast %cst_135 : f32 to vector<16x256xf32>
    %231 = arith.subf %229, %230 : vector<16x256xf32>
    %232 = arith.select %226, %224, %231 : vector<16x256xi1>, vector<16x256xf32>
    %233 = tpu.iota {dimensions = array<i32: 0>} : vector<256x32xi32>
    %234 = tpu.iota {dimensions = array<i32: 1>} : vector<256x32xi32>
    %c8_i32 = arith.constant 8 : i32
    %235 = vector.broadcast %c8_i32 : i32 to vector<256x32xi32>
    %236 = arith.muli %234, %235 : vector<256x32xi32>
    %237 = arith.cmpi sge, %233, %236 : vector<256x32xi32>
    %c8_i32_136 = arith.constant 8 : i32
    %238 = vector.broadcast %c8_i32_136 : i32 to vector<256x32xi32>
    %239 = arith.muli %234, %238 : vector<256x32xi32>
    %c8_i32_137 = arith.constant 8 : i32
    %240 = vector.broadcast %c8_i32_137 : i32 to vector<256x32xi32>
    %241 = arith.addi %239, %240 : vector<256x32xi32>
    %242 = arith.cmpi slt, %233, %241 : vector<256x32xi32>
    %243 = arith.andi %237, %242 : vector<256x32xi1>
    %cst_138 = arith.constant 1.250000e-01 : f32
    %cst_139 = arith.constant 0.000000e+00 : f32
    %244 = vector.broadcast %cst_138 : f32 to vector<256x32xf32>
    %245 = vector.broadcast %cst_139 : f32 to vector<256x32xf32>
    %246 = arith.select %243, %244, %245 : vector<256x32xi1>, vector<256x32xf32>
    %cst_140 = arith.constant dense<0.000000e+00> : vector<16x32xf32>
    %247 = tpu.matmul %232, %246, %cst_140 {dimension_numbers = #tpu.dot_dimension_numbers<[1], [0], [0], [1], [0, 0, 1, 1], [], []>} : vector<16x256xf32>, vector<256x32xf32>, vector<16x32xf32> -> vector<16x32xf32>
    %cst_141 = arith.constant 0.000000e+00 : f32
    %248 = vector.broadcast %cst_141 : f32 to vector<16x256xf32>
    %c0_142 = arith.constant 0 : index
    %c0_143 = arith.constant 0 : index
    %249 = vector.load %arg17[%c0_142, %c0_143] : memref<16x256xf32, #tpu.memory_space<vmem>>, vector<16x256xf32>
    tpu.vector_store %arg17[%c0_142, %c0_143], %248 {strides = array<i32>} : memref<16x256xf32, #tpu.memory_space<vmem>>, vector<16x256xf32>,
    %c0_144 = arith.constant 0 : index
    %c128_145 = arith.constant 128 : index
    %250 = vector.load %arg17[%c0_144, %c128_145] : memref<16x256xf32, #tpu.memory_space<vmem>>, vector<16x32xf32>
    tpu.vector_store %arg17[%c0_144, %c128_145], %247 {strides = array<i32>} : memref<16x256xf32, #tpu.memory_space<vmem>>, vector<16x32xf32>,
    %c0_146 = arith.constant 0 : index
    %c0_147 = arith.constant 0 : index
    %251 = vector.load %arg17[%c0_146, %c0_147] : memref<16x256xf32, #tpu.memory_space<vmem>>, vector<16x256xf32>
    %c0_148 = arith.constant 0 : index
    %c0_149 = arith.constant 0 : index
    %c0_150 = arith.constant 0 : index
    %252 = vector.load %arg7[%c0_148, %c0_149, %c0_150] : memref<16x32x16xf32, #tpu.memory_space<vmem>>, vector<1x32x16xf32>
    %253 = vector.shape_cast %252 : vector<1x32x16xf32> to vector<32x16xf32>
    %254 = vector.extract_strided_slice %251 {offsets = [0, 121], sizes = [16, 32], strides = [1, 1]} : vector<16x256xf32> to vector<16x32xf32>
    %cst_151 = arith.constant dense<0.000000e+00> : vector<32x32xf32>
    %255 = tpu.matmul %253, %254, %cst_151 {dimension_numbers = #tpu.dot_dimension_numbers<[1], [0], [0], [1], [0, 0, 1, 1], [], []>} : vector<32x16xf32>, vector<16x32xf32>, vector<32x32xf32> -> vector<32x32xf32>
    %c1_152 = arith.constant 1 : index
    %c0_153 = arith.constant 0 : index
    %c0_154 = arith.constant 0 : index
    %256 = vector.load %arg7[%c1_152, %c0_153, %c0_154] : memref<16x32x16xf32, #tpu.memory_space<vmem>>, vector<1x32x16xf32>
    %257 = vector.shape_cast %256 : vector<1x32x16xf32> to vector<32x16xf32>
    %258 = vector.extract_strided_slice %251 {offsets = [0, 122], sizes = [16, 32], strides = [1, 1]} : vector<16x256xf32> to vector<16x32xf32>
    %cst_155 = arith.constant dense<0.000000e+00> : vector<32x32xf32>
    %259 = tpu.matmul %257, %258, %cst_155 {dimension_numbers = #tpu.dot_dimension_numbers<[1], [0], [0], [1], [0, 0, 1, 1], [], []>} : vector<32x16xf32>, vector<16x32xf32>, vector<32x32xf32> -> vector<32x32xf32>
    %260 = arith.addf %255, %259 : vector<32x32xf32>
    %c2_156 = arith.constant 2 : index
    %c0_157 = arith.constant 0 : index
    %c0_158 = arith.constant 0 : index
    %261 = vector.load %arg7[%c2_156, %c0_157, %c0_158] : memref<16x32x16xf32, #tpu.memory_space<vmem>>, vector<1x32x16xf32>
    %262 = vector.shape_cast %261 : vector<1x32x16xf32> to vector<32x16xf32>
    %263 = vector.extract_strided_slice %251 {offsets = [0, 123], sizes = [16, 32], strides = [1, 1]} : vector<16x256xf32> to vector<16x32xf32>
    %cst_159 = arith.constant dense<0.000000e+00> : vector<32x32xf32>
    %264 = tpu.matmul %262, %263, %cst_159 {dimension_numbers = #tpu.dot_dimension_numbers<[1], [0], [0], [1], [0, 0, 1, 1], [], []>} : vector<32x16xf32>, vector<16x32xf32>, vector<32x32xf32> -> vector<32x32xf32>
    %265 = arith.addf %260, %264 : vector<32x32xf32>
    %c3_160 = arith.constant 3 : index
    %c0_161 = arith.constant 0 : index
    %c0_162 = arith.constant 0 : index
    %266 = vector.load %arg7[%c3_160, %c0_161, %c0_162] : memref<16x32x16xf32, #tpu.memory_space<vmem>>, vector<1x32x16xf32>
    %267 = vector.shape_cast %266 : vector<1x32x16xf32> to vector<32x16xf32>
    %268 = vector.extract_strided_slice %251 {offsets = [0, 124], sizes = [16, 32], strides = [1, 1]} : vector<16x256xf32> to vector<16x32xf32>
    %cst_163 = arith.constant dense<0.000000e+00> : vector<32x32xf32>
    %269 = tpu.matmul %267, %268, %cst_163 {dimension_numbers = #tpu.dot_dimension_numbers<[1], [0], [0], [1], [0, 0, 1, 1], [], []>} : vector<32x16xf32>, vector<16x32xf32>, vector<32x32xf32> -> vector<32x32xf32>
    %270 = arith.addf %265, %269 : vector<32x32xf32>
    %c4_164 = arith.constant 4 : index
    %c0_165 = arith.constant 0 : index
    %c0_166 = arith.constant 0 : index
    %271 = vector.load %arg7[%c4_164, %c0_165, %c0_166] : memref<16x32x16xf32, #tpu.memory_space<vmem>>, vector<1x32x16xf32>
    %272 = vector.shape_cast %271 : vector<1x32x16xf32> to vector<32x16xf32>
    %273 = vector.extract_strided_slice %251 {offsets = [0, 125], sizes = [16, 32], strides = [1, 1]} : vector<16x256xf32> to vector<16x32xf32>
    %cst_167 = arith.constant dense<0.000000e+00> : vector<32x32xf32>
    %274 = tpu.matmul %272, %273, %cst_167 {dimension_numbers = #tpu.dot_dimension_numbers<[1], [0], [0], [1], [0, 0, 1, 1], [], []>} : vector<32x16xf32>, vector<16x32xf32>, vector<32x32xf32> -> vector<32x32xf32>
    %275 = arith.addf %270, %274 : vector<32x32xf32>
    %c5_168 = arith.constant 5 : index
    %c0_169 = arith.constant 0 : index
    %c0_170 = arith.constant 0 : index
    %276 = vector.load %arg7[%c5_168, %c0_169, %c0_170] : memref<16x32x16xf32, #tpu.memory_space<vmem>>, vector<1x32x16xf32>
    %277 = vector.shape_cast %276 : vector<1x32x16xf32> to vector<32x16xf32>
    %278 = vector.extract_strided_slice %251 {offsets = [0, 126], sizes = [16, 32], strides = [1, 1]} : vector<16x256xf32> to vector<16x32xf32>
    %cst_171 = arith.constant dense<0.000000e+00> : vector<32x32xf32>
    %279 = tpu.matmul %277, %278, %cst_171 {dimension_numbers = #tpu.dot_dimension_numbers<[1], [0], [0], [1], [0, 0, 1, 1], [], []>} : vector<32x16xf32>, vector<16x32xf32>, vector<32x32xf32> -> vector<32x32xf32>
    %280 = arith.addf %275, %279 : vector<32x32xf32>
    %c6_172 = arith.constant 6 : index
    %c0_173 = arith.constant 0 : index
    %c0_174 = arith.constant 0 : index
    %281 = vector.load %arg7[%c6_172, %c0_173, %c0_174] : memref<16x32x16xf32, #tpu.memory_space<vmem>>, vector<1x32x16xf32>
    %282 = vector.shape_cast %281 : vector<1x32x16xf32> to vector<32x16xf32>
    %283 = vector.extract_strided_slice %251 {offsets = [0, 127], sizes = [16, 32], strides = [1, 1]} : vector<16x256xf32> to vector<16x32xf32>
    %cst_175 = arith.constant dense<0.000000e+00> : vector<32x32xf32>
    %284 = tpu.matmul %282, %283, %cst_175 {dimension_numbers = #tpu.dot_dimension_numbers<[1], [0], [0], [1], [0, 0, 1, 1], [], []>} : vector<32x16xf32>, vector<16x32xf32>, vector<32x32xf32> -> vector<32x32xf32>
    %285 = arith.addf %280, %284 : vector<32x32xf32>
    %c7_176 = arith.constant 7 : index
    %c0_177 = arith.constant 0 : index
    %c0_178 = arith.constant 0 : index
    %286 = vector.load %arg7[%c7_176, %c0_177, %c0_178] : memref<16x32x16xf32, #tpu.memory_space<vmem>>, vector<1x32x16xf32>
    %287 = vector.shape_cast %286 : vector<1x32x16xf32> to vector<32x16xf32>
    %288 = vector.extract_strided_slice %251 {offsets = [0, 128], sizes = [16, 32], strides = [1, 1]} : vector<16x256xf32> to vector<16x32xf32>
    %cst_179 = arith.constant dense<0.000000e+00> : vector<32x32xf32>
    %289 = tpu.matmul %287, %288, %cst_179 {dimension_numbers = #tpu.dot_dimension_numbers<[1], [0], [0], [1], [0, 0, 1, 1], [], []>} : vector<32x16xf32>, vector<16x32xf32>, vector<32x32xf32> -> vector<32x32xf32>
    %290 = arith.addf %285, %289 : vector<32x32xf32>
    %c8_180 = arith.constant 8 : index
    %c0_181 = arith.constant 0 : index
    %c0_182 = arith.constant 0 : index
    %291 = vector.load %arg7[%c8_180, %c0_181, %c0_182] : memref<16x32x16xf32, #tpu.memory_space<vmem>>, vector<1x32x16xf32>
    %292 = vector.shape_cast %291 : vector<1x32x16xf32> to vector<32x16xf32>
    %293 = vector.extract_strided_slice %251 {offsets = [0, 129], sizes = [16, 32], strides = [1, 1]} : vector<16x256xf32> to vector<16x32xf32>
    %cst_183 = arith.constant dense<0.000000e+00> : vector<32x32xf32>
    %294 = tpu.matmul %292, %293, %cst_183 {dimension_numbers = #tpu.dot_dimension_numbers<[1], [0], [0], [1], [0, 0, 1, 1], [], []>} : vector<32x16xf32>, vector<16x32xf32>, vector<32x32xf32> -> vector<32x32xf32>
    %295 = arith.addf %290, %294 : vector<32x32xf32>
    %c9_184 = arith.constant 9 : index
    %c0_185 = arith.constant 0 : index
    %c0_186 = arith.constant 0 : index
    %296 = vector.load %arg7[%c9_184, %c0_185, %c0_186] : memref<16x32x16xf32, #tpu.memory_space<vmem>>, vector<1x32x16xf32>
    %297 = vector.shape_cast %296 : vector<1x32x16xf32> to vector<32x16xf32>
    %298 = vector.extract_strided_slice %251 {offsets = [0, 130], sizes = [16, 32], strides = [1, 1]} : vector<16x256xf32> to vector<16x32xf32>
    %cst_187 = arith.constant dense<0.000000e+00> : vector<32x32xf32>
    %299 = tpu.matmul %297, %298, %cst_187 {dimension_numbers = #tpu.dot_dimension_numbers<[1], [0], [0], [1], [0, 0, 1, 1], [], []>} : vector<32x16xf32>, vector<16x32xf32>, vector<32x32xf32> -> vector<32x32xf32>
    %300 = arith.addf %295, %299 : vector<32x32xf32>
    %c10_188 = arith.constant 10 : index
    %c0_189 = arith.constant 0 : index
    %c0_190 = arith.constant 0 : index
    %301 = vector.load %arg7[%c10_188, %c0_189, %c0_190] : memref<16x32x16xf32, #tpu.memory_space<vmem>>, vector<1x32x16xf32>
    %302 = vector.shape_cast %301 : vector<1x32x16xf32> to vector<32x16xf32>
    %303 = vector.extract_strided_slice %251 {offsets = [0, 131], sizes = [16, 32], strides = [1, 1]} : vector<16x256xf32> to vector<16x32xf32>
    %cst_191 = arith.constant dense<0.000000e+00> : vector<32x32xf32>
    %304 = tpu.matmul %302, %303, %cst_191 {dimension_numbers = #tpu.dot_dimension_numbers<[1], [0], [0], [1], [0, 0, 1, 1], [], []>} : vector<32x16xf32>, vector<16x32xf32>, vector<32x32xf32> -> vector<32x32xf32>
    %305 = arith.addf %300, %304 : vector<32x32xf32>
    %c11_192 = arith.constant 11 : index
    %c0_193 = arith.constant 0 : index
    %c0_194 = arith.constant 0 : index
    %306 = vector.load %arg7[%c11_192, %c0_193, %c0_194] : memref<16x32x16xf32, #tpu.memory_space<vmem>>, vector<1x32x16xf32>
    %307 = vector.shape_cast %306 : vector<1x32x16xf32> to vector<32x16xf32>
    %308 = vector.extract_strided_slice %251 {offsets = [0, 132], sizes = [16, 32], strides = [1, 1]} : vector<16x256xf32> to vector<16x32xf32>
    %cst_195 = arith.constant dense<0.000000e+00> : vector<32x32xf32>
    %309 = tpu.matmul %307, %308, %cst_195 {dimension_numbers = #tpu.dot_dimension_numbers<[1], [0], [0], [1], [0, 0, 1, 1], [], []>} : vector<32x16xf32>, vector<16x32xf32>, vector<32x32xf32> -> vector<32x32xf32>
    %310 = arith.addf %305, %309 : vector<32x32xf32>
    %c12_196 = arith.constant 12 : index
    %c0_197 = arith.constant 0 : index
    %c0_198 = arith.constant 0 : index
    %311 = vector.load %arg7[%c12_196, %c0_197, %c0_198] : memref<16x32x16xf32, #tpu.memory_space<vmem>>, vector<1x32x16xf32>
    %312 = vector.shape_cast %311 : vector<1x32x16xf32> to vector<32x16xf32>
    %313 = vector.extract_strided_slice %251 {offsets = [0, 133], sizes = [16, 32], strides = [1, 1]} : vector<16x256xf32> to vector<16x32xf32>
    %cst_199 = arith.constant dense<0.000000e+00> : vector<32x32xf32>
    %314 = tpu.matmul %312, %313, %cst_199 {dimension_numbers = #tpu.dot_dimension_numbers<[1], [0], [0], [1], [0, 0, 1, 1], [], []>} : vector<32x16xf32>, vector<16x32xf32>, vector<32x32xf32> -> vector<32x32xf32>
    %315 = arith.addf %310, %314 : vector<32x32xf32>
    %c13_200 = arith.constant 13 : index
    %c0_201 = arith.constant 0 : index
    %c0_202 = arith.constant 0 : index
    %316 = vector.load %arg7[%c13_200, %c0_201, %c0_202] : memref<16x32x16xf32, #tpu.memory_space<vmem>>, vector<1x32x16xf32>
    %317 = vector.shape_cast %316 : vector<1x32x16xf32> to vector<32x16xf32>
    %318 = vector.extract_strided_slice %251 {offsets = [0, 134], sizes = [16, 32], strides = [1, 1]} : vector<16x256xf32> to vector<16x32xf32>
    %cst_203 = arith.constant dense<0.000000e+00> : vector<32x32xf32>
    %319 = tpu.matmul %317, %318, %cst_203 {dimension_numbers = #tpu.dot_dimension_numbers<[1], [0], [0], [1], [0, 0, 1, 1], [], []>} : vector<32x16xf32>, vector<16x32xf32>, vector<32x32xf32> -> vector<32x32xf32>
    %320 = arith.addf %315, %319 : vector<32x32xf32>
    %c14_204 = arith.constant 14 : index
    %c0_205 = arith.constant 0 : index
    %c0_206 = arith.constant 0 : index
    %321 = vector.load %arg7[%c14_204, %c0_205, %c0_206] : memref<16x32x16xf32, #tpu.memory_space<vmem>>, vector<1x32x16xf32>
    %322 = vector.shape_cast %321 : vector<1x32x16xf32> to vector<32x16xf32>
    %323 = vector.extract_strided_slice %251 {offsets = [0, 135], sizes = [16, 32], strides = [1, 1]} : vector<16x256xf32> to vector<16x32xf32>
    %cst_207 = arith.constant dense<0.000000e+00> : vector<32x32xf32>
    %324 = tpu.matmul %322, %323, %cst_207 {dimension_numbers = #tpu.dot_dimension_numbers<[1], [0], [0], [1], [0, 0, 1, 1], [], []>} : vector<32x16xf32>, vector<16x32xf32>, vector<32x32xf32> -> vector<32x32xf32>
    %325 = arith.addf %320, %324 : vector<32x32xf32>
    %c15_208 = arith.constant 15 : index
    %c0_209 = arith.constant 0 : index
    %c0_210 = arith.constant 0 : index
    %326 = vector.load %arg7[%c15_208, %c0_209, %c0_210] : memref<16x32x16xf32, #tpu.memory_space<vmem>>, vector<1x32x16xf32>
    %327 = vector.shape_cast %326 : vector<1x32x16xf32> to vector<32x16xf32>
    %328 = vector.extract_strided_slice %251 {offsets = [0, 136], sizes = [16, 32], strides = [1, 1]} : vector<16x256xf32> to vector<16x32xf32>
    %cst_211 = arith.constant dense<0.000000e+00> : vector<32x32xf32>
    %329 = tpu.matmul %327, %328, %cst_211 {dimension_numbers = #tpu.dot_dimension_numbers<[1], [0], [0], [1], [0, 0, 1, 1], [], []>} : vector<32x16xf32>, vector<16x32xf32>, vector<32x32xf32> -> vector<32x32xf32>
    %330 = arith.addf %325, %329 : vector<32x32xf32>
    %c0_212 = arith.constant 0 : index
    %c0_213 = arith.constant 0 : index
    %331 = vector.load %arg8[%c0_212, %c0_213] : memref<32x1xf32, #tpu.memory_space<vmem>>, vector<32x1xf32>
    %332 = vector.broadcast %331 : vector<32x1xf32> to vector<32x32xf32>
    %333 = arith.addf %330, %332 : vector<32x32xf32>
    %cst_214 = arith.constant 0.000000e+00 : f32
    %334 = vector.broadcast %cst_214 : f32 to vector<32x32xf32>
    %335 = arith.cmpf ogt, %333, %334 : vector<32x32xf32>
    %cst_215 = arith.constant 0.000000e+00 : f32
    %336 = vector.broadcast %cst_215 : f32 to vector<32x32xf32>
    %337 = arith.minimumf %333, %336 : vector<32x32xf32>
    %338 = math.exp %337 : vector<32x32xf32>
    %cst_216 = arith.constant 1.000000e+00 : f32
    %339 = vector.broadcast %cst_216 : f32 to vector<32x32xf32>
    %340 = arith.subf %338, %339 : vector<32x32xf32>
    %341 = arith.select %335, %333, %340 : vector<32x32xi1>, vector<32x32xf32>
    %342 = tpu.iota {dimensions = array<i32: 0>} : vector<32x4xi32>
    %343 = tpu.iota {dimensions = array<i32: 1>} : vector<32x4xi32>
    %c8_i32_217 = arith.constant 8 : i32
    %344 = vector.broadcast %c8_i32_217 : i32 to vector<32x4xi32>
    %345 = arith.muli %343, %344 : vector<32x4xi32>
    %346 = arith.cmpi sge, %342, %345 : vector<32x4xi32>
    %c8_i32_218 = arith.constant 8 : i32
    %347 = vector.broadcast %c8_i32_218 : i32 to vector<32x4xi32>
    %348 = arith.muli %343, %347 : vector<32x4xi32>
    %c8_i32_219 = arith.constant 8 : i32
    %349 = vector.broadcast %c8_i32_219 : i32 to vector<32x4xi32>
    %350 = arith.addi %348, %349 : vector<32x4xi32>
    %351 = arith.cmpi slt, %342, %350 : vector<32x4xi32>
    %352 = arith.andi %346, %351 : vector<32x4xi1>
    %cst_220 = arith.constant 1.250000e-01 : f32
    %cst_221 = arith.constant 0.000000e+00 : f32
    %353 = vector.broadcast %cst_220 : f32 to vector<32x4xf32>
    %354 = vector.broadcast %cst_221 : f32 to vector<32x4xf32>
    %355 = arith.select %352, %353, %354 : vector<32x4xi1>, vector<32x4xf32>
    %cst_222 = arith.constant dense<0.000000e+00> : vector<32x4xf32>
    %356 = tpu.matmul %341, %355, %cst_222 {dimension_numbers = #tpu.dot_dimension_numbers<[1], [0], [0], [1], [0, 0, 1, 1], [], []>} : vector<32x32xf32>, vector<32x4xf32>, vector<32x4xf32> -> vector<32x4xf32>
    %357 = tpu.transpose %356, [1, 0] : vector<32x4xf32> -> vector<4x32xf32>
    %c0_223 = arith.constant 0 : index
    %c0_224 = arith.constant 0 : index
    %358 = vector.load %arg9[%c0_223, %c0_224] : memref<32x96xf32, #tpu.memory_space<vmem>>, vector<32x96xf32>
    %cst_225 = arith.constant dense<0.000000e+00> : vector<4x96xf32>
    %359 = tpu.matmul %357, %358, %cst_225 {dimension_numbers = #tpu.dot_dimension_numbers<[1], [0], [0], [1], [0, 0, 1, 1], [], []>} : vector<4x32xf32>, vector<32x96xf32>, vector<4x96xf32> -> vector<4x96xf32>
    %c0_226 = arith.constant 0 : index
    %c0_227 = arith.constant 0 : index
    %360 = vector.load %arg10[%c0_226, %c0_227] : memref<1x96xf32, #tpu.memory_space<vmem>>, vector<1x96xf32>
    %361 = vector.broadcast %360 : vector<1x96xf32> to vector<4x96xf32>
    %362 = arith.addf %359, %361 : vector<4x96xf32>
    %363 = vector.extract_strided_slice %362 {offsets = [0, 0], sizes = [4, 32], strides = [1, 1]} : vector<4x96xf32> to vector<4x32xf32>
    %364 = vector.extract_strided_slice %362 {offsets = [0, 32], sizes = [4, 32], strides = [1, 1]} : vector<4x96xf32> to vector<4x32xf32>
    %365 = vector.extract_strided_slice %362 {offsets = [0, 64], sizes = [4, 32], strides = [1, 1]} : vector<4x96xf32> to vector<4x32xf32>
    %366 = tpu.transpose %364, [1, 0] : vector<4x32xf32> -> vector<32x4xf32>
    %cst_228 = arith.constant dense<0.000000e+00> : vector<4x4xf32>
    %367 = tpu.matmul %363, %366, %cst_228 {dimension_numbers = #tpu.dot_dimension_numbers<[1], [0], [0], [1], [0, 0, 1, 1], [], []>} : vector<4x32xf32>, vector<32x4xf32>, vector<4x4xf32> -> vector<4x4xf32>
    %cst_229 = arith.constant 0.176776692 : f32
    %368 = vector.broadcast %cst_229 : f32 to vector<4x4xf32>
    %369 = arith.mulf %367, %368 : vector<4x4xf32>
    %cst_230 = arith.constant dense<0xFF800000> : vector<4xf32>
    %370 = vector.multi_reduction <maximumf>, %369, %cst_230 [1] : vector<4x4xf32> to vector<4xf32>
    %371 = vector.shape_cast %370 : vector<4xf32> to vector<4x1xf32>
    %372 = vector.broadcast %371 : vector<4x1xf32> to vector<4x4xf32>
    %373 = arith.subf %369, %372 : vector<4x4xf32>
    %374 = math.exp %373 : vector<4x4xf32>
    %cst_231 = arith.constant dense<0.000000e+00> : vector<4xf32>
    %375 = vector.multi_reduction <add>, %374, %cst_231 [1] : vector<4x4xf32> to vector<4xf32>
    %376 = vector.shape_cast %375 : vector<4xf32> to vector<4x1xf32>
    %377 = vector.broadcast %376 : vector<4x1xf32> to vector<4x4xf32>
    %378 = arith.divf %374, %377 : vector<4x4xf32>
    %cst_232 = arith.constant dense<0.000000e+00> : vector<4x32xf32>
    %379 = tpu.matmul %378, %365, %cst_232 {dimension_numbers = #tpu.dot_dimension_numbers<[1], [0], [0], [1], [0, 0, 1, 1], [], []>} : vector<4x4xf32>, vector<4x32xf32>, vector<4x32xf32> -> vector<4x32xf32>
    %c0_233 = arith.constant 0 : index
    %c0_234 = arith.constant 0 : index
    %380 = vector.load %arg12[%c0_233, %c0_234] : memref<1x128xf32, #tpu.memory_space<vmem>>, vector<1x128xf32>
    %381 = vector.extract_strided_slice %379 {offsets = [0, 0], sizes = [1, 32], strides = [1, 1]} : vector<4x32xf32> to vector<1x32xf32>
    %c0_235 = arith.constant 0 : index
    %c0_236 = arith.constant 0 : index
    %c0_237 = arith.constant 0 : index
    %382 = vector.load %arg11[%c0_235, %c0_236, %c0_237] : memref<4x32x128xf32, #tpu.memory_space<vmem>>, vector<1x32x128xf32>
    %383 = vector.shape_cast %382 : vector<1x32x128xf32> to vector<32x128xf32>
    %cst_238 = arith.constant dense<0.000000e+00> : vector<1x128xf32>
    %384 = tpu.matmul %381, %383, %cst_238 {dimension_numbers = #tpu.dot_dimension_numbers<[1], [0], [0], [1], [0, 0, 1, 1], [], []>} : vector<1x32xf32>, vector<32x128xf32>, vector<1x128xf32> -> vector<1x128xf32>
    %385 = arith.addf %380, %384 : vector<1x128xf32>
    %386 = vector.extract_strided_slice %379 {offsets = [1, 0], sizes = [1, 32], strides = [1, 1]} : vector<4x32xf32> to vector<1x32xf32>
    %c1_239 = arith.constant 1 : index
    %c0_240 = arith.constant 0 : index
    %c0_241 = arith.constant 0 : index
    %387 = vector.load %arg11[%c1_239, %c0_240, %c0_241] : memref<4x32x128xf32, #tpu.memory_space<vmem>>, vector<1x32x128xf32>
    %388 = vector.shape_cast %387 : vector<1x32x128xf32> to vector<32x128xf32>
    %cst_242 = arith.constant dense<0.000000e+00> : vector<1x128xf32>
    %389 = tpu.matmul %386, %388, %cst_242 {dimension_numbers = #tpu.dot_dimension_numbers<[1], [0], [0], [1], [0, 0, 1, 1], [], []>} : vector<1x32xf32>, vector<32x128xf32>, vector<1x128xf32> -> vector<1x128xf32>
    %390 = arith.addf %385, %389 : vector<1x128xf32>
    %391 = vector.extract_strided_slice %379 {offsets = [2, 0], sizes = [1, 32], strides = [1, 1]} : vector<4x32xf32> to vector<1x32xf32>
    %c2_243 = arith.constant 2 : index
    %c0_244 = arith.constant 0 : index
    %c0_245 = arith.constant 0 : index
    %392 = vector.load %arg11[%c2_243, %c0_244, %c0_245] : memref<4x32x128xf32, #tpu.memory_space<vmem>>, vector<1x32x128xf32>
    %393 = vector.shape_cast %392 : vector<1x32x128xf32> to vector<32x128xf32>
    %cst_246 = arith.constant dense<0.000000e+00> : vector<1x128xf32>
    %394 = tpu.matmul %391, %393, %cst_246 {dimension_numbers = #tpu.dot_dimension_numbers<[1], [0], [0], [1], [0, 0, 1, 1], [], []>} : vector<1x32xf32>, vector<32x128xf32>, vector<1x128xf32> -> vector<1x128xf32>
    %395 = arith.addf %390, %394 : vector<1x128xf32>
    %396 = vector.extract_strided_slice %379 {offsets = [3, 0], sizes = [1, 32], strides = [1, 1]} : vector<4x32xf32> to vector<1x32xf32>
    %c3_247 = arith.constant 3 : index
    %c0_248 = arith.constant 0 : index
    %c0_249 = arith.constant 0 : index
    %397 = vector.load %arg11[%c3_247, %c0_248, %c0_249] : memref<4x32x128xf32, #tpu.memory_space<vmem>>, vector<1x32x128xf32>
    %398 = vector.shape_cast %397 : vector<1x32x128xf32> to vector<32x128xf32>
    %cst_250 = arith.constant dense<0.000000e+00> : vector<1x128xf32>
    %399 = tpu.matmul %396, %398, %cst_250 {dimension_numbers = #tpu.dot_dimension_numbers<[1], [0], [0], [1], [0, 0, 1, 1], [], []>} : vector<1x32xf32>, vector<32x128xf32>, vector<1x128xf32> -> vector<1x128xf32>
    %400 = arith.addf %395, %399 : vector<1x128xf32>
    %c0_251 = arith.constant 0 : index
    %c0_252 = arith.constant 0 : index
    %401 = vector.load %arg13[%c0_251, %c0_252] : memref<128x4xf32, #tpu.memory_space<vmem>>, vector<128x4xf32>
    %cst_253 = arith.constant dense<0.000000e+00> : vector<1x4xf32>
    %402 = tpu.matmul %400, %401, %cst_253 {dimension_numbers = #tpu.dot_dimension_numbers<[1], [0], [0], [1], [0, 0, 1, 1], [], []>} : vector<1x128xf32>, vector<128x4xf32>, vector<1x4xf32> -> vector<1x4xf32>
    %c0_254 = arith.constant 0 : index
    %c0_255 = arith.constant 0 : index
    %403 = vector.load %arg14[%c0_254, %c0_255] : memref<1x4xf32, #tpu.memory_space<vmem>>, vector<1x4xf32>
    %404 = arith.addf %402, %403 : vector<1x4xf32>
    %cst_256 = arith.constant dense<0xFF800000> : vector<1xf32>
    %405 = vector.multi_reduction <maximumf>, %404, %cst_256 [1] : vector<1x4xf32> to vector<1xf32>
    %406 = vector.shape_cast %405 : vector<1xf32> to vector<1x1xf32>
    %407 = vector.broadcast %406 : vector<1x1xf32> to vector<1x4xf32>
    %408 = arith.subf %404, %407 : vector<1x4xf32>
    %409 = math.exp %408 : vector<1x4xf32>
    %cst_257 = arith.constant dense<0.000000e+00> : vector<1xf32>
    %410 = vector.multi_reduction <add>, %409, %cst_257 [1] : vector<1x4xf32> to vector<1xf32>
    %411 = vector.shape_cast %410 : vector<1xf32> to vector<1x1xf32>
    %412 = math.log %411 : vector<1x1xf32>
    %413 = arith.addf %412, %406 : vector<1x1xf32>
    %414 = vector.broadcast %413 : vector<1x1xf32> to vector<1x4xf32>
    %415 = arith.subf %404, %414 : vector<1x4xf32>
    %c0_258 = arith.constant 0 : index
    %c0_259 = arith.constant 0 : index
    %c0_260 = arith.constant 0 : index
    %416 = vector.load %arg15[%c0_258, %c0_259, %c0_260] : memref<1x1x4xf32, #tpu.memory_space<vmem>>, vector<1x1x4xf32>
    %417 = vector.shape_cast %416 : vector<1x1x4xf32> to vector<1x4xf32>
    %418 = vector.shape_cast %415 : vector<1x4xf32> to vector<1x1x4xf32>
    tpu.vector_store %arg15[%c0_258, %c0_259, %c0_260], %418 {strides = array<i32>} : memref<1x1x4xf32, #tpu.memory_space<vmem>>, vector<1x1x4xf32>,
    return
  }
  func.func @transform_0(%arg0: i32) -> (i32, i32, i32) {
    %c0_i32 = arith.constant 0 : i32
    %c0_i32_0 = arith.constant 0 : i32
    %c0_i32_1 = arith.constant 0 : i32
    return %arg0, %c0_i32, %c0_i32_0 : i32, i32, i32
  }
  func.func @transform_1(%arg0: i32) -> (i32, i32) {
    %c0_i32 = arith.constant 0 : i32
    %c0_i32_0 = arith.constant 0 : i32
    %c0_i32_1 = arith.constant 0 : i32
    return %c0_i32, %c0_i32_0 : i32, i32
  }
  func.func @transform_2(%arg0: i32) -> (i32, i32, i32) {
    %c0_i32 = arith.constant 0 : i32
    %c0_i32_0 = arith.constant 0 : i32
    %c0_i32_1 = arith.constant 0 : i32
    %c0_i32_2 = arith.constant 0 : i32
    return %c0_i32, %c0_i32_0, %c0_i32_1 : i32, i32, i32
  }
  func.func @transform_3(%arg0: i32) -> (i32, i32) {
    %c0_i32 = arith.constant 0 : i32
    %c0_i32_0 = arith.constant 0 : i32
    %c0_i32_1 = arith.constant 0 : i32
    return %c0_i32, %c0_i32_0 : i32, i32
  }
  func.func @transform_4(%arg0: i32) -> (i32, i32, i32) {
    %c0_i32 = arith.constant 0 : i32
    %c0_i32_0 = arith.constant 0 : i32
    %c0_i32_1 = arith.constant 0 : i32
    %c0_i32_2 = arith.constant 0 : i32
    return %c0_i32, %c0_i32_0, %c0_i32_1 : i32, i32, i32
  }
  func.func @transform_5(%arg0: i32) -> (i32, i32) {
    %c0_i32 = arith.constant 0 : i32
    %c0_i32_0 = arith.constant 0 : i32
    %c0_i32_1 = arith.constant 0 : i32
    return %c0_i32, %c0_i32_0 : i32, i32
  }
  func.func @transform_6(%arg0: i32) -> (i32, i32, i32) {
    %c0_i32 = arith.constant 0 : i32
    %c0_i32_0 = arith.constant 0 : i32
    %c0_i32_1 = arith.constant 0 : i32
    %c0_i32_2 = arith.constant 0 : i32
    return %c0_i32, %c0_i32_0, %c0_i32_1 : i32, i32, i32
  }
  func.func @transform_7(%arg0: i32) -> (i32, i32) {
    %c0_i32 = arith.constant 0 : i32
    %c0_i32_0 = arith.constant 0 : i32
    %c0_i32_1 = arith.constant 0 : i32
    return %c0_i32, %c0_i32_0 : i32, i32
  }
  func.func @transform_8(%arg0: i32) -> (i32, i32) {
    %c0_i32 = arith.constant 0 : i32
    %c0_i32_0 = arith.constant 0 : i32
    %c0_i32_1 = arith.constant 0 : i32
    return %c0_i32, %c0_i32_0 : i32, i32
  }
  func.func @transform_9(%arg0: i32) -> (i32, i32) {
    %c0_i32 = arith.constant 0 : i32
    %c0_i32_0 = arith.constant 0 : i32
    %c0_i32_1 = arith.constant 0 : i32
    return %c0_i32, %c0_i32_0 : i32, i32
  }
  func.func @transform_10(%arg0: i32) -> (i32, i32, i32) {
    %c0_i32 = arith.constant 0 : i32
    %c0_i32_0 = arith.constant 0 : i32
    %c0_i32_1 = arith.constant 0 : i32
    %c0_i32_2 = arith.constant 0 : i32
    return %c0_i32, %c0_i32_0, %c0_i32_1 : i32, i32, i32
  }
  func.func @transform_11(%arg0: i32) -> (i32, i32) {
    %c0_i32 = arith.constant 0 : i32
    %c0_i32_0 = arith.constant 0 : i32
    %c0_i32_1 = arith.constant 0 : i32
    return %c0_i32, %c0_i32_0 : i32, i32
  }
  func.func @transform_12(%arg0: i32) -> (i32, i32) {
    %c0_i32 = arith.constant 0 : i32
    %c0_i32_0 = arith.constant 0 : i32
    %c0_i32_1 = arith.constant 0 : i32
    return %c0_i32, %c0_i32_0 : i32, i32
  }
  func.func @transform_13(%arg0: i32) -> (i32, i32) {
    %c0_i32 = arith.constant 0 : i32
    %c0_i32_0 = arith.constant 0 : i32
    %c0_i32_1 = arith.constant 0 : i32
    return %c0_i32, %c0_i32_0 : i32, i32
  }
  func.func @transform_14(%arg0: i32) -> (i32, i32, i32) {
    %c0_i32 = arith.constant 0 : i32
    %c0_i32_0 = arith.constant 0 : i32
    %c0_i32_1 = arith.constant 0 : i32
    return %arg0, %c0_i32, %c0_i32_0 : i32, i32, i32
  }
}

</mosaic_0001>

<llo_original>
// kernel: eegnet_attention_deep_forward.1
$region0: #{eegnet_attention_deep_forward.1}
  #allocation0 [shape = 'u32[]', space=smem, size = 0x4, offset = 0x4, fixed_abs, tag = 'smem constant byte address 0x4 - core index']
  #allocation1 [shape = 'u32[144,128]{1,0:T(1,128)}', space=vmem, size = 0x12000, scoped, tag = 'internal scratch']
  #allocation2 [shape = 'f32[16,512]{1,0:T(8,128)}', space=vmem, size = 0x8000, scoped, tag = 'scratch operand']
  #allocation3 [shape = 'f32[16,256]{1,0:T(8,128)}', space=vmem, size = 0x4000, scoped, tag = 'scratch operand']
  %s0 = inlined_call_operand.vmem [shape: f32[2,8,1280], index: 0, kind: input, shape index: {}]
  %s1 = inlined_call_operand.vmem [shape: f32[16,8], index: 1, kind: input, shape index: {}]
  %s2 = inlined_call_operand.vmem [shape: f32[16,16,1], index: 2, kind: input, shape index: {}]
  %s3 = inlined_call_operand.vmem [shape: f32[16,1], index: 3, kind: input, shape index: {}]
  %s4 = inlined_call_operand.vmem [shape: f32[16,16,16], index: 4, kind: input, shape index: {}]
  %s5 = inlined_call_operand.vmem [shape: f32[16,1], index: 5, kind: input, shape index: {}]
  %s6 = inlined_call_operand.vmem [shape: f32[16,32,16], index: 6, kind: input, shape index: {}]
  %s7 = inlined_call_operand.vmem [shape: f32[32,1], index: 7, kind: input, shape index: {}]
  %s8 = inlined_call_operand.vmem [shape: f32[32,96], index: 8, kind: input, shape index: {}]
  %s9 = inlined_call_operand.vmem [shape: f32[1,96], index: 9, kind: input, shape index: {}]
  %s10 = inlined_call_operand.vmem [shape: f32[4,32,128], index: 10, kind: input, shape index: {}]
  %s11 = inlined_call_operand.vmem [shape: f32[1,128], index: 11, kind: input, shape index: {}]
  %s12 = inlined_call_operand.vmem [shape: f32[128,4], index: 12, kind: input, shape index: {}]
  %s13 = inlined_call_operand.vmem [shape: f32[1,4], index: 13, kind: input, shape index: {}]
  %s14 = inlined_call_operand.hbm [shape: f32[2,1,4], index: 14, kind: output, shape index: {}]
  %s15 = sld [smem:[#allocation0]]
  $region89: #{eegnet_attention_deep_forward.1} parent=0
    _
  %s17 = ssub.s32 1, %s15
  %s18 = scalar_select 0, %s17, %s15
  $region1: #{eegnet_attention_deep_forward.1} parent=0
    #allocation4 [shape = 'u8[1024]{0}', space=vmem, size = 0x400, scoped, tag = 'output window, operand 0']
    #allocation5 [shape = 's32[2]{0}', space=sflag, size = 0x8, scoped, tag = 'scoped memory for eegnet_attention_deep_forward.1']
    %19 = vsyncpa [#allocation5], 0
    %s20 = scalar_lea.sflag [#allocation5], 1
    %21 = vsyncpa %s20, 0
    loop: start=0, step=1, limit=4
    $region2: #{eegnet_attention_deep_forward.1} parent=1 // loop_pre_header
      _
    $region3: #{eegnet_attention_deep_forward.1} parent=1 // loop_header
      %s23 = sphi 0, %s27
      %p24 = scmp.ge.s32.totalorder %s23, 4
      %s33 = sphi 0, %s35
      %s36 = sphi 0, %s33
      %s37 = sphi 0, %s36
      %s53 = sphi 0, %s37
      %s57 = sphi 0, %s57
      %s59 = sphi 0, %s57
      %s60 = sphi 0, %s59
      %s74 = sphi 0, %s60
      %s78 = sphi 0, %s78
      %s80 = sphi 0, %s78
      %s81 = sphi 0, %s80
      %s95 = sphi 0, %s81
      %s99 = sphi 0, %s99
      %s101 = sphi 0, %s99
      %s102 = sphi 0, %s101
      %s116 = sphi 0, %s102
      %s120 = sphi 0, %s120
      %s122 = sphi 0, %s120
      %s123 = sphi 0, %s122
      %s137 = sphi 0, %s123
      %s141 = sphi 0, %s141
      %s143 = sphi 0, %s141
      %s144 = sphi 0, %s143
      %s158 = sphi 0, %s144
      %s162 = sphi 0, %s162
      %s164 = sphi 0, %s162
      %s165 = sphi 0, %s164
      %s179 = sphi 0, %s165
      %s183 = sphi 0, %s183
      %s185 = sphi 0, %s183
      %s186 = sphi 0, %s185
      %s200 = sphi 0, %s186
      %s204 = sphi 0, %s204
      %s206 = sphi 0, %s204
      %s207 = sphi 0, %s206
      %s221 = sphi 0, %s207
      %s225 = sphi 0, %s225
      %s227 = sphi 0, %s225
      %s228 = sphi 0, %s227
      %s242 = sphi 0, %s228
      %s246 = sphi 0, %s246
      %s248 = sphi 0, %s246
      %s249 = sphi 0, %s248
      %s263 = sphi 0, %s249
      %s267 = sphi 0, %s267
      %s269 = sphi 0, %s267
      %s270 = sphi 0, %s269
      %s284 = sphi 0, %s270
      %s288 = sphi 0, %s288
      %s290 = sphi 0, %s288
      %s291 = sphi 0, %s290
      %s305 = sphi 0, %s291
      %s309 = sphi 0, %s309
      %s311 = sphi 0, %s309
      %s312 = sphi 0, %s311
      %s326 = sphi 0, %s312
      %s332 = sphi 0, %s334
      %s335 = sphi 0, %s332
      %s336 = sphi 0, %s335
      %s352 = sphi 0, %s336
    $region4: #{eegnet_attention_deep_forward.1} parent=1 // loop_header_branch
      %26 = sbr.rel (%p24) target = $region8
    $region5: #{eegnet_attention_deep_forward.1} parent=1 // loop_body
      %s28 = ssub.s32 %s23, 1
      %s29 = ssub.s32 %s23, 2
      %s30 = sadd.s32 %s23, 1
      %s31 = ssub.s32 %s23, %s30
      %p32 = scmp.eq.s32.totalorder %s31, 0
      %s34 = sadd.s32 %s33, 1
      %s35 = scalar_select %p32, %s33, %s34
      %p38 = pneg %p32
      %p39 = scmp.eq.s32.totalorder %s23, 1
      %p40 = por %p38, %p39
      %p41 = scmp.ne.s32.totalorder %s33, %s36
      %p42 = scmp.eq.s32.totalorder %s23, 0
      %p43 = por %p41, %p42
      %p44 = scmp.ne.s32.totalorder %s33, %s36
      %p45 = scmp.eq.s32.totalorder %s28, 1
      %p46 = por %p44, %p45
      %p47 = scmp.ne.s32.totalorder %s36, %s37
      %p48 = scmp.eq.s32.totalorder %s28, 0
      %p49 = por %p47, %p48
      %p50 = scmp.ne.s32.totalorder %s36, %s37
      %p51 = scmp.eq.s32.totalorder %s29, 1
      %p52 = por %p50, %p51
      %p54 = scmp.ne.s32.totalorder %s37, %s53
      %p55 = scmp.eq.s32.totalorder %s29, 0
      %p56 = por %p54, %p55
      %s58 = sadd.s32 %s57, 1
      %p61 = scmp.eq.s32.totalorder %s23, 1
      %p62 = scmp.ne.s32.totalorder %s57, %s59
      %p63 = scmp.eq.s32.totalorder %s23, 0
      %p64 = por %p62, %p63
      %p65 = scmp.ne.s32.totalorder %s57, %s59
      %p66 = scmp.eq.s32.totalorder %s28, 1
      %p67 = por %p65, %p66
      %p68 = scmp.ne.s32.totalorder %s59, %s60
      %p69 = scmp.eq.s32.totalorder %s28, 0
      %p70 = por %p68, %p69
      %p71 = scmp.ne.s32.totalorder %s59, %s60
      %p72 = scmp.eq.s32.totalorder %s29, 1
      %p73 = por %p71, %p72
      %p75 = scmp.ne.s32.totalorder %s60, %s74
      %p76 = scmp.eq.s32.totalorder %s29, 0
      %p77 = por %p75, %p76
      %s79 = sadd.s32 %s78, 1
      %p82 = scmp.eq.s32.totalorder %s23, 1
      %p83 = scmp.ne.s32.totalorder %s78, %s80
      %p84 = scmp.eq.s32.totalorder %s23, 0
      %p85 = por %p83, %p84
      %p86 = scmp.ne.s32.totalorder %s78, %s80
      %p87 = scmp.eq.s32.totalorder %s28, 1
      %p88 = por %p86, %p87
      %p89 = scmp.ne.s32.totalorder %s80, %s81
      %p90 = scmp.eq.s32.totalorder %s28, 0
      %p91 = por %p89, %p90
      %p92 = scmp.ne.s32.totalorder %s80, %s81
      %p93 = scmp.eq.s32.totalorder %s29, 1
      %p94 = por %p92, %p93
      %p96 = scmp.ne.s32.totalorder %s81, %s95
      %p97 = scmp.eq.s32.totalorder %s29, 0
      %p98 = por %p96, %p97
      %s100 = sadd.s32 %s99, 1
      %p103 = scmp.eq.s32.totalorder %s23, 1
      %p104 = scmp.ne.s32.totalorder %s99, %s101
      %p105 = scmp.eq.s32.totalorder %s23, 0
      %p106 = por %p104, %p105
      %p107 = scmp.ne.s32.totalorder %s99, %s101
      %p108 = scmp.eq.s32.totalorder %s28, 1
      %p109 = por %p107, %p108
      %p110 = scmp.ne.s32.totalorder %s101, %s102
      %p111 = scmp.eq.s32.totalorder %s28, 0
      %p112 = por %p110, %p111
      %p113 = scmp.ne.s32.totalorder %s101, %s102
      %p114 = scmp.eq.s32.totalorder %s29, 1
      %p115 = por %p113, %p114
      %p117 = scmp.ne.s32.totalorder %s102, %s116
      %p118 = scmp.eq.s32.totalorder %s29, 0
      %p119 = por %p117, %p118
      %s121 = sadd.s32 %s120, 1
      %p124 = scmp.eq.s32.totalorder %s23, 1
      %p125 = scmp.ne.s32.totalorder %s120, %s122
      %p126 = scmp.eq.s32.totalorder %s23, 0
      %p127 = por %p125, %p126
      %p128 = scmp.ne.s32.totalorder %s120, %s122
      %p129 = scmp.eq.s32.totalorder %s28, 1
      %p130 = por %p128, %p129
      %p131 = scmp.ne.s32.totalorder %s122, %s123
      %p132 = scmp.eq.s32.totalorder %s28, 0
      %p133 = por %p131, %p132
      %p134 = scmp.ne.s32.totalorder %s122, %s123
      %p135 = scmp.eq.s32.totalorder %s29, 1
      %p136 = por %p134, %p135
      %p138 = scmp.ne.s32.totalorder %s123, %s137
      %p139 = scmp.eq.s32.totalorder %s29, 0
      %p140 = por %p138, %p139
      %s142 = sadd.s32 %s141, 1
      %p145 = scmp.eq.s32.totalorder %s23, 1
      %p146 = scmp.ne.s32.totalorder %s141, %s143
      %p147 = scmp.eq.s32.totalorder %s23, 0
      %p148 = por %p146, %p147
      %p149 = scmp.ne.s32.totalorder %s141, %s143
      %p150 = scmp.eq.s32.totalorder %s28, 1
      %p151 = por %p149, %p150
      %p152 = scmp.ne.s32.totalorder %s143, %s144
      %p153 = scmp.eq.s32.totalorder %s28, 0
      %p154 = por %p152, %p153
      %p155 = scmp.ne.s32.totalorder %s143, %s144
      %p156 = scmp.eq.s32.totalorder %s29, 1
      %p157 = por %p155, %p156
      %p159 = scmp.ne.s32.totalorder %s144, %s158
      %p160 = scmp.eq.s32.totalorder %s29, 0
      %p161 = por %p159, %p160
      %s163 = sadd.s32 %s162, 1
      %p166 = scmp.eq.s32.totalorder %s23, 1
      %p167 = scmp.ne.s32.totalorder %s162, %s164
      %p168 = scmp.eq.s32.totalorder %s23, 0
      %p169 = por %p167, %p168
      %p170 = scmp.ne.s32.totalorder %s162, %s164
      %p171 = scmp.eq.s32.totalorder %s28, 1
      %p172 = por %p170, %p171
      %p173 = scmp.ne.s32.totalorder %s164, %s165
      %p174 = scmp.eq.s32.totalorder %s28, 0
      %p175 = por %p173, %p174
      %p176 = scmp.ne.s32.totalorder %s164, %s165
      %p177 = scmp.eq.s32.totalorder %s29, 1
      %p178 = por %p176, %p177
      %p180 = scmp.ne.s32.totalorder %s165, %s179
      %p181 = scmp.eq.s32.totalorder %s29, 0
      %p182 = por %p180, %p181
      %s184 = sadd.s32 %s183, 1
      %p187 = scmp.eq.s32.totalorder %s23, 1
      %p188 = scmp.ne.s32.totalorder %s183, %s185
      %p189 = scmp.eq.s32.totalorder %s23, 0
      %p190 = por %p188, %p189
      %p191 = scmp.ne.s32.totalorder %s183, %s185
      %p192 = scmp.eq.s32.totalorder %s28, 1
      %p193 = por %p191, %p192
      %p194 = scmp.ne.s32.totalorder %s185, %s186
      %p195 = scmp.eq.s32.totalorder %s28, 0
      %p196 = por %p194, %p195
      %p197 = scmp.ne.s32.totalorder %s185, %s186
      %p198 = scmp.eq.s32.totalorder %s29, 1
      %p199 = por %p197, %p198
      %p201 = scmp.ne.s32.totalorder %s186, %s200
      %p202 = scmp.eq.s32.totalorder %s29, 0
      %p203 = por %p201, %p202
      %s205 = sadd.s32 %s204, 1
      %p208 = scmp.eq.s32.totalorder %s23, 1
      %p209 = scmp.ne.s32.totalorder %s204, %s206
      %p210 = scmp.eq.s32.totalorder %s23, 0
      %p211 = por %p209, %p210
      %p212 = scmp.ne.s32.totalorder %s204, %s206
      %p213 = scmp.eq.s32.totalorder %s28, 1
      %p214 = por %p212, %p213
      %p215 = scmp.ne.s32.totalorder %s206, %s207
      %p216 = scmp.eq.s32.totalorder %s28, 0
      %p217 = por %p215, %p216
      %p218 = scmp.ne.s32.totalorder %s206, %s207
      %p219 = scmp.eq.s32.totalorder %s29, 1
      %p220 = por %p218, %p219
      %p222 = scmp.ne.s32.totalorder %s207, %s221
      %p223 = scmp.eq.s32.totalorder %s29, 0
      %p224 = por %p222, %p223
      %s226 = sadd.s32 %s225, 1
      %p229 = scmp.eq.s32.totalorder %s23, 1
      %p230 = scmp.ne.s32.totalorder %s225, %s227
      %p231 = scmp.eq.s32.totalorder %s23, 0
      %p232 = por %p230, %p231
      %p233 = scmp.ne.s32.totalorder %s225, %s227
      %p234 = scmp.eq.s32.totalorder %s28, 1
      %p235 = por %p233, %p234
      %p236 = scmp.ne.s32.totalorder %s227, %s228
      %p237 = scmp.eq.s32.totalorder %s28, 0
      %p238 = por %p236, %p237
      %p239 = scmp.ne.s32.totalorder %s227, %s228
      %p240 = scmp.eq.s32.totalorder %s29, 1
      %p241 = por %p239, %p240
      %p243 = scmp.ne.s32.totalorder %s228, %s242
      %p244 = scmp.eq.s32.totalorder %s29, 0
      %p245 = por %p243, %p244
      %s247 = sadd.s32 %s246, 1
      %p250 = scmp.eq.s32.totalorder %s23, 1
      %p251 = scmp.ne.s32.totalorder %s246, %s248
      %p252 = scmp.eq.s32.totalorder %s23, 0
      %p253 = por %p251, %p252
      %p254 = scmp.ne.s32.totalorder %s246, %s248
      %p255 = scmp.eq.s32.totalorder %s28, 1
      %p256 = por %p254, %p255
      %p257 = scmp.ne.s32.totalorder %s248, %s249
      %p258 = scmp.eq.s32.totalorder %s28, 0
      %p259 = por %p257, %p258
      %p260 = scmp.ne.s32.totalorder %s248, %s249
      %p261 = scmp.eq.s32.totalorder %s29, 1
      %p262 = por %p260, %p261
      %p264 = scmp.ne.s32.totalorder %s249, %s263
      %p265 = scmp.eq.s32.totalorder %s29, 0
      %p266 = por %p264, %p265
      %s268 = sadd.s32 %s267, 1
      %p271 = scmp.eq.s32.totalorder %s23, 1
      %p272 = scmp.ne.s32.totalorder %s267, %s269
      %p273 = scmp.eq.s32.totalorder %s23, 0
      %p274 = por %p272, %p273
      %p275 = scmp.ne.s32.totalorder %s267, %s269
      %p276 = scmp.eq.s32.totalorder %s28, 1
      %p277 = por %p275, %p276
      %p278 = scmp.ne.s32.totalorder %s269, %s270
      %p279 = scmp.eq.s32.totalorder %s28, 0
      %p280 = por %p278, %p279
      %p281 = scmp.ne.s32.totalorder %s269, %s270
      %p282 = scmp.eq.s32.totalorder %s29, 1
      %p283 = por %p281, %p282
      %p285 = scmp.ne.s32.totalorder %s270, %s284
      %p286 = scmp.eq.s32.totalorder %s29, 0
      %p287 = por %p285, %p286
      %s289 = sadd.s32 %s288, 1
      %p292 = scmp.eq.s32.totalorder %s23, 1
      %p293 = scmp.ne.s32.totalorder %s288, %s290
      %p294 = scmp.eq.s32.totalorder %s23, 0
      %p295 = por %p293, %p294
      %p296 = scmp.ne.s32.totalorder %s288, %s290
      %p297 = scmp.eq.s32.totalorder %s28, 1
      %p298 = por %p296, %p297
      %p299 = scmp.ne.s32.totalorder %s290, %s291
      %p300 = scmp.eq.s32.totalorder %s28, 0
      %p301 = por %p299, %p300
      %p302 = scmp.ne.s32.totalorder %s290, %s291
      %p303 = scmp.eq.s32.totalorder %s29, 1
      %p304 = por %p302, %p303
      %p306 = scmp.ne.s32.totalorder %s291, %s305
      %p307 = scmp.eq.s32.totalorder %s29, 0
      %p308 = por %p306, %p307
      %s310 = sadd.s32 %s309, 1
      %p313 = scmp.eq.s32.totalorder %s23, 1
      %p314 = scmp.ne.s32.totalorder %s309, %s311
      %p315 = scmp.eq.s32.totalorder %s23, 0
      %p316 = por %p314, %p315
      %p317 = scmp.ne.s32.totalorder %s309, %s311
      %p318 = scmp.eq.s32.totalorder %s28, 1
      %p319 = por %p317, %p318
      %p320 = scmp.ne.s32.totalorder %s311, %s312
      %p321 = scmp.eq.s32.totalorder %s28, 0
      %p322 = por %p320, %p321
      %p323 = scmp.ne.s32.totalorder %s311, %s312
      %p324 = scmp.eq.s32.totalorder %s29, 1
      %p325 = por %p323, %p324
      %p327 = scmp.ne.s32.totalorder %s312, %s326
      %p328 = scmp.eq.s32.totalorder %s29, 0
      %p329 = por %p327, %p328
      %s330 = ssub.s32 %s23, %s30
      %p331 = scmp.eq.s32.totalorder %s330, 0
      %s333 = sadd.s32 %s332, 1
      %s334 = scalar_select %p331, %s332, %s333
      %p337 = pneg %p331
      %p338 = scmp.eq.s32.totalorder %s23, 1
      %p339 = por %p337, %p338
      %p340 = scmp.ne.s32.totalorder %s332, %s335
      %p341 = scmp.eq.s32.totalorder %s23, 0
      %p342 = por %p340, %p341
      %p343 = scmp.ne.s32.totalorder %s332, %s335
      %p344 = scmp.eq.s32.totalorder %s28, 1
      %p345 = por %p343, %p344
      %p346 = scmp.ne.s32.totalorder %s335, %s336
      %p347 = scmp.eq.s32.totalorder %s28, 0
      %p348 = por %p346, %p347
      %p349 = scmp.ne.s32.totalorder %s335, %s336
      %p350 = scmp.eq.s32.totalorder %s29, 1
      %p351 = por %p349, %p350
      %p353 = scmp.ne.s32.totalorder %s336, %s352
      %p354 = scmp.eq.s32.totalorder %s29, 0
      %p355 = por %p353, %p354
      %p356 = scmp.le.s32.totalorder 1, %s23
      %p357 = scmp.lt.s32.totalorder %s23, 3
      %p358 = pnand %p356, %p357
      %p359 = pneg %p358
      // Predicated region
      $region9: #{eegnet_attention_deep_forward.1} parent=5 // pred_check
        _
      $region10: #{eegnet_attention_deep_forward.1} parent=5 // pred_check_branch
        %361 = sbr.rel (%p358) target = $region12
      $region11: #{eegnet_attention_deep_forward.1} parent=5 // pred_region
        %s362 = ssub.s32 %s23, 1
        // Predicated region
        $region13: #{eegnet_attention_deep_forward.1} parent=11 // pred_check
          %p363 = pneg %p70
        $region14: #{eegnet_attention_deep_forward.1} parent=11 // pred_check_branch
          %365 = sbr.rel (%p363) target = $region16
        $region15: #{eegnet_attention_deep_forward.1} parent=11 // pred_region
          _
        $region16: #{eegnet_attention_deep_forward.1} parent=11 // pred_fallthru
          _
        // Predicated region
        $region17: #{eegnet_attention_deep_forward.1} parent=11 // pred_check
          %p366 = pneg %p91
        $region18: #{eegnet_attention_deep_forward.1} parent=11 // pred_check_branch
          %368 = sbr.rel (%p366) target = $region20
        $region19: #{eegnet_attention_deep_forward.1} parent=11 // pred_region
          _
        $region20: #{eegnet_attention_deep_forward.1} parent=11 // pred_fallthru
          _
        // Predicated region
        $region21: #{eegnet_attention_deep_forward.1} parent=11 // pred_check
          %p369 = pneg %p112
        $region22: #{eegnet_attention_deep_forward.1} parent=11 // pred_check_branch
          %371 = sbr.rel (%p369) target = $region24
        $region23: #{eegnet_attention_deep_forward.1} parent=11 // pred_region
          _
        $region24: #{eegnet_attention_deep_forward.1} parent=11 // pred_fallthru
          _
        // Predicated region
        $region25: #{eegnet_attention_deep_forward.1} parent=11 // pred_check
          %p372 = pneg %p133
        $region26: #{eegnet_attention_deep_forward.1} parent=11 // pred_check_branch
          %374 = sbr.rel (%p372) target = $region28
        $region27: #{eegnet_attention_deep_forward.1} parent=11 // pred_region
          _
        $region28: #{eegnet_attention_deep_forward.1} parent=11 // pred_fallthru
          _
        // Predicated region
        $region29: #{eegnet_attention_deep_forward.1} parent=11 // pred_check
          %p375 = pneg %p154
        $region30: #{eegnet_attention_deep_forward.1} parent=11 // pred_check_branch
          %377 = sbr.rel (%p375) target = $region32
        $region31: #{eegnet_attention_deep_forward.1} parent=11 // pred_region
          _
        $region32: #{eegnet_attention_deep_forward.1} parent=11 // pred_fallthru
          _
        // Predicated region
        $region33: #{eegnet_attention_deep_forward.1} parent=11 // pred_check
          %p378 = pneg %p175
        $region34: #{eegnet_attention_deep_forward.1} parent=11 // pred_check_branch
          %380 = sbr.rel (%p378) target = $region36
        $region35: #{eegnet_attention_deep_forward.1} parent=11 // pred_region
          _
        $region36: #{eegnet_attention_deep_forward.1} parent=11 // pred_fallthru
          _
        // Predicated region
        $region37: #{eegnet_attention_deep_forward.1} parent=11 // pred_check
          %p381 = pneg %p196
        $region38: #{eegnet_attention_deep_forward.1} parent=11 // pred_check_branch
          %383 = sbr.rel (%p381) target = $region40
        $region39: #{eegnet_attention_deep_forward.1} parent=11 // pred_region
          _
        $region40: #{eegnet_attention_deep_forward.1} parent=11 // pred_fallthru
          _
        // Predicated region
        $region41: #{eegnet_attention_deep_forward.1} parent=11 // pred_check
          %p384 = pneg %p217
        $region42: #{eegnet_attention_deep_forward.1} parent=11 // pred_check_branch
          %386 = sbr.rel (%p384) target = $region44
        $region43: #{eegnet_attention_deep_forward.1} parent=11 // pred_region
          _
        $region44: #{eegnet_attention_deep_forward.1} parent=11 // pred_fallthru
          _
        // Predicated region
        $region45: #{eegnet_attention_deep_forward.1} parent=11 // pred_check
          %p387 = pneg %p238
        $region46: #{eegnet_attention_deep_forward.1} parent=11 // pred_check_branch
          %389 = sbr.rel (%p387) target = $region48
        $region47: #{eegnet_attention_deep_forward.1} parent=11 // pred_region
          _
        $region48: #{eegnet_attention_deep_forward.1} parent=11 // pred_fallthru
          _
        // Predicated region
        $region49: #{eegnet_attention_deep_forward.1} parent=11 // pred_check
          %p390 = pneg %p259
        $region50: #{eegnet_attention_deep_forward.1} parent=11 // pred_check_branch
          %392 = sbr.rel (%p390) target = $region52
        $region51: #{eegnet_attention_deep_forward.1} parent=11 // pred_region
          _
        $region52: #{eegnet_attention_deep_forward.1} parent=11 // pred_fallthru
          _
        // Predicated region
        $region53: #{eegnet_attention_deep_forward.1} parent=11 // pred_check
          %p393 = pneg %p280
        $region54: #{eegnet_attention_deep_forward.1} parent=11 // pred_check_branch
          %395 = sbr.rel (%p393) target = $region56
        $region55: #{eegnet_attention_deep_forward.1} parent=11 // pred_region
          _
        $region56: #{eegnet_attention_deep_forward.1} parent=11 // pred_fallthru
          _
        // Predicated region
        $region57: #{eegnet_attention_deep_forward.1} parent=11 // pred_check
          %p396 = pneg %p301
        $region58: #{eegnet_attention_deep_forward.1} parent=11 // pred_check_branch
          %398 = sbr.rel (%p396) target = $region60
        $region59: #{eegnet_attention_deep_forward.1} parent=11 // pred_region
          _
        $region60: #{eegnet_attention_deep_forward.1} parent=11 // pred_fallthru
          _
        // Predicated region
        $region61: #{eegnet_attention_deep_forward.1} parent=11 // pred_check
          %p399 = pneg %p322
        $region62: #{eegnet_attention_deep_forward.1} parent=11 // pred_check_branch
          %401 = sbr.rel (%p399) target = $region64
        $region63: #{eegnet_attention_deep_forward.1} parent=11 // pred_region
          _
        $region64: #{eegnet_attention_deep_forward.1} parent=11 // pred_fallthru
          _
      $region12: #{eegnet_attention_deep_forward.1} parent=5 // pred_fallthru
        _
      %p402 = scmp.lt.s32.totalorder %s23, 2
      // Predicated region
      $region65: #{eegnet_attention_deep_forward.1} parent=5 // pred_check
        %p403 = pneg %p402
      $region66: #{eegnet_attention_deep_forward.1} parent=5 // pred_check_branch
        %405 = sbr.rel (%p403) target = $region68
      $region67: #{eegnet_attention_deep_forward.1} parent=5 // pred_region
        // Predicated region
        $region69: #{eegnet_attention_deep_forward.1} parent=67 // pred_check
          %p406 = pneg %p43
        $region70: #{eegnet_attention_deep_forward.1} parent=67 // pred_check_branch
          %408 = sbr.rel (%p406) target = $region72
        $region71: #{eegnet_attention_deep_forward.1} parent=67 // pred_region
          %p409 = scmp.lt.s32.totalorder %s23, 1
          %s410 = scalar_select %p409, %s23, 1
          %s411 = smul.addr %s410, 10
          %s412 = smul.addr %s411, 8
          %s413 = scalar_lea.vmem %s0, %s412
        $region72: #{eegnet_attention_deep_forward.1} parent=67 // pred_fallthru
          _
      $region68: #{eegnet_attention_deep_forward.1} parent=5 // pred_fallthru
        _
      %p414 = scmp.le.s32.totalorder 1, %s23
      %p415 = scmp.lt.s32.totalorder %s23, 3
      %p416 = pnand %p414, %p415
      %p417 = pneg %p416
      // Predicated region
      $region73: #{eegnet_attention_deep_forward.1} parent=5 // pred_check
        _
      $region74: #{eegnet_attention_deep_forward.1} parent=5 // pred_check_branch
        %419 = sbr.rel (%p416) target = $region76
      $region75: #{eegnet_attention_deep_forward.1} parent=5 // pred_region
        %s420 = ssub.s32 %s23, 1
        %p421 = scmp.lt.s32.totalorder %s28, 1
        %s422 = scalar_select %p421, %s28, 1
        %s423 = smul.addr %s422, 10
        %s424 = smul.addr %s423, 8
        %s425 = scalar_lea.vmem %s0, %s424
        %p426 = pneg %p49
        %p427 = pneg %p46
        %p428 = pneg %p70
        %p429 = pneg %p67
        %p430 = pneg %p91
        %p431 = pneg %p88
        %p432 = pneg %p112
        %p433 = pneg %p109
        %p434 = pneg %p133
        %p435 = pneg %p130
        %p436 = pneg %p154
        %p437 = pneg %p151
        %p438 = pneg %p175
        %p439 = pneg %p172
        %p440 = pneg %p196
        %p441 = pneg %p193
        %p442 = pneg %p217
        %p443 = pneg %p214
        %p444 = pneg %p238
        %p445 = pneg %p235
        %p446 = pneg %p259
        %p447 = pneg %p256
        %p448 = pneg %p280
        %p449 = pneg %p277
        %p450 = pneg %p301
        %p451 = pneg %p298
        %p452 = pneg %p322
        %p453 = pneg %p319
        %p454 = pneg %p348
        %p455 = pneg %p345
        %s456 = sand.u32 %s335, 1
        %s457 = scalar_lea.sflag [#allocation5], %s456
        %s458 = sand.u32 %s335, 1
        %s459 = scalar_lea.vmem [#allocation4], %s458
        %p460 = scmp.lt.s32.totalorder %s28, 1
        %s461 = scalar_select %p460, %s28, 1
        %s462 = smul.addr %s461, 10
        %s463 = smul.addr %s462, 8
        %s464 = scalar_lea.vmem %s0, %s463
        %v465 = vld [vmem:[%s464] sm:$0xff]
        %v466 = vld [vmem:[%s464 + $0x8] sm:$0xff]
        %v467 = vld [vmem:[%s464 + $0x10] sm:$0xff]
        %v468 = vld [vmem:[%s464 + $0x18] sm:$0xff]
        %v469 = vld [vmem:[%s464 + $0x20] sm:$0xff]
        %v470 = vld [vmem:[%s464 + $0x28] sm:$0xff]
        %v471 = vld [vmem:[%s464 + $0x30] sm:$0xff]
        %v472 = vld [vmem:[%s464 + $0x38] sm:$0xff]
        %v473 = vld [vmem:[%s464 + $0x40] sm:$0xff]
        %v474 = vld [vmem:[%s464 + $0x48] sm:$0xff]
        %v475 = vld [vmem:[%s1] sm:$0xff]
        %v476 = vld [vmem:[%s1 + $0x8] sm:$0xff]
        %vm477 = vcmask 64512
        %v479 = vsel %vm477, %v475, 0
        %v482 = vsel %vm477, %v476, 0
        %484 = vmatprep.subr.mxu0 %v466
        %485 = vmatpush1.msra.mxu0 %v465
        %486 = vmatprep.subr.mxu0 0.0
        %487 = vmatpush1.msra.mxu0 0.0
        %488 = vmatprep.subr.mxu0 0.0
        %489 = vmatpush1.msra.mxu0 0.0
        %490 = vmatprep.subr.mxu0 0.0
        %491 = vmatpush1.msra.mxu0 0.0
        %492 = vmatprep.subr.mxu0 0.0
        %493 = vmatpush1.msra.mxu0 0.0
        %494 = vmatprep.subr.mxu0 0.0
        %495 = vmatpush1.msra.mxu0 0.0
        %496 = vmatprep.subr.mxu0 0.0
        %497 = vmatpush1.msra.mxu0 0.0
        %498 = vmatprep.subr.mxu0 0.0
        %499 = vmatpush1.msra.mxu0 0.0
        %500 = vmatprep.subr.mxu0 0.0
        %501 = vmatpush1.msra.mxu0 0.0
        %502 = vmatprep.subr.mxu0 0.0
        %503 = vmatpush1.msra.mxu0 0.0
        %504 = vmatprep.subr.mxu0 0.0
        %505 = vmatpush1.msra.mxu0 0.0
        %506 = vmatprep.subr.mxu0 0.0
        %507 = vmatpush1.msra.mxu0 0.0
        %508 = vmatprep.subr.mxu0 0.0
        %509 = vmatpush1.msra.mxu0 0.0
        %510 = vmatprep.subr.mxu0 0.0
        %511 = vmatpush1.msra.mxu0 0.0
        %512 = vmatprep.subr.mxu0 0.0
        %513 = vmatpush1.msra.mxu0 0.0
        %514 = vmatprep.subr.mxu0 0.0
        %515 = vmatpush1.msra.mxu0 0.0
        %516 = vmatprep.subr.mxu0 0.0
        %517 = vmatpush1.msra.mxu0 0.0
        %518 = vmatprep.subr.mxu0 0.0
        %519 = vmatpush1.msra.mxu0 0.0
        %520 = vmatprep.subr.mxu0 0.0
        %521 = vmatpush1.msra.mxu0 0.0
        %522 = vmatprep.subr.mxu0 0.0
        %523 = vmatpush1.msra.mxu0 0.0
        %524 = vmatprep.subr.mxu0 0.0
        %525 = vmatpush1.msra.mxu0 0.0
        %526 = vmatprep.subr.mxu0 0.0
        %527 = vmatpush1.msra.mxu0 0.0
        %528 = vmatprep.subr.mxu0 0.0
        %529 = vmatpush1.msra.mxu0 0.0
        %530 = vmatprep.subr.mxu0 0.0
        %531 = vmatpush1.msra.mxu0 0.0
        %532 = vmatprep.subr.mxu0 0.0
        %533 = vmatpush1.msra.mxu0 0.0
        %534 = vmatprep.subr.mxu0 0.0
        %535 = vmatpush1.msra.mxu0 0.0
        %536 = vmatprep.subr.mxu0 0.0
        %537 = vmatpush1.msra.mxu0 0.0
        %538 = vmatprep.subr.mxu0 0.0
        %539 = vmatpush1.msra.mxu0 0.0
        %540 = vmatprep.subr.mxu0 0.0
        %541 = vmatpush1.msra.mxu0 0.0
        %542 = vmatprep.subr.mxu0 0.0
        %543 = vmatpush1.msra.mxu0 0.0
        %544 = vmatprep.subr.mxu0 0.0
        %545 = vmatpush1.msra.mxu0 0.0
        %546 = vmatprep.subr.mxu0 0.0
        %547 = vmatpush1.msra.mxu0 0.0
        %548 = vmatprep.mubr.f32.mxu0 0.0
        %549 = vmatmul.mubr.f32.gmra.mrb[0].mxu0 %v479
        %v550 = vpop.f32.mrb[0].mxu0
        %v551 = vadd.f32 0.0, %v550
        %v552 = vpop.f32.mrb[0].mxu0
        %v553 = vadd.f32 0.0, %v552
        %554 = vmatprep.mubr.f32.mxu0 0.0
        %555 = vmatmul.mubr.f32.gmra.mrb[0].mxu0 %v482
        %v556 = vpop.f32.mrb[0].mxu0
        %v557 = vadd.f32 0.0, %v556
        %v558 = vpop.f32.mrb[0].mxu0
        %v559 = vadd.f32 0.0, %v558
        %560 = vdwg.mxu0
        %561 = vmatprep.subr.mxu0 %v468
        %562 = vmatpush1.msra.mxu0 %v467
        %563 = vmatprep.subr.mxu0 0.0
        %564 = vmatpush1.msra.mxu0 0.0
        %565 = vmatprep.subr.mxu0 0.0
        %566 = vmatpush1.msra.mxu0 0.0
        %567 = vmatprep.subr.mxu0 0.0
        %568 = vmatpush1.msra.mxu0 0.0
        %569 = vmatprep.subr.mxu0 0.0
        %570 = vmatpush1.msra.mxu0 0.0
        %571 = vmatprep.subr.mxu0 0.0
        %572 = vmatpush1.msra.mxu0 0.0
        %573 = vmatprep.subr.mxu0 0.0
        %574 = vmatpush1.msra.mxu0 0.0
        %575 = vmatprep.subr.mxu0 0.0
        %576 = vmatpush1.msra.mxu0 0.0
        %577 = vmatprep.subr.mxu0 0.0
        %578 = vmatpush1.msra.mxu0 0.0
        %579 = vmatprep.subr.mxu0 0.0
        %580 = vmatpush1.msra.mxu0 0.0
        %581 = vmatprep.subr.mxu0 0.0
        %582 = vmatpush1.msra.mxu0 0.0
        %583 = vmatprep.subr.mxu0 0.0
        %584 = vmatpush1.msra.mxu0 0.0
        %585 = vmatprep.subr.mxu0 0.0
        %586 = vmatpush1.msra.mxu0 0.0
        %587 = vmatprep.subr.mxu0 0.0
        %588 = vmatpush1.msra.mxu0 0.0
        %589 = vmatprep.subr.mxu0 0.0
        %590 = vmatpush1.msra.mxu0 0.0
        %591 = vmatprep.subr.mxu0 0.0
        %592 = vmatpush1.msra.mxu0 0.0
        %593 = vmatprep.subr.mxu0 0.0
        %594 = vmatpush1.msra.mxu0 0.0
        %595 = vmatprep.subr.mxu0 0.0
        %596 = vmatpush1.msra.mxu0 0.0
        %597 = vmatprep.subr.mxu0 0.0
        %598 = vmatpush1.msra.mxu0 0.0
        %599 = vmatprep.subr.mxu0 0.0
        %600 = vmatpush1.msra.mxu0 0.0
        %601 = vmatprep.subr.mxu0 0.0
        %602 = vmatpush1.msra.mxu0 0.0
        %603 = vmatprep.subr.mxu0 0.0
        %604 = vmatpush1.msra.mxu0 0.0
        %605 = vmatprep.subr.mxu0 0.0
        %606 = vmatpush1.msra.mxu0 0.0
        %607 = vmatprep.subr.mxu0 0.0
        %608 = vmatpush1.msra.mxu0 0.0
        %609 = vmatprep.subr.mxu0 0.0
        %610 = vmatpush1.msra.mxu0 0.0
        %611 = vmatprep.subr.mxu0 0.0
        %612 = vmatpush1.msra.mxu0 0.0
        %613 = vmatprep.subr.mxu0 0.0
        %614 = vmatpush1.msra.mxu0 0.0
        %615 = vmatprep.subr.mxu0 0.0
        %616 = vmatpush1.msra.mxu0 0.0
        %617 = vmatprep.subr.mxu0 0.0
        %618 = vmatpush1.msra.mxu0 0.0
        %619 = vmatprep.subr.mxu0 0.0
        %620 = vmatpush1.msra.mxu0 0.0
        %621 = vmatprep.subr.mxu0 0.0
        %622 = vmatpush1.msra.mxu0 0.0
        %623 = vmatprep.subr.mxu0 0.0
        %624 = vmatpush1.msra.mxu0 0.0
        %625 = vmatprep.mubr.f32.mxu0 0.0
        %626 = vmatmul.mubr.f32.gmra.mrb[0].mxu0 %v479
        %v627 = vpop.f32.mrb[0].mxu0
        %v628 = vadd.f32 0.0, %v627
        %v629 = vpop.f32.mrb[0].mxu0
        %v630 = vadd.f32 0.0, %v629
        %631 = vmatprep.mubr.f32.mxu0 0.0
        %632 = vmatmul.mubr.f32.gmra.mrb[0].mxu0 %v482
        %v633 = vpop.f32.mrb[0].mxu0
        %v634 = vadd.f32 0.0, %v633
        %v635 = vpop.f32.mrb[0].mxu0
        %v636 = vadd.f32 0.0, %v635
        %637 = vdwg.mxu0
        %638 = vmatprep.subr.mxu0 %v470
        %639 = vmatpush1.msra.mxu0 %v469
        %640 = vmatprep.subr.mxu0 0.0
        %641 = vmatpush1.msra.mxu0 0.0
        %642 = vmatprep.subr.mxu0 0.0
        %643 = vmatpush1.msra.mxu0 0.0
        %644 = vmatprep.subr.mxu0 0.0
        %645 = vmatpush1.msra.mxu0 0.0
        %646 = vmatprep.subr.mxu0 0.0
        %647 = vmatpush1.msra.mxu0 0.0
        %648 = vmatprep.subr.mxu0 0.0
        %649 = vmatpush1.msra.mxu0 0.0
        %650 = vmatprep.subr.mxu0 0.0
        %651 = vmatpush1.msra.mxu0 0.0
        %652 = vmatprep.subr.mxu0 0.0
        %653 = vmatpush1.msra.mxu0 0.0
        %654 = vmatprep.subr.mxu0 0.0
        %655 = vmatpush1.msra.mxu0 0.0
        %656 = vmatprep.subr.mxu0 0.0
        %657 = vmatpush1.msra.mxu0 0.0
        %658 = vmatprep.subr.mxu0 0.0
        %659 = vmatpush1.msra.mxu0 0.0
        %660 = vmatprep.subr.mxu0 0.0
        %661 = vmatpush1.msra.mxu0 0.0
        %662 = vmatprep.subr.mxu0 0.0
        %663 = vmatpush1.msra.mxu0 0.0
        %664 = vmatprep.subr.mxu0 0.0
        %665 = vmatpush1.msra.mxu0 0.0
        %666 = vmatprep.subr.mxu0 0.0
        %667 = vmatpush1.msra.mxu0 0.0
        %668 = vmatprep.subr.mxu0 0.0
        %669 = vmatpush1.msra.mxu0 0.0
        %670 = vmatprep.subr.mxu0 0.0
        %671 = vmatpush1.msra.mxu0 0.0
        %672 = vmatprep.subr.mxu0 0.0
        %673 = vmatpush1.msra.mxu0 0.0
        %674 = vmatprep.subr.mxu0 0.0
        %675 = vmatpush1.msra.mxu0 0.0
        %676 = vmatprep.subr.mxu0 0.0
        %677 = vmatpush1.msra.mxu0 0.0
        %678 = vmatprep.subr.mxu0 0.0
        %679 = vmatpush1.msra.mxu0 0.0
        %680 = vmatprep.subr.mxu0 0.0
        %681 = vmatpush1.msra.mxu0 0.0
        %682 = vmatprep.subr.mxu0 0.0
        %683 = vmatpush1.msra.mxu0 0.0
        %684 = vmatprep.subr.mxu0 0.0
        %685 = vmatpush1.msra.mxu0 0.0
        %686 = vmatprep.subr.mxu0 0.0
        %687 = vmatpush1.msra.mxu0 0.0
        %688 = vmatprep.subr.mxu0 0.0
        %689 = vmatpush1.msra.mxu0 0.0
        %690 = vmatprep.subr.mxu0 0.0
        %691 = vmatpush1.msra.mxu0 0.0
        %692 = vmatprep.subr.mxu0 0.0
        %693 = vmatpush1.msra.mxu0 0.0
        %694 = vmatprep.subr.mxu0 0.0
        %695 = vmatpush1.msra.mxu0 0.0
        %696 = vmatprep.subr.mxu0 0.0
        %697 = vmatpush1.msra.mxu0 0.0
        %698 = vmatprep.subr.mxu0 0.0
        %699 = vmatpush1.msra.mxu0 0.0
        %700 = vmatprep.subr.mxu0 0.0
        %701 = vmatpush1.msra.mxu0 0.0
        %702 = vmatprep.mubr.f32.mxu0 0.0
        %703 = vmatmul.mubr.f32.gmra.mrb[0].mxu0 %v479
        %v704 = vpop.f32.mrb[0].mxu0
        %v705 = vadd.f32 0.0, %v704
        %v706 = vpop.f32.mrb[0].mxu0
        %v707 = vadd.f32 0.0, %v706
        %708 = vmatprep.mubr.f32.mxu0 0.0
        %709 = vmatmul.mubr.f32.gmra.mrb[0].mxu0 %v482
        %v710 = vpop.f32.mrb[0].mxu0
        %v711 = vadd.f32 0.0, %v710
        %v712 = vpop.f32.mrb[0].mxu0
        %v713 = vadd.f32 0.0, %v712
        %714 = vdwg.mxu0
        %715 = vmatprep.subr.mxu0 %v472
        %716 = vmatpush1.msra.mxu0 %v471
        %717 = vmatprep.subr.mxu0 0.0
        %718 = vmatpush1.msra.mxu0 0.0
        %719 = vmatprep.subr.mxu0 0.0
        %720 = vmatpush1.msra.mxu0 0.0
        %721 = vmatprep.subr.mxu0 0.0
        %722 = vmatpush1.msra.mxu0 0.0
        %723 = vmatprep.subr.mxu0 0.0
        %724 = vmatpush1.msra.mxu0 0.0
        %725 = vmatprep.subr.mxu0 0.0
        %726 = vmatpush1.msra.mxu0 0.0
        %727 = vmatprep.subr.mxu0 0.0
        %728 = vmatpush1.msra.mxu0 0.0
        %729 = vmatprep.subr.mxu0 0.0
        %730 = vmatpush1.msra.mxu0 0.0
        %731 = vmatprep.subr.mxu0 0.0
        %732 = vmatpush1.msra.mxu0 0.0
        %733 = vmatprep.subr.mxu0 0.0
        %734 = vmatpush1.msra.mxu0 0.0
        %735 = vmatprep.subr.mxu0 0.0
        %736 = vmatpush1.msra.mxu0 0.0
        %737 = vmatprep.subr.mxu0 0.0
        %738 = vmatpush1.msra.mxu0 0.0
        %739 = vmatprep.subr.mxu0 0.0
        %740 = vmatpush1.msra.mxu0 0.0
        %741 = vmatprep.subr.mxu0 0.0
        %742 = vmatpush1.msra.mxu0 0.0
        %743 = vmatprep.subr.mxu0 0.0
        %744 = vmatpush1.msra.mxu0 0.0
        %745 = vmatprep.subr.mxu0 0.0
        %746 = vmatpush1.msra.mxu0 0.0
        %747 = vmatprep.subr.mxu0 0.0
        %748 = vmatpush1.msra.mxu0 0.0
        %749 = vmatprep.subr.mxu0 0.0
        %750 = vmatpush1.msra.mxu0 0.0
        %751 = vmatprep.subr.mxu0 0.0
        %752 = vmatpush1.msra.mxu0 0.0
        %753 = vmatprep.subr.mxu0 0.0
        %754 = vmatpush1.msra.mxu0 0.0
        %755 = vmatprep.subr.mxu0 0.0
        %756 = vmatpush1.msra.mxu0 0.0
        %757 = vmatprep.subr.mxu0 0.0
        %758 = vmatpush1.msra.mxu0 0.0
        %759 = vmatprep.subr.mxu0 0.0
        %760 = vmatpush1.msra.mxu0 0.0
        %761 = vmatprep.subr.mxu0 0.0
        %762 = vmatpush1.msra.mxu0 0.0
        %763 = vmatprep.subr.mxu0 0.0
        %764 = vmatpush1.msra.mxu0 0.0
        %765 = vmatprep.subr.mxu0 0.0
        %766 = vmatpush1.msra.mxu0 0.0
        %767 = vmatprep.subr.mxu0 0.0
        %768 = vmatpush1.msra.mxu0 0.0
        %769 = vmatprep.subr.mxu0 0.0
        %770 = vmatpush1.msra.mxu0 0.0
        %771 = vmatprep.subr.mxu0 0.0
        %772 = vmatpush1.msra.mxu0 0.0
        %773 = vmatprep.subr.mxu0 0.0
        %774 = vmatpush1.msra.mxu0 0.0
        %775 = vmatprep.subr.mxu0 0.0
        %776 = vmatpush1.msra.mxu0 0.0
        %777 = vmatprep.subr.mxu0 0.0
        %778 = vmatpush1.msra.mxu0 0.0
        %779 = vmatprep.mubr.f32.mxu0 0.0
        %780 = vmatmul.mubr.f32.gmra.mrb[0].mxu0 %v479
        %v781 = vpop.f32.mrb[0].mxu0
        %v782 = vadd.f32 0.0, %v781
        %v783 = vpop.f32.mrb[0].mxu0
        %v784 = vadd.f32 0.0, %v783
        %785 = vmatprep.mubr.f32.mxu0 0.0
        %786 = vmatmul.mubr.f32.gmra.mrb[0].mxu0 %v482
        %v787 = vpop.f32.mrb[0].mxu0
        %v788 = vadd.f32 0.0, %v787
        %v789 = vpop.f32.mrb[0].mxu0
        %v790 = vadd.f32 0.0, %v789
        %791 = vdwg.mxu0
        %792 = vmatprep.subr.mxu0 %v474
        %793 = vmatpush1.msra.mxu0 %v473
        %794 = vmatprep.subr.mxu0 0.0
        %795 = vmatpush1.msra.mxu0 0.0
        %796 = vmatprep.subr.mxu0 0.0
        %797 = vmatpush1.msra.mxu0 0.0
        %798 = vmatprep.subr.mxu0 0.0
        %799 = vmatpush1.msra.mxu0 0.0
        %800 = vmatprep.subr.mxu0 0.0
        %801 = vmatpush1.msra.mxu0 0.0
        %802 = vmatprep.subr.mxu0 0.0
        %803 = vmatpush1.msra.mxu0 0.0
        %804 = vmatprep.subr.mxu0 0.0
        %805 = vmatpush1.msra.mxu0 0.0
        %806 = vmatprep.subr.mxu0 0.0
        %807 = vmatpush1.msra.mxu0 0.0
        %808 = vmatprep.subr.mxu0 0.0
        %809 = vmatpush1.msra.mxu0 0.0
        %810 = vmatprep.subr.mxu0 0.0
        %811 = vmatpush1.msra.mxu0 0.0
        %812 = vmatprep.subr.mxu0 0.0
        %813 = vmatpush1.msra.mxu0 0.0
        %814 = vmatprep.subr.mxu0 0.0
        %815 = vmatpush1.msra.mxu0 0.0
        %816 = vmatprep.subr.mxu0 0.0
        %817 = vmatpush1.msra.mxu0 0.0
        %818 = vmatprep.subr.mxu0 0.0
        %819 = vmatpush1.msra.mxu0 0.0
        %820 = vmatprep.subr.mxu0 0.0
        %821 = vmatpush1.msra.mxu0 0.0
        %822 = vmatprep.subr.mxu0 0.0
        %823 = vmatpush1.msra.mxu0 0.0
        %824 = vmatprep.subr.mxu0 0.0
        %825 = vmatpush1.msra.mxu0 0.0
        %826 = vmatprep.subr.mxu0 0.0
        %827 = vmatpush1.msra.mxu0 0.0
        %828 = vmatprep.subr.mxu0 0.0
        %829 = vmatpush1.msra.mxu0 0.0
        %830 = vmatprep.subr.mxu0 0.0
        %831 = vmatpush1.msra.mxu0 0.0
        %832 = vmatprep.subr.mxu0 0.0
        %833 = vmatpush1.msra.mxu0 0.0
        %834 = vmatprep.subr.mxu0 0.0
        %835 = vmatpush1.msra.mxu0 0.0
        %836 = vmatprep.subr.mxu0 0.0
        %837 = vmatpush1.msra.mxu0 0.0
        %838 = vmatprep.subr.mxu0 0.0
        %839 = vmatpush1.msra.mxu0 0.0
        %840 = vmatprep.subr.mxu0 0.0
        %841 = vmatpush1.msra.mxu0 0.0
        %842 = vmatprep.subr.mxu0 0.0
        %843 = vmatpush1.msra.mxu0 0.0
        %844 = vmatprep.subr.mxu0 0.0
        %845 = vmatpush1.msra.mxu0 0.0
        %846 = vmatprep.subr.mxu0 0.0
        %847 = vmatpush1.msra.mxu0 0.0
        %848 = vmatprep.subr.mxu0 0.0
        %849 = vmatpush1.msra.mxu0 0.0
        %850 = vmatprep.subr.mxu0 0.0
        %851 = vmatpush1.msra.mxu0 0.0
        %852 = vmatprep.subr.mxu0 0.0
        %853 = vmatpush1.msra.mxu0 0.0
        %854 = vmatprep.subr.mxu0 0.0
        %855 = vmatpush1.msra.mxu0 0.0
        %856 = vmatprep.mubr.f32.mxu0 0.0
        %857 = vmatmul.mubr.f32.gmra.mrb[0].mxu0 %v479
        %v858 = vpop.f32.mrb[0].mxu0
        %v859 = vadd.f32 0.0, %v858
        %v860 = vpop.f32.mrb[0].mxu0
        %v861 = vadd.f32 0.0, %v860
        %862 = vmatprep.mubr.f32.mxu0 0.0
        %863 = vmatmul.mubr.f32.gmra.mrb[0].mxu0 %v482
        %v864 = vpop.f32.mrb[0].mxu0
        %v865 = vadd.f32 0.0, %v864
        %v866 = vpop.f32.mrb[0].mxu0
        %v867 = vadd.f32 0.0, %v866
        %868 = vdwg.mxu0
        %v869 = vld [vmem:[%s2] sm:$0xff]
        %v870 = vld [vmem:[%s2 + $0x8] sm:$0xff]
        %872 = vset.pattern.permute.xlu0 0
        %873 = vperm.xlu0 %872, %v869
        %v874 = vpop.permute.xlu0 %873
        %877 = vset.pattern.permute.xlu0 0
        %878 = vperm.xlu0 %877, %v870
        %v879 = vpop.permute.xlu0 %878
        %v881 = vmul.f32 %v874, %v551
        %v882 = vmul.f32 %v874, %v553
        %v883 = vmul.f32 %v874, %v628
        %v884 = vmul.f32 %v874, %v630
        %v885 = vmul.f32 %v874, %v705
        %v886 = vmul.f32 %v874, %v707
        %v887 = vmul.f32 %v874, %v782
        %v888 = vmul.f32 %v874, %v784
        %v889 = vmul.f32 %v879, %v557
        %v890 = vmul.f32 %v879, %v559
        %v891 = vmul.f32 %v879, %v634
        %v892 = vmul.f32 %v879, %v636
        %v893 = vmul.f32 %v879, %v711
        %v894 = vmul.f32 %v879, %v713
        %v895 = vmul.f32 %v879, %v788
        %v896 = vmul.f32 %v879, %v790
        %s897 = scalar_lea.vmem %s2, 16
        %v898 = vld [vmem:[%s897] sm:$0xff]
        %v899 = vld [vmem:[%s897 + $0x8] sm:$0xff]
        %901 = vset.pattern.permute.xlu0 0
        %902 = vperm.xlu0 %901, %v898
        %v903 = vpop.permute.xlu0 %902
        %906 = vset.pattern.permute.xlu0 0
        %907 = vperm.xlu0 %906, %v899
        %v908 = vpop.permute.xlu0 %907
        %v910 = vmul.f32 %v903, %v551
        %v911 = vmul.f32 %v903, %v553
        %v912 = vmul.f32 %v903, %v628
        %v913 = vmul.f32 %v903, %v630
        %v914 = vmul.f32 %v903, %v705
        %v915 = vmul.f32 %v903, %v707
        %v916 = vmul.f32 %v903, %v782
        %v917 = vmul.f32 %v903, %v784
        %v918 = vmul.f32 %v903, %v859
        %v919 = vmul.f32 %v908, %v557
        %v920 = vmul.f32 %v908, %v559
        %v921 = vmul.f32 %v908, %v634
        %v922 = vmul.f32 %v908, %v636
        %v923 = vmul.f32 %v908, %v711
        %v924 = vmul.f32 %v908, %v713
        %v925 = vmul.f32 %v908, %v788
        %v926 = vmul.f32 %v908, %v790
        %v927 = vmul.f32 %v908, %v865
        %946 = vrot.lane.b32.xlu0 %v910, 127
        %v947 = vpop.permute.xlu0 %946
        %948 = vrot.lane.b32.xlu0 %v911, 127
        %v949 = vpop.permute.xlu0 %948
        %950 = vrot.lane.b32.xlu0 %v912, 127
        %v951 = vpop.permute.xlu0 %950
        %952 = vrot.lane.b32.xlu0 %v913, 127
        %v953 = vpop.permute.xlu0 %952
        %954 = vrot.lane.b32.xlu0 %v914, 127
        %v955 = vpop.permute.xlu0 %954
        %956 = vrot.lane.b32.xlu0 %v915, 127
        %v957 = vpop.permute.xlu0 %956
        %958 = vrot.lane.b32.xlu0 %v916, 127
        %v959 = vpop.permute.xlu0 %958
        %960 = vrot.lane.b32.xlu0 %v917, 127
        %v961 = vpop.permute.xlu0 %960
        %962 = vrot.lane.b32.xlu0 %v918, 127
        %v963 = vpop.permute.xlu0 %962
        %964 = vrot.lane.b32.xlu0 %v919, 127
        %v965 = vpop.permute.xlu0 %964
        %966 = vrot.lane.b32.xlu0 %v920, 127
        %v967 = vpop.permute.xlu0 %966
        %968 = vrot.lane.b32.xlu0 %v921, 127
        %v969 = vpop.permute.xlu0 %968
        %970 = vrot.lane.b32.xlu0 %v922, 127
        %v971 = vpop.permute.xlu0 %970
        %972 = vrot.lane.b32.xlu0 %v923, 127
        %v973 = vpop.permute.xlu0 %972
        %974 = vrot.lane.b32.xlu0 %v924, 127
        %v975 = vpop.permute.xlu0 %974
        %976 = vrot.lane.b32.xlu0 %v925, 127
        %v977 = vpop.permute.xlu0 %976
        %978 = vrot.lane.b32.xlu0 %v926, 127
        %v979 = vpop.permute.xlu0 %978
        %980 = vrot.lane.b32.xlu0 %v927, 127
        %v981 = vpop.permute.xlu0 %980
        %vm982 = vcmask 1039360
        %v983 = vsel %vm982, %v947, %v949
        %v984 = vsel %vm982, %v949, %v951
        %v985 = vsel %vm982, %v951, %v953
        %v986 = vsel %vm982, %v953, %v955
        %v987 = vsel %vm982, %v955, %v957
        %v988 = vsel %vm982, %v957, %v959
        %v989 = vsel %vm982, %v959, %v961
        %v990 = vsel %vm982, %v961, %v963
        %v991 = vsel %vm982, %v965, %v967
        %v992 = vsel %vm982, %v967, %v969
        %v993 = vsel %vm982, %v969, %v971
        %v994 = vsel %vm982, %v971, %v973
        %v995 = vsel %vm982, %v973, %v975
        %v996 = vsel %vm982, %v975, %v977
        %v997 = vsel %vm982, %v977, %v979
        %v998 = vsel %vm982, %v979, %v981
        %v1015 = vadd.f32 %v881, %v983
        %v1016 = vadd.f32 %v882, %v984
        %v1017 = vadd.f32 %v883, %v985
        %v1018 = vadd.f32 %v884, %v986
        %v1019 = vadd.f32 %v885, %v987
        %v1020 = vadd.f32 %v886, %v988
        %v1021 = vadd.f32 %v887, %v989
        %v1022 = vadd.f32 %v888, %v990
        %v1023 = vadd.f32 %v889, %v991
        %v1024 = vadd.f32 %v890, %v992
        %v1025 = vadd.f32 %v891, %v993
        %v1026 = vadd.f32 %v892, %v994
        %v1027 = vadd.f32 %v893, %v995
        %v1028 = vadd.f32 %v894, %v996
        %v1029 = vadd.f32 %v895, %v997
        %v1030 = vadd.f32 %v896, %v998
        %s1031 = scalar_lea.vmem %s2, 32
        %v1032 = vld [vmem:[%s1031] sm:$0xff]
        %v1033 = vld [vmem:[%s1031 + $0x8] sm:$0xff]
        %1035 = vset.pattern.permute.xlu0 0
        %1036 = vperm.xlu0 %1035, %v1032
        %v1037 = vpop.permute.xlu0 %1036
        %1040 = vset.pattern.permute.xlu0 0
        %1041 = vperm.xlu0 %1040, %v1033
        %v1042 = vpop.permute.xlu0 %1041
        %v1044 = vmul.f32 %v1037, %v551
        %v1045 = vmul.f32 %v1037, %v553
        %v1046 = vmul.f32 %v1037, %v628
        %v1047 = vmul.f32 %v1037, %v630
        %v1048 = vmul.f32 %v1037, %v705
        %v1049 = vmul.f32 %v1037, %v707
        %v1050 = vmul.f32 %v1037, %v782
        %v1051 = vmul.f32 %v1037, %v784
        %v1052 = vmul.f32 %v1037, %v859
        %v1053 = vmul.f32 %v1042, %v557
        %v1054 = vmul.f32 %v1042, %v559
        %v1055 = vmul.f32 %v1042, %v634
        %v1056 = vmul.f32 %v1042, %v636
        %v1057 = vmul.f32 %v1042, %v711
        %v1058 = vmul.f32 %v1042, %v713
        %v1059 = vmul.f32 %v1042, %v788
        %v1060 = vmul.f32 %v1042, %v790
        %v1061 = vmul.f32 %v1042, %v865
        %1080 = vrot.lane.b32.xlu0 %v1044, 126
        %v1081 = vpop.permute.xlu0 %1080
        %1082 = vrot.lane.b32.xlu0 %v1045, 126
        %v1083 = vpop.permute.xlu0 %1082
        %1084 = vrot.lane.b32.xlu0 %v1046, 126
        %v1085 = vpop.permute.xlu0 %1084
        %1086 = vrot.lane.b32.xlu0 %v1047, 126
        %v1087 = vpop.permute.xlu0 %1086
        %1088 = vrot.lane.b32.xlu0 %v1048, 126
        %v1089 = vpop.permute.xlu0 %1088
        %1090 = vrot.lane.b32.xlu0 %v1049, 126
        %v1091 = vpop.permute.xlu0 %1090
        %1092 = vrot.lane.b32.xlu0 %v1050, 126
        %v1093 = vpop.permute.xlu0 %1092
        %1094 = vrot.lane.b32.xlu0 %v1051, 126
        %v1095 = vpop.permute.xlu0 %1094
        %1096 = vrot.lane.b32.xlu0 %v1052, 126
        %v1097 = vpop.permute.xlu0 %1096
        %1098 = vrot.lane.b32.xlu0 %v1053, 126
        %v1099 = vpop.permute.xlu0 %1098
        %1100 = vrot.lane.b32.xlu0 %v1054, 126
        %v1101 = vpop.permute.xlu0 %1100
        %1102 = vrot.lane.b32.xlu0 %v1055, 126
        %v1103 = vpop.permute.xlu0 %1102
        %1104 = vrot.lane.b32.xlu0 %v1056, 126
        %v1105 = vpop.permute.xlu0 %1104
        %1106 = vrot.lane.b32.xlu0 %v1057, 126
        %v1107 = vpop.permute.xlu0 %1106
        %1108 = vrot.lane.b32.xlu0 %v1058, 126
        %v1109 = vpop.permute.xlu0 %1108
        %1110 = vrot.lane.b32.xlu0 %v1059, 126
        %v1111 = vpop.permute.xlu0 %1110
        %1112 = vrot.lane.b32.xlu0 %v1060, 126
        %v1113 = vpop.permute.xlu0 %1112
        %1114 = vrot.lane.b32.xlu0 %v1061, 126
        %v1115 = vpop.permute.xlu0 %1114
        %vm1116 = vcmask 1031168
        %v1117 = vsel %vm1116, %v1081, %v1083
        %v1118 = vsel %vm1116, %v1083, %v1085
        %v1119 = vsel %vm1116, %v1085, %v1087
        %v1120 = vsel %vm1116, %v1087, %v1089
        %v1121 = vsel %vm1116, %v1089, %v1091
        %v1122 = vsel %vm1116, %v1091, %v1093
        %v1123 = vsel %vm1116, %v1093, %v1095
        %v1124 = vsel %vm1116, %v1095, %v1097
        %v1125 = vsel %vm1116, %v1099, %v1101
        %v1126 = vsel %vm1116, %v1101, %v1103
        %v1127 = vsel %vm1116, %v1103, %v1105
        %v1128 = vsel %vm1116, %v1105, %v1107
        %v1129 = vsel %vm1116, %v1107, %v1109
        %v1130 = vsel %vm1116, %v1109, %v1111
        %v1131 = vsel %vm1116, %v1111, %v1113
        %v1132 = vsel %vm1116, %v1113, %v1115
        %v1149 = vadd.f32 %v1015, %v1117
        %v1150 = vadd.f32 %v1016, %v1118
        %v1151 = vadd.f32 %v1017, %v1119
        %v1152 = vadd.f32 %v1018, %v1120
        %v1153 = vadd.f32 %v1019, %v1121
        %v1154 = vadd.f32 %v1020, %v1122
        %v1155 = vadd.f32 %v1021, %v1123
        %v1156 = vadd.f32 %v1022, %v1124
        %v1157 = vadd.f32 %v1023, %v1125
        %v1158 = vadd.f32 %v1024, %v1126
        %v1159 = vadd.f32 %v1025, %v1127
        %v1160 = vadd.f32 %v1026, %v1128
        %v1161 = vadd.f32 %v1027, %v1129
        %v1162 = vadd.f32 %v1028, %v1130
        %v1163 = vadd.f32 %v1029, %v1131
        %v1164 = vadd.f32 %v1030, %v1132
        %s1165 = scalar_lea.vmem %s2, 48
        %v1166 = vld [vmem:[%s1165] sm:$0xff]
        %v1167 = vld [vmem:[%s1165 + $0x8] sm:$0xff]
        %1169 = vset.pattern.permute.xlu0 0
        %1170 = vperm.xlu0 %1169, %v1166
        %v1171 = vpop.permute.xlu0 %1170
        %1174 = vset.pattern.permute.xlu0 0
        %1175 = vperm.xlu0 %1174, %v1167
        %v1176 = vpop.permute.xlu0 %1175
        %v1178 = vmul.f32 %v1171, %v551
        %v1179 = vmul.f32 %v1171, %v553
        %v1180 = vmul.f32 %v1171, %v628
        %v1181 = vmul.f32 %v1171, %v630
        %v1182 = vmul.f32 %v1171, %v705
        %v1183 = vmul.f32 %v1171, %v707
        %v1184 = vmul.f32 %v1171, %v782
        %v1185 = vmul.f32 %v1171, %v784
        %v1186 = vmul.f32 %v1171, %v859
        %v1187 = vmul.f32 %v1176, %v557
        %v1188 = vmul.f32 %v1176, %v559
        %v1189 = vmul.f32 %v1176, %v634
        %v1190 = vmul.f32 %v1176, %v636
        %v1191 = vmul.f32 %v1176, %v711
        %v1192 = vmul.f32 %v1176, %v713
        %v1193 = vmul.f32 %v1176, %v788
        %v1194 = vmul.f32 %v1176, %v790
        %v1195 = vmul.f32 %v1176, %v865
        %1214 = vrot.lane.b32.xlu0 %v1178, 125
        %v1215 = vpop.permute.xlu0 %1214
        %1216 = vrot.lane.b32.xlu0 %v1179, 125
        %v1217 = vpop.permute.xlu0 %1216
        %1218 = vrot.lane.b32.xlu0 %v1180, 125
        %v1219 = vpop.permute.xlu0 %1218
        %1220 = vrot.lane.b32.xlu0 %v1181, 125
        %v1221 = vpop.permute.xlu0 %1220
        %1222 = vrot.lane.b32.xlu0 %v1182, 125
        %v1223 = vpop.permute.xlu0 %1222
        %1224 = vrot.lane.b32.xlu0 %v1183, 125
        %v1225 = vpop.permute.xlu0 %1224
        %1226 = vrot.lane.b32.xlu0 %v1184, 125
        %v1227 = vpop.permute.xlu0 %1226
        %1228 = vrot.lane.b32.xlu0 %v1185, 125
        %v1229 = vpop.permute.xlu0 %1228
        %1230 = vrot.lane.b32.xlu0 %v1186, 125
        %v1231 = vpop.permute.xlu0 %1230
        %1232 = vrot.lane.b32.xlu0 %v1187, 125
        %v1233 = vpop.permute.xlu0 %1232
        %1234 = vrot.lane.b32.xlu0 %v1188, 125
        %v1235 = vpop.permute.xlu0 %1234
        %1236 = vrot.lane.b32.xlu0 %v1189, 125
        %v1237 = vpop.permute.xlu0 %1236
        %1238 = vrot.lane.b32.xlu0 %v1190, 125
        %v1239 = vpop.permute.xlu0 %1238
        %1240 = vrot.lane.b32.xlu0 %v1191, 125
        %v1241 = vpop.permute.xlu0 %1240
        %1242 = vrot.lane.b32.xlu0 %v1192, 125
        %v1243 = vpop.permute.xlu0 %1242
        %1244 = vrot.lane.b32.xlu0 %v1193, 125
        %v1245 = vpop.permute.xlu0 %1244
        %1246 = vrot.lane.b32.xlu0 %v1194, 125
        %v1247 = vpop.permute.xlu0 %1246
        %1248 = vrot.lane.b32.xlu0 %v1195, 125
        %v1249 = vpop.permute.xlu0 %1248
        %vm1250 = vcmask 1022976
        %v1251 = vsel %vm1250, %v1215, %v1217
        %v1252 = vsel %vm1250, %v1217, %v1219
        %v1253 = vsel %vm1250, %v1219, %v1221
        %v1254 = vsel %vm1250, %v1221, %v1223
        %v1255 = vsel %vm1250, %v1223, %v1225
        %v1256 = vsel %vm1250, %v1225, %v1227
        %v1257 = vsel %vm1250, %v1227, %v1229
        %v1258 = vsel %vm1250, %v1229, %v1231
        %v1259 = vsel %vm1250, %v1233, %v1235
        %v1260 = vsel %vm1250, %v1235, %v1237
        %v1261 = vsel %vm1250, %v1237, %v1239
        %v1262 = vsel %vm1250, %v1239, %v1241
        %v1263 = vsel %vm1250, %v1241, %v1243
        %v1264 = vsel %vm1250, %v1243, %v1245
        %v1265 = vsel %vm1250, %v1245, %v1247
        %v1266 = vsel %vm1250, %v1247, %v1249
        %v1283 = vadd.f32 %v1149, %v1251
        %v1284 = vadd.f32 %v1150, %v1252
        %v1285 = vadd.f32 %v1151, %v1253
        %v1286 = vadd.f32 %v1152, %v1254
        %v1287 = vadd.f32 %v1153, %v1255
        %v1288 = vadd.f32 %v1154, %v1256
        %v1289 = vadd.f32 %v1155, %v1257
        %v1290 = vadd.f32 %v1156, %v1258
        %v1291 = vadd.f32 %v1157, %v1259
        %v1292 = vadd.f32 %v1158, %v1260
        %v1293 = vadd.f32 %v1159, %v1261
        %v1294 = vadd.f32 %v1160, %v1262
        %v1295 = vadd.f32 %v1161, %v1263
        %v1296 = vadd.f32 %v1162, %v1264
        %v1297 = vadd.f32 %v1163, %v1265
        %v1298 = vadd.f32 %v1164, %v1266
        %s1299 = scalar_lea.vmem %s2, 64
        %v1300 = vld [vmem:[%s1299] sm:$0xff]
        %v1301 = vld [vmem:[%s1299 + $0x8] sm:$0xff]
        %1303 = vset.pattern.permute.xlu0 0
        %1304 = vperm.xlu0 %1303, %v1300
        %v1305 = vpop.permute.xlu0 %1304
        %1308 = vset.pattern.permute.xlu0 0
        %1309 = vperm.xlu0 %1308, %v1301
        %v1310 = vpop.permute.xlu0 %1309
        %v1312 = vmul.f32 %v1305, %v551
        %v1313 = vmul.f32 %v1305, %v553
        %v1314 = vmul.f32 %v1305, %v628
        %v1315 = vmul.f32 %v1305, %v630
        %v1316 = vmul.f32 %v1305, %v705
        %v1317 = vmul.f32 %v1305, %v707
        %v1318 = vmul.f32 %v1305, %v782
        %v1319 = vmul.f32 %v1305, %v784
        %v1320 = vmul.f32 %v1305, %v859
        %v1321 = vmul.f32 %v1310, %v557
        %v1322 = vmul.f32 %v1310, %v559
        %v1323 = vmul.f32 %v1310, %v634
        %v1324 = vmul.f32 %v1310, %v636
        %v1325 = vmul.f32 %v1310, %v711
        %v1326 = vmul.f32 %v1310, %v713
        %v1327 = vmul.f32 %v1310, %v788
        %v1328 = vmul.f32 %v1310, %v790
        %v1329 = vmul.f32 %v1310, %v865
        %s1330 = scalar_lea.vmem %s2, 80
        %v1331 = vld [vmem:[%s1330] sm:$0xff]
        %v1332 = vld [vmem:[%s1330 + $0x8] sm:$0xff]
        %1334 = vset.pattern.permute.xlu0 0
        %1335 = vperm.xlu0 %1334, %v1331
        %v1336 = vpop.permute.xlu0 %1335
        %1339 = vset.pattern.permute.xlu0 0
        %1340 = vperm.xlu0 %1339, %v1332
        %v1341 = vpop.permute.xlu0 %1340
        %v1343 = vmul.f32 %v1336, %v551
        %v1344 = vmul.f32 %v1336, %v553
        %v1345 = vmul.f32 %v1336, %v628
        %v1346 = vmul.f32 %v1336, %v630
        %v1347 = vmul.f32 %v1336, %v705
        %v1348 = vmul.f32 %v1336, %v707
        %v1349 = vmul.f32 %v1336, %v782
        %v1350 = vmul.f32 %v1336, %v784
        %v1351 = vmul.f32 %v1336, %v859
        %v1352 = vmul.f32 %v1336, %v861
        %v1353 = vmul.f32 %v1341, %v557
        %v1354 = vmul.f32 %v1341, %v559
        %v1355 = vmul.f32 %v1341, %v634
        %v1356 = vmul.f32 %v1341, %v636
        %v1357 = vmul.f32 %v1341, %v711
        %v1358 = vmul.f32 %v1341, %v713
        %v1359 = vmul.f32 %v1341, %v788
        %v1360 = vmul.f32 %v1341, %v790
        %v1361 = vmul.f32 %v1341, %v865
        %v1362 = vmul.f32 %v1341, %v867
        %1383 = vrot.lane.b32.xlu0 %v1343, 127
        %v1384 = vpop.permute.xlu0 %1383
        %1385 = vrot.lane.b32.xlu0 %v1344, 127
        %v1386 = vpop.permute.xlu0 %1385
        %1387 = vrot.lane.b32.xlu0 %v1345, 127
        %v1388 = vpop.permute.xlu0 %1387
        %1389 = vrot.lane.b32.xlu0 %v1346, 127
        %v1390 = vpop.permute.xlu0 %1389
        %1391 = vrot.lane.b32.xlu0 %v1347, 127
        %v1392 = vpop.permute.xlu0 %1391
        %1393 = vrot.lane.b32.xlu0 %v1348, 127
        %v1394 = vpop.permute.xlu0 %1393
        %1395 = vrot.lane.b32.xlu0 %v1349, 127
        %v1396 = vpop.permute.xlu0 %1395
        %1397 = vrot.lane.b32.xlu0 %v1350, 127
        %v1398 = vpop.permute.xlu0 %1397
        %1399 = vrot.lane.b32.xlu0 %v1351, 127
        %v1400 = vpop.permute.xlu0 %1399
        %1401 = vrot.lane.b32.xlu0 %v1352, 127
        %v1402 = vpop.permute.xlu0 %1401
        %1403 = vrot.lane.b32.xlu0 %v1353, 127
        %v1404 = vpop.permute.xlu0 %1403
        %1405 = vrot.lane.b32.xlu0 %v1354, 127
        %v1406 = vpop.permute.xlu0 %1405
        %1407 = vrot.lane.b32.xlu0 %v1355, 127
        %v1408 = vpop.permute.xlu0 %1407
        %1409 = vrot.lane.b32.xlu0 %v1356, 127
        %v1410 = vpop.permute.xlu0 %1409
        %1411 = vrot.lane.b32.xlu0 %v1357, 127
        %v1412 = vpop.permute.xlu0 %1411
        %1413 = vrot.lane.b32.xlu0 %v1358, 127
        %v1414 = vpop.permute.xlu0 %1413
        %1415 = vrot.lane.b32.xlu0 %v1359, 127
        %v1416 = vpop.permute.xlu0 %1415
        %1417 = vrot.lane.b32.xlu0 %v1360, 127
        %v1418 = vpop.permute.xlu0 %1417
        %1419 = vrot.lane.b32.xlu0 %v1361, 127
        %v1420 = vpop.permute.xlu0 %1419
        %1421 = vrot.lane.b32.xlu0 %v1362, 127
        %v1422 = vpop.permute.xlu0 %1421
        %v1423 = vsel %vm982, %v1384, %v1386
        %v1424 = vsel %vm982, %v1386, %v1388
        %v1425 = vsel %vm982, %v1388, %v1390
        %v1426 = vsel %vm982, %v1390, %v1392
        %v1427 = vsel %vm982, %v1392, %v1394
        %v1428 = vsel %vm982, %v1394, %v1396
        %v1429 = vsel %vm982, %v1396, %v1398
        %v1430 = vsel %vm982, %v1398, %v1400
        %v1431 = vsel %vm982, %v1400, %v1402
        %v1432 = vsel %vm982, %v1404, %v1406
        %v1433 = vsel %vm982, %v1406, %v1408
        %v1434 = vsel %vm982, %v1408, %v1410
        %v1435 = vsel %vm982, %v1410, %v1412
        %v1436 = vsel %vm982, %v1412, %v1414
        %v1437 = vsel %vm982, %v1414, %v1416
        %v1438 = vsel %vm982, %v1416, %v1418
        %v1439 = vsel %vm982, %v1418, %v1420
        %v1440 = vsel %vm982, %v1420, %v1422
        %v1459 = vadd.f32 %v1312, %v1423
        %v1460 = vadd.f32 %v1313, %v1424
        %v1461 = vadd.f32 %v1314, %v1425
        %v1462 = vadd.f32 %v1315, %v1426
        %v1463 = vadd.f32 %v1316, %v1427
        %v1464 = vadd.f32 %v1317, %v1428
        %v1465 = vadd.f32 %v1318, %v1429
        %v1466 = vadd.f32 %v1319, %v1430
        %v1467 = vadd.f32 %v1320, %v1431
        %v1468 = vadd.f32 %v1321, %v1432
        %v1469 = vadd.f32 %v1322, %v1433
        %v1470 = vadd.f32 %v1323, %v1434
        %v1471 = vadd.f32 %v1324, %v1435
        %v1472 = vadd.f32 %v1325, %v1436
        %v1473 = vadd.f32 %v1326, %v1437
        %v1474 = vadd.f32 %v1327, %v1438
        %v1475 = vadd.f32 %v1328, %v1439
        %v1476 = vadd.f32 %v1329, %v1440
        %s1477 = scalar_lea.vmem %s2, 96
        %v1478 = vld [vmem:[%s1477] sm:$0xff]
        %v1479 = vld [vmem:[%s1477 + $0x8] sm:$0xff]
        %1481 = vset.pattern.permute.xlu0 0
        %1482 = vperm.xlu0 %1481, %v1478
        %v1483 = vpop.permute.xlu0 %1482
        %1486 = vset.pattern.permute.xlu0 0
        %1487 = vperm.xlu0 %1486, %v1479
        %v1488 = vpop.permute.xlu0 %1487
        %v1490 = vmul.f32 %v1483, %v551
        %v1491 = vmul.f32 %v1483, %v553
        %v1492 = vmul.f32 %v1483, %v628
        %v1493 = vmul.f32 %v1483, %v630
        %v1494 = vmul.f32 %v1483, %v705
        %v1495 = vmul.f32 %v1483, %v707
        %v1496 = vmul.f32 %v1483, %v782
        %v1497 = vmul.f32 %v1483, %v784
        %v1498 = vmul.f32 %v1483, %v859
        %v1499 = vmul.f32 %v1483, %v861
        %v1500 = vmul.f32 %v1488, %v557
        %v1501 = vmul.f32 %v1488, %v559
        %v1502 = vmul.f32 %v1488, %v634
        %v1503 = vmul.f32 %v1488, %v636
        %v1504 = vmul.f32 %v1488, %v711
        %v1505 = vmul.f32 %v1488, %v713
        %v1506 = vmul.f32 %v1488, %v788
        %v1507 = vmul.f32 %v1488, %v790
        %v1508 = vmul.f32 %v1488, %v865
        %v1509 = vmul.f32 %v1488, %v867
        %1530 = vrot.lane.b32.xlu0 %v1490, 126
        %v1531 = vpop.permute.xlu0 %1530
        %1532 = vrot.lane.b32.xlu0 %v1491, 126
        %v1533 = vpop.permute.xlu0 %1532
        %1534 = vrot.lane.b32.xlu0 %v1492, 126
        %v1535 = vpop.permute.xlu0 %1534
        %1536 = vrot.lane.b32.xlu0 %v1493, 126
        %v1537 = vpop.permute.xlu0 %1536
        %1538 = vrot.lane.b32.xlu0 %v1494, 126
        %v1539 = vpop.permute.xlu0 %1538
        %1540 = vrot.lane.b32.xlu0 %v1495, 126
        %v1541 = vpop.permute.xlu0 %1540
        %1542 = vrot.lane.b32.xlu0 %v1496, 126
        %v1543 = vpop.permute.xlu0 %1542
        %1544 = vrot.lane.b32.xlu0 %v1497, 126
        %v1545 = vpop.permute.xlu0 %1544
        %1546 = vrot.lane.b32.xlu0 %v1498, 126
        %v1547 = vpop.permute.xlu0 %1546
        %1548 = vrot.lane.b32.xlu0 %v1499, 126
        %v1549 = vpop.permute.xlu0 %1548
        %1550 = vrot.lane.b32.xlu0 %v1500, 126
        %v1551 = vpop.permute.xlu0 %1550
        %1552 = vrot.lane.b32.xlu0 %v1501, 126
        %v1553 = vpop.permute.xlu0 %1552
        %1554 = vrot.lane.b32.xlu0 %v1502, 126
        %v1555 = vpop.permute.xlu0 %1554
        %1556 = vrot.lane.b32.xlu0 %v1503, 126
        %v1557 = vpop.permute.xlu0 %1556
        %1558 = vrot.lane.b32.xlu0 %v1504, 126
        %v1559 = vpop.permute.xlu0 %1558
        %1560 = vrot.lane.b32.xlu0 %v1505, 126
        %v1561 = vpop.permute.xlu0 %1560
        %1562 = vrot.lane.b32.xlu0 %v1506, 126
        %v1563 = vpop.permute.xlu0 %1562
        %1564 = vrot.lane.b32.xlu0 %v1507, 126
        %v1565 = vpop.permute.xlu0 %1564
        %1566 = vrot.lane.b32.xlu0 %v1508, 126
        %v1567 = vpop.permute.xlu0 %1566
        %1568 = vrot.lane.b32.xlu0 %v1509, 126
        %v1569 = vpop.permute.xlu0 %1568
        %v1570 = vsel %vm1116, %v1531, %v1533
        %v1571 = vsel %vm1116, %v1533, %v1535
        %v1572 = vsel %vm1116, %v1535, %v1537
        %v1573 = vsel %vm1116, %v1537, %v1539
        %v1574 = vsel %vm1116, %v1539, %v1541
        %v1575 = vsel %vm1116, %v1541, %v1543
        %v1576 = vsel %vm1116, %v1543, %v1545
        %v1577 = vsel %vm1116, %v1545, %v1547
        %v1578 = vsel %vm1116, %v1547, %v1549
        %v1579 = vsel %vm1116, %v1551, %v1553
        %v1580 = vsel %vm1116, %v1553, %v1555
        %v1581 = vsel %vm1116, %v1555, %v1557
        %v1582 = vsel %vm1116, %v1557, %v1559
        %v1583 = vsel %vm1116, %v1559, %v1561
        %v1584 = vsel %vm1116, %v1561, %v1563
        %v1585 = vsel %vm1116, %v1563, %v1565
        %v1586 = vsel %vm1116, %v1565, %v1567
        %v1587 = vsel %vm1116, %v1567, %v1569
        %v1606 = vadd.f32 %v1459, %v1570
        %v1607 = vadd.f32 %v1460, %v1571
        %v1608 = vadd.f32 %v1461, %v1572
        %v1609 = vadd.f32 %v1462, %v1573
        %v1610 = vadd.f32 %v1463, %v1574
        %v1611 = vadd.f32 %v1464, %v1575
        %v1612 = vadd.f32 %v1465, %v1576
        %v1613 = vadd.f32 %v1466, %v1577
        %v1614 = vadd.f32 %v1467, %v1578
        %v1615 = vadd.f32 %v1468, %v1579
        %v1616 = vadd.f32 %v1469, %v1580
        %v1617 = vadd.f32 %v1470, %v1581
        %v1618 = vadd.f32 %v1471, %v1582
        %v1619 = vadd.f32 %v1472, %v1583
        %v1620 = vadd.f32 %v1473, %v1584
        %v1621 = vadd.f32 %v1474, %v1585
        %v1622 = vadd.f32 %v1475, %v1586
        %v1623 = vadd.f32 %v1476, %v1587
        %s1624 = scalar_lea.vmem %s2, 112
        %v1625 = vld [vmem:[%s1624] sm:$0xff]
        %v1626 = vld [vmem:[%s1624 + $0x8] sm:$0xff]
        %1628 = vset.pattern.permute.xlu0 0
        %1629 = vperm.xlu0 %1628, %v1625
        %v1630 = vpop.permute.xlu0 %1629
        %1633 = vset.pattern.permute.xlu0 0
        %1634 = vperm.xlu0 %1633, %v1626
        %v1635 = vpop.permute.xlu0 %1634
        %v1637 = vmul.f32 %v1630, %v551
        %v1638 = vmul.f32 %v1630, %v553
        %v1639 = vmul.f32 %v1630, %v628
        %v1640 = vmul.f32 %v1630, %v630
        %v1641 = vmul.f32 %v1630, %v705
        %v1642 = vmul.f32 %v1630, %v707
        %v1643 = vmul.f32 %v1630, %v782
        %v1644 = vmul.f32 %v1630, %v784
        %v1645 = vmul.f32 %v1630, %v859
        %v1646 = vmul.f32 %v1630, %v861
        %v1647 = vmul.f32 %v1635, %v557
        %v1648 = vmul.f32 %v1635, %v559
        %v1649 = vmul.f32 %v1635, %v634
        %v1650 = vmul.f32 %v1635, %v636
        %v1651 = vmul.f32 %v1635, %v711
        %v1652 = vmul.f32 %v1635, %v713
        %v1653 = vmul.f32 %v1635, %v788
        %v1654 = vmul.f32 %v1635, %v790
        %v1655 = vmul.f32 %v1635, %v865
        %v1656 = vmul.f32 %v1635, %v867
        %1677 = vrot.lane.b32.xlu0 %v1637, 125
        %v1678 = vpop.permute.xlu0 %1677
        %1679 = vrot.lane.b32.xlu0 %v1638, 125
        %v1680 = vpop.permute.xlu0 %1679
        %1681 = vrot.lane.b32.xlu0 %v1639, 125
        %v1682 = vpop.permute.xlu0 %1681
        %1683 = vrot.lane.b32.xlu0 %v1640, 125
        %v1684 = vpop.permute.xlu0 %1683
        %1685 = vrot.lane.b32.xlu0 %v1641, 125
        %v1686 = vpop.permute.xlu0 %1685
        %1687 = vrot.lane.b32.xlu0 %v1642, 125
        %v1688 = vpop.permute.xlu0 %1687
        %1689 = vrot.lane.b32.xlu0 %v1643, 125
        %v1690 = vpop.permute.xlu0 %1689
        %1691 = vrot.lane.b32.xlu0 %v1644, 125
        %v1692 = vpop.permute.xlu0 %1691
        %1693 = vrot.lane.b32.xlu0 %v1645, 125
        %v1694 = vpop.permute.xlu0 %1693
        %1695 = vrot.lane.b32.xlu0 %v1646, 125
        %v1696 = vpop.permute.xlu0 %1695
        %1697 = vrot.lane.b32.xlu0 %v1647, 125
        %v1698 = vpop.permute.xlu0 %1697
        %1699 = vrot.lane.b32.xlu0 %v1648, 125
        %v1700 = vpop.permute.xlu0 %1699
        %1701 = vrot.lane.b32.xlu0 %v1649, 125
        %v1702 = vpop.permute.xlu0 %1701
        %1703 = vrot.lane.b32.xlu0 %v1650, 125
        %v1704 = vpop.permute.xlu0 %1703
        %1705 = vrot.lane.b32.xlu0 %v1651, 125
        %v1706 = vpop.permute.xlu0 %1705
        %1707 = vrot.lane.b32.xlu0 %v1652, 125
        %v1708 = vpop.permute.xlu0 %1707
        %1709 = vrot.lane.b32.xlu0 %v1653, 125
        %v1710 = vpop.permute.xlu0 %1709
        %1711 = vrot.lane.b32.xlu0 %v1654, 125
        %v1712 = vpop.permute.xlu0 %1711
        %1713 = vrot.lane.b32.xlu0 %v1655, 125
        %v1714 = vpop.permute.xlu0 %1713
        %1715 = vrot.lane.b32.xlu0 %v1656, 125
        %v1716 = vpop.permute.xlu0 %1715
        %v1717 = vsel %vm1250, %v1678, %v1680
        %v1718 = vsel %vm1250, %v1680, %v1682
        %v1719 = vsel %vm1250, %v1682, %v1684
        %v1720 = vsel %vm1250, %v1684, %v1686
        %v1721 = vsel %vm1250, %v1686, %v1688
        %v1722 = vsel %vm1250, %v1688, %v1690
        %v1723 = vsel %vm1250, %v1690, %v1692
        %v1724 = vsel %vm1250, %v1692, %v1694
        %v1725 = vsel %vm1250, %v1694, %v1696
        %v1726 = vsel %vm1250, %v1698, %v1700
        %v1727 = vsel %vm1250, %v1700, %v1702
        %v1728 = vsel %vm1250, %v1702, %v1704
        %v1729 = vsel %vm1250, %v1704, %v1706
        %v1730 = vsel %vm1250, %v1706, %v1708
        %v1731 = vsel %vm1250, %v1708, %v1710
        %v1732 = vsel %vm1250, %v1710, %v1712
        %v1733 = vsel %vm1250, %v1712, %v1714
        %v1734 = vsel %vm1250, %v1714, %v1716
        %v1753 = vadd.f32 %v1606, %v1717
        %v1754 = vadd.f32 %v1607, %v1718
        %v1755 = vadd.f32 %v1608, %v1719
        %v1756 = vadd.f32 %v1609, %v1720
        %v1757 = vadd.f32 %v1610, %v1721
        %v1758 = vadd.f32 %v1611, %v1722
        %v1759 = vadd.f32 %v1612, %v1723
        %v1760 = vadd.f32 %v1613, %v1724
        %v1761 = vadd.f32 %v1614, %v1725
        %v1762 = vadd.f32 %v1615, %v1726
        %v1763 = vadd.f32 %v1616, %v1727
        %v1764 = vadd.f32 %v1617, %v1728
        %v1765 = vadd.f32 %v1618, %v1729
        %v1766 = vadd.f32 %v1619, %v1730
        %v1767 = vadd.f32 %v1620, %v1731
        %v1768 = vadd.f32 %v1621, %v1732
        %v1769 = vadd.f32 %v1622, %v1733
        %v1770 = vadd.f32 %v1623, %v1734
        %1789 = vrot.lane.b32.xlu0 %v1753, 124
        %v1790 = vpop.permute.xlu0 %1789
        %1791 = vrot.lane.b32.xlu0 %v1754, 124
        %v1792 = vpop.permute.xlu0 %1791
        %1793 = vrot.lane.b32.xlu0 %v1755, 124
        %v1794 = vpop.permute.xlu0 %1793
        %1795 = vrot.lane.b32.xlu0 %v1756, 124
        %v1796 = vpop.permute.xlu0 %1795
        %1797 = vrot.lane.b32.xlu0 %v1757, 124
        %v1798 = vpop.permute.xlu0 %1797
        %1799 = vrot.lane.b32.xlu0 %v1758, 124
        %v1800 = vpop.permute.xlu0 %1799
        %1801 = vrot.lane.b32.xlu0 %v1759, 124
        %v1802 = vpop.permute.xlu0 %1801
        %1803 = vrot.lane.b32.xlu0 %v1760, 124
        %v1804 = vpop.permute.xlu0 %1803
        %1805 = vrot.lane.b32.xlu0 %v1761, 124
        %v1806 = vpop.permute.xlu0 %1805
        %1807 = vrot.lane.b32.xlu0 %v1762, 124
        %v1808 = vpop.permute.xlu0 %1807
        %1809 = vrot.lane.b32.xlu0 %v1763, 124
        %v1810 = vpop.permute.xlu0 %1809
        %1811 = vrot.lane.b32.xlu0 %v1764, 124
        %v1812 = vpop.permute.xlu0 %1811
        %1813 = vrot.lane.b32.xlu0 %v1765, 124
        %v1814 = vpop.permute.xlu0 %1813
        %1815 = vrot.lane.b32.xlu0 %v1766, 124
        %v1816 = vpop.permute.xlu0 %1815
        %1817 = vrot.lane.b32.xlu0 %v1767, 124
        %v1818 = vpop.permute.xlu0 %1817
        %1819 = vrot.lane.b32.xlu0 %v1768, 124
        %v1820 = vpop.permute.xlu0 %1819
        %1821 = vrot.lane.b32.xlu0 %v1769, 124
        %v1822 = vpop.permute.xlu0 %1821
        %1823 = vrot.lane.b32.xlu0 %v1770, 124
        %v1824 = vpop.permute.xlu0 %1823
        %vm1825 = vcmask 1014784
        %v1826 = vsel %vm1825, %v1790, %v1792
        %v1827 = vsel %vm1825, %v1792, %v1794
        %v1828 = vsel %vm1825, %v1794, %v1796
        %v1829 = vsel %vm1825, %v1796, %v1798
        %v1830 = vsel %vm1825, %v1798, %v1800
        %v1831 = vsel %vm1825, %v1800, %v1802
        %v1832 = vsel %vm1825, %v1802, %v1804
        %v1833 = vsel %vm1825, %v1804, %v1806
        %v1834 = vsel %vm1825, %v1808, %v1810
        %v1835 = vsel %vm1825, %v1810, %v1812
        %v1836 = vsel %vm1825, %v1812, %v1814
        %v1837 = vsel %vm1825, %v1814, %v1816
        %v1838 = vsel %vm1825, %v1816, %v1818
        %v1839 = vsel %vm1825, %v1818, %v1820
        %v1840 = vsel %vm1825, %v1820, %v1822
        %v1841 = vsel %vm1825, %v1822, %v1824
        %v1858 = vadd.f32 %v1283, %v1826
        %v1859 = vadd.f32 %v1284, %v1827
        %v1860 = vadd.f32 %v1285, %v1828
        %v1861 = vadd.f32 %v1286, %v1829
        %v1862 = vadd.f32 %v1287, %v1830
        %v1863 = vadd.f32 %v1288, %v1831
        %v1864 = vadd.f32 %v1289, %v1832
        %v1865 = vadd.f32 %v1290, %v1833
        %v1866 = vadd.f32 %v1291, %v1834
        %v1867 = vadd.f32 %v1292, %v1835
        %v1868 = vadd.f32 %v1293, %v1836
        %v1869 = vadd.f32 %v1294, %v1837
        %v1870 = vadd.f32 %v1295, %v1838
        %v1871 = vadd.f32 %v1296, %v1839
        %v1872 = vadd.f32 %v1297, %v1840
        %v1873 = vadd.f32 %v1298, %v1841
        %s1874 = scalar_lea.vmem %s2, 128
        %v1875 = vld [vmem:[%s1874] sm:$0xff]
        %v1876 = vld [vmem:[%s1874 + $0x8] sm:$0xff]
        %1878 = vset.pattern.permute.xlu0 0
        %1879 = vperm.xlu0 %1878, %v1875
        %v1880 = vpop.permute.xlu0 %1879
        %1883 = vset.pattern.permute.xlu0 0
        %1884 = vperm.xlu0 %1883, %v1876
        %v1885 = vpop.permute.xlu0 %1884
        %v1887 = vmul.f32 %v1880, %v551
        %v1888 = vmul.f32 %v1880, %v553
        %v1889 = vmul.f32 %v1880, %v628
        %v1890 = vmul.f32 %v1880, %v630
        %v1891 = vmul.f32 %v1880, %v705
        %v1892 = vmul.f32 %v1880, %v707
        %v1893 = vmul.f32 %v1880, %v782
        %v1894 = vmul.f32 %v1880, %v784
        %v1895 = vmul.f32 %v1880, %v859
        %v1896 = vmul.f32 %v1885, %v557
        %v1897 = vmul.f32 %v1885, %v559
        %v1898 = vmul.f32 %v1885, %v634
        %v1899 = vmul.f32 %v1885, %v636
        %v1900 = vmul.f32 %v1885, %v711
        %v1901 = vmul.f32 %v1885, %v713
        %v1902 = vmul.f32 %v1885, %v788
        %v1903 = vmul.f32 %v1885, %v790
        %v1904 = vmul.f32 %v1885, %v865
        %s1905 = scalar_lea.vmem %s2, 144
        %v1906 = vld [vmem:[%s1905] sm:$0xff]
        %v1907 = vld [vmem:[%s1905 + $0x8] sm:$0xff]
        %1909 = vset.pattern.permute.xlu0 0
        %1910 = vperm.xlu0 %1909, %v1906
        %v1911 = vpop.permute.xlu0 %1910
        %1914 = vset.pattern.permute.xlu0 0
        %1915 = vperm.xlu0 %1914, %v1907
        %v1916 = vpop.permute.xlu0 %1915
        %v1918 = vmul.f32 %v1911, %v551
        %v1919 = vmul.f32 %v1911, %v553
        %v1920 = vmul.f32 %v1911, %v628
        %v1921 = vmul.f32 %v1911, %v630
        %v1922 = vmul.f32 %v1911, %v705
        %v1923 = vmul.f32 %v1911, %v707
        %v1924 = vmul.f32 %v1911, %v782
        %v1925 = vmul.f32 %v1911, %v784
        %v1926 = vmul.f32 %v1911, %v859
        %v1927 = vmul.f32 %v1911, %v861
        %v1928 = vmul.f32 %v1916, %v557
        %v1929 = vmul.f32 %v1916, %v559
        %v1930 = vmul.f32 %v1916, %v634
        %v1931 = vmul.f32 %v1916, %v636
        %v1932 = vmul.f32 %v1916, %v711
        %v1933 = vmul.f32 %v1916, %v713
        %v1934 = vmul.f32 %v1916, %v788
        %v1935 = vmul.f32 %v1916, %v790
        %v1936 = vmul.f32 %v1916, %v865
        %v1937 = vmul.f32 %v1916, %v867
        %1958 = vrot.lane.b32.xlu0 %v1918, 127
        %v1959 = vpop.permute.xlu0 %1958
        %1960 = vrot.lane.b32.xlu0 %v1919, 127
        %v1961 = vpop.permute.xlu0 %1960
        %1962 = vrot.lane.b32.xlu0 %v1920, 127
        %v1963 = vpop.permute.xlu0 %1962
        %1964 = vrot.lane.b32.xlu0 %v1921, 127
        %v1965 = vpop.permute.xlu0 %1964
        %1966 = vrot.lane.b32.xlu0 %v1922, 127
        %v1967 = vpop.permute.xlu0 %1966
        %1968 = vrot.lane.b32.xlu0 %v1923, 127
        %v1969 = vpop.permute.xlu0 %1968
        %1970 = vrot.lane.b32.xlu0 %v1924, 127
        %v1971 = vpop.permute.xlu0 %1970
        %1972 = vrot.lane.b32.xlu0 %v1925, 127
        %v1973 = vpop.permute.xlu0 %1972
        %1974 = vrot.lane.b32.xlu0 %v1926, 127
        %v1975 = vpop.permute.xlu0 %1974
        %1976 = vrot.lane.b32.xlu0 %v1927, 127
        %v1977 = vpop.permute.xlu0 %1976
        %1978 = vrot.lane.b32.xlu0 %v1928, 127
        %v1979 = vpop.permute.xlu0 %1978
        %1980 = vrot.lane.b32.xlu0 %v1929, 127
        %v1981 = vpop.permute.xlu0 %1980
        %1982 = vrot.lane.b32.xlu0 %v1930, 127
        %v1983 = vpop.permute.xlu0 %1982
        %1984 = vrot.lane.b32.xlu0 %v1931, 127
        %v1985 = vpop.permute.xlu0 %1984
        %1986 = vrot.lane.b32.xlu0 %v1932, 127
        %v1987 = vpop.permute.xlu0 %1986
        %1988 = vrot.lane.b32.xlu0 %v1933, 127
        %v1989 = vpop.permute.xlu0 %1988
        %1990 = vrot.lane.b32.xlu0 %v1934, 127
        %v1991 = vpop.permute.xlu0 %1990
        %1992 = vrot.lane.b32.xlu0 %v1935, 127
        %v1993 = vpop.permute.xlu0 %1992
        %1994 = vrot.lane.b32.xlu0 %v1936, 127
        %v1995 = vpop.permute.xlu0 %1994
        %1996 = vrot.lane.b32.xlu0 %v1937, 127
        %v1997 = vpop.permute.xlu0 %1996
        %v1998 = vsel %vm982, %v1959, %v1961
        %v1999 = vsel %vm982, %v1961, %v1963
        %v2000 = vsel %vm982, %v1963, %v1965
        %v2001 = vsel %vm982, %v1965, %v1967
        %v2002 = vsel %vm982, %v1967, %v1969
        %v2003 = vsel %vm982, %v1969, %v1971
        %v2004 = vsel %vm982, %v1971, %v1973
        %v2005 = vsel %vm982, %v1973, %v1975
        %v2006 = vsel %vm982, %v1975, %v1977
        %v2007 = vsel %vm982, %v1979, %v1981
        %v2008 = vsel %vm982, %v1981, %v1983
        %v2009 = vsel %vm982, %v1983, %v1985
        %v2010 = vsel %vm982, %v1985, %v1987
        %v2011 = vsel %vm982, %v1987, %v1989
        %v2012 = vsel %vm982, %v1989, %v1991
        %v2013 = vsel %vm982, %v1991, %v1993
        %v2014 = vsel %vm982, %v1993, %v1995
        %v2015 = vsel %vm982, %v1995, %v1997
        %v2034 = vadd.f32 %v1887, %v1998
        %v2035 = vadd.f32 %v1888, %v1999
        %v2036 = vadd.f32 %v1889, %v2000
        %v2037 = vadd.f32 %v1890, %v2001
        %v2038 = vadd.f32 %v1891, %v2002
        %v2039 = vadd.f32 %v1892, %v2003
        %v2040 = vadd.f32 %v1893, %v2004
        %v2041 = vadd.f32 %v1894, %v2005
        %v2042 = vadd.f32 %v1895, %v2006
        %v2043 = vadd.f32 %v1896, %v2007
        %v2044 = vadd.f32 %v1897, %v2008
        %v2045 = vadd.f32 %v1898, %v2009
        %v2046 = vadd.f32 %v1899, %v2010
        %v2047 = vadd.f32 %v1900, %v2011
        %v2048 = vadd.f32 %v1901, %v2012
        %v2049 = vadd.f32 %v1902, %v2013
        %v2050 = vadd.f32 %v1903, %v2014
        %v2051 = vadd.f32 %v1904, %v2015
        %s2052 = scalar_lea.vmem %s2, 160
        %v2053 = vld [vmem:[%s2052] sm:$0xff]
        %v2054 = vld [vmem:[%s2052 + $0x8] sm:$0xff]
        %2056 = vset.pattern.permute.xlu0 0
        %2057 = vperm.xlu0 %2056, %v2053
        %v2058 = vpop.permute.xlu0 %2057
        %2061 = vset.pattern.permute.xlu0 0
        %2062 = vperm.xlu0 %2061, %v2054
        %v2063 = vpop.permute.xlu0 %2062
        %v2065 = vmul.f32 %v2058, %v551
        %v2066 = vmul.f32 %v2058, %v553
        %v2067 = vmul.f32 %v2058, %v628
        %v2068 = vmul.f32 %v2058, %v630
        %v2069 = vmul.f32 %v2058, %v705
        %v2070 = vmul.f32 %v2058, %v707
        %v2071 = vmul.f32 %v2058, %v782
        %v2072 = vmul.f32 %v2058, %v784
        %v2073 = vmul.f32 %v2058, %v859
        %v2074 = vmul.f32 %v2058, %v861
        %v2075 = vmul.f32 %v2063, %v557
        %v2076 = vmul.f32 %v2063, %v559
        %v2077 = vmul.f32 %v2063, %v634
        %v2078 = vmul.f32 %v2063, %v636
        %v2079 = vmul.f32 %v2063, %v711
        %v2080 = vmul.f32 %v2063, %v713
        %v2081 = vmul.f32 %v2063, %v788
        %v2082 = vmul.f32 %v2063, %v790
        %v2083 = vmul.f32 %v2063, %v865
        %v2084 = vmul.f32 %v2063, %v867
        %2105 = vrot.lane.b32.xlu0 %v2065, 126
        %v2106 = vpop.permute.xlu0 %2105
        %2107 = vrot.lane.b32.xlu0 %v2066, 126
        %v2108 = vpop.permute.xlu0 %2107
        %2109 = vrot.lane.b32.xlu0 %v2067, 126
        %v2110 = vpop.permute.xlu0 %2109
        %2111 = vrot.lane.b32.xlu0 %v2068, 126
        %v2112 = vpop.permute.xlu0 %2111
        %2113 = vrot.lane.b32.xlu0 %v2069, 126
        %v2114 = vpop.permute.xlu0 %2113
        %2115 = vrot.lane.b32.xlu0 %v2070, 126
        %v2116 = vpop.permute.xlu0 %2115
        %2117 = vrot.lane.b32.xlu0 %v2071, 126
        %v2118 = vpop.permute.xlu0 %2117
        %2119 = vrot.lane.b32.xlu0 %v2072, 126
        %v2120 = vpop.permute.xlu0 %2119
        %2121 = vrot.lane.b32.xlu0 %v2073, 126
        %v2122 = vpop.permute.xlu0 %2121
        %2123 = vrot.lane.b32.xlu0 %v2074, 126
        %v2124 = vpop.permute.xlu0 %2123
        %2125 = vrot.lane.b32.xlu0 %v2075, 126
        %v2126 = vpop.permute.xlu0 %2125
        %2127 = vrot.lane.b32.xlu0 %v2076, 126
        %v2128 = vpop.permute.xlu0 %2127
        %2129 = vrot.lane.b32.xlu0 %v2077, 126
        %v2130 = vpop.permute.xlu0 %2129
        %2131 = vrot.lane.b32.xlu0 %v2078, 126
        %v2132 = vpop.permute.xlu0 %2131
        %2133 = vrot.lane.b32.xlu0 %v2079, 126
        %v2134 = vpop.permute.xlu0 %2133
        %2135 = vrot.lane.b32.xlu0 %v2080, 126
        %v2136 = vpop.permute.xlu0 %2135
        %2137 = vrot.lane.b32.xlu0 %v2081, 126
        %v2138 = vpop.permute.xlu0 %2137
        %2139 = vrot.lane.b32.xlu0 %v2082, 126
        %v2140 = vpop.permute.xlu0 %2139
        %2141 = vrot.lane.b32.xlu0 %v2083, 126
        %v2142 = vpop.permute.xlu0 %2141
        %2143 = vrot.lane.b32.xlu0 %v2084, 126
        %v2144 = vpop.permute.xlu0 %2143
        %v2145 = vsel %vm1116, %v2106, %v2108
        %v2146 = vsel %vm1116, %v2108, %v2110
        %v2147 = vsel %vm1116, %v2110, %v2112
        %v2148 = vsel %vm1116, %v2112, %v2114
        %v2149 = vsel %vm1116, %v2114, %v2116
        %v2150 = vsel %vm1116, %v2116, %v2118
        %v2151 = vsel %vm1116, %v2118, %v2120
        %v2152 = vsel %vm1116, %v2120, %v2122
        %v2153 = vsel %vm1116, %v2122, %v2124
        %v2154 = vsel %vm1116, %v2126, %v2128
        %v2155 = vsel %vm1116, %v2128, %v2130
        %v2156 = vsel %vm1116, %v2130, %v2132
        %v2157 = vsel %vm1116, %v2132, %v2134
        %v2158 = vsel %vm1116, %v2134, %v2136
        %v2159 = vsel %vm1116, %v2136, %v2138
        %v2160 = vsel %vm1116, %v2138, %v2140
        %v2161 = vsel %vm1116, %v2140, %v2142
        %v2162 = vsel %vm1116, %v2142, %v2144
        %v2181 = vadd.f32 %v2034, %v2145
        %v2182 = vadd.f32 %v2035, %v2146
        %v2183 = vadd.f32 %v2036, %v2147
        %v2184 = vadd.f32 %v2037, %v2148
        %v2185 = vadd.f32 %v2038, %v2149
        %v2186 = vadd.f32 %v2039, %v2150
        %v2187 = vadd.f32 %v2040, %v2151
        %v2188 = vadd.f32 %v2041, %v2152
        %v2189 = vadd.f32 %v2042, %v2153
        %v2190 = vadd.f32 %v2043, %v2154
        %v2191 = vadd.f32 %v2044, %v2155
        %v2192 = vadd.f32 %v2045, %v2156
        %v2193 = vadd.f32 %v2046, %v2157
        %v2194 = vadd.f32 %v2047, %v2158
        %v2195 = vadd.f32 %v2048, %v2159
        %v2196 = vadd.f32 %v2049, %v2160
        %v2197 = vadd.f32 %v2050, %v2161
        %v2198 = vadd.f32 %v2051, %v2162
        %s2199 = scalar_lea.vmem %s2, 176
        %v2200 = vld [vmem:[%s2199] sm:$0xff]
        %v2201 = vld [vmem:[%s2199 + $0x8] sm:$0xff]
        %2203 = vset.pattern.permute.xlu0 0
        %2204 = vperm.xlu0 %2203, %v2200
        %v2205 = vpop.permute.xlu0 %2204
        %2208 = vset.pattern.permute.xlu0 0
        %2209 = vperm.xlu0 %2208, %v2201
        %v2210 = vpop.permute.xlu0 %2209
        %v2212 = vmul.f32 %v2205, %v551
        %v2213 = vmul.f32 %v2205, %v553
        %v2214 = vmul.f32 %v2205, %v628
        %v2215 = vmul.f32 %v2205, %v630
        %v2216 = vmul.f32 %v2205, %v705
        %v2217 = vmul.f32 %v2205, %v707
        %v2218 = vmul.f32 %v2205, %v782
        %v2219 = vmul.f32 %v2205, %v784
        %v2220 = vmul.f32 %v2205, %v859
        %v2221 = vmul.f32 %v2205, %v861
        %v2222 = vmul.f32 %v2210, %v557
        %v2223 = vmul.f32 %v2210, %v559
        %v2224 = vmul.f32 %v2210, %v634
        %v2225 = vmul.f32 %v2210, %v636
        %v2226 = vmul.f32 %v2210, %v711
        %v2227 = vmul.f32 %v2210, %v713
        %v2228 = vmul.f32 %v2210, %v788
        %v2229 = vmul.f32 %v2210, %v790
        %v2230 = vmul.f32 %v2210, %v865
        %v2231 = vmul.f32 %v2210, %v867
        %2252 = vrot.lane.b32.xlu0 %v2212, 125
        %v2253 = vpop.permute.xlu0 %2252
        %2254 = vrot.lane.b32.xlu0 %v2213, 125
        %v2255 = vpop.permute.xlu0 %2254
        %2256 = vrot.lane.b32.xlu0 %v2214, 125
        %v2257 = vpop.permute.xlu0 %2256
        %2258 = vrot.lane.b32.xlu0 %v2215, 125
        %v2259 = vpop.permute.xlu0 %2258
        %2260 = vrot.lane.b32.xlu0 %v2216, 125
        %v2261 = vpop.permute.xlu0 %2260
        %2262 = vrot.lane.b32.xlu0 %v2217, 125
        %v2263 = vpop.permute.xlu0 %2262
        %2264 = vrot.lane.b32.xlu0 %v2218, 125
        %v2265 = vpop.permute.xlu0 %2264
        %2266 = vrot.lane.b32.xlu0 %v2219, 125
        %v2267 = vpop.permute.xlu0 %2266
        %2268 = vrot.lane.b32.xlu0 %v2220, 125
        %v2269 = vpop.permute.xlu0 %2268
        %2270 = vrot.lane.b32.xlu0 %v2221, 125
        %v2271 = vpop.permute.xlu0 %2270
        %2272 = vrot.lane.b32.xlu0 %v2222, 125
        %v2273 = vpop.permute.xlu0 %2272
        %2274 = vrot.lane.b32.xlu0 %v2223, 125
        %v2275 = vpop.permute.xlu0 %2274
        %2276 = vrot.lane.b32.xlu0 %v2224, 125
        %v2277 = vpop.permute.xlu0 %2276
        %2278 = vrot.lane.b32.xlu0 %v2225, 125
        %v2279 = vpop.permute.xlu0 %2278
        %2280 = vrot.lane.b32.xlu0 %v2226, 125
        %v2281 = vpop.permute.xlu0 %2280
        %2282 = vrot.lane.b32.xlu0 %v2227, 125
        %v2283 = vpop.permute.xlu0 %2282
        %2284 = vrot.lane.b32.xlu0 %v2228, 125
        %v2285 = vpop.permute.xlu0 %2284
        %2286 = vrot.lane.b32.xlu0 %v2229, 125
        %v2287 = vpop.permute.xlu0 %2286
        %2288 = vrot.lane.b32.xlu0 %v2230, 125
        %v2289 = vpop.permute.xlu0 %2288
        %2290 = vrot.lane.b32.xlu0 %v2231, 125
        %v2291 = vpop.permute.xlu0 %2290
        %v2292 = vsel %vm1250, %v2253, %v2255
        %v2293 = vsel %vm1250, %v2255, %v2257
        %v2294 = vsel %vm1250, %v2257, %v2259
        %v2295 = vsel %vm1250, %v2259, %v2261
        %v2296 = vsel %vm1250, %v2261, %v2263
        %v2297 = vsel %vm1250, %v2263, %v2265
        %v2298 = vsel %vm1250, %v2265, %v2267
        %v2299 = vsel %vm1250, %v2267, %v2269
        %v2300 = vsel %vm1250, %v2269, %v2271
        %v2301 = vsel %vm1250, %v2273, %v2275
        %v2302 = vsel %vm1250, %v2275, %v2277
        %v2303 = vsel %vm1250, %v2277, %v2279
        %v2304 = vsel %vm1250, %v2279, %v2281
        %v2305 = vsel %vm1250, %v2281, %v2283
        %v2306 = vsel %vm1250, %v2283, %v2285
        %v2307 = vsel %vm1250, %v2285, %v2287
        %v2308 = vsel %vm1250, %v2287, %v2289
        %v2309 = vsel %vm1250, %v2289, %v2291
        %v2328 = vadd.f32 %v2181, %v2292
        %v2329 = vadd.f32 %v2182, %v2293
        %v2330 = vadd.f32 %v2183, %v2294
        %v2331 = vadd.f32 %v2184, %v2295
        %v2332 = vadd.f32 %v2185, %v2296
        %v2333 = vadd.f32 %v2186, %v2297
        %v2334 = vadd.f32 %v2187, %v2298
        %v2335 = vadd.f32 %v2188, %v2299
        %v2336 = vadd.f32 %v2189, %v2300
        %v2337 = vadd.f32 %v2190, %v2301
        %v2338 = vadd.f32 %v2191, %v2302
        %v2339 = vadd.f32 %v2192, %v2303
        %v2340 = vadd.f32 %v2193, %v2304
        %v2341 = vadd.f32 %v2194, %v2305
        %v2342 = vadd.f32 %v2195, %v2306
        %v2343 = vadd.f32 %v2196, %v2307
        %v2344 = vadd.f32 %v2197, %v2308
        %v2345 = vadd.f32 %v2198, %v2309
        %2364 = vrot.lane.b32.xlu0 %v2328, 120
        %v2365 = vpop.permute.xlu0 %2364
        %2366 = vrot.lane.b32.xlu0 %v2329, 120
        %v2367 = vpop.permute.xlu0 %2366
        %2368 = vrot.lane.b32.xlu0 %v2330, 120
        %v2369 = vpop.permute.xlu0 %2368
        %2370 = vrot.lane.b32.xlu0 %v2331, 120
        %v2371 = vpop.permute.xlu0 %2370
        %2372 = vrot.lane.b32.xlu0 %v2332, 120
        %v2373 = vpop.permute.xlu0 %2372
        %2374 = vrot.lane.b32.xlu0 %v2333, 120
        %v2375 = vpop.permute.xlu0 %2374
        %2376 = vrot.lane.b32.xlu0 %v2334, 120
        %v2377 = vpop.permute.xlu0 %2376
        %2378 = vrot.lane.b32.xlu0 %v2335, 120
        %v2379 = vpop.permute.xlu0 %2378
        %2380 = vrot.lane.b32.xlu0 %v2336, 120
        %v2381 = vpop.permute.xlu0 %2380
        %2382 = vrot.lane.b32.xlu0 %v2337, 120
        %v2383 = vpop.permute.xlu0 %2382
        %2384 = vrot.lane.b32.xlu0 %v2338, 120
        %v2385 = vpop.permute.xlu0 %2384
        %2386 = vrot.lane.b32.xlu0 %v2339, 120
        %v2387 = vpop.permute.xlu0 %2386
        %2388 = vrot.lane.b32.xlu0 %v2340, 120
        %v2389 = vpop.permute.xlu0 %2388
        %2390 = vrot.lane.b32.xlu0 %v2341, 120
        %v2391 = vpop.permute.xlu0 %2390
        %2392 = vrot.lane.b32.xlu0 %v2342, 120
        %v2393 = vpop.permute.xlu0 %2392
        %2394 = vrot.lane.b32.xlu0 %v2343, 120
        %v2395 = vpop.permute.xlu0 %2394
        %2396 = vrot.lane.b32.xlu0 %v2344, 120
        %v2397 = vpop.permute.xlu0 %2396
        %2398 = vrot.lane.b32.xlu0 %v2345, 120
        %v2399 = vpop.permute.xlu0 %2398
        %vm2400 = vcmask 982016
        %v2401 = vsel %vm2400, %v2365, %v2367
        %v2402 = vsel %vm2400, %v2367, %v2369
        %v2403 = vsel %vm2400, %v2369, %v2371
        %v2404 = vsel %vm2400, %v2371, %v2373
        %v2405 = vsel %vm2400, %v2373, %v2375
        %v2406 = vsel %vm2400, %v2375, %v2377
        %v2407 = vsel %vm2400, %v2377, %v2379
        %v2408 = vsel %vm2400, %v2379, %v2381
        %v2409 = vsel %vm2400, %v2383, %v2385
        %v2410 = vsel %vm2400, %v2385, %v2387
        %v2411 = vsel %vm2400, %v2387, %v2389
        %v2412 = vsel %vm2400, %v2389, %v2391
        %v2413 = vsel %vm2400, %v2391, %v2393
        %v2414 = vsel %vm2400, %v2393, %v2395
        %v2415 = vsel %vm2400, %v2395, %v2397
        %v2416 = vsel %vm2400, %v2397, %v2399
        %v2433 = vadd.f32 %v1858, %v2401
        %v2434 = vadd.f32 %v1859, %v2402
        %v2435 = vadd.f32 %v1860, %v2403
        %v2436 = vadd.f32 %v1861, %v2404
        %v2437 = vadd.f32 %v1862, %v2405
        %v2438 = vadd.f32 %v1863, %v2406
        %v2439 = vadd.f32 %v1864, %v2407
        %v2440 = vadd.f32 %v1865, %v2408
        %v2441 = vadd.f32 %v1866, %v2409
        %v2442 = vadd.f32 %v1867, %v2410
        %v2443 = vadd.f32 %v1868, %v2411
        %v2444 = vadd.f32 %v1869, %v2412
        %v2445 = vadd.f32 %v1870, %v2413
        %v2446 = vadd.f32 %v1871, %v2414
        %v2447 = vadd.f32 %v1872, %v2415
        %v2448 = vadd.f32 %v1873, %v2416
        %s2449 = scalar_lea.vmem %s2, 192
        %v2450 = vld [vmem:[%s2449] sm:$0xff]
        %v2451 = vld [vmem:[%s2449 + $0x8] sm:$0xff]
        %2453 = vset.pattern.permute.xlu0 0
        %2454 = vperm.xlu0 %2453, %v2450
        %v2455 = vpop.permute.xlu0 %2454
        %2458 = vset.pattern.permute.xlu0 0
        %2459 = vperm.xlu0 %2458, %v2451
        %v2460 = vpop.permute.xlu0 %2459
        %v2462 = vmul.f32 %v2455, %v551
        %v2463 = vmul.f32 %v2455, %v553
        %v2464 = vmul.f32 %v2455, %v628
        %v2465 = vmul.f32 %v2455, %v630
        %v2466 = vmul.f32 %v2455, %v705
        %v2467 = vmul.f32 %v2455, %v707
        %v2468 = vmul.f32 %v2455, %v782
        %v2469 = vmul.f32 %v2455, %v784
        %v2470 = vmul.f32 %v2455, %v859
        %v2471 = vmul.f32 %v2460, %v557
        %v2472 = vmul.f32 %v2460, %v559
        %v2473 = vmul.f32 %v2460, %v634
        %v2474 = vmul.f32 %v2460, %v636
        %v2475 = vmul.f32 %v2460, %v711
        %v2476 = vmul.f32 %v2460, %v713
        %v2477 = vmul.f32 %v2460, %v788
        %v2478 = vmul.f32 %v2460, %v790
        %v2479 = vmul.f32 %v2460, %v865
        %s2480 = scalar_lea.vmem %s2, 208
        %v2481 = vld [vmem:[%s2480] sm:$0xff]
        %v2482 = vld [vmem:[%s2480 + $0x8] sm:$0xff]
        %2484 = vset.pattern.permute.xlu0 0
        %2485 = vperm.xlu0 %2484, %v2481
        %v2486 = vpop.permute.xlu0 %2485
        %2489 = vset.pattern.permute.xlu0 0
        %2490 = vperm.xlu0 %2489, %v2482
        %v2491 = vpop.permute.xlu0 %2490
        %v2493 = vmul.f32 %v2486, %v551
        %v2494 = vmul.f32 %v2486, %v553
        %v2495 = vmul.f32 %v2486, %v628
        %v2496 = vmul.f32 %v2486, %v630
        %v2497 = vmul.f32 %v2486, %v705
        %v2498 = vmul.f32 %v2486, %v707
        %v2499 = vmul.f32 %v2486, %v782
        %v2500 = vmul.f32 %v2486, %v784
        %v2501 = vmul.f32 %v2486, %v859
        %v2502 = vmul.f32 %v2486, %v861
        %v2503 = vmul.f32 %v2491, %v557
        %v2504 = vmul.f32 %v2491, %v559
        %v2505 = vmul.f32 %v2491, %v634
        %v2506 = vmul.f32 %v2491, %v636
        %v2507 = vmul.f32 %v2491, %v711
        %v2508 = vmul.f32 %v2491, %v713
        %v2509 = vmul.f32 %v2491, %v788
        %v2510 = vmul.f32 %v2491, %v790
        %v2511 = vmul.f32 %v2491, %v865
        %v2512 = vmul.f32 %v2491, %v867
        %2533 = vrot.lane.b32.xlu0 %v2493, 127
        %v2534 = vpop.permute.xlu0 %2533
        %2535 = vrot.lane.b32.xlu0 %v2494, 127
        %v2536 = vpop.permute.xlu0 %2535
        %2537 = vrot.lane.b32.xlu0 %v2495, 127
        %v2538 = vpop.permute.xlu0 %2537
        %2539 = vrot.lane.b32.xlu0 %v2496, 127
        %v2540 = vpop.permute.xlu0 %2539
        %2541 = vrot.lane.b32.xlu0 %v2497, 127
        %v2542 = vpop.permute.xlu0 %2541
        %2543 = vrot.lane.b32.xlu0 %v2498, 127
        %v2544 = vpop.permute.xlu0 %2543
        %2545 = vrot.lane.b32.xlu0 %v2499, 127
        %v2546 = vpop.permute.xlu0 %2545
        %2547 = vrot.lane.b32.xlu0 %v2500, 127
        %v2548 = vpop.permute.xlu0 %2547
        %2549 = vrot.lane.b32.xlu0 %v2501, 127
        %v2550 = vpop.permute.xlu0 %2549
        %2551 = vrot.lane.b32.xlu0 %v2502, 127
        %v2552 = vpop.permute.xlu0 %2551
        %2553 = vrot.lane.b32.xlu0 %v2503, 127
        %v2554 = vpop.permute.xlu0 %2553
        %2555 = vrot.lane.b32.xlu0 %v2504, 127
        %v2556 = vpop.permute.xlu0 %2555
        %2557 = vrot.lane.b32.xlu0 %v2505, 127
        %v2558 = vpop.permute.xlu0 %2557
        %2559 = vrot.lane.b32.xlu0 %v2506, 127
        %v2560 = vpop.permute.xlu0 %2559
        %2561 = vrot.lane.b32.xlu0 %v2507, 127
        %v2562 = vpop.permute.xlu0 %2561
        %2563 = vrot.lane.b32.xlu0 %v2508, 127
        %v2564 = vpop.permute.xlu0 %2563
        %2565 = vrot.lane.b32.xlu0 %v2509, 127
        %v2566 = vpop.permute.xlu0 %2565
        %2567 = vrot.lane.b32.xlu0 %v2510, 127
        %v2568 = vpop.permute.xlu0 %2567
        %2569 = vrot.lane.b32.xlu0 %v2511, 127
        %v2570 = vpop.permute.xlu0 %2569
        %2571 = vrot.lane.b32.xlu0 %v2512, 127
        %v2572 = vpop.permute.xlu0 %2571
        %v2573 = vsel %vm982, %v2534, %v2536
        %v2574 = vsel %vm982, %v2536, %v2538
        %v2575 = vsel %vm982, %v2538, %v2540
        %v2576 = vsel %vm982, %v2540, %v2542
        %v2577 = vsel %vm982, %v2542, %v2544
        %v2578 = vsel %vm982, %v2544, %v2546
        %v2579 = vsel %vm982, %v2546, %v2548
        %v2580 = vsel %vm982, %v2548, %v2550
        %v2581 = vsel %vm982, %v2550, %v2552
        %v2582 = vsel %vm982, %v2554, %v2556
        %v2583 = vsel %vm982, %v2556, %v2558
        %v2584 = vsel %vm982, %v2558, %v2560
        %v2585 = vsel %vm982, %v2560, %v2562
        %v2586 = vsel %vm982, %v2562, %v2564
        %v2587 = vsel %vm982, %v2564, %v2566
        %v2588 = vsel %vm982, %v2566, %v2568
        %v2589 = vsel %vm982, %v2568, %v2570
        %v2590 = vsel %vm982, %v2570, %v2572
        %v2609 = vadd.f32 %v2462, %v2573
        %v2610 = vadd.f32 %v2463, %v2574
        %v2611 = vadd.f32 %v2464, %v2575
        %v2612 = vadd.f32 %v2465, %v2576
        %v2613 = vadd.f32 %v2466, %v2577
        %v2614 = vadd.f32 %v2467, %v2578
        %v2615 = vadd.f32 %v2468, %v2579
        %v2616 = vadd.f32 %v2469, %v2580
        %v2617 = vadd.f32 %v2470, %v2581
        %v2618 = vadd.f32 %v2471, %v2582
        %v2619 = vadd.f32 %v2472, %v2583
        %v2620 = vadd.f32 %v2473, %v2584
        %v2621 = vadd.f32 %v2474, %v2585
        %v2622 = vadd.f32 %v2475, %v2586
        %v2623 = vadd.f32 %v2476, %v2587
        %v2624 = vadd.f32 %v2477, %v2588
        %v2625 = vadd.f32 %v2478, %v2589
        %v2626 = vadd.f32 %v2479, %v2590
        %s2627 = scalar_lea.vmem %s2, 224
        %v2628 = vld [vmem:[%s2627] sm:$0xff]
        %v2629 = vld [vmem:[%s2627 + $0x8] sm:$0xff]
        %2631 = vset.pattern.permute.xlu0 0
        %2632 = vperm.xlu0 %2631, %v2628
        %v2633 = vpop.permute.xlu0 %2632
        %2636 = vset.pattern.permute.xlu0 0
        %2637 = vperm.xlu0 %2636, %v2629
        %v2638 = vpop.permute.xlu0 %2637
        %v2640 = vmul.f32 %v2633, %v551
        %v2641 = vmul.f32 %v2633, %v553
        %v2642 = vmul.f32 %v2633, %v628
        %v2643 = vmul.f32 %v2633, %v630
        %v2644 = vmul.f32 %v2633, %v705
        %v2645 = vmul.f32 %v2633, %v707
        %v2646 = vmul.f32 %v2633, %v782
        %v2647 = vmul.f32 %v2633, %v784
        %v2648 = vmul.f32 %v2633, %v859
        %v2649 = vmul.f32 %v2633, %v861
        %v2650 = vmul.f32 %v2638, %v557
        %v2651 = vmul.f32 %v2638, %v559
        %v2652 = vmul.f32 %v2638, %v634
        %v2653 = vmul.f32 %v2638, %v636
        %v2654 = vmul.f32 %v2638, %v711
        %v2655 = vmul.f32 %v2638, %v713
        %v2656 = vmul.f32 %v2638, %v788
        %v2657 = vmul.f32 %v2638, %v790
        %v2658 = vmul.f32 %v2638, %v865
        %v2659 = vmul.f32 %v2638, %v867
        %2680 = vrot.lane.b32.xlu0 %v2640, 126
        %v2681 = vpop.permute.xlu0 %2680
        %2682 = vrot.lane.b32.xlu0 %v2641, 126
        %v2683 = vpop.permute.xlu0 %2682
        %2684 = vrot.lane.b32.xlu0 %v2642, 126
        %v2685 = vpop.permute.xlu0 %2684
        %2686 = vrot.lane.b32.xlu0 %v2643, 126
        %v2687 = vpop.permute.xlu0 %2686
        %2688 = vrot.lane.b32.xlu0 %v2644, 126
        %v2689 = vpop.permute.xlu0 %2688
        %2690 = vrot.lane.b32.xlu0 %v2645, 126
        %v2691 = vpop.permute.xlu0 %2690
        %2692 = vrot.lane.b32.xlu0 %v2646, 126
        %v2693 = vpop.permute.xlu0 %2692
        %2694 = vrot.lane.b32.xlu0 %v2647, 126
        %v2695 = vpop.permute.xlu0 %2694
        %2696 = vrot.lane.b32.xlu0 %v2648, 126
        %v2697 = vpop.permute.xlu0 %2696
        %2698 = vrot.lane.b32.xlu0 %v2649, 126
        %v2699 = vpop.permute.xlu0 %2698
        %2700 = vrot.lane.b32.xlu0 %v2650, 126
        %v2701 = vpop.permute.xlu0 %2700
        %2702 = vrot.lane.b32.xlu0 %v2651, 126
        %v2703 = vpop.permute.xlu0 %2702
        %2704 = vrot.lane.b32.xlu0 %v2652, 126
        %v2705 = vpop.permute.xlu0 %2704
        %2706 = vrot.lane.b32.xlu0 %v2653, 126
        %v2707 = vpop.permute.xlu0 %2706
        %2708 = vrot.lane.b32.xlu0 %v2654, 126
        %v2709 = vpop.permute.xlu0 %2708
        %2710 = vrot.lane.b32.xlu0 %v2655, 126
        %v2711 = vpop.permute.xlu0 %2710
        %2712 = vrot.lane.b32.xlu0 %v2656, 126
        %v2713 = vpop.permute.xlu0 %2712
        %2714 = vrot.lane.b32.xlu0 %v2657, 126
        %v2715 = vpop.permute.xlu0 %2714
        %2716 = vrot.lane.b32.xlu0 %v2658, 126
        %v2717 = vpop.permute.xlu0 %2716
        %2718 = vrot.lane.b32.xlu0 %v2659, 126
        %v2719 = vpop.permute.xlu0 %2718
        %v2720 = vsel %vm1116, %v2681, %v2683
        %v2721 = vsel %vm1116, %v2683, %v2685
        %v2722 = vsel %vm1116, %v2685, %v2687
        %v2723 = vsel %vm1116, %v2687, %v2689
        %v2724 = vsel %vm1116, %v2689, %v2691
        %v2725 = vsel %vm1116, %v2691, %v2693
        %v2726 = vsel %vm1116, %v2693, %v2695
        %v2727 = vsel %vm1116, %v2695, %v2697
        %v2728 = vsel %vm1116, %v2697, %v2699
        %v2729 = vsel %vm1116, %v2701, %v2703
        %v2730 = vsel %vm1116, %v2703, %v2705
        %v2731 = vsel %vm1116, %v2705, %v2707
        %v2732 = vsel %vm1116, %v2707, %v2709
        %v2733 = vsel %vm1116, %v2709, %v2711
        %v2734 = vsel %vm1116, %v2711, %v2713
        %v2735 = vsel %vm1116, %v2713, %v2715
        %v2736 = vsel %vm1116, %v2715, %v2717
        %v2737 = vsel %vm1116, %v2717, %v2719
        %v2756 = vadd.f32 %v2609, %v2720
        %v2757 = vadd.f32 %v2610, %v2721
        %v2758 = vadd.f32 %v2611, %v2722
        %v2759 = vadd.f32 %v2612, %v2723
        %v2760 = vadd.f32 %v2613, %v2724
        %v2761 = vadd.f32 %v2614, %v2725
        %v2762 = vadd.f32 %v2615, %v2726
        %v2763 = vadd.f32 %v2616, %v2727
        %v2764 = vadd.f32 %v2617, %v2728
        %v2765 = vadd.f32 %v2618, %v2729
        %v2766 = vadd.f32 %v2619, %v2730
        %v2767 = vadd.f32 %v2620, %v2731
        %v2768 = vadd.f32 %v2621, %v2732
        %v2769 = vadd.f32 %v2622, %v2733
        %v2770 = vadd.f32 %v2623, %v2734
        %v2771 = vadd.f32 %v2624, %v2735
        %v2772 = vadd.f32 %v2625, %v2736
        %v2773 = vadd.f32 %v2626, %v2737
        %s2774 = scalar_lea.vmem %s2, 240
        %v2775 = vld [vmem:[%s2774] sm:$0xff]
        %v2776 = vld [vmem:[%s2774 + $0x8] sm:$0xff]
        %2778 = vset.pattern.permute.xlu0 0
        %2779 = vperm.xlu0 %2778, %v2775
        %v2780 = vpop.permute.xlu0 %2779
        %2783 = vset.pattern.permute.xlu0 0
        %2784 = vperm.xlu0 %2783, %v2776
        %v2785 = vpop.permute.xlu0 %2784
        %v2787 = vmul.f32 %v2780, %v551
        %v2788 = vmul.f32 %v2780, %v553
        %v2789 = vmul.f32 %v2780, %v628
        %v2790 = vmul.f32 %v2780, %v630
        %v2791 = vmul.f32 %v2780, %v705
        %v2792 = vmul.f32 %v2780, %v707
        %v2793 = vmul.f32 %v2780, %v782
        %v2794 = vmul.f32 %v2780, %v784
        %v2795 = vmul.f32 %v2780, %v859
        %v2796 = vmul.f32 %v2780, %v861
        %v2797 = vmul.f32 %v2785, %v557
        %v2798 = vmul.f32 %v2785, %v559
        %v2799 = vmul.f32 %v2785, %v634
        %v2800 = vmul.f32 %v2785, %v636
        %v2801 = vmul.f32 %v2785, %v711
        %v2802 = vmul.f32 %v2785, %v713
        %v2803 = vmul.f32 %v2785, %v788
        %v2804 = vmul.f32 %v2785, %v790
        %v2805 = vmul.f32 %v2785, %v865
        %v2806 = vmul.f32 %v2785, %v867
        %2827 = vrot.lane.b32.xlu0 %v2787, 125
        %v2828 = vpop.permute.xlu0 %2827
        %2829 = vrot.lane.b32.xlu0 %v2788, 125
        %v2830 = vpop.permute.xlu0 %2829
        %2831 = vrot.lane.b32.xlu0 %v2789, 125
        %v2832 = vpop.permute.xlu0 %2831
        %2833 = vrot.lane.b32.xlu0 %v2790, 125
        %v2834 = vpop.permute.xlu0 %2833
        %2835 = vrot.lane.b32.xlu0 %v2791, 125
        %v2836 = vpop.permute.xlu0 %2835
        %2837 = vrot.lane.b32.xlu0 %v2792, 125
        %v2838 = vpop.permute.xlu0 %2837
        %2839 = vrot.lane.b32.xlu0 %v2793, 125
        %v2840 = vpop.permute.xlu0 %2839
        %2841 = vrot.lane.b32.xlu0 %v2794, 125
        %v2842 = vpop.permute.xlu0 %2841
        %2843 = vrot.lane.b32.xlu0 %v2795, 125
        %v2844 = vpop.permute.xlu0 %2843
        %2845 = vrot.lane.b32.xlu0 %v2796, 125
        %v2846 = vpop.permute.xlu0 %2845
        %2847 = vrot.lane.b32.xlu0 %v2797, 125
        %v2848 = vpop.permute.xlu0 %2847
        %2849 = vrot.lane.b32.xlu0 %v2798, 125
        %v2850 = vpop.permute.xlu0 %2849
        %2851 = vrot.lane.b32.xlu0 %v2799, 125
        %v2852 = vpop.permute.xlu0 %2851
        %2853 = vrot.lane.b32.xlu0 %v2800, 125
        %v2854 = vpop.permute.xlu0 %2853
        %2855 = vrot.lane.b32.xlu0 %v2801, 125
        %v2856 = vpop.permute.xlu0 %2855
        %2857 = vrot.lane.b32.xlu0 %v2802, 125
        %v2858 = vpop.permute.xlu0 %2857
        %2859 = vrot.lane.b32.xlu0 %v2803, 125
        %v2860 = vpop.permute.xlu0 %2859
        %2861 = vrot.lane.b32.xlu0 %v2804, 125
        %v2862 = vpop.permute.xlu0 %2861
        %2863 = vrot.lane.b32.xlu0 %v2805, 125
        %v2864 = vpop.permute.xlu0 %2863
        %2865 = vrot.lane.b32.xlu0 %v2806, 125
        %v2866 = vpop.permute.xlu0 %2865
        %v2867 = vsel %vm1250, %v2828, %v2830
        %v2868 = vsel %vm1250, %v2830, %v2832
        %v2869 = vsel %vm1250, %v2832, %v2834
        %v2870 = vsel %vm1250, %v2834, %v2836
        %v2871 = vsel %vm1250, %v2836, %v2838
        %v2872 = vsel %vm1250, %v2838, %v2840
        %v2873 = vsel %vm1250, %v2840, %v2842
        %v2874 = vsel %vm1250, %v2842, %v2844
        %v2875 = vsel %vm1250, %v2844, %v2846
        %v2876 = vsel %vm1250, %v2848, %v2850
        %v2877 = vsel %vm1250, %v2850, %v2852
        %v2878 = vsel %vm1250, %v2852, %v2854
        %v2879 = vsel %vm1250, %v2854, %v2856
        %v2880 = vsel %vm1250, %v2856, %v2858
        %v2881 = vsel %vm1250, %v2858, %v2860
        %v2882 = vsel %vm1250, %v2860, %v2862
        %v2883 = vsel %vm1250, %v2862, %v2864
        %v2884 = vsel %vm1250, %v2864, %v2866
        %v2903 = vadd.f32 %v2756, %v2867
        %v2904 = vadd.f32 %v2757, %v2868
        %v2905 = vadd.f32 %v2758, %v2869
        %v2906 = vadd.f32 %v2759, %v2870
        %v2907 = vadd.f32 %v2760, %v2871
        %v2908 = vadd.f32 %v2761, %v2872
        %v2909 = vadd.f32 %v2762, %v2873
        %v2910 = vadd.f32 %v2763, %v2874
        %v2911 = vadd.f32 %v2764, %v2875
        %v2912 = vadd.f32 %v2765, %v2876
        %v2913 = vadd.f32 %v2766, %v2877
        %v2914 = vadd.f32 %v2767, %v2878
        %v2915 = vadd.f32 %v2768, %v2879
        %v2916 = vadd.f32 %v2769, %v2880
        %v2917 = vadd.f32 %v2770, %v2881
        %v2918 = vadd.f32 %v2771, %v2882
        %v2919 = vadd.f32 %v2772, %v2883
        %v2920 = vadd.f32 %v2773, %v2884
        %2939 = vrot.lane.b32.xlu0 %v2903, 116
        %v2940 = vpop.permute.xlu0 %2939
        %2941 = vrot.lane.b32.xlu0 %v2904, 116
        %v2942 = vpop.permute.xlu0 %2941
        %2943 = vrot.lane.b32.xlu0 %v2905, 116
        %v2944 = vpop.permute.xlu0 %2943
        %2945 = vrot.lane.b32.xlu0 %v2906, 116
        %v2946 = vpop.permute.xlu0 %2945
        %2947 = vrot.lane.b32.xlu0 %v2907, 116
        %v2948 = vpop.permute.xlu0 %2947
        %2949 = vrot.lane.b32.xlu0 %v2908, 116
        %v2950 = vpop.permute.xlu0 %2949
        %2951 = vrot.lane.b32.xlu0 %v2909, 116
        %v2952 = vpop.permute.xlu0 %2951
        %2953 = vrot.lane.b32.xlu0 %v2910, 116
        %v2954 = vpop.permute.xlu0 %2953
        %2955 = vrot.lane.b32.xlu0 %v2911, 116
        %v2956 = vpop.permute.xlu0 %2955
        %2957 = vrot.lane.b32.xlu0 %v2912, 116
        %v2958 = vpop.permute.xlu0 %2957
        %2959 = vrot.lane.b32.xlu0 %v2913, 116
        %v2960 = vpop.permute.xlu0 %2959
        %2961 = vrot.lane.b32.xlu0 %v2914, 116
        %v2962 = vpop.permute.xlu0 %2961
        %2963 = vrot.lane.b32.xlu0 %v2915, 116
        %v2964 = vpop.permute.xlu0 %2963
        %2965 = vrot.lane.b32.xlu0 %v2916, 116
        %v2966 = vpop.permute.xlu0 %2965
        %2967 = vrot.lane.b32.xlu0 %v2917, 116
        %v2968 = vpop.permute.xlu0 %2967
        %2969 = vrot.lane.b32.xlu0 %v2918, 116
        %v2970 = vpop.permute.xlu0 %2969
        %2971 = vrot.lane.b32.xlu0 %v2919, 116
        %v2972 = vpop.permute.xlu0 %2971
        %2973 = vrot.lane.b32.xlu0 %v2920, 116
        %v2974 = vpop.permute.xlu0 %2973
        %vm2975 = vcmask 949248
        %v2976 = vsel %vm2975, %v2940, %v2942
        %v2977 = vsel %vm2975, %v2942, %v2944
        %v2978 = vsel %vm2975, %v2944, %v2946
        %v2979 = vsel %vm2975, %v2946, %v2948
        %v2980 = vsel %vm2975, %v2948, %v2950
        %v2981 = vsel %vm2975, %v2950, %v2952
        %v2982 = vsel %vm2975, %v2952, %v2954
        %v2983 = vsel %vm2975, %v2954, %v2956
        %v2984 = vsel %vm2975, %v2958, %v2960
        %v2985 = vsel %vm2975, %v2960, %v2962
        %v2986 = vsel %vm2975, %v2962, %v2964
        %v2987 = vsel %vm2975, %v2964, %v2966
        %v2988 = vsel %vm2975, %v2966, %v2968
        %v2989 = vsel %vm2975, %v2968, %v2970
        %v2990 = vsel %vm2975, %v2970, %v2972
        %v2991 = vsel %vm2975, %v2972, %v2974
        %v3008 = vadd.f32 %v2433, %v2976
        %v3009 = vadd.f32 %v2434, %v2977
        %v3010 = vadd.f32 %v2435, %v2978
        %v3011 = vadd.f32 %v2436, %v2979
        %v3012 = vadd.f32 %v2437, %v2980
        %v3013 = vadd.f32 %v2438, %v2981
        %v3014 = vadd.f32 %v2439, %v2982
        %v3015 = vadd.f32 %v2440, %v2983
        %v3016 = vadd.f32 %v2441, %v2984
        %v3017 = vadd.f32 %v2442, %v2985
        %v3018 = vadd.f32 %v2443, %v2986
        %v3019 = vadd.f32 %v2444, %v2987
        %v3020 = vadd.f32 %v2445, %v2988
        %v3021 = vadd.f32 %v2446, %v2989
        %v3022 = vadd.f32 %v2447, %v2990
        %v3023 = vadd.f32 %v2448, %v2991
        %v3024 = vld [vmem:[%s3] sm:$0xff]
        %v3025 = vld [vmem:[%s3 + $0x8] sm:$0xff]
        %3027 = vset.pattern.permute.xlu0 0
        %3028 = vperm.xlu0 %3027, %v3024
        %v3029 = vpop.permute.xlu0 %3028
        %3032 = vset.pattern.permute.xlu0 0
        %3033 = vperm.xlu0 %3032, %v3025
        %v3034 = vpop.permute.xlu0 %3033
        %v3036 = vadd.f32 %v3008, %v3029
        %v3037 = vadd.f32 %v3009, %v3029
        %v3038 = vadd.f32 %v3010, %v3029
        %v3039 = vadd.f32 %v3011, %v3029
        %v3040 = vadd.f32 %v3012, %v3029
        %v3041 = vadd.f32 %v3013, %v3029
        %v3042 = vadd.f32 %v3014, %v3029
        %v3043 = vadd.f32 %v3015, %v3029
        %v3044 = vadd.f32 %v3016, %v3034
        %v3045 = vadd.f32 %v3017, %v3034
        %v3046 = vadd.f32 %v3018, %v3034
        %v3047 = vadd.f32 %v3019, %v3034
        %v3048 = vadd.f32 %v3020, %v3034
        %v3049 = vadd.f32 %v3021, %v3034
        %v3050 = vadd.f32 %v3022, %v3034
        %v3051 = vadd.f32 %v3023, %v3034
        %vm3052 = vcmp.gt.f32.partialorder %v3036, 0.0
        %vm3053 = vcmp.gt.f32.partialorder %v3037, 0.0
        %vm3054 = vcmp.gt.f32.partialorder %v3038, 0.0
        %vm3055 = vcmp.gt.f32.partialorder %v3039, 0.0
        %vm3056 = vcmp.gt.f32.partialorder %v3040, 0.0
        %vm3057 = vcmp.gt.f32.partialorder %v3041, 0.0
        %vm3058 = vcmp.gt.f32.partialorder %v3042, 0.0
        %vm3059 = vcmp.gt.f32.partialorder %v3043, 0.0
        %vm3060 = vcmp.gt.f32.partialorder %v3044, 0.0
        %vm3061 = vcmp.gt.f32.partialorder %v3045, 0.0
        %vm3062 = vcmp.gt.f32.partialorder %v3046, 0.0
        %vm3063 = vcmp.gt.f32.partialorder %v3047, 0.0
        %vm3064 = vcmp.gt.f32.partialorder %v3048, 0.0
        %vm3065 = vcmp.gt.f32.partialorder %v3049, 0.0
        %vm3066 = vcmp.gt.f32.partialorder %v3050, 0.0
        %vm3067 = vcmp.gt.f32.partialorder %v3051, 0.0
        %v3068 = vmin.f32 %v3036, 0.0
        %v3069 = vmin.f32 %v3037, 0.0
        %v3070 = vmin.f32 %v3038, 0.0
        %v3071 = vmin.f32 %v3039, 0.0
        %v3072 = vmin.f32 %v3040, 0.0
        %v3073 = vmin.f32 %v3041, 0.0
        %v3074 = vmin.f32 %v3042, 0.0
        %v3075 = vmin.f32 %v3043, 0.0
        %v3076 = vmin.f32 %v3044, 0.0
        %v3077 = vmin.f32 %v3045, 0.0
        %v3078 = vmin.f32 %v3046, 0.0
        %v3079 = vmin.f32 %v3047, 0.0
        %v3080 = vmin.f32 %v3048, 0.0
        %v3081 = vmin.f32 %v3049, 0.0
        %v3082 = vmin.f32 %v3050, 0.0
        %v3083 = vmin.f32 %v3051, 0.0
        %v3084 = vmul.f32 %v3068, 1.442695
        %v3085 = vpow.pop %v3084
        %v3086 = vmul.f32 %v3069, 1.442695
        %v3087 = vpow.pop %v3086
        %v3088 = vmul.f32 %v3070, 1.442695
        %v3089 = vpow.pop %v3088
        %v3090 = vmul.f32 %v3071, 1.442695
        %v3091 = vpow.pop %v3090
        %v3092 = vmul.f32 %v3072, 1.442695
        %v3093 = vpow.pop %v3092
        %v3094 = vmul.f32 %v3073, 1.442695
        %v3095 = vpow.pop %v3094
        %v3096 = vmul.f32 %v3074, 1.442695
        %v3097 = vpow.pop %v3096
        %v3098 = vmul.f32 %v3075, 1.442695
        %v3099 = vpow.pop %v3098
        %v3100 = vmul.f32 %v3076, 1.442695
        %v3101 = vpow.pop %v3100
        %v3102 = vmul.f32 %v3077, 1.442695
        %v3103 = vpow.pop %v3102
        %v3104 = vmul.f32 %v3078, 1.442695
        %v3105 = vpow.pop %v3104
        %v3106 = vmul.f32 %v3079, 1.442695
        %v3107 = vpow.pop %v3106
        %v3108 = vmul.f32 %v3080, 1.442695
        %v3109 = vpow.pop %v3108
        %v3110 = vmul.f32 %v3081, 1.442695
        %v3111 = vpow.pop %v3110
        %v3112 = vmul.f32 %v3082, 1.442695
        %v3113 = vpow.pop %v3112
        %v3114 = vmul.f32 %v3083, 1.442695
        %v3115 = vpow.pop %v3114
        %v3116 = vsub.f32 %v3085, 1.0
        %v3117 = vsub.f32 %v3087, 1.0
        %v3118 = vsub.f32 %v3089, 1.0
        %v3119 = vsub.f32 %v3091, 1.0
        %v3120 = vsub.f32 %v3093, 1.0
        %v3121 = vsub.f32 %v3095, 1.0
        %v3122 = vsub.f32 %v3097, 1.0
        %v3123 = vsub.f32 %v3099, 1.0
        %v3124 = vsub.f32 %v3101, 1.0
        %v3125 = vsub.f32 %v3103, 1.0
        %v3126 = vsub.f32 %v3105, 1.0
        %v3127 = vsub.f32 %v3107, 1.0
        %v3128 = vsub.f32 %v3109, 1.0
        %v3129 = vsub.f32 %v3111, 1.0
        %v3130 = vsub.f32 %v3113, 1.0
        %v3131 = vsub.f32 %v3115, 1.0
        %v3132 = vsel %vm3052, %v3036, %v3116
        %v3133 = vsel %vm3053, %v3037, %v3117
        %v3134 = vsel %vm3054, %v3038, %v3118
        %v3135 = vsel %vm3055, %v3039, %v3119
        %v3136 = vsel %vm3056, %v3040, %v3120
        %v3137 = vsel %vm3057, %v3041, %v3121
        %v3138 = vsel %vm3058, %v3042, %v3122
        %v3139 = vsel %vm3059, %v3043, %v3123
        %v3140 = vsel %vm3060, %v3044, %v3124
        %v3141 = vsel %vm3061, %v3045, %v3125
        %v3142 = vsel %vm3062, %v3046, %v3126
        %v3143 = vsel %vm3063, %v3047, %v3127
        %v3144 = vsel %vm3064, %v3048, %v3128
        %v3145 = vsel %vm3065, %v3049, %v3129
        %v3146 = vsel %vm3066, %v3050, %v3130
        %v3147 = vsel %vm3067, %v3051, %v3131
        %v3148 = vlaneseq
        %v3149 = vshrl.u32 %v3148, 7
        %v3150 = vadd.s32 %v3149, 8
        %v3151 = vadd.s32 %v3149, 16
        %v3152 = vadd.s32 %v3149, 24
        %v3153 = vadd.s32 %v3149, 32
        %v3154 = vadd.s32 %v3149, 40
        %v3155 = vadd.s32 %v3149, 48
        %v3156 = vadd.s32 %v3149, 56
        %v3157 = vadd.s32 %v3149, 64
        %v3158 = vadd.s32 %v3149, 72
        %v3159 = vadd.s32 %v3149, 80
        %v3160 = vadd.s32 %v3149, 88
        %v3161 = vadd.s32 %v3149, 96
        %v3162 = vadd.s32 %v3149, 104
        %v3163 = vadd.s32 %v3149, 112
        %v3164 = vadd.s32 %v3149, 120
        %v3165 = vlaneseq
        %v3166 = vand.u32 %v3165, 127
        %v3167 = vmul.u32 %v3166, 4
        %vm3168 = vcmp.ge.s32.totalorder %v3149, %v3167
        %vm3169 = vcmp.ge.s32.totalorder %v3150, %v3167
        %vm3170 = vcmp.ge.s32.totalorder %v3151, %v3167
        %vm3171 = vcmp.ge.s32.totalorder %v3152, %v3167
        %vm3172 = vcmp.ge.s32.totalorder %v3153, %v3167
        %vm3173 = vcmp.ge.s32.totalorder %v3154, %v3167
        %vm3174 = vcmp.ge.s32.totalorder %v3155, %v3167
        %vm3175 = vcmp.ge.s32.totalorder %v3156, %v3167
        %vm3176 = vcmp.ge.s32.totalorder %v3157, %v3167
        %vm3177 = vcmp.ge.s32.totalorder %v3158, %v3167
        %vm3178 = vcmp.ge.s32.totalorder %v3159, %v3167
        %vm3179 = vcmp.ge.s32.totalorder %v3160, %v3167
        %vm3180 = vcmp.ge.s32.totalorder %v3161, %v3167
        %vm3181 = vcmp.ge.s32.totalorder %v3162, %v3167
        %vm3182 = vcmp.ge.s32.totalorder %v3163, %v3167
        %vm3183 = vcmp.ge.s32.totalorder %v3164, %v3167
        %v3184 = vadd.s32 %v3167, 4
        %vm3185 = vcmp.lt.s32.totalorder %v3149, %v3184
        %vm3186 = vcmp.lt.s32.totalorder %v3150, %v3184
        %vm3187 = vcmp.lt.s32.totalorder %v3151, %v3184
        %vm3188 = vcmp.lt.s32.totalorder %v3152, %v3184
        %vm3189 = vcmp.lt.s32.totalorder %v3153, %v3184
        %vm3190 = vcmp.lt.s32.totalorder %v3154, %v3184
        %vm3191 = vcmp.lt.s32.totalorder %v3155, %v3184
        %vm3192 = vcmp.lt.s32.totalorder %v3156, %v3184
        %vm3193 = vcmp.lt.s32.totalorder %v3157, %v3184
        %vm3194 = vcmp.lt.s32.totalorder %v3158, %v3184
        %vm3195 = vcmp.lt.s32.totalorder %v3159, %v3184
        %vm3196 = vcmp.lt.s32.totalorder %v3160, %v3184
        %vm3197 = vcmp.lt.s32.totalorder %v3161, %v3184
        %vm3198 = vcmp.lt.s32.totalorder %v3162, %v3184
        %vm3199 = vcmp.lt.s32.totalorder %v3163, %v3184
        %vm3200 = vcmp.lt.s32.totalorder %v3164, %v3184
        %vm3201 = vmand %vm3168, %vm3185
        %vm3202 = vmand %vm3169, %vm3186
        %vm3203 = vmand %vm3170, %vm3187
        %vm3204 = vmand %vm3171, %vm3188
        %vm3205 = vmand %vm3172, %vm3189
        %vm3206 = vmand %vm3173, %vm3190
        %vm3207 = vmand %vm3174, %vm3191
        %vm3208 = vmand %vm3175, %vm3192
        %vm3209 = vmand %vm3176, %vm3193
        %vm3210 = vmand %vm3177, %vm3194
        %vm3211 = vmand %vm3178, %vm3195
        %vm3212 = vmand %vm3179, %vm3196
        %vm3213 = vmand %vm3180, %vm3197
        %vm3214 = vmand %vm3181, %vm3198
        %vm3215 = vmand %vm3182, %vm3199
        %vm3216 = vmand %vm3183, %vm3200
        %v3217 = vsel %vm3201, 0.25, 0.0
        %v3218 = vsel %vm3202, 0.25, 0.0
        %v3219 = vsel %vm3203, 0.25, 0.0
        %v3220 = vsel %vm3204, 0.25, 0.0
        %v3221 = vsel %vm3205, 0.25, 0.0
        %v3222 = vsel %vm3206, 0.25, 0.0
        %v3223 = vsel %vm3207, 0.25, 0.0
        %v3224 = vsel %vm3208, 0.25, 0.0
        %v3225 = vsel %vm3209, 0.25, 0.0
        %v3226 = vsel %vm3210, 0.25, 0.0
        %v3227 = vsel %vm3211, 0.25, 0.0
        %v3228 = vsel %vm3212, 0.25, 0.0
        %v3229 = vsel %vm3213, 0.25, 0.0
        %v3230 = vsel %vm3214, 0.25, 0.0
        %v3231 = vsel %vm3215, 0.25, 0.0
        %v3232 = vsel %vm3216, 0.25, 0.0
        %3233 = vst [vmem:[#allocation2] sm:$0xff] 0.0
        %3234 = vst [vmem:[#allocation2 + $0x8] sm:$0xff] 0.0
        %3235 = vst [vmem:[#allocation2 + $0x10] sm:$0xff] 0.0
        %3236 = vst [vmem:[#allocation2 + $0x18] sm:$0xff] 0.0
        %3237 = vst [vmem:[#allocation2 + $0x20] sm:$0xff] 0.0
        %3238 = vst [vmem:[#allocation2 + $0x28] sm:$0xff] 0.0
        %3239 = vst [vmem:[#allocation2 + $0x30] sm:$0xff] 0.0
        %3240 = vst [vmem:[#allocation2 + $0x38] sm:$0xff] 0.0
        %3241 = vmatprep.subr.mxu0 0.0
        %3242 = vmatpush1.msra.mxu0 %v3217
        %3243 = vmatprep.subr.mxu0 0.0
        %3244 = vmatpush1.msra.mxu0 %v3218
        %3245 = vmatprep.subr.mxu0 0.0
        %3246 = vmatpush1.msra.mxu0 %v3219
        %3247 = vmatprep.subr.mxu0 0.0
        %3248 = vmatpush1.msra.mxu0 %v3220
        %3249 = vmatprep.subr.mxu0 0.0
        %3250 = vmatpush1.msra.mxu0 %v3221
        %3251 = vmatprep.subr.mxu0 0.0
        %3252 = vmatpush1.msra.mxu0 %v3222
        %3253 = vmatprep.subr.mxu0 0.0
        %3254 = vmatpush1.msra.mxu0 %v3223
        %3255 = vmatprep.subr.mxu0 0.0
        %3256 = vmatpush1.msra.mxu0 %v3224
        %3257 = vmatprep.subr.mxu0 0.0
        %3258 = vmatpush1.msra.mxu0 %v3225
        %3259 = vmatprep.subr.mxu0 0.0
        %3260 = vmatpush1.msra.mxu0 %v3226
        %3261 = vmatprep.subr.mxu0 0.0
        %3262 = vmatpush1.msra.mxu0 %v3227
        %3263 = vmatprep.subr.mxu0 0.0
        %3264 = vmatpush1.msra.mxu0 %v3228
        %3265 = vmatprep.subr.mxu0 0.0
        %3266 = vmatpush1.msra.mxu0 %v3229
        %3267 = vmatprep.subr.mxu0 0.0
        %3268 = vmatpush1.msra.mxu0 %v3230
        %3269 = vmatprep.subr.mxu0 0.0
        %3270 = vmatpush1.msra.mxu0 %v3231
        %3271 = vmatprep.subr.mxu0 0.0
        %3272 = vmatpush1.msra.mxu0 %v3232
        %3273 = vmatprep.subr.mxu0 0.0
        %3274 = vmatpush1.msra.mxu0 0.0
        %3275 = vmatprep.subr.mxu0 0.0
        %3276 = vmatpush1.msra.mxu0 0.0
        %3277 = vmatprep.subr.mxu0 0.0
        %3278 = vmatpush1.msra.mxu0 0.0
        %3279 = vmatprep.subr.mxu0 0.0
        %3280 = vmatpush1.msra.mxu0 0.0
        %3281 = vmatprep.subr.mxu0 0.0
        %3282 = vmatpush1.msra.mxu0 0.0
        %3283 = vmatprep.subr.mxu0 0.0
        %3284 = vmatpush1.msra.mxu0 0.0
        %3285 = vmatprep.subr.mxu0 0.0
        %3286 = vmatpush1.msra.mxu0 0.0
        %3287 = vmatprep.subr.mxu0 0.0
        %3288 = vmatpush1.msra.mxu0 0.0
        %3289 = vmatprep.subr.mxu0 0.0
        %3290 = vmatpush1.msra.mxu0 0.0
        %3291 = vmatprep.subr.mxu0 0.0
        %3292 = vmatpush1.msra.mxu0 0.0
        %3293 = vmatprep.subr.mxu0 0.0
        %3294 = vmatpush1.msra.mxu0 0.0
        %3295 = vmatprep.subr.mxu0 0.0
        %3296 = vmatpush1.msra.mxu0 0.0
        %3297 = vmatprep.subr.mxu0 0.0
        %3298 = vmatpush1.msra.mxu0 0.0
        %3299 = vmatprep.subr.mxu0 0.0
        %3300 = vmatpush1.msra.mxu0 0.0
        %3301 = vmatprep.subr.mxu0 0.0
        %3302 = vmatpush1.msra.mxu0 0.0
        %3303 = vmatprep.subr.mxu0 0.0
        %3304 = vmatpush1.msra.mxu0 0.0
        %3305 = vmatprep.mubr.f32.mxu0 0.0
        %3306 = vmatmul.mubr.f32.gmra.mrb[0].mxu0 %v3132
        %v3307 = vpop.f32.mrb[0].mxu0
        %v3308 = vadd.f32 0.0, %v3307
        %v3309 = vpop.f32.mrb[0].mxu0
        %3310 = vmatprep.mubr.f32.mxu0 0.0
        %3311 = vmatmul.mubr.f32.gmra.mrb[0].mxu0 %v3140
        %v3312 = vpop.f32.mrb[0].mxu0
        %v3313 = vadd.f32 0.0, %v3312
        %v3314 = vpop.f32.mrb[0].mxu0
        %3315 = vdwg.mxu0
        %vm3316 = vcmask 261120
        %3317 = vst.msk [vmem:[#allocation2 + $0x8] sm:$0xff] %vm3316, %v3308
        %3318 = vst.msk [vmem:[#allocation2 + $0x28] sm:$0xff] %vm3316, %v3313
        %3319 = vmatprep.subr.mxu0 0.0
        %3320 = vmatpush1.msra.mxu0 %v3217
        %3321 = vmatprep.subr.mxu0 0.0
        %3322 = vmatpush1.msra.mxu0 %v3218
        %3323 = vmatprep.subr.mxu0 0.0
        %3324 = vmatpush1.msra.mxu0 %v3219
        %3325 = vmatprep.subr.mxu0 0.0
        %3326 = vmatpush1.msra.mxu0 %v3220
        %3327 = vmatprep.subr.mxu0 0.0
        %3328 = vmatpush1.msra.mxu0 %v3221
        %3329 = vmatprep.subr.mxu0 0.0
        %3330 = vmatpush1.msra.mxu0 %v3222
        %3331 = vmatprep.subr.mxu0 0.0
        %3332 = vmatpush1.msra.mxu0 %v3223
        %3333 = vmatprep.subr.mxu0 0.0
        %3334 = vmatpush1.msra.mxu0 %v3224
        %3335 = vmatprep.subr.mxu0 0.0
        %3336 = vmatpush1.msra.mxu0 %v3225
        %3337 = vmatprep.subr.mxu0 0.0
        %3338 = vmatpush1.msra.mxu0 %v3226
        %3339 = vmatprep.subr.mxu0 0.0
        %3340 = vmatpush1.msra.mxu0 %v3227
        %3341 = vmatprep.subr.mxu0 0.0
        %3342 = vmatpush1.msra.mxu0 %v3228
        %3343 = vmatprep.subr.mxu0 0.0
        %3344 = vmatpush1.msra.mxu0 %v3229
        %3345 = vmatprep.subr.mxu0 0.0
        %3346 = vmatpush1.msra.mxu0 %v3230
        %3347 = vmatprep.subr.mxu0 0.0
        %3348 = vmatpush1.msra.mxu0 %v3231
        %3349 = vmatprep.subr.mxu0 0.0
        %3350 = vmatpush1.msra.mxu0 %v3232
        %3351 = vmatprep.subr.mxu0 0.0
        %3352 = vmatpush1.msra.mxu0 0.0
        %3353 = vmatprep.subr.mxu0 0.0
        %3354 = vmatpush1.msra.mxu0 0.0
        %3355 = vmatprep.subr.mxu0 0.0
        %3356 = vmatpush1.msra.mxu0 0.0
        %3357 = vmatprep.subr.mxu0 0.0
        %3358 = vmatpush1.msra.mxu0 0.0
        %3359 = vmatprep.subr.mxu0 0.0
        %3360 = vmatpush1.msra.mxu0 0.0
        %3361 = vmatprep.subr.mxu0 0.0
        %3362 = vmatpush1.msra.mxu0 0.0
        %3363 = vmatprep.subr.mxu0 0.0
        %3364 = vmatpush1.msra.mxu0 0.0
        %3365 = vmatprep.subr.mxu0 0.0
        %3366 = vmatpush1.msra.mxu0 0.0
        %3367 = vmatprep.subr.mxu0 0.0
        %3368 = vmatpush1.msra.mxu0 0.0
        %3369 = vmatprep.subr.mxu0 0.0
        %3370 = vmatpush1.msra.mxu0 0.0
        %3371 = vmatprep.subr.mxu0 0.0
        %3372 = vmatpush1.msra.mxu0 0.0
        %3373 = vmatprep.subr.mxu0 0.0
        %3374 = vmatpush1.msra.mxu0 0.0
        %3375 = vmatprep.subr.mxu0 0.0
        %3376 = vmatpush1.msra.mxu0 0.0
        %3377 = vmatprep.subr.mxu0 0.0
        %3378 = vmatpush1.msra.mxu0 0.0
        %3379 = vmatprep.subr.mxu0 0.0
        %3380 = vmatpush1.msra.mxu0 0.0
        %3381 = vmatprep.subr.mxu0 0.0
        %3382 = vmatpush1.msra.mxu0 0.0
        %3383 = vmatprep.mubr.f32.mxu0 0.0
        %3384 = vmatmul.mubr.f32.gmra.mrb[0].mxu0 %v3133
        %v3385 = vpop.f32.mrb[0].mxu0
        %v3386 = vadd.f32 0.0, %v3385
        %v3387 = vpop.f32.mrb[0].mxu0
        %3388 = vmatprep.mubr.f32.mxu0 0.0
        %3389 = vmatmul.mubr.f32.gmra.mrb[0].mxu0 %v3141
        %v3390 = vpop.f32.mrb[0].mxu0
        %v3391 = vadd.f32 0.0, %v3390
        %v3392 = vpop.f32.mrb[0].mxu0
        %3393 = vdwg.mxu0
        %3396 = vrot.lane.b32.xlu0 %v3386, 32
        %v3397 = vpop.permute.xlu0 %3396
        %3398 = vrot.lane.b32.xlu0 %v3391, 32
        %v3399 = vpop.permute.xlu0 %3398
        %vm3402 = vcmask 523520
        %3403 = vst.msk [vmem:[#allocation2 + $0x8] sm:$0xff] %vm3402, %v3397
        %3404 = vst.msk [vmem:[#allocation2 + $0x28] sm:$0xff] %vm3402, %v3399
        %3405 = vmatprep.subr.mxu0 0.0
        %3406 = vmatpush1.msra.mxu0 %v3217
        %3407 = vmatprep.subr.mxu0 0.0
        %3408 = vmatpush1.msra.mxu0 %v3218
        %3409 = vmatprep.subr.mxu0 0.0
        %3410 = vmatpush1.msra.mxu0 %v3219
        %3411 = vmatprep.subr.mxu0 0.0
        %3412 = vmatpush1.msra.mxu0 %v3220
        %3413 = vmatprep.subr.mxu0 0.0
        %3414 = vmatpush1.msra.mxu0 %v3221
        %3415 = vmatprep.subr.mxu0 0.0
        %3416 = vmatpush1.msra.mxu0 %v3222
        %3417 = vmatprep.subr.mxu0 0.0
        %3418 = vmatpush1.msra.mxu0 %v3223
        %3419 = vmatprep.subr.mxu0 0.0
        %3420 = vmatpush1.msra.mxu0 %v3224
        %3421 = vmatprep.subr.mxu0 0.0
        %3422 = vmatpush1.msra.mxu0 %v3225
        %3423 = vmatprep.subr.mxu0 0.0
        %3424 = vmatpush1.msra.mxu0 %v3226
        %3425 = vmatprep.subr.mxu0 0.0
        %3426 = vmatpush1.msra.mxu0 %v3227
        %3427 = vmatprep.subr.mxu0 0.0
        %3428 = vmatpush1.msra.mxu0 %v3228
        %3429 = vmatprep.subr.mxu0 0.0
        %3430 = vmatpush1.msra.mxu0 %v3229
        %3431 = vmatprep.subr.mxu0 0.0
        %3432 = vmatpush1.msra.mxu0 %v3230
        %3433 = vmatprep.subr.mxu0 0.0
        %3434 = vmatpush1.msra.mxu0 %v3231
        %3435 = vmatprep.subr.mxu0 0.0
        %3436 = vmatpush1.msra.mxu0 %v3232
        %3437 = vmatprep.subr.mxu0 0.0
        %3438 = vmatpush1.msra.mxu0 0.0
        %3439 = vmatprep.subr.mxu0 0.0
        %3440 = vmatpush1.msra.mxu0 0.0
        %3441 = vmatprep.subr.mxu0 0.0
        %3442 = vmatpush1.msra.mxu0 0.0
        %3443 = vmatprep.subr.mxu0 0.0
        %3444 = vmatpush1.msra.mxu0 0.0
        %3445 = vmatprep.subr.mxu0 0.0
        %3446 = vmatpush1.msra.mxu0 0.0
        %3447 = vmatprep.subr.mxu0 0.0
        %3448 = vmatpush1.msra.mxu0 0.0
        %3449 = vmatprep.subr.mxu0 0.0
        %3450 = vmatpush1.msra.mxu0 0.0
        %3451 = vmatprep.subr.mxu0 0.0
        %3452 = vmatpush1.msra.mxu0 0.0
        %3453 = vmatprep.subr.mxu0 0.0
        %3454 = vmatpush1.msra.mxu0 0.0
        %3455 = vmatprep.subr.mxu0 0.0
        %3456 = vmatpush1.msra.mxu0 0.0
        %3457 = vmatprep.subr.mxu0 0.0
        %3458 = vmatpush1.msra.mxu0 0.0
        %3459 = vmatprep.subr.mxu0 0.0
        %3460 = vmatpush1.msra.mxu0 0.0
        %3461 = vmatprep.subr.mxu0 0.0
        %3462 = vmatpush1.msra.mxu0 0.0
        %3463 = vmatprep.subr.mxu0 0.0
        %3464 = vmatpush1.msra.mxu0 0.0
        %3465 = vmatprep.subr.mxu0 0.0
        %3466 = vmatpush1.msra.mxu0 0.0
        %3467 = vmatprep.subr.mxu0 0.0
        %3468 = vmatpush1.msra.mxu0 0.0
        %3469 = vmatprep.mubr.f32.mxu0 0.0
        %3470 = vmatmul.mubr.f32.gmra.mrb[0].mxu0 %v3134
        %v3471 = vpop.f32.mrb[0].mxu0
        %v3472 = vadd.f32 0.0, %v3471
        %v3473 = vpop.f32.mrb[0].mxu0
        %3474 = vmatprep.mubr.f32.mxu0 0.0
        %3475 = vmatmul.mubr.f32.gmra.mrb[0].mxu0 %v3142
        %v3476 = vpop.f32.mrb[0].mxu0
        %v3477 = vadd.f32 0.0, %v3476
        %v3478 = vpop.f32.mrb[0].mxu0
        %3479 = vdwg.mxu0
        %3482 = vrot.lane.b32.xlu0 %v3472, 64
        %v3483 = vpop.permute.xlu0 %3482
        %3484 = vrot.lane.b32.xlu0 %v3477, 64
        %v3485 = vpop.permute.xlu0 %3484
        %vm3488 = vcmask 785920
        %3489 = vst.msk [vmem:[#allocation2 + $0x8] sm:$0xff] %vm3488, %v3483
        %3490 = vst.msk [vmem:[#allocation2 + $0x28] sm:$0xff] %vm3488, %v3485
        %3491 = vmatprep.subr.mxu0 0.0
        %3492 = vmatpush1.msra.mxu0 %v3217
        %3493 = vmatprep.subr.mxu0 0.0
        %3494 = vmatpush1.msra.mxu0 %v3218
        %3495 = vmatprep.subr.mxu0 0.0
        %3496 = vmatpush1.msra.mxu0 %v3219
        %3497 = vmatprep.subr.mxu0 0.0
        %3498 = vmatpush1.msra.mxu0 %v3220
        %3499 = vmatprep.subr.mxu0 0.0
        %3500 = vmatpush1.msra.mxu0 %v3221
        %3501 = vmatprep.subr.mxu0 0.0
        %3502 = vmatpush1.msra.mxu0 %v3222
        %3503 = vmatprep.subr.mxu0 0.0
        %3504 = vmatpush1.msra.mxu0 %v3223
        %3505 = vmatprep.subr.mxu0 0.0
        %3506 = vmatpush1.msra.mxu0 %v3224
        %3507 = vmatprep.subr.mxu0 0.0
        %3508 = vmatpush1.msra.mxu0 %v3225
        %3509 = vmatprep.subr.mxu0 0.0
        %3510 = vmatpush1.msra.mxu0 %v3226
        %3511 = vmatprep.subr.mxu0 0.0
        %3512 = vmatpush1.msra.mxu0 %v3227
        %3513 = vmatprep.subr.mxu0 0.0
        %3514 = vmatpush1.msra.mxu0 %v3228
        %3515 = vmatprep.subr.mxu0 0.0
        %3516 = vmatpush1.msra.mxu0 %v3229
        %3517 = vmatprep.subr.mxu0 0.0
        %3518 = vmatpush1.msra.mxu0 %v3230
        %3519 = vmatprep.subr.mxu0 0.0
        %3520 = vmatpush1.msra.mxu0 %v3231
        %3521 = vmatprep.subr.mxu0 0.0
        %3522 = vmatpush1.msra.mxu0 %v3232
        %3523 = vmatprep.subr.mxu0 0.0
        %3524 = vmatpush1.msra.mxu0 0.0
        %3525 = vmatprep.subr.mxu0 0.0
        %3526 = vmatpush1.msra.mxu0 0.0
        %3527 = vmatprep.subr.mxu0 0.0
        %3528 = vmatpush1.msra.mxu0 0.0
        %3529 = vmatprep.subr.mxu0 0.0
        %3530 = vmatpush1.msra.mxu0 0.0
        %3531 = vmatprep.subr.mxu0 0.0
        %3532 = vmatpush1.msra.mxu0 0.0
        %3533 = vmatprep.subr.mxu0 0.0
        %3534 = vmatpush1.msra.mxu0 0.0
        %3535 = vmatprep.subr.mxu0 0.0
        %3536 = vmatpush1.msra.mxu0 0.0
        %3537 = vmatprep.subr.mxu0 0.0
        %3538 = vmatpush1.msra.mxu0 0.0
        %3539 = vmatprep.subr.mxu0 0.0
        %3540 = vmatpush1.msra.mxu0 0.0
        %3541 = vmatprep.subr.mxu0 0.0
        %3542 = vmatpush1.msra.mxu0 0.0
        %3543 = vmatprep.subr.mxu0 0.0
        %3544 = vmatpush1.msra.mxu0 0.0
        %3545 = vmatprep.subr.mxu0 0.0
        %3546 = vmatpush1.msra.mxu0 0.0
        %3547 = vmatprep.subr.mxu0 0.0
        %3548 = vmatpush1.msra.mxu0 0.0
        %3549 = vmatprep.subr.mxu0 0.0
        %3550 = vmatpush1.msra.mxu0 0.0
        %3551 = vmatprep.subr.mxu0 0.0
        %3552 = vmatpush1.msra.mxu0 0.0
        %3553 = vmatprep.subr.mxu0 0.0
        %3554 = vmatpush1.msra.mxu0 0.0
        %3555 = vmatprep.mubr.f32.mxu0 0.0
        %3556 = vmatmul.mubr.f32.gmra.mrb[0].mxu0 %v3135
        %v3557 = vpop.f32.mrb[0].mxu0
        %v3558 = vadd.f32 0.0, %v3557
        %v3559 = vpop.f32.mrb[0].mxu0
        %3560 = vmatprep.mubr.f32.mxu0 0.0
        %3561 = vmatmul.mubr.f32.gmra.mrb[0].mxu0 %v3143
        %v3562 = vpop.f32.mrb[0].mxu0
        %v3563 = vadd.f32 0.0, %v3562
        %v3564 = vpop.f32.mrb[0].mxu0
        %3565 = vdwg.mxu0
        %3568 = vrot.lane.b32.xlu0 %v3558, 96
        %v3569 = vpop.permute.xlu0 %3568
        %3570 = vrot.lane.b32.xlu0 %v3563, 96
        %v3571 = vpop.permute.xlu0 %3570
        %vm3574 = vcmask 1048320
        %3575 = vst.msk [vmem:[#allocation2 + $0x8] sm:$0xff] %vm3574, %v3569
        %3576 = vst.msk [vmem:[#allocation2 + $0x28] sm:$0xff] %vm3574, %v3571
        %3577 = vmatprep.subr.mxu0 0.0
        %3578 = vmatpush1.msra.mxu0 %v3217
        %3579 = vmatprep.subr.mxu0 0.0
        %3580 = vmatpush1.msra.mxu0 %v3218
        %3581 = vmatprep.subr.mxu0 0.0
        %3582 = vmatpush1.msra.mxu0 %v3219
        %3583 = vmatprep.subr.mxu0 0.0
        %3584 = vmatpush1.msra.mxu0 %v3220
        %3585 = vmatprep.subr.mxu0 0.0
        %3586 = vmatpush1.msra.mxu0 %v3221
        %3587 = vmatprep.subr.mxu0 0.0
        %3588 = vmatpush1.msra.mxu0 %v3222
        %3589 = vmatprep.subr.mxu0 0.0
        %3590 = vmatpush1.msra.mxu0 %v3223
        %3591 = vmatprep.subr.mxu0 0.0
        %3592 = vmatpush1.msra.mxu0 %v3224
        %3593 = vmatprep.subr.mxu0 0.0
        %3594 = vmatpush1.msra.mxu0 %v3225
        %3595 = vmatprep.subr.mxu0 0.0
        %3596 = vmatpush1.msra.mxu0 %v3226
        %3597 = vmatprep.subr.mxu0 0.0
        %3598 = vmatpush1.msra.mxu0 %v3227
        %3599 = vmatprep.subr.mxu0 0.0
        %3600 = vmatpush1.msra.mxu0 %v3228
        %3601 = vmatprep.subr.mxu0 0.0
        %3602 = vmatpush1.msra.mxu0 %v3229
        %3603 = vmatprep.subr.mxu0 0.0
        %3604 = vmatpush1.msra.mxu0 %v3230
        %3605 = vmatprep.subr.mxu0 0.0
        %3606 = vmatpush1.msra.mxu0 %v3231
        %3607 = vmatprep.subr.mxu0 0.0
        %3608 = vmatpush1.msra.mxu0 %v3232
        %3609 = vmatprep.subr.mxu0 0.0
        %3610 = vmatpush1.msra.mxu0 0.0
        %3611 = vmatprep.subr.mxu0 0.0
        %3612 = vmatpush1.msra.mxu0 0.0
        %3613 = vmatprep.subr.mxu0 0.0
        %3614 = vmatpush1.msra.mxu0 0.0
        %3615 = vmatprep.subr.mxu0 0.0
        %3616 = vmatpush1.msra.mxu0 0.0
        %3617 = vmatprep.subr.mxu0 0.0
        %3618 = vmatpush1.msra.mxu0 0.0
        %3619 = vmatprep.subr.mxu0 0.0
        %3620 = vmatpush1.msra.mxu0 0.0
        %3621 = vmatprep.subr.mxu0 0.0
        %3622 = vmatpush1.msra.mxu0 0.0
        %3623 = vmatprep.subr.mxu0 0.0
        %3624 = vmatpush1.msra.mxu0 0.0
        %3625 = vmatprep.subr.mxu0 0.0
        %3626 = vmatpush1.msra.mxu0 0.0
        %3627 = vmatprep.subr.mxu0 0.0
        %3628 = vmatpush1.msra.mxu0 0.0
        %3629 = vmatprep.subr.mxu0 0.0
        %3630 = vmatpush1.msra.mxu0 0.0
        %3631 = vmatprep.subr.mxu0 0.0
        %3632 = vmatpush1.msra.mxu0 0.0
        %3633 = vmatprep.subr.mxu0 0.0
        %3634 = vmatpush1.msra.mxu0 0.0
        %3635 = vmatprep.subr.mxu0 0.0
        %3636 = vmatpush1.msra.mxu0 0.0
        %3637 = vmatprep.subr.mxu0 0.0
        %3638 = vmatpush1.msra.mxu0 0.0
        %3639 = vmatprep.subr.mxu0 0.0
        %3640 = vmatpush1.msra.mxu0 0.0
        %3641 = vmatprep.mubr.f32.mxu0 0.0
        %3642 = vmatmul.mubr.f32.gmra.mrb[0].mxu0 %v3136
        %v3643 = vpop.f32.mrb[0].mxu0
        %v3644 = vadd.f32 0.0, %v3643
        %v3645 = vpop.f32.mrb[0].mxu0
        %3646 = vmatprep.mubr.f32.mxu0 0.0
        %3647 = vmatmul.mubr.f32.gmra.mrb[0].mxu0 %v3144
        %v3648 = vpop.f32.mrb[0].mxu0
        %v3649 = vadd.f32 0.0, %v3648
        %v3650 = vpop.f32.mrb[0].mxu0
        %3651 = vdwg.mxu0
        %3652 = vst.msk [vmem:[#allocation2 + $0x10] sm:$0xff] %vm3316, %v3644
        %3653 = vst.msk [vmem:[#allocation2 + $0x30] sm:$0xff] %vm3316, %v3649
        %3654 = vmatprep.subr.mxu0 0.0
        %3655 = vmatpush1.msra.mxu0 %v3217
        %3656 = vmatprep.subr.mxu0 0.0
        %3657 = vmatpush1.msra.mxu0 %v3218
        %3658 = vmatprep.subr.mxu0 0.0
        %3659 = vmatpush1.msra.mxu0 %v3219
        %3660 = vmatprep.subr.mxu0 0.0
        %3661 = vmatpush1.msra.mxu0 %v3220
        %3662 = vmatprep.subr.mxu0 0.0
        %3663 = vmatpush1.msra.mxu0 %v3221
        %3664 = vmatprep.subr.mxu0 0.0
        %3665 = vmatpush1.msra.mxu0 %v3222
        %3666 = vmatprep.subr.mxu0 0.0
        %3667 = vmatpush1.msra.mxu0 %v3223
        %3668 = vmatprep.subr.mxu0 0.0
        %3669 = vmatpush1.msra.mxu0 %v3224
        %3670 = vmatprep.subr.mxu0 0.0
        %3671 = vmatpush1.msra.mxu0 %v3225
        %3672 = vmatprep.subr.mxu0 0.0
        %3673 = vmatpush1.msra.mxu0 %v3226
        %3674 = vmatprep.subr.mxu0 0.0
        %3675 = vmatpush1.msra.mxu0 %v3227
        %3676 = vmatprep.subr.mxu0 0.0
        %3677 = vmatpush1.msra.mxu0 %v3228
        %3678 = vmatprep.subr.mxu0 0.0
        %3679 = vmatpush1.msra.mxu0 %v3229
        %3680 = vmatprep.subr.mxu0 0.0
        %3681 = vmatpush1.msra.mxu0 %v3230
        %3682 = vmatprep.subr.mxu0 0.0
        %3683 = vmatpush1.msra.mxu0 %v3231
        %3684 = vmatprep.subr.mxu0 0.0
        %3685 = vmatpush1.msra.mxu0 %v3232
        %3686 = vmatprep.subr.mxu0 0.0
        %3687 = vmatpush1.msra.mxu0 0.0
        %3688 = vmatprep.subr.mxu0 0.0
        %3689 = vmatpush1.msra.mxu0 0.0
        %3690 = vmatprep.subr.mxu0 0.0
        %3691 = vmatpush1.msra.mxu0 0.0
        %3692 = vmatprep.subr.mxu0 0.0
        %3693 = vmatpush1.msra.mxu0 0.0
        %3694 = vmatprep.subr.mxu0 0.0
        %3695 = vmatpush1.msra.mxu0 0.0
        %3696 = vmatprep.subr.mxu0 0.0
        %3697 = vmatpush1.msra.mxu0 0.0
        %3698 = vmatprep.subr.mxu0 0.0
        %3699 = vmatpush1.msra.mxu0 0.0
        %3700 = vmatprep.subr.mxu0 0.0
        %3701 = vmatpush1.msra.mxu0 0.0
        %3702 = vmatprep.subr.mxu0 0.0
        %3703 = vmatpush1.msra.mxu0 0.0
        %3704 = vmatprep.subr.mxu0 0.0
        %3705 = vmatpush1.msra.mxu0 0.0
        %3706 = vmatprep.subr.mxu0 0.0
        %3707 = vmatpush1.msra.mxu0 0.0
        %3708 = vmatprep.subr.mxu0 0.0
        %3709 = vmatpush1.msra.mxu0 0.0
        %3710 = vmatprep.subr.mxu0 0.0
        %3711 = vmatpush1.msra.mxu0 0.0
        %3712 = vmatprep.subr.mxu0 0.0
        %3713 = vmatpush1.msra.mxu0 0.0
        %3714 = vmatprep.subr.mxu0 0.0
        %3715 = vmatpush1.msra.mxu0 0.0
        %3716 = vmatprep.subr.mxu0 0.0
        %3717 = vmatpush1.msra.mxu0 0.0
        %3718 = vmatprep.mubr.f32.mxu0 0.0
        %3719 = vmatmul.mubr.f32.gmra.mrb[0].mxu0 %v3137
        %v3720 = vpop.f32.mrb[0].mxu0
        %v3721 = vadd.f32 0.0, %v3720
        %v3722 = vpop.f32.mrb[0].mxu0
        %3723 = vmatprep.mubr.f32.mxu0 0.0
        %3724 = vmatmul.mubr.f32.gmra.mrb[0].mxu0 %v3145
        %v3725 = vpop.f32.mrb[0].mxu0
        %v3726 = vadd.f32 0.0, %v3725
        %v3727 = vpop.f32.mrb[0].mxu0
        %3728 = vdwg.mxu0
        %3731 = vrot.lane.b32.xlu0 %v3721, 32
        %v3732 = vpop.permute.xlu0 %3731
        %3733 = vrot.lane.b32.xlu0 %v3726, 32
        %v3734 = vpop.permute.xlu0 %3733
        %3737 = vst.msk [vmem:[#allocation2 + $0x10] sm:$0xff] %vm3402, %v3732
        %3738 = vst.msk [vmem:[#allocation2 + $0x30] sm:$0xff] %vm3402, %v3734
        %3739 = vmatprep.subr.mxu0 0.0
        %3740 = vmatpush1.msra.mxu0 %v3217
        %3741 = vmatprep.subr.mxu0 0.0
        %3742 = vmatpush1.msra.mxu0 %v3218
        %3743 = vmatprep.subr.mxu0 0.0
        %3744 = vmatpush1.msra.mxu0 %v3219
        %3745 = vmatprep.subr.mxu0 0.0
        %3746 = vmatpush1.msra.mxu0 %v3220
        %3747 = vmatprep.subr.mxu0 0.0
        %3748 = vmatpush1.msra.mxu0 %v3221
        %3749 = vmatprep.subr.mxu0 0.0
        %3750 = vmatpush1.msra.mxu0 %v3222
        %3751 = vmatprep.subr.mxu0 0.0
        %3752 = vmatpush1.msra.mxu0 %v3223
        %3753 = vmatprep.subr.mxu0 0.0
        %3754 = vmatpush1.msra.mxu0 %v3224
        %3755 = vmatprep.subr.mxu0 0.0
        %3756 = vmatpush1.msra.mxu0 %v3225
        %3757 = vmatprep.subr.mxu0 0.0
        %3758 = vmatpush1.msra.mxu0 %v3226
        %3759 = vmatprep.subr.mxu0 0.0
        %3760 = vmatpush1.msra.mxu0 %v3227
        %3761 = vmatprep.subr.mxu0 0.0
        %3762 = vmatpush1.msra.mxu0 %v3228
        %3763 = vmatprep.subr.mxu0 0.0
        %3764 = vmatpush1.msra.mxu0 %v3229
        %3765 = vmatprep.subr.mxu0 0.0
        %3766 = vmatpush1.msra.mxu0 %v3230
        %3767 = vmatprep.subr.mxu0 0.0
        %3768 = vmatpush1.msra.mxu0 %v3231
        %3769 = vmatprep.subr.mxu0 0.0
        %3770 = vmatpush1.msra.mxu0 %v3232
        %3771 = vmatprep.subr.mxu0 0.0
        %3772 = vmatpush1.msra.mxu0 0.0
        %3773 = vmatprep.subr.mxu0 0.0
        %3774 = vmatpush1.msra.mxu0 0.0
        %3775 = vmatprep.subr.mxu0 0.0
        %3776 = vmatpush1.msra.mxu0 0.0
        %3777 = vmatprep.subr.mxu0 0.0
        %3778 = vmatpush1.msra.mxu0 0.0
        %3779 = vmatprep.subr.mxu0 0.0
        %3780 = vmatpush1.msra.mxu0 0.0
        %3781 = vmatprep.subr.mxu0 0.0
        %3782 = vmatpush1.msra.mxu0 0.0
        %3783 = vmatprep.subr.mxu0 0.0
        %3784 = vmatpush1.msra.mxu0 0.0
        %3785 = vmatprep.subr.mxu0 0.0
        %3786 = vmatpush1.msra.mxu0 0.0
        %3787 = vmatprep.subr.mxu0 0.0
        %3788 = vmatpush1.msra.mxu0 0.0
        %3789 = vmatprep.subr.mxu0 0.0
        %3790 = vmatpush1.msra.mxu0 0.0
        %3791 = vmatprep.subr.mxu0 0.0
        %3792 = vmatpush1.msra.mxu0 0.0
        %3793 = vmatprep.subr.mxu0 0.0
        %3794 = vmatpush1.msra.mxu0 0.0
        %3795 = vmatprep.subr.mxu0 0.0
        %3796 = vmatpush1.msra.mxu0 0.0
        %3797 = vmatprep.subr.mxu0 0.0
        %3798 = vmatpush1.msra.mxu0 0.0
        %3799 = vmatprep.subr.mxu0 0.0
        %3800 = vmatpush1.msra.mxu0 0.0
        %3801 = vmatprep.subr.mxu0 0.0
        %3802 = vmatpush1.msra.mxu0 0.0
        %3803 = vmatprep.mubr.f32.mxu0 0.0
        %3804 = vmatmul.mubr.f32.gmra.mrb[0].mxu0 %v3138
        %v3805 = vpop.f32.mrb[0].mxu0
        %v3806 = vadd.f32 0.0, %v3805
        %v3807 = vpop.f32.mrb[0].mxu0
        %3808 = vmatprep.mubr.f32.mxu0 0.0
        %3809 = vmatmul.mubr.f32.gmra.mrb[0].mxu0 %v3146
        %v3810 = vpop.f32.mrb[0].mxu0
        %v3811 = vadd.f32 0.0, %v3810
        %v3812 = vpop.f32.mrb[0].mxu0
        %3813 = vdwg.mxu0
        %3816 = vrot.lane.b32.xlu0 %v3806, 64
        %v3817 = vpop.permute.xlu0 %3816
        %3818 = vrot.lane.b32.xlu0 %v3811, 64
        %v3819 = vpop.permute.xlu0 %3818
        %3822 = vst.msk [vmem:[#allocation2 + $0x10] sm:$0xff] %vm3488, %v3817
        %3823 = vst.msk [vmem:[#allocation2 + $0x30] sm:$0xff] %vm3488, %v3819
        %3824 = vmatprep.subr.mxu0 0.0
        %3825 = vmatpush1.msra.mxu0 %v3217
        %3826 = vmatprep.subr.mxu0 0.0
        %3827 = vmatpush1.msra.mxu0 %v3218
        %3828 = vmatprep.subr.mxu0 0.0
        %3829 = vmatpush1.msra.mxu0 %v3219
        %3830 = vmatprep.subr.mxu0 0.0
        %3831 = vmatpush1.msra.mxu0 %v3220
        %3832 = vmatprep.subr.mxu0 0.0
        %3833 = vmatpush1.msra.mxu0 %v3221
        %3834 = vmatprep.subr.mxu0 0.0
        %3835 = vmatpush1.msra.mxu0 %v3222
        %3836 = vmatprep.subr.mxu0 0.0
        %3837 = vmatpush1.msra.mxu0 %v3223
        %3838 = vmatprep.subr.mxu0 0.0
        %3839 = vmatpush1.msra.mxu0 %v3224
        %3840 = vmatprep.subr.mxu0 0.0
        %3841 = vmatpush1.msra.mxu0 %v3225
        %3842 = vmatprep.subr.mxu0 0.0
        %3843 = vmatpush1.msra.mxu0 %v3226
        %3844 = vmatprep.subr.mxu0 0.0
        %3845 = vmatpush1.msra.mxu0 %v3227
        %3846 = vmatprep.subr.mxu0 0.0
        %3847 = vmatpush1.msra.mxu0 %v3228
        %3848 = vmatprep.subr.mxu0 0.0
        %3849 = vmatpush1.msra.mxu0 %v3229
        %3850 = vmatprep.subr.mxu0 0.0
        %3851 = vmatpush1.msra.mxu0 %v3230
        %3852 = vmatprep.subr.mxu0 0.0
        %3853 = vmatpush1.msra.mxu0 %v3231
        %3854 = vmatprep.subr.mxu0 0.0
        %3855 = vmatpush1.msra.mxu0 %v3232
        %3856 = vmatprep.subr.mxu0 0.0
        %3857 = vmatpush1.msra.mxu0 0.0
        %3858 = vmatprep.subr.mxu0 0.0
        %3859 = vmatpush1.msra.mxu0 0.0
        %3860 = vmatprep.subr.mxu0 0.0
        %3861 = vmatpush1.msra.mxu0 0.0
        %3862 = vmatprep.subr.mxu0 0.0
        %3863 = vmatpush1.msra.mxu0 0.0
        %3864 = vmatprep.subr.mxu0 0.0
        %3865 = vmatpush1.msra.mxu0 0.0
        %3866 = vmatprep.subr.mxu0 0.0
        %3867 = vmatpush1.msra.mxu0 0.0
        %3868 = vmatprep.subr.mxu0 0.0
        %3869 = vmatpush1.msra.mxu0 0.0
        %3870 = vmatprep.subr.mxu0 0.0
        %3871 = vmatpush1.msra.mxu0 0.0
        %3872 = vmatprep.subr.mxu0 0.0
        %3873 = vmatpush1.msra.mxu0 0.0
        %3874 = vmatprep.subr.mxu0 0.0
        %3875 = vmatpush1.msra.mxu0 0.0
        %3876 = vmatprep.subr.mxu0 0.0
        %3877 = vmatpush1.msra.mxu0 0.0
        %3878 = vmatprep.subr.mxu0 0.0
        %3879 = vmatpush1.msra.mxu0 0.0
        %3880 = vmatprep.subr.mxu0 0.0
        %3881 = vmatpush1.msra.mxu0 0.0
        %3882 = vmatprep.subr.mxu0 0.0
        %3883 = vmatpush1.msra.mxu0 0.0
        %3884 = vmatprep.subr.mxu0 0.0
        %3885 = vmatpush1.msra.mxu0 0.0
        %3886 = vmatprep.subr.mxu0 0.0
        %3887 = vmatpush1.msra.mxu0 0.0
        %3888 = vmatprep.mubr.f32.mxu0 0.0
        %3889 = vmatmul.mubr.f32.gmra.mrb[0].mxu0 %v3139
        %v3890 = vpop.f32.mrb[0].mxu0
        %v3891 = vadd.f32 0.0, %v3890
        %v3892 = vpop.f32.mrb[0].mxu0
        %3893 = vmatprep.mubr.f32.mxu0 0.0
        %3894 = vmatmul.mubr.f32.gmra.mrb[0].mxu0 %v3147
        %v3895 = vpop.f32.mrb[0].mxu0
        %v3896 = vadd.f32 0.0, %v3895
        %v3897 = vpop.f32.mrb[0].mxu0
        %3898 = vdwg.mxu0
        %3901 = vrot.lane.b32.xlu0 %v3891, 96
        %v3902 = vpop.permute.xlu0 %3901
        %3903 = vrot.lane.b32.xlu0 %v3896, 96
        %v3904 = vpop.permute.xlu0 %3903
        %3907 = vst.msk [vmem:[#allocation2 + $0x10] sm:$0xff] %vm3574, %v3902
        %3908 = vst.msk [vmem:[#allocation2 + $0x30] sm:$0xff] %vm3574, %v3904
        %v3909 = vld [vmem:[#allocation2] sm:$0xff]
        %v3910 = vld [vmem:[#allocation2 + $0x8] sm:$0xff]
        %v3911 = vld [vmem:[#allocation2 + $0x10] sm:$0xff]
        %v3912 = vld [vmem:[#allocation2 + $0x18] sm:$0xff]
        %v3913 = vld [vmem:[#allocation2 + $0x20] sm:$0xff]
        %v3914 = vld [vmem:[#allocation2 + $0x28] sm:$0xff]
        %v3915 = vld [vmem:[#allocation2 + $0x30] sm:$0xff]
        %v3916 = vld [vmem:[#allocation2 + $0x38] sm:$0xff]
        %v3917 = vld [vmem:[%s4] sm:$0xff]
        %v3918 = vld [vmem:[%s4 + $0x8] sm:$0xff]
        %s3919 = scalar_lea.vmem %s4, 16
        %v3920 = vld [vmem:[%s3919] sm:$0xff]
        %v3921 = vld [vmem:[%s3919 + $0x8] sm:$0xff]
        %3928 = vrot.lane.b32.xlu0 %v3909, 6
        %v3929 = vpop.permute.xlu0 %3928
        %3930 = vrot.lane.b32.xlu0 %v3910, 6
        %v3931 = vpop.permute.xlu0 %3930
        %3932 = vrot.lane.b32.xlu0 %v3911, 6
        %v3933 = vpop.permute.xlu0 %3932
        %3934 = vrot.lane.b32.xlu0 %v3913, 6
        %v3935 = vpop.permute.xlu0 %3934
        %3936 = vrot.lane.b32.xlu0 %v3914, 6
        %v3937 = vpop.permute.xlu0 %3936
        %3938 = vrot.lane.b32.xlu0 %v3915, 6
        %v3939 = vpop.permute.xlu0 %3938
        %vm3940 = vcmask 48128
        %v3941 = vsel %vm3940, %v3929, %v3931
        %v3942 = vsel %vm3940, %v3931, %v3933
        %v3943 = vsel %vm3940, %v3935, %v3937
        %v3944 = vsel %vm3940, %v3937, %v3939
        %vm3949 = vcmask 130048
        %v3951 = vsel %vm3949, %v3920, 0
        %v3954 = vsel %vm3949, %v3921, 0
        %3956 = vmatprep.subr.mxu0 %v3942
        %3957 = vmatpush1.msra.mxu0 %v3941
        %3958 = vmatprep.subr.mxu0 %v3944
        %3959 = vmatpush1.msra.mxu0 %v3943
        %3960 = vmatprep.subr.mxu0 0.0
        %3961 = vmatpush1.msra.mxu0 0.0
        %3962 = vmatprep.subr.mxu0 0.0
        %3963 = vmatpush1.msra.mxu0 0.0
        %3964 = vmatprep.subr.mxu0 0.0
        %3965 = vmatpush1.msra.mxu0 0.0
        %3966 = vmatprep.subr.mxu0 0.0
        %3967 = vmatpush1.msra.mxu0 0.0
        %3968 = vmatprep.subr.mxu0 0.0
        %3969 = vmatpush1.msra.mxu0 0.0
        %3970 = vmatprep.subr.mxu0 0.0
        %3971 = vmatpush1.msra.mxu0 0.0
        %3972 = vmatprep.subr.mxu0 0.0
        %3973 = vmatpush1.msra.mxu0 0.0
        %3974 = vmatprep.subr.mxu0 0.0
        %3975 = vmatpush1.msra.mxu0 0.0
        %3976 = vmatprep.subr.mxu0 0.0
        %3977 = vmatpush1.msra.mxu0 0.0
        %3978 = vmatprep.subr.mxu0 0.0
        %3979 = vmatpush1.msra.mxu0 0.0
        %3980 = vmatprep.subr.mxu0 0.0
        %3981 = vmatpush1.msra.mxu0 0.0
        %3982 = vmatprep.subr.mxu0 0.0
        %3983 = vmatpush1.msra.mxu0 0.0
        %3984 = vmatprep.subr.mxu0 0.0
        %3985 = vmatpush1.msra.mxu0 0.0
        %3986 = vmatprep.subr.mxu0 0.0
        %3987 = vmatpush1.msra.mxu0 0.0
        %3988 = vmatprep.subr.mxu0 0.0
        %3989 = vmatpush1.msra.mxu0 0.0
        %3990 = vmatprep.subr.mxu0 0.0
        %3991 = vmatpush1.msra.mxu0 0.0
        %3992 = vmatprep.subr.mxu0 0.0
        %3993 = vmatpush1.msra.mxu0 0.0
        %3994 = vmatprep.subr.mxu0 0.0
        %3995 = vmatpush1.msra.mxu0 0.0
        %3996 = vmatprep.subr.mxu0 0.0
        %3997 = vmatpush1.msra.mxu0 0.0
        %3998 = vmatprep.subr.mxu0 0.0
        %3999 = vmatpush1.msra.mxu0 0.0
        %4000 = vmatprep.subr.mxu0 0.0
        %4001 = vmatpush1.msra.mxu0 0.0
        %4002 = vmatprep.subr.mxu0 0.0
        %4003 = vmatpush1.msra.mxu0 0.0
        %4004 = vmatprep.subr.mxu0 0.0
        %4005 = vmatpush1.msra.mxu0 0.0
        %4006 = vmatprep.subr.mxu0 0.0
        %4007 = vmatpush1.msra.mxu0 0.0
        %4008 = vmatprep.subr.mxu0 0.0
        %4009 = vmatpush1.msra.mxu0 0.0
        %4010 = vmatprep.subr.mxu0 0.0
        %4011 = vmatpush1.msra.mxu0 0.0
        %4012 = vmatprep.subr.mxu0 0.0
        %4013 = vmatpush1.msra.mxu0 0.0
        %4014 = vmatprep.subr.mxu0 0.0
        %4015 = vmatpush1.msra.mxu0 0.0
        %4016 = vmatprep.subr.mxu0 0.0
        %4017 = vmatpush1.msra.mxu0 0.0
        %4018 = vmatprep.subr.mxu0 0.0
        %4019 = vmatpush1.msra.mxu0 0.0
        %4020 = vmatprep.mubr.f32.mxu0 0.0
        %4021 = vmatmul.mubr.f32.gmra.mrb[0].mxu0 %v3951
        %v4022 = vpop.f32.mrb[0].mxu0
        %v4023 = vadd.f32 0.0, %v4022
        %v4024 = vpop.f32.mrb[0].mxu0
        %v4025 = vadd.f32 0.0, %v4024
        %4026 = vmatprep.mubr.f32.mxu0 0.0
        %4027 = vmatmul.mubr.f32.gmra.mrb[0].mxu0 %v3954
        %v4028 = vpop.f32.mrb[0].mxu0
        %v4029 = vadd.f32 0.0, %v4028
        %v4030 = vpop.f32.mrb[0].mxu0
        %v4031 = vadd.f32 0.0, %v4030
        %4032 = vdwg.mxu0
        %4033 = vrot.lane.b32.xlu0 %v3909, 7
        %v4034 = vpop.permute.xlu0 %4033
        %4035 = vrot.lane.b32.xlu0 %v3910, 7
        %v4036 = vpop.permute.xlu0 %4035
        %4037 = vrot.lane.b32.xlu0 %v3911, 7
        %v4038 = vpop.permute.xlu0 %4037
        %4039 = vrot.lane.b32.xlu0 %v3913, 7
        %v4040 = vpop.permute.xlu0 %4039
        %4041 = vrot.lane.b32.xlu0 %v3914, 7
        %v4042 = vpop.permute.xlu0 %4041
        %4043 = vrot.lane.b32.xlu0 %v3915, 7
        %v4044 = vpop.permute.xlu0 %4043
        %vm4045 = vcmask 56320
        %v4046 = vsel %vm4045, %v4034, %v4036
        %v4047 = vsel %vm4045, %v4036, %v4038
        %v4048 = vsel %vm4045, %v4040, %v4042
        %v4049 = vsel %vm4045, %v4042, %v4044
        %v4055 = vsel %vm3949, %v3917, 0
        %v4058 = vsel %vm3949, %v3918, 0
        %4060 = vmatprep.subr.mxu0 %v4047
        %4061 = vmatpush1.msra.mxu0 %v4046
        %4062 = vmatprep.subr.mxu0 %v4049
        %4063 = vmatpush1.msra.mxu0 %v4048
        %4064 = vmatprep.subr.mxu0 0.0
        %4065 = vmatpush1.msra.mxu0 0.0
        %4066 = vmatprep.subr.mxu0 0.0
        %4067 = vmatpush1.msra.mxu0 0.0
        %4068 = vmatprep.subr.mxu0 0.0
        %4069 = vmatpush1.msra.mxu0 0.0
        %4070 = vmatprep.subr.mxu0 0.0
        %4071 = vmatpush1.msra.mxu0 0.0
        %4072 = vmatprep.subr.mxu0 0.0
        %4073 = vmatpush1.msra.mxu0 0.0
        %4074 = vmatprep.subr.mxu0 0.0
        %4075 = vmatpush1.msra.mxu0 0.0
        %4076 = vmatprep.subr.mxu0 0.0
        %4077 = vmatpush1.msra.mxu0 0.0
        %4078 = vmatprep.subr.mxu0 0.0
        %4079 = vmatpush1.msra.mxu0 0.0
        %4080 = vmatprep.subr.mxu0 0.0
        %4081 = vmatpush1.msra.mxu0 0.0
        %4082 = vmatprep.subr.mxu0 0.0
        %4083 = vmatpush1.msra.mxu0 0.0
        %4084 = vmatprep.subr.mxu0 0.0
        %4085 = vmatpush1.msra.mxu0 0.0
        %4086 = vmatprep.subr.mxu0 0.0
        %4087 = vmatpush1.msra.mxu0 0.0
        %4088 = vmatprep.subr.mxu0 0.0
        %4089 = vmatpush1.msra.mxu0 0.0
        %4090 = vmatprep.subr.mxu0 0.0
        %4091 = vmatpush1.msra.mxu0 0.0
        %4092 = vmatprep.subr.mxu0 0.0
        %4093 = vmatpush1.msra.mxu0 0.0
        %4094 = vmatprep.subr.mxu0 0.0
        %4095 = vmatpush1.msra.mxu0 0.0
        %4096 = vmatprep.subr.mxu0 0.0
        %4097 = vmatpush1.msra.mxu0 0.0
        %4098 = vmatprep.subr.mxu0 0.0
        %4099 = vmatpush1.msra.mxu0 0.0
        %4100 = vmatprep.subr.mxu0 0.0
        %4101 = vmatpush1.msra.mxu0 0.0
        %4102 = vmatprep.subr.mxu0 0.0
        %4103 = vmatpush1.msra.mxu0 0.0
        %4104 = vmatprep.subr.mxu0 0.0
        %4105 = vmatpush1.msra.mxu0 0.0
        %4106 = vmatprep.subr.mxu0 0.0
        %4107 = vmatpush1.msra.mxu0 0.0
        %4108 = vmatprep.subr.mxu0 0.0
        %4109 = vmatpush1.msra.mxu0 0.0
        %4110 = vmatprep.subr.mxu0 0.0
        %4111 = vmatpush1.msra.mxu0 0.0
        %4112 = vmatprep.subr.mxu0 0.0
        %4113 = vmatpush1.msra.mxu0 0.0
        %4114 = vmatprep.subr.mxu0 0.0
        %4115 = vmatpush1.msra.mxu0 0.0
        %4116 = vmatprep.subr.mxu0 0.0
        %4117 = vmatpush1.msra.mxu0 0.0
        %4118 = vmatprep.subr.mxu0 0.0
        %4119 = vmatpush1.msra.mxu0 0.0
        %4120 = vmatprep.subr.mxu0 0.0
        %4121 = vmatpush1.msra.mxu0 0.0
        %4122 = vmatprep.subr.mxu0 0.0
        %4123 = vmatpush1.msra.mxu0 0.0
        %4124 = vmatprep.mubr.f32.mxu0 0.0
        %4125 = vmatmul.mubr.f32.gmra.mrb[0].mxu0 %v4055
        %v4126 = vpop.f32.mrb[0].mxu0
        %v4127 = vadd.f32 %v4023, %v4126
        %v4128 = vpop.f32.mrb[0].mxu0
        %v4129 = vadd.f32 %v4025, %v4128
        %4130 = vmatprep.mubr.f32.mxu0 0.0
        %4131 = vmatmul.mubr.f32.gmra.mrb[0].mxu0 %v4058
        %v4132 = vpop.f32.mrb[0].mxu0
        %v4133 = vadd.f32 %v4029, %v4132
        %v4134 = vpop.f32.mrb[0].mxu0
        %v4135 = vadd.f32 %v4031, %v4134
        %4136 = vdwg.mxu0
        %s4137 = scalar_lea.vmem %s4, 32
        %v4138 = vld [vmem:[%s4137] sm:$0xff]
        %v4139 = vld [vmem:[%s4137 + $0x8] sm:$0xff]
        %4140 = vrot.lane.b32.xlu0 %v3909, 5
        %v4141 = vpop.permute.xlu0 %4140
        %4142 = vrot.lane.b32.xlu0 %v3910, 5
        %v4143 = vpop.permute.xlu0 %4142
        %4144 = vrot.lane.b32.xlu0 %v3911, 5
        %v4145 = vpop.permute.xlu0 %4144
        %4146 = vrot.lane.b32.xlu0 %v3913, 5
        %v4147 = vpop.permute.xlu0 %4146
        %4148 = vrot.lane.b32.xlu0 %v3914, 5
        %v4149 = vpop.permute.xlu0 %4148
        %4150 = vrot.lane.b32.xlu0 %v3915, 5
        %v4151 = vpop.permute.xlu0 %4150
        %vm4152 = vcmask 39936
        %v4153 = vsel %vm4152, %v4141, %v4143
        %v4154 = vsel %vm4152, %v4143, %v4145
        %v4155 = vsel %vm4152, %v4147, %v4149
        %v4156 = vsel %vm4152, %v4149, %v4151
        %v4162 = vsel %vm3949, %v4138, 0
        %v4165 = vsel %vm3949, %v4139, 0
        %4167 = vmatprep.subr.mxu0 %v4154
        %4168 = vmatpush1.msra.mxu0 %v4153
        %4169 = vmatprep.subr.mxu0 %v4156
        %4170 = vmatpush1.msra.mxu0 %v4155
        %4171 = vmatprep.subr.mxu0 0.0
        %4172 = vmatpush1.msra.mxu0 0.0
        %4173 = vmatprep.subr.mxu0 0.0
        %4174 = vmatpush1.msra.mxu0 0.0
        %4175 = vmatprep.subr.mxu0 0.0
        %4176 = vmatpush1.msra.mxu0 0.0
        %4177 = vmatprep.subr.mxu0 0.0
        %4178 = vmatpush1.msra.mxu0 0.0
        %4179 = vmatprep.subr.mxu0 0.0
        %4180 = vmatpush1.msra.mxu0 0.0
        %4181 = vmatprep.subr.mxu0 0.0
        %4182 = vmatpush1.msra.mxu0 0.0
        %4183 = vmatprep.subr.mxu0 0.0
        %4184 = vmatpush1.msra.mxu0 0.0
        %4185 = vmatprep.subr.mxu0 0.0
        %4186 = vmatpush1.msra.mxu0 0.0
        %4187 = vmatprep.subr.mxu0 0.0
        %4188 = vmatpush1.msra.mxu0 0.0
        %4189 = vmatprep.subr.mxu0 0.0
        %4190 = vmatpush1.msra.mxu0 0.0
        %4191 = vmatprep.subr.mxu0 0.0
        %4192 = vmatpush1.msra.mxu0 0.0
        %4193 = vmatprep.subr.mxu0 0.0
        %4194 = vmatpush1.msra.mxu0 0.0
        %4195 = vmatprep.subr.mxu0 0.0
        %4196 = vmatpush1.msra.mxu0 0.0
        %4197 = vmatprep.subr.mxu0 0.0
        %4198 = vmatpush1.msra.mxu0 0.0
        %4199 = vmatprep.subr.mxu0 0.0
        %4200 = vmatpush1.msra.mxu0 0.0
        %4201 = vmatprep.subr.mxu0 0.0
        %4202 = vmatpush1.msra.mxu0 0.0
        %4203 = vmatprep.subr.mxu0 0.0
        %4204 = vmatpush1.msra.mxu0 0.0
        %4205 = vmatprep.subr.mxu0 0.0
        %4206 = vmatpush1.msra.mxu0 0.0
        %4207 = vmatprep.subr.mxu0 0.0
        %4208 = vmatpush1.msra.mxu0 0.0
        %4209 = vmatprep.subr.mxu0 0.0
        %4210 = vmatpush1.msra.mxu0 0.0
        %4211 = vmatprep.subr.mxu0 0.0
        %4212 = vmatpush1.msra.mxu0 0.0
        %4213 = vmatprep.subr.mxu0 0.0
        %4214 = vmatpush1.msra.mxu0 0.0
        %4215 = vmatprep.subr.mxu0 0.0
        %4216 = vmatpush1.msra.mxu0 0.0
        %4217 = vmatprep.subr.mxu0 0.0
        %4218 = vmatpush1.msra.mxu0 0.0
        %4219 = vmatprep.subr.mxu0 0.0
        %4220 = vmatpush1.msra.mxu0 0.0
        %4221 = vmatprep.subr.mxu0 0.0
        %4222 = vmatpush1.msra.mxu0 0.0
        %4223 = vmatprep.subr.mxu0 0.0
        %4224 = vmatpush1.msra.mxu0 0.0
        %4225 = vmatprep.subr.mxu0 0.0
        %4226 = vmatpush1.msra.mxu0 0.0
        %4227 = vmatprep.subr.mxu0 0.0
        %4228 = vmatpush1.msra.mxu0 0.0
        %4229 = vmatprep.subr.mxu0 0.0
        %4230 = vmatpush1.msra.mxu0 0.0
        %4231 = vmatprep.mubr.f32.mxu0 0.0
        %4232 = vmatmul.mubr.f32.gmra.mrb[0].mxu0 %v4162
        %v4233 = vpop.f32.mrb[0].mxu0
        %v4234 = vadd.f32 0.0, %v4233
        %v4235 = vpop.f32.mrb[0].mxu0
        %v4236 = vadd.f32 0.0, %v4235
        %4237 = vmatprep.mubr.f32.mxu0 0.0
        %4238 = vmatmul.mubr.f32.gmra.mrb[0].mxu0 %v4165
        %v4239 = vpop.f32.mrb[0].mxu0
        %v4240 = vadd.f32 0.0, %v4239
        %v4241 = vpop.f32.mrb[0].mxu0
        %v4242 = vadd.f32 0.0, %v4241
        %4243 = vdwg.mxu0
        %v4244 = vadd.f32 %v4127, %v4234
        %v4245 = vadd.f32 %v4129, %v4236
        %v4246 = vadd.f32 %v4133, %v4240
        %v4247 = vadd.f32 %v4135, %v4242
        %s4248 = scalar_lea.vmem %s4, 48
        %v4249 = vld [vmem:[%s4248] sm:$0xff]
        %v4250 = vld [vmem:[%s4248 + $0x8] sm:$0xff]
        %4251 = vrot.lane.b32.xlu0 %v3909, 4
        %v4252 = vpop.permute.xlu0 %4251
        %4253 = vrot.lane.b32.xlu0 %v3910, 4
        %v4254 = vpop.permute.xlu0 %4253
        %4255 = vrot.lane.b32.xlu0 %v3911, 4
        %v4256 = vpop.permute.xlu0 %4255
        %4257 = vrot.lane.b32.xlu0 %v3913, 4
        %v4258 = vpop.permute.xlu0 %4257
        %4259 = vrot.lane.b32.xlu0 %v3914, 4
        %v4260 = vpop.permute.xlu0 %4259
        %4261 = vrot.lane.b32.xlu0 %v3915, 4
        %v4262 = vpop.permute.xlu0 %4261
        %vm4263 = vcmask 31744
        %v4264 = vsel %vm4263, %v4252, %v4254
        %v4265 = vsel %vm4263, %v4254, %v4256
        %v4266 = vsel %vm4263, %v4258, %v4260
        %v4267 = vsel %vm4263, %v4260, %v4262
        %v4273 = vsel %vm3949, %v4249, 0
        %v4276 = vsel %vm3949, %v4250, 0
        %4278 = vmatprep.subr.mxu0 %v4265
        %4279 = vmatpush1.msra.mxu0 %v4264
        %4280 = vmatprep.subr.mxu0 %v4267
        %4281 = vmatpush1.msra.mxu0 %v4266
        %4282 = vmatprep.subr.mxu0 0.0
        %4283 = vmatpush1.msra.mxu0 0.0
        %4284 = vmatprep.subr.mxu0 0.0
        %4285 = vmatpush1.msra.mxu0 0.0
        %4286 = vmatprep.subr.mxu0 0.0
        %4287 = vmatpush1.msra.mxu0 0.0
        %4288 = vmatprep.subr.mxu0 0.0
        %4289 = vmatpush1.msra.mxu0 0.0
        %4290 = vmatprep.subr.mxu0 0.0
        %4291 = vmatpush1.msra.mxu0 0.0
        %4292 = vmatprep.subr.mxu0 0.0
        %4293 = vmatpush1.msra.mxu0 0.0
        %4294 = vmatprep.subr.mxu0 0.0
        %4295 = vmatpush1.msra.mxu0 0.0
        %4296 = vmatprep.subr.mxu0 0.0
        %4297 = vmatpush1.msra.mxu0 0.0
        %4298 = vmatprep.subr.mxu0 0.0
        %4299 = vmatpush1.msra.mxu0 0.0
        %4300 = vmatprep.subr.mxu0 0.0
        %4301 = vmatpush1.msra.mxu0 0.0
        %4302 = vmatprep.subr.mxu0 0.0
        %4303 = vmatpush1.msra.mxu0 0.0
        %4304 = vmatprep.subr.mxu0 0.0
        %4305 = vmatpush1.msra.mxu0 0.0
        %4306 = vmatprep.subr.mxu0 0.0
        %4307 = vmatpush1.msra.mxu0 0.0
        %4308 = vmatprep.subr.mxu0 0.0
        %4309 = vmatpush1.msra.mxu0 0.0
        %4310 = vmatprep.subr.mxu0 0.0
        %4311 = vmatpush1.msra.mxu0 0.0
        %4312 = vmatprep.subr.mxu0 0.0
        %4313 = vmatpush1.msra.mxu0 0.0
        %4314 = vmatprep.subr.mxu0 0.0
        %4315 = vmatpush1.msra.mxu0 0.0
        %4316 = vmatprep.subr.mxu0 0.0
        %4317 = vmatpush1.msra.mxu0 0.0
        %4318 = vmatprep.subr.mxu0 0.0
        %4319 = vmatpush1.msra.mxu0 0.0
        %4320 = vmatprep.subr.mxu0 0.0
        %4321 = vmatpush1.msra.mxu0 0.0
        %4322 = vmatprep.subr.mxu0 0.0
        %4323 = vmatpush1.msra.mxu0 0.0
        %4324 = vmatprep.subr.mxu0 0.0
        %4325 = vmatpush1.msra.mxu0 0.0
        %4326 = vmatprep.subr.mxu0 0.0
        %4327 = vmatpush1.msra.mxu0 0.0
        %4328 = vmatprep.subr.mxu0 0.0
        %4329 = vmatpush1.msra.mxu0 0.0
        %4330 = vmatprep.subr.mxu0 0.0
        %4331 = vmatpush1.msra.mxu0 0.0
        %4332 = vmatprep.subr.mxu0 0.0
        %4333 = vmatpush1.msra.mxu0 0.0
        %4334 = vmatprep.subr.mxu0 0.0
        %4335 = vmatpush1.msra.mxu0 0.0
        %4336 = vmatprep.subr.mxu0 0.0
        %4337 = vmatpush1.msra.mxu0 0.0
        %4338 = vmatprep.subr.mxu0 0.0
        %4339 = vmatpush1.msra.mxu0 0.0
        %4340 = vmatprep.subr.mxu0 0.0
        %4341 = vmatpush1.msra.mxu0 0.0
        %4342 = vmatprep.mubr.f32.mxu0 0.0
        %4343 = vmatmul.mubr.f32.gmra.mrb[0].mxu0 %v4273
        %v4344 = vpop.f32.mrb[0].mxu0
        %v4345 = vadd.f32 0.0, %v4344
        %v4346 = vpop.f32.mrb[0].mxu0
        %v4347 = vadd.f32 0.0, %v4346
        %4348 = vmatprep.mubr.f32.mxu0 0.0
        %4349 = vmatmul.mubr.f32.gmra.mrb[0].mxu0 %v4276
        %v4350 = vpop.f32.mrb[0].mxu0
        %v4351 = vadd.f32 0.0, %v4350
        %v4352 = vpop.f32.mrb[0].mxu0
        %v4353 = vadd.f32 0.0, %v4352
        %4354 = vdwg.mxu0
        %v4355 = vadd.f32 %v4244, %v4345
        %v4356 = vadd.f32 %v4245, %v4347
        %v4357 = vadd.f32 %v4246, %v4351
        %v4358 = vadd.f32 %v4247, %v4353
        %s4359 = scalar_lea.vmem %s4, 64
        %v4360 = vld [vmem:[%s4359] sm:$0xff]
        %v4361 = vld [vmem:[%s4359 + $0x8] sm:$0xff]
        %4362 = vrot.lane.b32.xlu0 %v3909, 3
        %v4363 = vpop.permute.xlu0 %4362
        %4364 = vrot.lane.b32.xlu0 %v3910, 3
        %v4365 = vpop.permute.xlu0 %4364
        %4366 = vrot.lane.b32.xlu0 %v3911, 3
        %v4367 = vpop.permute.xlu0 %4366
        %4368 = vrot.lane.b32.xlu0 %v3913, 3
        %v4369 = vpop.permute.xlu0 %4368
        %4370 = vrot.lane.b32.xlu0 %v3914, 3
        %v4371 = vpop.permute.xlu0 %4370
        %4372 = vrot.lane.b32.xlu0 %v3915, 3
        %v4373 = vpop.permute.xlu0 %4372
        %vm4374 = vcmask 23552
        %v4375 = vsel %vm4374, %v4363, %v4365
        %v4376 = vsel %vm4374, %v4365, %v4367
        %v4377 = vsel %vm4374, %v4369, %v4371
        %v4378 = vsel %vm4374, %v4371, %v4373
        %v4384 = vsel %vm3949, %v4360, 0
        %v4387 = vsel %vm3949, %v4361, 0
        %4389 = vmatprep.subr.mxu0 %v4376
        %4390 = vmatpush1.msra.mxu0 %v4375
        %4391 = vmatprep.subr.mxu0 %v4378
        %4392 = vmatpush1.msra.mxu0 %v4377
        %4393 = vmatprep.subr.mxu0 0.0
        %4394 = vmatpush1.msra.mxu0 0.0
        %4395 = vmatprep.subr.mxu0 0.0
        %4396 = vmatpush1.msra.mxu0 0.0
        %4397 = vmatprep.subr.mxu0 0.0
        %4398 = vmatpush1.msra.mxu0 0.0
        %4399 = vmatprep.subr.mxu0 0.0
        %4400 = vmatpush1.msra.mxu0 0.0
        %4401 = vmatprep.subr.mxu0 0.0
        %4402 = vmatpush1.msra.mxu0 0.0
        %4403 = vmatprep.subr.mxu0 0.0
        %4404 = vmatpush1.msra.mxu0 0.0
        %4405 = vmatprep.subr.mxu0 0.0
        %4406 = vmatpush1.msra.mxu0 0.0
        %4407 = vmatprep.subr.mxu0 0.0
        %4408 = vmatpush1.msra.mxu0 0.0
        %4409 = vmatprep.subr.mxu0 0.0
        %4410 = vmatpush1.msra.mxu0 0.0
        %4411 = vmatprep.subr.mxu0 0.0
        %4412 = vmatpush1.msra.mxu0 0.0
        %4413 = vmatprep.subr.mxu0 0.0
        %4414 = vmatpush1.msra.mxu0 0.0
        %4415 = vmatprep.subr.mxu0 0.0
        %4416 = vmatpush1.msra.mxu0 0.0
        %4417 = vmatprep.subr.mxu0 0.0
        %4418 = vmatpush1.msra.mxu0 0.0
        %4419 = vmatprep.subr.mxu0 0.0
        %4420 = vmatpush1.msra.mxu0 0.0
        %4421 = vmatprep.subr.mxu0 0.0
        %4422 = vmatpush1.msra.mxu0 0.0
        %4423 = vmatprep.subr.mxu0 0.0
        %4424 = vmatpush1.msra.mxu0 0.0
        %4425 = vmatprep.subr.mxu0 0.0
        %4426 = vmatpush1.msra.mxu0 0.0
        %4427 = vmatprep.subr.mxu0 0.0
        %4428 = vmatpush1.msra.mxu0 0.0
        %4429 = vmatprep.subr.mxu0 0.0
        %4430 = vmatpush1.msra.mxu0 0.0
        %4431 = vmatprep.subr.mxu0 0.0
        %4432 = vmatpush1.msra.mxu0 0.0
        %4433 = vmatprep.subr.mxu0 0.0
        %4434 = vmatpush1.msra.mxu0 0.0
        %4435 = vmatprep.subr.mxu0 0.0
        %4436 = vmatpush1.msra.mxu0 0.0
        %4437 = vmatprep.subr.mxu0 0.0
        %4438 = vmatpush1.msra.mxu0 0.0
        %4439 = vmatprep.subr.mxu0 0.0
        %4440 = vmatpush1.msra.mxu0 0.0
        %4441 = vmatprep.subr.mxu0 0.0
        %4442 = vmatpush1.msra.mxu0 0.0
        %4443 = vmatprep.subr.mxu0 0.0
        %4444 = vmatpush1.msra.mxu0 0.0
        %4445 = vmatprep.subr.mxu0 0.0
        %4446 = vmatpush1.msra.mxu0 0.0
        %4447 = vmatprep.subr.mxu0 0.0
        %4448 = vmatpush1.msra.mxu0 0.0
        %4449 = vmatprep.subr.mxu0 0.0
        %4450 = vmatpush1.msra.mxu0 0.0
        %4451 = vmatprep.subr.mxu0 0.0
        %4452 = vmatpush1.msra.mxu0 0.0
        %4453 = vmatprep.mubr.f32.mxu0 0.0
        %4454 = vmatmul.mubr.f32.gmra.mrb[0].mxu0 %v4384
        %v4455 = vpop.f32.mrb[0].mxu0
        %v4456 = vadd.f32 0.0, %v4455
        %v4457 = vpop.f32.mrb[0].mxu0
        %v4458 = vadd.f32 0.0, %v4457
        %4459 = vmatprep.mubr.f32.mxu0 0.0
        %4460 = vmatmul.mubr.f32.gmra.mrb[0].mxu0 %v4387
        %v4461 = vpop.f32.mrb[0].mxu0
        %v4462 = vadd.f32 0.0, %v4461
        %v4463 = vpop.f32.mrb[0].mxu0
        %v4464 = vadd.f32 0.0, %v4463
        %4465 = vdwg.mxu0
        %v4466 = vadd.f32 %v4355, %v4456
        %v4467 = vadd.f32 %v4356, %v4458
        %v4468 = vadd.f32 %v4357, %v4462
        %v4469 = vadd.f32 %v4358, %v4464
        %s4470 = scalar_lea.vmem %s4, 80
        %v4471 = vld [vmem:[%s4470] sm:$0xff]
        %v4472 = vld [vmem:[%s4470 + $0x8] sm:$0xff]
        %4473 = vrot.lane.b32.xlu0 %v3909, 2
        %v4474 = vpop.permute.xlu0 %4473
        %4475 = vrot.lane.b32.xlu0 %v3910, 2
        %v4476 = vpop.permute.xlu0 %4475
        %4477 = vrot.lane.b32.xlu0 %v3911, 2
        %v4478 = vpop.permute.xlu0 %4477
        %4479 = vrot.lane.b32.xlu0 %v3913, 2
        %v4480 = vpop.permute.xlu0 %4479
        %4481 = vrot.lane.b32.xlu0 %v3914, 2
        %v4482 = vpop.permute.xlu0 %4481
        %4483 = vrot.lane.b32.xlu0 %v3915, 2
        %v4484 = vpop.permute.xlu0 %4483
        %vm4485 = vcmask 15360
        %v4486 = vsel %vm4485, %v4474, %v4476
        %v4487 = vsel %vm4485, %v4476, %v4478
        %v4488 = vsel %vm4485, %v4480, %v4482
        %v4489 = vsel %vm4485, %v4482, %v4484
        %v4495 = vsel %vm3949, %v4471, 0
        %v4498 = vsel %vm3949, %v4472, 0
        %4500 = vmatprep.subr.mxu0 %v4487
        %4501 = vmatpush1.msra.mxu0 %v4486
        %4502 = vmatprep.subr.mxu0 %v4489
        %4503 = vmatpush1.msra.mxu0 %v4488
        %4504 = vmatprep.subr.mxu0 0.0
        %4505 = vmatpush1.msra.mxu0 0.0
        %4506 = vmatprep.subr.mxu0 0.0
        %4507 = vmatpush1.msra.mxu0 0.0
        %4508 = vmatprep.subr.mxu0 0.0
        %4509 = vmatpush1.msra.mxu0 0.0
        %4510 = vmatprep.subr.mxu0 0.0
        %4511 = vmatpush1.msra.mxu0 0.0
        %4512 = vmatprep.subr.mxu0 0.0
        %4513 = vmatpush1.msra.mxu0 0.0
        %4514 = vmatprep.subr.mxu0 0.0
        %4515 = vmatpush1.msra.mxu0 0.0
        %4516 = vmatprep.subr.mxu0 0.0
        %4517 = vmatpush1.msra.mxu0 0.0
        %4518 = vmatprep.subr.mxu0 0.0
        %4519 = vmatpush1.msra.mxu0 0.0
        %4520 = vmatprep.subr.mxu0 0.0
        %4521 = vmatpush1.msra.mxu0 0.0
        %4522 = vmatprep.subr.mxu0 0.0
        %4523 = vmatpush1.msra.mxu0 0.0
        %4524 = vmatprep.subr.mxu0 0.0
        %4525 = vmatpush1.msra.mxu0 0.0
        %4526 = vmatprep.subr.mxu0 0.0
        %4527 = vmatpush1.msra.mxu0 0.0
        %4528 = vmatprep.subr.mxu0 0.0
        %4529 = vmatpush1.msra.mxu0 0.0
        %4530 = vmatprep.subr.mxu0 0.0
        %4531 = vmatpush1.msra.mxu0 0.0
        %4532 = vmatprep.subr.mxu0 0.0
        %4533 = vmatpush1.msra.mxu0 0.0
        %4534 = vmatprep.subr.mxu0 0.0
        %4535 = vmatpush1.msra.mxu0 0.0
        %4536 = vmatprep.subr.mxu0 0.0
        %4537 = vmatpush1.msra.mxu0 0.0
        %4538 = vmatprep.subr.mxu0 0.0
        %4539 = vmatpush1.msra.mxu0 0.0
        %4540 = vmatprep.subr.mxu0 0.0
        %4541 = vmatpush1.msra.mxu0 0.0
        %4542 = vmatprep.subr.mxu0 0.0
        %4543 = vmatpush1.msra.mxu0 0.0
        %4544 = vmatprep.subr.mxu0 0.0
        %4545 = vmatpush1.msra.mxu0 0.0
        %4546 = vmatprep.subr.mxu0 0.0
        %4547 = vmatpush1.msra.mxu0 0.0
        %4548 = vmatprep.subr.mxu0 0.0
        %4549 = vmatpush1.msra.mxu0 0.0
        %4550 = vmatprep.subr.mxu0 0.0
        %4551 = vmatpush1.msra.mxu0 0.0
        %4552 = vmatprep.subr.mxu0 0.0
        %4553 = vmatpush1.msra.mxu0 0.0
        %4554 = vmatprep.subr.mxu0 0.0
        %4555 = vmatpush1.msra.mxu0 0.0
        %4556 = vmatprep.subr.mxu0 0.0
        %4557 = vmatpush1.msra.mxu0 0.0
        %4558 = vmatprep.subr.mxu0 0.0
        %4559 = vmatpush1.msra.mxu0 0.0
        %4560 = vmatprep.subr.mxu0 0.0
        %4561 = vmatpush1.msra.mxu0 0.0
        %4562 = vmatprep.subr.mxu0 0.0
        %4563 = vmatpush1.msra.mxu0 0.0
        %4564 = vmatprep.mubr.f32.mxu0 0.0
        %4565 = vmatmul.mubr.f32.gmra.mrb[0].mxu0 %v4495
        %v4566 = vpop.f32.mrb[0].mxu0
        %v4567 = vadd.f32 0.0, %v4566
        %v4568 = vpop.f32.mrb[0].mxu0
        %v4569 = vadd.f32 0.0, %v4568
        %4570 = vmatprep.mubr.f32.mxu0 0.0
        %4571 = vmatmul.mubr.f32.gmra.mrb[0].mxu0 %v4498
        %v4572 = vpop.f32.mrb[0].mxu0
        %v4573 = vadd.f32 0.0, %v4572
        %v4574 = vpop.f32.mrb[0].mxu0
        %v4575 = vadd.f32 0.0, %v4574
        %4576 = vdwg.mxu0
        %v4577 = vadd.f32 %v4466, %v4567
        %v4578 = vadd.f32 %v4467, %v4569
        %v4579 = vadd.f32 %v4468, %v4573
        %v4580 = vadd.f32 %v4469, %v4575
        %s4581 = scalar_lea.vmem %s4, 96
        %v4582 = vld [vmem:[%s4581] sm:$0xff]
        %v4583 = vld [vmem:[%s4581 + $0x8] sm:$0xff]
        %4584 = vrot.lane.b32.xlu0 %v3909, 1
        %v4585 = vpop.permute.xlu0 %4584
        %4586 = vrot.lane.b32.xlu0 %v3910, 1
        %v4587 = vpop.permute.xlu0 %4586
        %4588 = vrot.lane.b32.xlu0 %v3911, 1
        %v4589 = vpop.permute.xlu0 %4588
        %4590 = vrot.lane.b32.xlu0 %v3913, 1
        %v4591 = vpop.permute.xlu0 %4590
        %4592 = vrot.lane.b32.xlu0 %v3914, 1
        %v4593 = vpop.permute.xlu0 %4592
        %4594 = vrot.lane.b32.xlu0 %v3915, 1
        %v4595 = vpop.permute.xlu0 %4594
        %vm4596 = vcmask 7168
        %v4597 = vsel %vm4596, %v4585, %v4587
        %v4598 = vsel %vm4596, %v4587, %v4589
        %v4599 = vsel %vm4596, %v4591, %v4593
        %v4600 = vsel %vm4596, %v4593, %v4595
        %v4606 = vsel %vm3949, %v4582, 0
        %v4609 = vsel %vm3949, %v4583, 0
        %4611 = vmatprep.subr.mxu0 %v4598
        %4612 = vmatpush1.msra.mxu0 %v4597
        %4613 = vmatprep.subr.mxu0 %v4600
        %4614 = vmatpush1.msra.mxu0 %v4599
        %4615 = vmatprep.subr.mxu0 0.0
        %4616 = vmatpush1.msra.mxu0 0.0
        %4617 = vmatprep.subr.mxu0 0.0
        %4618 = vmatpush1.msra.mxu0 0.0
        %4619 = vmatprep.subr.mxu0 0.0
        %4620 = vmatpush1.msra.mxu0 0.0
        %4621 = vmatprep.subr.mxu0 0.0
        %4622 = vmatpush1.msra.mxu0 0.0
        %4623 = vmatprep.subr.mxu0 0.0
        %4624 = vmatpush1.msra.mxu0 0.0
        %4625 = vmatprep.subr.mxu0 0.0
        %4626 = vmatpush1.msra.mxu0 0.0
        %4627 = vmatprep.subr.mxu0 0.0
        %4628 = vmatpush1.msra.mxu0 0.0
        %4629 = vmatprep.subr.mxu0 0.0
        %4630 = vmatpush1.msra.mxu0 0.0
        %4631 = vmatprep.subr.mxu0 0.0
        %4632 = vmatpush1.msra.mxu0 0.0
        %4633 = vmatprep.subr.mxu0 0.0
        %4634 = vmatpush1.msra.mxu0 0.0
        %4635 = vmatprep.subr.mxu0 0.0
        %4636 = vmatpush1.msra.mxu0 0.0
        %4637 = vmatprep.subr.mxu0 0.0
        %4638 = vmatpush1.msra.mxu0 0.0
        %4639 = vmatprep.subr.mxu0 0.0
        %4640 = vmatpush1.msra.mxu0 0.0
        %4641 = vmatprep.subr.mxu0 0.0
        %4642 = vmatpush1.msra.mxu0 0.0
        %4643 = vmatprep.subr.mxu0 0.0
        %4644 = vmatpush1.msra.mxu0 0.0
        %4645 = vmatprep.subr.mxu0 0.0
        %4646 = vmatpush1.msra.mxu0 0.0
        %4647 = vmatprep.subr.mxu0 0.0
        %4648 = vmatpush1.msra.mxu0 0.0
        %4649 = vmatprep.subr.mxu0 0.0
        %4650 = vmatpush1.msra.mxu0 0.0
        %4651 = vmatprep.subr.mxu0 0.0
        %4652 = vmatpush1.msra.mxu0 0.0
        %4653 = vmatprep.subr.mxu0 0.0
        %4654 = vmatpush1.msra.mxu0 0.0
        %4655 = vmatprep.subr.mxu0 0.0
        %4656 = vmatpush1.msra.mxu0 0.0
        %4657 = vmatprep.subr.mxu0 0.0
        %4658 = vmatpush1.msra.mxu0 0.0
        %4659 = vmatprep.subr.mxu0 0.0
        %4660 = vmatpush1.msra.mxu0 0.0
        %4661 = vmatprep.subr.mxu0 0.0
        %4662 = vmatpush1.msra.mxu0 0.0
        %4663 = vmatprep.subr.mxu0 0.0
        %4664 = vmatpush1.msra.mxu0 0.0
        %4665 = vmatprep.subr.mxu0 0.0
        %4666 = vmatpush1.msra.mxu0 0.0
        %4667 = vmatprep.subr.mxu0 0.0
        %4668 = vmatpush1.msra.mxu0 0.0
        %4669 = vmatprep.subr.mxu0 0.0
        %4670 = vmatpush1.msra.mxu0 0.0
        %4671 = vmatprep.subr.mxu0 0.0
        %4672 = vmatpush1.msra.mxu0 0.0
        %4673 = vmatprep.subr.mxu0 0.0
        %4674 = vmatpush1.msra.mxu0 0.0
        %4675 = vmatprep.mubr.f32.mxu0 0.0
        %4676 = vmatmul.mubr.f32.gmra.mrb[0].mxu0 %v4606
        %v4677 = vpop.f32.mrb[0].mxu0
        %v4678 = vadd.f32 0.0, %v4677
        %v4679 = vpop.f32.mrb[0].mxu0
        %v4680 = vadd.f32 0.0, %v4679
        %4681 = vmatprep.mubr.f32.mxu0 0.0
        %4682 = vmatmul.mubr.f32.gmra.mrb[0].mxu0 %v4609
        %v4683 = vpop.f32.mrb[0].mxu0
        %v4684 = vadd.f32 0.0, %v4683
        %v4685 = vpop.f32.mrb[0].mxu0
        %v4686 = vadd.f32 0.0, %v4685
        %4687 = vdwg.mxu0
        %v4688 = vadd.f32 %v4577, %v4678
        %v4689 = vadd.f32 %v4578, %v4680
        %v4690 = vadd.f32 %v4579, %v4684
        %v4691 = vadd.f32 %v4580, %v4686
        %s4692 = scalar_lea.vmem %s4, 112
        %v4693 = vld [vmem:[%s4692] sm:$0xff]
        %v4694 = vld [vmem:[%s4692 + $0x8] sm:$0xff]
        %v4696 = vsel %vm3949, %v4693, 0
        %v4699 = vsel %vm3949, %v4694, 0
        %4701 = vmatprep.subr.mxu0 %v3911
        %4702 = vmatpush1.msra.mxu0 %v3910
        %4703 = vmatprep.subr.mxu0 %v3915
        %4704 = vmatpush1.msra.mxu0 %v3914
        %4705 = vmatprep.subr.mxu0 0.0
        %4706 = vmatpush1.msra.mxu0 0.0
        %4707 = vmatprep.subr.mxu0 0.0
        %4708 = vmatpush1.msra.mxu0 0.0
        %4709 = vmatprep.subr.mxu0 0.0
        %4710 = vmatpush1.msra.mxu0 0.0
        %4711 = vmatprep.subr.mxu0 0.0
        %4712 = vmatpush1.msra.mxu0 0.0
        %4713 = vmatprep.subr.mxu0 0.0
        %4714 = vmatpush1.msra.mxu0 0.0
        %4715 = vmatprep.subr.mxu0 0.0
        %4716 = vmatpush1.msra.mxu0 0.0
        %4717 = vmatprep.subr.mxu0 0.0
        %4718 = vmatpush1.msra.mxu0 0.0
        %4719 = vmatprep.subr.mxu0 0.0
        %4720 = vmatpush1.msra.mxu0 0.0
        %4721 = vmatprep.subr.mxu0 0.0
        %4722 = vmatpush1.msra.mxu0 0.0
        %4723 = vmatprep.subr.mxu0 0.0
        %4724 = vmatpush1.msra.mxu0 0.0
        %4725 = vmatprep.subr.mxu0 0.0
        %4726 = vmatpush1.msra.mxu0 0.0
        %4727 = vmatprep.subr.mxu0 0.0
        %4728 = vmatpush1.msra.mxu0 0.0
        %4729 = vmatprep.subr.mxu0 0.0
        %4730 = vmatpush1.msra.mxu0 0.0
        %4731 = vmatprep.subr.mxu0 0.0
        %4732 = vmatpush1.msra.mxu0 0.0
        %4733 = vmatprep.subr.mxu0 0.0
        %4734 = vmatpush1.msra.mxu0 0.0
        %4735 = vmatprep.subr.mxu0 0.0
        %4736 = vmatpush1.msra.mxu0 0.0
        %4737 = vmatprep.subr.mxu0 0.0
        %4738 = vmatpush1.msra.mxu0 0.0
        %4739 = vmatprep.subr.mxu0 0.0
        %4740 = vmatpush1.msra.mxu0 0.0
        %4741 = vmatprep.subr.mxu0 0.0
        %4742 = vmatpush1.msra.mxu0 0.0
        %4743 = vmatprep.subr.mxu0 0.0
        %4744 = vmatpush1.msra.mxu0 0.0
        %4745 = vmatprep.subr.mxu0 0.0
        %4746 = vmatpush1.msra.mxu0 0.0
        %4747 = vmatprep.subr.mxu0 0.0
        %4748 = vmatpush1.msra.mxu0 0.0
        %4749 = vmatprep.subr.mxu0 0.0
        %4750 = vmatpush1.msra.mxu0 0.0
        %4751 = vmatprep.subr.mxu0 0.0
        %4752 = vmatpush1.msra.mxu0 0.0
        %4753 = vmatprep.subr.mxu0 0.0
        %4754 = vmatpush1.msra.mxu0 0.0
        %4755 = vmatprep.subr.mxu0 0.0
        %4756 = vmatpush1.msra.mxu0 0.0
        %4757 = vmatprep.subr.mxu0 0.0
        %4758 = vmatpush1.msra.mxu0 0.0
        %4759 = vmatprep.subr.mxu0 0.0
        %4760 = vmatpush1.msra.mxu0 0.0
        %4761 = vmatprep.subr.mxu0 0.0
        %4762 = vmatpush1.msra.mxu0 0.0
        %4763 = vmatprep.subr.mxu0 0.0
        %4764 = vmatpush1.msra.mxu0 0.0
        %4765 = vmatprep.mubr.f32.mxu0 0.0
        %4766 = vmatmul.mubr.f32.gmra.mrb[0].mxu0 %v4696
        %v4767 = vpop.f32.mrb[0].mxu0
        %v4768 = vadd.f32 0.0, %v4767
        %v4769 = vpop.f32.mrb[0].mxu0
        %v4770 = vadd.f32 0.0, %v4769
        %4771 = vmatprep.mubr.f32.mxu0 0.0
        %4772 = vmatmul.mubr.f32.gmra.mrb[0].mxu0 %v4699
        %v4773 = vpop.f32.mrb[0].mxu0
        %v4774 = vadd.f32 0.0, %v4773
        %v4775 = vpop.f32.mrb[0].mxu0
        %v4776 = vadd.f32 0.0, %v4775
        %4777 = vdwg.mxu0
        %v4778 = vadd.f32 %v4688, %v4768
        %v4779 = vadd.f32 %v4689, %v4770
        %v4780 = vadd.f32 %v4690, %v4774
        %v4781 = vadd.f32 %v4691, %v4776
        %s4782 = scalar_lea.vmem %s4, 128
        %v4783 = vld [vmem:[%s4782] sm:$0xff]
        %v4784 = vld [vmem:[%s4782 + $0x8] sm:$0xff]
        %4787 = vrot.lane.b32.xlu0 %v3910, 127
        %v4788 = vpop.permute.xlu0 %4787
        %4789 = vrot.lane.b32.xlu0 %v3911, 127
        %v4790 = vpop.permute.xlu0 %4789
        %4791 = vrot.lane.b32.xlu0 %v3912, 127
        %v4792 = vpop.permute.xlu0 %4791
        %4793 = vrot.lane.b32.xlu0 %v3914, 127
        %v4794 = vpop.permute.xlu0 %4793
        %4795 = vrot.lane.b32.xlu0 %v3915, 127
        %v4796 = vpop.permute.xlu0 %4795
        %4797 = vrot.lane.b32.xlu0 %v3916, 127
        %v4798 = vpop.permute.xlu0 %4797
        %v4799 = vsel %vm982, %v4788, %v4790
        %v4800 = vsel %vm982, %v4790, %v4792
        %v4801 = vsel %vm982, %v4794, %v4796
        %v4802 = vsel %vm982, %v4796, %v4798
        %v4808 = vsel %vm3949, %v4783, 0
        %v4811 = vsel %vm3949, %v4784, 0
        %4813 = vmatprep.subr.mxu0 %v4800
        %4814 = vmatpush1.msra.mxu0 %v4799
        %4815 = vmatprep.subr.mxu0 %v4802
        %4816 = vmatpush1.msra.mxu0 %v4801
        %4817 = vmatprep.subr.mxu0 0.0
        %4818 = vmatpush1.msra.mxu0 0.0
        %4819 = vmatprep.subr.mxu0 0.0
        %4820 = vmatpush1.msra.mxu0 0.0
        %4821 = vmatprep.subr.mxu0 0.0
        %4822 = vmatpush1.msra.mxu0 0.0
        %4823 = vmatprep.subr.mxu0 0.0
        %4824 = vmatpush1.msra.mxu0 0.0
        %4825 = vmatprep.subr.mxu0 0.0
        %4826 = vmatpush1.msra.mxu0 0.0
        %4827 = vmatprep.subr.mxu0 0.0
        %4828 = vmatpush1.msra.mxu0 0.0
        %4829 = vmatprep.subr.mxu0 0.0
        %4830 = vmatpush1.msra.mxu0 0.0
        %4831 = vmatprep.subr.mxu0 0.0
        %4832 = vmatpush1.msra.mxu0 0.0
        %4833 = vmatprep.subr.mxu0 0.0
        %4834 = vmatpush1.msra.mxu0 0.0
        %4835 = vmatprep.subr.mxu0 0.0
        %4836 = vmatpush1.msra.mxu0 0.0
        %4837 = vmatprep.subr.mxu0 0.0
        %4838 = vmatpush1.msra.mxu0 0.0
        %4839 = vmatprep.subr.mxu0 0.0
        %4840 = vmatpush1.msra.mxu0 0.0
        %4841 = vmatprep.subr.mxu0 0.0
        %4842 = vmatpush1.msra.mxu0 0.0
        %4843 = vmatprep.subr.mxu0 0.0
        %4844 = vmatpush1.msra.mxu0 0.0
        %4845 = vmatprep.subr.mxu0 0.0
        %4846 = vmatpush1.msra.mxu0 0.0
        %4847 = vmatprep.subr.mxu0 0.0
        %4848 = vmatpush1.msra.mxu0 0.0
        %4849 = vmatprep.subr.mxu0 0.0
        %4850 = vmatpush1.msra.mxu0 0.0
        %4851 = vmatprep.subr.mxu0 0.0
        %4852 = vmatpush1.msra.mxu0 0.0
        %4853 = vmatprep.subr.mxu0 0.0
        %4854 = vmatpush1.msra.mxu0 0.0
        %4855 = vmatprep.subr.mxu0 0.0
        %4856 = vmatpush1.msra.mxu0 0.0
        %4857 = vmatprep.subr.mxu0 0.0
        %4858 = vmatpush1.msra.mxu0 0.0
        %4859 = vmatprep.subr.mxu0 0.0
        %4860 = vmatpush1.msra.mxu0 0.0
        %4861 = vmatprep.subr.mxu0 0.0
        %4862 = vmatpush1.msra.mxu0 0.0
        %4863 = vmatprep.subr.mxu0 0.0
        %4864 = vmatpush1.msra.mxu0 0.0
        %4865 = vmatprep.subr.mxu0 0.0
        %4866 = vmatpush1.msra.mxu0 0.0
        %4867 = vmatprep.subr.mxu0 0.0
        %4868 = vmatpush1.msra.mxu0 0.0
        %4869 = vmatprep.subr.mxu0 0.0
        %4870 = vmatpush1.msra.mxu0 0.0
        %4871 = vmatprep.subr.mxu0 0.0
        %4872 = vmatpush1.msra.mxu0 0.0
        %4873 = vmatprep.subr.mxu0 0.0
        %4874 = vmatpush1.msra.mxu0 0.0
        %4875 = vmatprep.subr.mxu0 0.0
        %4876 = vmatpush1.msra.mxu0 0.0
        %4877 = vmatprep.mubr.f32.mxu0 0.0
        %4878 = vmatmul.mubr.f32.gmra.mrb[0].mxu0 %v4808
        %v4879 = vpop.f32.mrb[0].mxu0
        %v4880 = vadd.f32 0.0, %v4879
        %v4881 = vpop.f32.mrb[0].mxu0
        %v4882 = vadd.f32 0.0, %v4881
        %4883 = vmatprep.mubr.f32.mxu0 0.0
        %4884 = vmatmul.mubr.f32.gmra.mrb[0].mxu0 %v4811
        %v4885 = vpop.f32.mrb[0].mxu0
        %v4886 = vadd.f32 0.0, %v4885
        %v4887 = vpop.f32.mrb[0].mxu0
        %v4888 = vadd.f32 0.0, %v4887
        %4889 = vdwg.mxu0
        %v4890 = vadd.f32 %v4778, %v4880
        %v4891 = vadd.f32 %v4779, %v4882
        %v4892 = vadd.f32 %v4780, %v4886
        %v4893 = vadd.f32 %v4781, %v4888
        %s4894 = scalar_lea.vmem %s4, 144
        %v4895 = vld [vmem:[%s4894] sm:$0xff]
        %v4896 = vld [vmem:[%s4894 + $0x8] sm:$0xff]
        %4897 = vrot.lane.b32.xlu0 %v3910, 126
        %v4898 = vpop.permute.xlu0 %4897
        %4899 = vrot.lane.b32.xlu0 %v3911, 126
        %v4900 = vpop.permute.xlu0 %4899
        %4901 = vrot.lane.b32.xlu0 %v3912, 126
        %v4902 = vpop.permute.xlu0 %4901
        %4903 = vrot.lane.b32.xlu0 %v3914, 126
        %v4904 = vpop.permute.xlu0 %4903
        %4905 = vrot.lane.b32.xlu0 %v3915, 126
        %v4906 = vpop.permute.xlu0 %4905
        %4907 = vrot.lane.b32.xlu0 %v3916, 126
        %v4908 = vpop.permute.xlu0 %4907
        %v4909 = vsel %vm1116, %v4898, %v4900
        %v4910 = vsel %vm1116, %v4900, %v4902
        %v4911 = vsel %vm1116, %v4904, %v4906
        %v4912 = vsel %vm1116, %v4906, %v4908
        %v4918 = vsel %vm3949, %v4895, 0
        %v4921 = vsel %vm3949, %v4896, 0
        %4923 = vmatprep.subr.mxu0 %v4910
        %4924 = vmatpush1.msra.mxu0 %v4909
        %4925 = vmatprep.subr.mxu0 %v4912
        %4926 = vmatpush1.msra.mxu0 %v4911
        %4927 = vmatprep.subr.mxu0 0.0
        %4928 = vmatpush1.msra.mxu0 0.0
        %4929 = vmatprep.subr.mxu0 0.0
        %4930 = vmatpush1.msra.mxu0 0.0
        %4931 = vmatprep.subr.mxu0 0.0
        %4932 = vmatpush1.msra.mxu0 0.0
        %4933 = vmatprep.subr.mxu0 0.0
        %4934 = vmatpush1.msra.mxu0 0.0
        %4935 = vmatprep.subr.mxu0 0.0
        %4936 = vmatpush1.msra.mxu0 0.0
        %4937 = vmatprep.subr.mxu0 0.0
        %4938 = vmatpush1.msra.mxu0 0.0
        %4939 = vmatprep.subr.mxu0 0.0
        %4940 = vmatpush1.msra.mxu0 0.0
        %4941 = vmatprep.subr.mxu0 0.0
        %4942 = vmatpush1.msra.mxu0 0.0
        %4943 = vmatprep.subr.mxu0 0.0
        %4944 = vmatpush1.msra.mxu0 0.0
        %4945 = vmatprep.subr.mxu0 0.0
        %4946 = vmatpush1.msra.mxu0 0.0
        %4947 = vmatprep.subr.mxu0 0.0
        %4948 = vmatpush1.msra.mxu0 0.0
        %4949 = vmatprep.subr.mxu0 0.0
        %4950 = vmatpush1.msra.mxu0 0.0
        %4951 = vmatprep.subr.mxu0 0.0
        %4952 = vmatpush1.msra.mxu0 0.0
        %4953 = vmatprep.subr.mxu0 0.0
        %4954 = vmatpush1.msra.mxu0 0.0
        %4955 = vmatprep.subr.mxu0 0.0
        %4956 = vmatpush1.msra.mxu0 0.0
        %4957 = vmatprep.subr.mxu0 0.0
        %4958 = vmatpush1.msra.mxu0 0.0
        %4959 = vmatprep.subr.mxu0 0.0
        %4960 = vmatpush1.msra.mxu0 0.0
        %4961 = vmatprep.subr.mxu0 0.0
        %4962 = vmatpush1.msra.mxu0 0.0
        %4963 = vmatprep.subr.mxu0 0.0
        %4964 = vmatpush1.msra.mxu0 0.0
        %4965 = vmatprep.subr.mxu0 0.0
        %4966 = vmatpush1.msra.mxu0 0.0
        %4967 = vmatprep.subr.mxu0 0.0
        %4968 = vmatpush1.msra.mxu0 0.0
        %4969 = vmatprep.subr.mxu0 0.0
        %4970 = vmatpush1.msra.mxu0 0.0
        %4971 = vmatprep.subr.mxu0 0.0
        %4972 = vmatpush1.msra.mxu0 0.0
        %4973 = vmatprep.subr.mxu0 0.0
        %4974 = vmatpush1.msra.mxu0 0.0
        %4975 = vmatprep.subr.mxu0 0.0
        %4976 = vmatpush1.msra.mxu0 0.0
        %4977 = vmatprep.subr.mxu0 0.0
        %4978 = vmatpush1.msra.mxu0 0.0
        %4979 = vmatprep.subr.mxu0 0.0
        %4980 = vmatpush1.msra.mxu0 0.0
        %4981 = vmatprep.subr.mxu0 0.0
        %4982 = vmatpush1.msra.mxu0 0.0
        %4983 = vmatprep.subr.mxu0 0.0
        %4984 = vmatpush1.msra.mxu0 0.0
        %4985 = vmatprep.subr.mxu0 0.0
        %4986 = vmatpush1.msra.mxu0 0.0
        %4987 = vmatprep.mubr.f32.mxu0 0.0
        %4988 = vmatmul.mubr.f32.gmra.mrb[0].mxu0 %v4918
        %v4989 = vpop.f32.mrb[0].mxu0
        %v4990 = vadd.f32 0.0, %v4989
        %v4991 = vpop.f32.mrb[0].mxu0
        %v4992 = vadd.f32 0.0, %v4991
        %4993 = vmatprep.mubr.f32.mxu0 0.0
        %4994 = vmatmul.mubr.f32.gmra.mrb[0].mxu0 %v4921
        %v4995 = vpop.f32.mrb[0].mxu0
        %v4996 = vadd.f32 0.0, %v4995
        %v4997 = vpop.f32.mrb[0].mxu0
        %v4998 = vadd.f32 0.0, %v4997
        %4999 = vdwg.mxu0
        %v5000 = vadd.f32 %v4890, %v4990
        %v5001 = vadd.f32 %v4891, %v4992
        %v5002 = vadd.f32 %v4892, %v4996
        %v5003 = vadd.f32 %v4893, %v4998
        %s5004 = scalar_lea.vmem %s4, 160
        %v5005 = vld [vmem:[%s5004] sm:$0xff]
        %v5006 = vld [vmem:[%s5004 + $0x8] sm:$0xff]
        %5007 = vrot.lane.b32.xlu0 %v3910, 125
        %v5008 = vpop.permute.xlu0 %5007
        %5009 = vrot.lane.b32.xlu0 %v3911, 125
        %v5010 = vpop.permute.xlu0 %5009
        %5011 = vrot.lane.b32.xlu0 %v3912, 125
        %v5012 = vpop.permute.xlu0 %5011
        %5013 = vrot.lane.b32.xlu0 %v3914, 125
        %v5014 = vpop.permute.xlu0 %5013
        %5015 = vrot.lane.b32.xlu0 %v3915, 125
        %v5016 = vpop.permute.xlu0 %5015
        %5017 = vrot.lane.b32.xlu0 %v3916, 125
        %v5018 = vpop.permute.xlu0 %5017
        %v5019 = vsel %vm1250, %v5008, %v5010
        %v5020 = vsel %vm1250, %v5010, %v5012
        %v5021 = vsel %vm1250, %v5014, %v5016
        %v5022 = vsel %vm1250, %v5016, %v5018
        %v5028 = vsel %vm3949, %v5005, 0
        %v5031 = vsel %vm3949, %v5006, 0
        %5033 = vmatprep.subr.mxu0 %v5020
        %5034 = vmatpush1.msra.mxu0 %v5019
        %5035 = vmatprep.subr.mxu0 %v5022
        %5036 = vmatpush1.msra.mxu0 %v5021
        %5037 = vmatprep.subr.mxu0 0.0
        %5038 = vmatpush1.msra.mxu0 0.0
        %5039 = vmatprep.subr.mxu0 0.0
        %5040 = vmatpush1.msra.mxu0 0.0
        %5041 = vmatprep.subr.mxu0 0.0
        %5042 = vmatpush1.msra.mxu0 0.0
        %5043 = vmatprep.subr.mxu0 0.0
        %5044 = vmatpush1.msra.mxu0 0.0
        %5045 = vmatprep.subr.mxu0 0.0
        %5046 = vmatpush1.msra.mxu0 0.0
        %5047 = vmatprep.subr.mxu0 0.0
        %5048 = vmatpush1.msra.mxu0 0.0
        %5049 = vmatprep.subr.mxu0 0.0
        %5050 = vmatpush1.msra.mxu0 0.0
        %5051 = vmatprep.subr.mxu0 0.0
        %5052 = vmatpush1.msra.mxu0 0.0
        %5053 = vmatprep.subr.mxu0 0.0
        %5054 = vmatpush1.msra.mxu0 0.0
        %5055 = vmatprep.subr.mxu0 0.0
        %5056 = vmatpush1.msra.mxu0 0.0
        %5057 = vmatprep.subr.mxu0 0.0
        %5058 = vmatpush1.msra.mxu0 0.0
        %5059 = vmatprep.subr.mxu0 0.0
        %5060 = vmatpush1.msra.mxu0 0.0
        %5061 = vmatprep.subr.mxu0 0.0
        %5062 = vmatpush1.msra.mxu0 0.0
        %5063 = vmatprep.subr.mxu0 0.0
        %5064 = vmatpush1.msra.mxu0 0.0
        %5065 = vmatprep.subr.mxu0 0.0
        %5066 = vmatpush1.msra.mxu0 0.0
        %5067 = vmatprep.subr.mxu0 0.0
        %5068 = vmatpush1.msra.mxu0 0.0
        %5069 = vmatprep.subr.mxu0 0.0
        %5070 = vmatpush1.msra.mxu0 0.0
        %5071 = vmatprep.subr.mxu0 0.0
        %5072 = vmatpush1.msra.mxu0 0.0
        %5073 = vmatprep.subr.mxu0 0.0
        %5074 = vmatpush1.msra.mxu0 0.0
        %5075 = vmatprep.subr.mxu0 0.0
        %5076 = vmatpush1.msra.mxu0 0.0
        %5077 = vmatprep.subr.mxu0 0.0
        %5078 = vmatpush1.msra.mxu0 0.0
        %5079 = vmatprep.subr.mxu0 0.0
        %5080 = vmatpush1.msra.mxu0 0.0
        %5081 = vmatprep.subr.mxu0 0.0
        %5082 = vmatpush1.msra.mxu0 0.0
        %5083 = vmatprep.subr.mxu0 0.0
        %5084 = vmatpush1.msra.mxu0 0.0
        %5085 = vmatprep.subr.mxu0 0.0
        %5086 = vmatpush1.msra.mxu0 0.0
        %5087 = vmatprep.subr.mxu0 0.0
        %5088 = vmatpush1.msra.mxu0 0.0
        %5089 = vmatprep.subr.mxu0 0.0
        %5090 = vmatpush1.msra.mxu0 0.0
        %5091 = vmatprep.subr.mxu0 0.0
        %5092 = vmatpush1.msra.mxu0 0.0
        %5093 = vmatprep.subr.mxu0 0.0
        %5094 = vmatpush1.msra.mxu0 0.0
        %5095 = vmatprep.subr.mxu0 0.0
        %5096 = vmatpush1.msra.mxu0 0.0
        %5097 = vmatprep.mubr.f32.mxu0 0.0
        %5098 = vmatmul.mubr.f32.gmra.mrb[0].mxu0 %v5028
        %v5099 = vpop.f32.mrb[0].mxu0
        %v5100 = vadd.f32 0.0, %v5099
        %v5101 = vpop.f32.mrb[0].mxu0
        %v5102 = vadd.f32 0.0, %v5101
        %5103 = vmatprep.mubr.f32.mxu0 0.0
        %5104 = vmatmul.mubr.f32.gmra.mrb[0].mxu0 %v5031
        %v5105 = vpop.f32.mrb[0].mxu0
        %v5106 = vadd.f32 0.0, %v5105
        %v5107 = vpop.f32.mrb[0].mxu0
        %v5108 = vadd.f32 0.0, %v5107
        %5109 = vdwg.mxu0
        %v5110 = vadd.f32 %v5000, %v5100
        %v5111 = vadd.f32 %v5001, %v5102
        %v5112 = vadd.f32 %v5002, %v5106
        %v5113 = vadd.f32 %v5003, %v5108
        %s5114 = scalar_lea.vmem %s4, 176
        %v5115 = vld [vmem:[%s5114] sm:$0xff]
        %v5116 = vld [vmem:[%s5114 + $0x8] sm:$0xff]
        %5117 = vrot.lane.b32.xlu0 %v3910, 124
        %v5118 = vpop.permute.xlu0 %5117
        %5119 = vrot.lane.b32.xlu0 %v3911, 124
        %v5120 = vpop.permute.xlu0 %5119
        %5121 = vrot.lane.b32.xlu0 %v3912, 124
        %v5122 = vpop.permute.xlu0 %5121
        %5123 = vrot.lane.b32.xlu0 %v3914, 124
        %v5124 = vpop.permute.xlu0 %5123
        %5125 = vrot.lane.b32.xlu0 %v3915, 124
        %v5126 = vpop.permute.xlu0 %5125
        %5127 = vrot.lane.b32.xlu0 %v3916, 124
        %v5128 = vpop.permute.xlu0 %5127
        %v5129 = vsel %vm1825, %v5118, %v5120
        %v5130 = vsel %vm1825, %v5120, %v5122
        %v5131 = vsel %vm1825, %v5124, %v5126
        %v5132 = vsel %vm1825, %v5126, %v5128
        %v5138 = vsel %vm3949, %v5115, 0
        %v5141 = vsel %vm3949, %v5116, 0
        %5143 = vmatprep.subr.mxu0 %v5130
        %5144 = vmatpush1.msra.mxu0 %v5129
        %5145 = vmatprep.subr.mxu0 %v5132
        %5146 = vmatpush1.msra.mxu0 %v5131
        %5147 = vmatprep.subr.mxu0 0.0
        %5148 = vmatpush1.msra.mxu0 0.0
        %5149 = vmatprep.subr.mxu0 0.0
        %5150 = vmatpush1.msra.mxu0 0.0
        %5151 = vmatprep.subr.mxu0 0.0
        %5152 = vmatpush1.msra.mxu0 0.0
        %5153 = vmatprep.subr.mxu0 0.0
        %5154 = vmatpush1.msra.mxu0 0.0
        %5155 = vmatprep.subr.mxu0 0.0
        %5156 = vmatpush1.msra.mxu0 0.0
        %5157 = vmatprep.subr.mxu0 0.0
        %5158 = vmatpush1.msra.mxu0 0.0
        %5159 = vmatprep.subr.mxu0 0.0
        %5160 = vmatpush1.msra.mxu0 0.0
        %5161 = vmatprep.subr.mxu0 0.0
        %5162 = vmatpush1.msra.mxu0 0.0
        %5163 = vmatprep.subr.mxu0 0.0
        %5164 = vmatpush1.msra.mxu0 0.0
        %5165 = vmatprep.subr.mxu0 0.0
        %5166 = vmatpush1.msra.mxu0 0.0
        %5167 = vmatprep.subr.mxu0 0.0
        %5168 = vmatpush1.msra.mxu0 0.0
        %5169 = vmatprep.subr.mxu0 0.0
        %5170 = vmatpush1.msra.mxu0 0.0
        %5171 = vmatprep.subr.mxu0 0.0
        %5172 = vmatpush1.msra.mxu0 0.0
        %5173 = vmatprep.subr.mxu0 0.0
        %5174 = vmatpush1.msra.mxu0 0.0
        %5175 = vmatprep.subr.mxu0 0.0
        %5176 = vmatpush1.msra.mxu0 0.0
        %5177 = vmatprep.subr.mxu0 0.0
        %5178 = vmatpush1.msra.mxu0 0.0
        %5179 = vmatprep.subr.mxu0 0.0
        %5180 = vmatpush1.msra.mxu0 0.0
        %5181 = vmatprep.subr.mxu0 0.0
        %5182 = vmatpush1.msra.mxu0 0.0
        %5183 = vmatprep.subr.mxu0 0.0
        %5184 = vmatpush1.msra.mxu0 0.0
        %5185 = vmatprep.subr.mxu0 0.0
        %5186 = vmatpush1.msra.mxu0 0.0
        %5187 = vmatprep.subr.mxu0 0.0
        %5188 = vmatpush1.msra.mxu0 0.0
        %5189 = vmatprep.subr.mxu0 0.0
        %5190 = vmatpush1.msra.mxu0 0.0
        %5191 = vmatprep.subr.mxu0 0.0
        %5192 = vmatpush1.msra.mxu0 0.0
        %5193 = vmatprep.subr.mxu0 0.0
        %5194 = vmatpush1.msra.mxu0 0.0
        %5195 = vmatprep.subr.mxu0 0.0
        %5196 = vmatpush1.msra.mxu0 0.0
        %5197 = vmatprep.subr.mxu0 0.0
        %5198 = vmatpush1.msra.mxu0 0.0
        %5199 = vmatprep.subr.mxu0 0.0
        %5200 = vmatpush1.msra.mxu0 0.0
        %5201 = vmatprep.subr.mxu0 0.0
        %5202 = vmatpush1.msra.mxu0 0.0
        %5203 = vmatprep.subr.mxu0 0.0
        %5204 = vmatpush1.msra.mxu0 0.0
        %5205 = vmatprep.subr.mxu0 0.0
        %5206 = vmatpush1.msra.mxu0 0.0
        %5207 = vmatprep.mubr.f32.mxu0 0.0
        %5208 = vmatmul.mubr.f32.gmra.mrb[0].mxu0 %v5138
        %v5209 = vpop.f32.mrb[0].mxu0
        %v5210 = vadd.f32 0.0, %v5209
        %v5211 = vpop.f32.mrb[0].mxu0
        %v5212 = vadd.f32 0.0, %v5211
        %5213 = vmatprep.mubr.f32.mxu0 0.0
        %5214 = vmatmul.mubr.f32.gmra.mrb[0].mxu0 %v5141
        %v5215 = vpop.f32.mrb[0].mxu0
        %v5216 = vadd.f32 0.0, %v5215
        %v5217 = vpop.f32.mrb[0].mxu0
        %v5218 = vadd.f32 0.0, %v5217
        %5219 = vdwg.mxu0
        %v5220 = vadd.f32 %v5110, %v5210
        %v5221 = vadd.f32 %v5111, %v5212
        %v5222 = vadd.f32 %v5112, %v5216
        %v5223 = vadd.f32 %v5113, %v5218
        %s5224 = scalar_lea.vmem %s4, 192
        %v5225 = vld [vmem:[%s5224] sm:$0xff]
        %v5226 = vld [vmem:[%s5224 + $0x8] sm:$0xff]
        %5227 = vrot.lane.b32.xlu0 %v3910, 123
        %v5228 = vpop.permute.xlu0 %5227
        %5229 = vrot.lane.b32.xlu0 %v3911, 123
        %v5230 = vpop.permute.xlu0 %5229
        %5231 = vrot.lane.b32.xlu0 %v3912, 123
        %v5232 = vpop.permute.xlu0 %5231
        %5233 = vrot.lane.b32.xlu0 %v3914, 123
        %v5234 = vpop.permute.xlu0 %5233
        %5235 = vrot.lane.b32.xlu0 %v3915, 123
        %v5236 = vpop.permute.xlu0 %5235
        %5237 = vrot.lane.b32.xlu0 %v3916, 123
        %v5238 = vpop.permute.xlu0 %5237
        %vm5239 = vcmask 1006592
        %v5240 = vsel %vm5239, %v5228, %v5230
        %v5241 = vsel %vm5239, %v5230, %v5232
        %v5242 = vsel %vm5239, %v5234, %v5236
        %v5243 = vsel %vm5239, %v5236, %v5238
        %v5249 = vsel %vm3949, %v5225, 0
        %v5252 = vsel %vm3949, %v5226, 0
        %5254 = vmatprep.subr.mxu0 %v5241
        %5255 = vmatpush1.msra.mxu0 %v5240
        %5256 = vmatprep.subr.mxu0 %v5243
        %5257 = vmatpush1.msra.mxu0 %v5242
        %5258 = vmatprep.subr.mxu0 0.0
        %5259 = vmatpush1.msra.mxu0 0.0
        %5260 = vmatprep.subr.mxu0 0.0
        %5261 = vmatpush1.msra.mxu0 0.0
        %5262 = vmatprep.subr.mxu0 0.0
        %5263 = vmatpush1.msra.mxu0 0.0
        %5264 = vmatprep.subr.mxu0 0.0
        %5265 = vmatpush1.msra.mxu0 0.0
        %5266 = vmatprep.subr.mxu0 0.0
        %5267 = vmatpush1.msra.mxu0 0.0
        %5268 = vmatprep.subr.mxu0 0.0
        %5269 = vmatpush1.msra.mxu0 0.0
        %5270 = vmatprep.subr.mxu0 0.0
        %5271 = vmatpush1.msra.mxu0 0.0
        %5272 = vmatprep.subr.mxu0 0.0
        %5273 = vmatpush1.msra.mxu0 0.0
        %5274 = vmatprep.subr.mxu0 0.0
        %5275 = vmatpush1.msra.mxu0 0.0
        %5276 = vmatprep.subr.mxu0 0.0
        %5277 = vmatpush1.msra.mxu0 0.0
        %5278 = vmatprep.subr.mxu0 0.0
        %5279 = vmatpush1.msra.mxu0 0.0
        %5280 = vmatprep.subr.mxu0 0.0
        %5281 = vmatpush1.msra.mxu0 0.0
        %5282 = vmatprep.subr.mxu0 0.0
        %5283 = vmatpush1.msra.mxu0 0.0
        %5284 = vmatprep.subr.mxu0 0.0
        %5285 = vmatpush1.msra.mxu0 0.0
        %5286 = vmatprep.subr.mxu0 0.0
        %5287 = vmatpush1.msra.mxu0 0.0
        %5288 = vmatprep.subr.mxu0 0.0
        %5289 = vmatpush1.msra.mxu0 0.0
        %5290 = vmatprep.subr.mxu0 0.0
        %5291 = vmatpush1.msra.mxu0 0.0
        %5292 = vmatprep.subr.mxu0 0.0
        %5293 = vmatpush1.msra.mxu0 0.0
        %5294 = vmatprep.subr.mxu0 0.0
        %5295 = vmatpush1.msra.mxu0 0.0
        %5296 = vmatprep.subr.mxu0 0.0
        %5297 = vmatpush1.msra.mxu0 0.0
        %5298 = vmatprep.subr.mxu0 0.0
        %5299 = vmatpush1.msra.mxu0 0.0
        %5300 = vmatprep.subr.mxu0 0.0
        %5301 = vmatpush1.msra.mxu0 0.0
        %5302 = vmatprep.subr.mxu0 0.0
        %5303 = vmatpush1.msra.mxu0 0.0
        %5304 = vmatprep.subr.mxu0 0.0
        %5305 = vmatpush1.msra.mxu0 0.0
        %5306 = vmatprep.subr.mxu0 0.0
        %5307 = vmatpush1.msra.mxu0 0.0
        %5308 = vmatprep.subr.mxu0 0.0
        %5309 = vmatpush1.msra.mxu0 0.0
        %5310 = vmatprep.subr.mxu0 0.0
        %5311 = vmatpush1.msra.mxu0 0.0
        %5312 = vmatprep.subr.mxu0 0.0
        %5313 = vmatpush1.msra.mxu0 0.0
        %5314 = vmatprep.subr.mxu0 0.0
        %5315 = vmatpush1.msra.mxu0 0.0
        %5316 = vmatprep.subr.mxu0 0.0
        %5317 = vmatpush1.msra.mxu0 0.0
        %5318 = vmatprep.mubr.f32.mxu0 0.0
        %5319 = vmatmul.mubr.f32.gmra.mrb[0].mxu0 %v5249
        %v5320 = vpop.f32.mrb[0].mxu0
        %v5321 = vadd.f32 0.0, %v5320
        %v5322 = vpop.f32.mrb[0].mxu0
        %v5323 = vadd.f32 0.0, %v5322
        %5324 = vmatprep.mubr.f32.mxu0 0.0
        %5325 = vmatmul.mubr.f32.gmra.mrb[0].mxu0 %v5252
        %v5326 = vpop.f32.mrb[0].mxu0
        %v5327 = vadd.f32 0.0, %v5326
        %v5328 = vpop.f32.mrb[0].mxu0
        %v5329 = vadd.f32 0.0, %v5328
        %5330 = vdwg.mxu0
        %v5331 = vadd.f32 %v5220, %v5321
        %v5332 = vadd.f32 %v5221, %v5323
        %v5333 = vadd.f32 %v5222, %v5327
        %v5334 = vadd.f32 %v5223, %v5329
        %s5335 = scalar_lea.vmem %s4, 208
        %v5336 = vld [vmem:[%s5335] sm:$0xff]
        %v5337 = vld [vmem:[%s5335 + $0x8] sm:$0xff]
        %5338 = vrot.lane.b32.xlu0 %v3910, 122
        %v5339 = vpop.permute.xlu0 %5338
        %5340 = vrot.lane.b32.xlu0 %v3911, 122
        %v5341 = vpop.permute.xlu0 %5340
        %5342 = vrot.lane.b32.xlu0 %v3912, 122
        %v5343 = vpop.permute.xlu0 %5342
        %5344 = vrot.lane.b32.xlu0 %v3914, 122
        %v5345 = vpop.permute.xlu0 %5344
        %5346 = vrot.lane.b32.xlu0 %v3915, 122
        %v5347 = vpop.permute.xlu0 %5346
        %5348 = vrot.lane.b32.xlu0 %v3916, 122
        %v5349 = vpop.permute.xlu0 %5348
        %vm5350 = vcmask 998400
        %v5351 = vsel %vm5350, %v5339, %v5341
        %v5352 = vsel %vm5350, %v5341, %v5343
        %v5353 = vsel %vm5350, %v5345, %v5347
        %v5354 = vsel %vm5350, %v5347, %v5349
        %v5360 = vsel %vm3949, %v5336, 0
        %v5363 = vsel %vm3949, %v5337, 0
        %5365 = vmatprep.subr.mxu0 %v5352
        %5366 = vmatpush1.msra.mxu0 %v5351
        %5367 = vmatprep.subr.mxu0 %v5354
        %5368 = vmatpush1.msra.mxu0 %v5353
        %5369 = vmatprep.subr.mxu0 0.0
        %5370 = vmatpush1.msra.mxu0 0.0
        %5371 = vmatprep.subr.mxu0 0.0
        %5372 = vmatpush1.msra.mxu0 0.0
        %5373 = vmatprep.subr.mxu0 0.0
        %5374 = vmatpush1.msra.mxu0 0.0
        %5375 = vmatprep.subr.mxu0 0.0
        %5376 = vmatpush1.msra.mxu0 0.0
        %5377 = vmatprep.subr.mxu0 0.0
        %5378 = vmatpush1.msra.mxu0 0.0
        %5379 = vmatprep.subr.mxu0 0.0
        %5380 = vmatpush1.msra.mxu0 0.0
        %5381 = vmatprep.subr.mxu0 0.0
        %5382 = vmatpush1.msra.mxu0 0.0
        %5383 = vmatprep.subr.mxu0 0.0
        %5384 = vmatpush1.msra.mxu0 0.0
        %5385 = vmatprep.subr.mxu0 0.0
        %5386 = vmatpush1.msra.mxu0 0.0
        %5387 = vmatprep.subr.mxu0 0.0
        %5388 = vmatpush1.msra.mxu0 0.0
        %5389 = vmatprep.subr.mxu0 0.0
        %5390 = vmatpush1.msra.mxu0 0.0
        %5391 = vmatprep.subr.mxu0 0.0
        %5392 = vmatpush1.msra.mxu0 0.0
        %5393 = vmatprep.subr.mxu0 0.0
        %5394 = vmatpush1.msra.mxu0 0.0
        %5395 = vmatprep.subr.mxu0 0.0
        %5396 = vmatpush1.msra.mxu0 0.0
        %5397 = vmatprep.subr.mxu0 0.0
        %5398 = vmatpush1.msra.mxu0 0.0
        %5399 = vmatprep.subr.mxu0 0.0
        %5400 = vmatpush1.msra.mxu0 0.0
        %5401 = vmatprep.subr.mxu0 0.0
        %5402 = vmatpush1.msra.mxu0 0.0
        %5403 = vmatprep.subr.mxu0 0.0
        %5404 = vmatpush1.msra.mxu0 0.0
        %5405 = vmatprep.subr.mxu0 0.0
        %5406 = vmatpush1.msra.mxu0 0.0
        %5407 = vmatprep.subr.mxu0 0.0
        %5408 = vmatpush1.msra.mxu0 0.0
        %5409 = vmatprep.subr.mxu0 0.0
        %5410 = vmatpush1.msra.mxu0 0.0
        %5411 = vmatprep.subr.mxu0 0.0
        %5412 = vmatpush1.msra.mxu0 0.0
        %5413 = vmatprep.subr.mxu0 0.0
        %5414 = vmatpush1.msra.mxu0 0.0
        %5415 = vmatprep.subr.mxu0 0.0
        %5416 = vmatpush1.msra.mxu0 0.0
        %5417 = vmatprep.subr.mxu0 0.0
        %5418 = vmatpush1.msra.mxu0 0.0
        %5419 = vmatprep.subr.mxu0 0.0
        %5420 = vmatpush1.msra.mxu0 0.0
        %5421 = vmatprep.subr.mxu0 0.0
        %5422 = vmatpush1.msra.mxu0 0.0
        %5423 = vmatprep.subr.mxu0 0.0
        %5424 = vmatpush1.msra.mxu0 0.0
        %5425 = vmatprep.subr.mxu0 0.0
        %5426 = vmatpush1.msra.mxu0 0.0
        %5427 = vmatprep.subr.mxu0 0.0
        %5428 = vmatpush1.msra.mxu0 0.0
        %5429 = vmatprep.mubr.f32.mxu0 0.0
        %5430 = vmatmul.mubr.f32.gmra.mrb[0].mxu0 %v5360
        %v5431 = vpop.f32.mrb[0].mxu0
        %v5432 = vadd.f32 0.0, %v5431
        %v5433 = vpop.f32.mrb[0].mxu0
        %v5434 = vadd.f32 0.0, %v5433
        %5435 = vmatprep.mubr.f32.mxu0 0.0
        %5436 = vmatmul.mubr.f32.gmra.mrb[0].mxu0 %v5363
        %v5437 = vpop.f32.mrb[0].mxu0
        %v5438 = vadd.f32 0.0, %v5437
        %v5439 = vpop.f32.mrb[0].mxu0
        %v5440 = vadd.f32 0.0, %v5439
        %5441 = vdwg.mxu0
        %v5442 = vadd.f32 %v5331, %v5432
        %v5443 = vadd.f32 %v5332, %v5434
        %v5444 = vadd.f32 %v5333, %v5438
        %v5445 = vadd.f32 %v5334, %v5440
        %s5446 = scalar_lea.vmem %s4, 224
        %v5447 = vld [vmem:[%s5446] sm:$0xff]
        %v5448 = vld [vmem:[%s5446 + $0x8] sm:$0xff]
        %5449 = vrot.lane.b32.xlu0 %v3910, 121
        %v5450 = vpop.permute.xlu0 %5449
        %5451 = vrot.lane.b32.xlu0 %v3911, 121
        %v5452 = vpop.permute.xlu0 %5451
        %5453 = vrot.lane.b32.xlu0 %v3912, 121
        %v5454 = vpop.permute.xlu0 %5453
        %5455 = vrot.lane.b32.xlu0 %v3914, 121
        %v5456 = vpop.permute.xlu0 %5455
        %5457 = vrot.lane.b32.xlu0 %v3915, 121
        %v5458 = vpop.permute.xlu0 %5457
        %5459 = vrot.lane.b32.xlu0 %v3916, 121
        %v5460 = vpop.permute.xlu0 %5459
        %vm5461 = vcmask 990208
        %v5462 = vsel %vm5461, %v5450, %v5452
        %v5463 = vsel %vm5461, %v5452, %v5454
        %v5464 = vsel %vm5461, %v5456, %v5458
        %v5465 = vsel %vm5461, %v5458, %v5460
        %v5471 = vsel %vm3949, %v5447, 0
        %v5474 = vsel %vm3949, %v5448, 0
        %5476 = vmatprep.subr.mxu0 %v5463
        %5477 = vmatpush1.msra.mxu0 %v5462
        %5478 = vmatprep.subr.mxu0 %v5465
        %5479 = vmatpush1.msra.mxu0 %v5464
        %5480 = vmatprep.subr.mxu0 0.0
        %5481 = vmatpush1.msra.mxu0 0.0
        %5482 = vmatprep.subr.mxu0 0.0
        %5483 = vmatpush1.msra.mxu0 0.0
        %5484 = vmatprep.subr.mxu0 0.0
        %5485 = vmatpush1.msra.mxu0 0.0
        %5486 = vmatprep.subr.mxu0 0.0
        %5487 = vmatpush1.msra.mxu0 0.0
        %5488 = vmatprep.subr.mxu0 0.0
        %5489 = vmatpush1.msra.mxu0 0.0
        %5490 = vmatprep.subr.mxu0 0.0
        %5491 = vmatpush1.msra.mxu0 0.0
        %5492 = vmatprep.subr.mxu0 0.0
        %5493 = vmatpush1.msra.mxu0 0.0
        %5494 = vmatprep.subr.mxu0 0.0
        %5495 = vmatpush1.msra.mxu0 0.0
        %5496 = vmatprep.subr.mxu0 0.0
        %5497 = vmatpush1.msra.mxu0 0.0
        %5498 = vmatprep.subr.mxu0 0.0
        %5499 = vmatpush1.msra.mxu0 0.0
        %5500 = vmatprep.subr.mxu0 0.0
        %5501 = vmatpush1.msra.mxu0 0.0
        %5502 = vmatprep.subr.mxu0 0.0
        %5503 = vmatpush1.msra.mxu0 0.0
        %5504 = vmatprep.subr.mxu0 0.0
        %5505 = vmatpush1.msra.mxu0 0.0
        %5506 = vmatprep.subr.mxu0 0.0
        %5507 = vmatpush1.msra.mxu0 0.0
        %5508 = vmatprep.subr.mxu0 0.0
        %5509 = vmatpush1.msra.mxu0 0.0
        %5510 = vmatprep.subr.mxu0 0.0
        %5511 = vmatpush1.msra.mxu0 0.0
        %5512 = vmatprep.subr.mxu0 0.0
        %5513 = vmatpush1.msra.mxu0 0.0
        %5514 = vmatprep.subr.mxu0 0.0
        %5515 = vmatpush1.msra.mxu0 0.0
        %5516 = vmatprep.subr.mxu0 0.0
        %5517 = vmatpush1.msra.mxu0 0.0
        %5518 = vmatprep.subr.mxu0 0.0
        %5519 = vmatpush1.msra.mxu0 0.0
        %5520 = vmatprep.subr.mxu0 0.0
        %5521 = vmatpush1.msra.mxu0 0.0
        %5522 = vmatprep.subr.mxu0 0.0
        %5523 = vmatpush1.msra.mxu0 0.0
        %5524 = vmatprep.subr.mxu0 0.0
        %5525 = vmatpush1.msra.mxu0 0.0
        %5526 = vmatprep.subr.mxu0 0.0
        %5527 = vmatpush1.msra.mxu0 0.0
        %5528 = vmatprep.subr.mxu0 0.0
        %5529 = vmatpush1.msra.mxu0 0.0
        %5530 = vmatprep.subr.mxu0 0.0
        %5531 = vmatpush1.msra.mxu0 0.0
        %5532 = vmatprep.subr.mxu0 0.0
        %5533 = vmatpush1.msra.mxu0 0.0
        %5534 = vmatprep.subr.mxu0 0.0
        %5535 = vmatpush1.msra.mxu0 0.0
        %5536 = vmatprep.subr.mxu0 0.0
        %5537 = vmatpush1.msra.mxu0 0.0
        %5538 = vmatprep.subr.mxu0 0.0
        %5539 = vmatpush1.msra.mxu0 0.0
        %5540 = vmatprep.mubr.f32.mxu0 0.0
        %5541 = vmatmul.mubr.f32.gmra.mrb[0].mxu0 %v5471
        %v5542 = vpop.f32.mrb[0].mxu0
        %v5543 = vadd.f32 0.0, %v5542
        %v5544 = vpop.f32.mrb[0].mxu0
        %v5545 = vadd.f32 0.0, %v5544
        %5546 = vmatprep.mubr.f32.mxu0 0.0
        %5547 = vmatmul.mubr.f32.gmra.mrb[0].mxu0 %v5474
        %v5548 = vpop.f32.mrb[0].mxu0
        %v5549 = vadd.f32 0.0, %v5548
        %v5550 = vpop.f32.mrb[0].mxu0
        %v5551 = vadd.f32 0.0, %v5550
        %5552 = vdwg.mxu0
        %v5553 = vadd.f32 %v5442, %v5543
        %v5554 = vadd.f32 %v5443, %v5545
        %v5555 = vadd.f32 %v5444, %v5549
        %v5556 = vadd.f32 %v5445, %v5551
        %s5557 = scalar_lea.vmem %s4, 240
        %v5558 = vld [vmem:[%s5557] sm:$0xff]
        %v5559 = vld [vmem:[%s5557 + $0x8] sm:$0xff]
        %5560 = vrot.lane.b32.xlu0 %v3910, 120
        %v5561 = vpop.permute.xlu0 %5560
        %5562 = vrot.lane.b32.xlu0 %v3911, 120
        %v5563 = vpop.permute.xlu0 %5562
        %5564 = vrot.lane.b32.xlu0 %v3912, 120
        %v5565 = vpop.permute.xlu0 %5564
        %5566 = vrot.lane.b32.xlu0 %v3914, 120
        %v5567 = vpop.permute.xlu0 %5566
        %5568 = vrot.lane.b32.xlu0 %v3915, 120
        %v5569 = vpop.permute.xlu0 %5568
        %5570 = vrot.lane.b32.xlu0 %v3916, 120
        %v5571 = vpop.permute.xlu0 %5570
        %v5572 = vsel %vm2400, %v5561, %v5563
        %v5573 = vsel %vm2400, %v5563, %v5565
        %v5574 = vsel %vm2400, %v5567, %v5569
        %v5575 = vsel %vm2400, %v5569, %v5571
        %v5581 = vsel %vm3949, %v5558, 0
        %v5584 = vsel %vm3949, %v5559, 0
        %5586 = vmatprep.subr.mxu0 %v5573
        %5587 = vmatpush1.msra.mxu0 %v5572
        %5588 = vmatprep.subr.mxu0 %v5575
        %5589 = vmatpush1.msra.mxu0 %v5574
        %5590 = vmatprep.subr.mxu0 0.0
        %5591 = vmatpush1.msra.mxu0 0.0
        %5592 = vmatprep.subr.mxu0 0.0
        %5593 = vmatpush1.msra.mxu0 0.0
        %5594 = vmatprep.subr.mxu0 0.0
        %5595 = vmatpush1.msra.mxu0 0.0
        %5596 = vmatprep.subr.mxu0 0.0
        %5597 = vmatpush1.msra.mxu0 0.0
        %5598 = vmatprep.subr.mxu0 0.0
        %5599 = vmatpush1.msra.mxu0 0.0
        %5600 = vmatprep.subr.mxu0 0.0
        %5601 = vmatpush1.msra.mxu0 0.0
        %5602 = vmatprep.subr.mxu0 0.0
        %5603 = vmatpush1.msra.mxu0 0.0
        %5604 = vmatprep.subr.mxu0 0.0
        %5605 = vmatpush1.msra.mxu0 0.0
        %5606 = vmatprep.subr.mxu0 0.0
        %5607 = vmatpush1.msra.mxu0 0.0
        %5608 = vmatprep.subr.mxu0 0.0
        %5609 = vmatpush1.msra.mxu0 0.0
        %5610 = vmatprep.subr.mxu0 0.0
        %5611 = vmatpush1.msra.mxu0 0.0
        %5612 = vmatprep.subr.mxu0 0.0
        %5613 = vmatpush1.msra.mxu0 0.0
        %5614 = vmatprep.subr.mxu0 0.0
        %5615 = vmatpush1.msra.mxu0 0.0
        %5616 = vmatprep.subr.mxu0 0.0
        %5617 = vmatpush1.msra.mxu0 0.0
        %5618 = vmatprep.subr.mxu0 0.0
        %5619 = vmatpush1.msra.mxu0 0.0
        %5620 = vmatprep.subr.mxu0 0.0
        %5621 = vmatpush1.msra.mxu0 0.0
        %5622 = vmatprep.subr.mxu0 0.0
        %5623 = vmatpush1.msra.mxu0 0.0
        %5624 = vmatprep.subr.mxu0 0.0
        %5625 = vmatpush1.msra.mxu0 0.0
        %5626 = vmatprep.subr.mxu0 0.0
        %5627 = vmatpush1.msra.mxu0 0.0
        %5628 = vmatprep.subr.mxu0 0.0
        %5629 = vmatpush1.msra.mxu0 0.0
        %5630 = vmatprep.subr.mxu0 0.0
        %5631 = vmatpush1.msra.mxu0 0.0
        %5632 = vmatprep.subr.mxu0 0.0
        %5633 = vmatpush1.msra.mxu0 0.0
        %5634 = vmatprep.subr.mxu0 0.0
        %5635 = vmatpush1.msra.mxu0 0.0
        %5636 = vmatprep.subr.mxu0 0.0
        %5637 = vmatpush1.msra.mxu0 0.0
        %5638 = vmatprep.subr.mxu0 0.0
        %5639 = vmatpush1.msra.mxu0 0.0
        %5640 = vmatprep.subr.mxu0 0.0
        %5641 = vmatpush1.msra.mxu0 0.0
        %5642 = vmatprep.subr.mxu0 0.0
        %5643 = vmatpush1.msra.mxu0 0.0
        %5644 = vmatprep.subr.mxu0 0.0
        %5645 = vmatpush1.msra.mxu0 0.0
        %5646 = vmatprep.subr.mxu0 0.0
        %5647 = vmatpush1.msra.mxu0 0.0
        %5648 = vmatprep.subr.mxu0 0.0
        %5649 = vmatpush1.msra.mxu0 0.0
        %5650 = vmatprep.mubr.f32.mxu0 0.0
        %5651 = vmatmul.mubr.f32.gmra.mrb[0].mxu0 %v5581
        %v5652 = vpop.f32.mrb[0].mxu0
        %v5653 = vadd.f32 0.0, %v5652
        %v5654 = vpop.f32.mrb[0].mxu0
        %v5655 = vadd.f32 0.0, %v5654
        %5656 = vmatprep.mubr.f32.mxu0 0.0
        %5657 = vmatmul.mubr.f32.gmra.mrb[0].mxu0 %v5584
        %v5658 = vpop.f32.mrb[0].mxu0
        %v5659 = vadd.f32 0.0, %v5658
        %v5660 = vpop.f32.mrb[0].mxu0
        %v5661 = vadd.f32 0.0, %v5660
        %5662 = vdwg.mxu0
        %v5663 = vadd.f32 %v5553, %v5653
        %v5664 = vadd.f32 %v5554, %v5655
        %v5665 = vadd.f32 %v5555, %v5659
        %v5666 = vadd.f32 %v5556, %v5661
        %v5667 = vld [vmem:[%s5] sm:$0xff]
        %v5668 = vld [vmem:[%s5 + $0x8] sm:$0xff]
        %5670 = vset.pattern.permute.xlu0 0
        %5671 = vperm.xlu0 %5670, %v5667
        %v5672 = vpop.permute.xlu0 %5671
        %5675 = vset.pattern.permute.xlu0 0
        %5676 = vperm.xlu0 %5675, %v5668
        %v5677 = vpop.permute.xlu0 %5676
        %v5679 = vadd.f32 %v5663, %v5672
        %v5680 = vadd.f32 %v5664, %v5672
        %v5681 = vadd.f32 %v5665, %v5677
        %v5682 = vadd.f32 %v5666, %v5677
        %vm5683 = vcmp.gt.f32.partialorder %v5679, 0.0
        %vm5684 = vcmp.gt.f32.partialorder %v5680, 0.0
        %vm5685 = vcmp.gt.f32.partialorder %v5681, 0.0
        %vm5686 = vcmp.gt.f32.partialorder %v5682, 0.0
        %v5687 = vmin.f32 %v5679, 0.0
        %v5688 = vmin.f32 %v5680, 0.0
        %v5689 = vmin.f32 %v5681, 0.0
        %v5690 = vmin.f32 %v5682, 0.0
        %v5691 = vmul.f32 %v5687, 1.442695
        %v5692 = vpow.pop %v5691
        %v5693 = vmul.f32 %v5688, 1.442695
        %v5694 = vpow.pop %v5693
        %v5695 = vmul.f32 %v5689, 1.442695
        %v5696 = vpow.pop %v5695
        %v5697 = vmul.f32 %v5690, 1.442695
        %v5698 = vpow.pop %v5697
        %v5699 = vsub.f32 %v5692, 1.0
        %v5700 = vsub.f32 %v5694, 1.0
        %v5701 = vsub.f32 %v5696, 1.0
        %v5702 = vsub.f32 %v5698, 1.0
        %v5703 = vsel %vm5683, %v5679, %v5699
        %v5704 = vsel %vm5684, %v5680, %v5700
        %v5705 = vsel %vm5685, %v5681, %v5701
        %v5706 = vsel %vm5686, %v5682, %v5702
        %v5707 = vadd.s32 %v3149, 128
        %v5708 = vadd.s32 %v3149, 136
        %v5709 = vadd.s32 %v3149, 144
        %v5710 = vadd.s32 %v3149, 152
        %v5711 = vadd.s32 %v3149, 160
        %v5712 = vadd.s32 %v3149, 168
        %v5713 = vadd.s32 %v3149, 176
        %v5714 = vadd.s32 %v3149, 184
        %v5715 = vadd.s32 %v3149, 192
        %v5716 = vadd.s32 %v3149, 200
        %v5717 = vadd.s32 %v3149, 208
        %v5718 = vadd.s32 %v3149, 216
        %v5719 = vadd.s32 %v3149, 224
        %v5720 = vadd.s32 %v3149, 232
        %v5721 = vadd.s32 %v3149, 240
        %v5722 = vadd.s32 %v3149, 248
        %v5723 = vmul.u32 %v3166, 8
        %vm5724 = vcmp.ge.s32.totalorder %v3149, %v5723
        %vm5725 = vcmp.ge.s32.totalorder %v3150, %v5723
        %vm5726 = vcmp.ge.s32.totalorder %v3151, %v5723
        %vm5727 = vcmp.ge.s32.totalorder %v3152, %v5723
        %vm5728 = vcmp.ge.s32.totalorder %v3153, %v5723
        %vm5729 = vcmp.ge.s32.totalorder %v3154, %v5723
        %vm5730 = vcmp.ge.s32.totalorder %v3155, %v5723
        %vm5731 = vcmp.ge.s32.totalorder %v3156, %v5723
        %vm5732 = vcmp.ge.s32.totalorder %v3157, %v5723
        %vm5733 = vcmp.ge.s32.totalorder %v3158, %v5723
        %vm5734 = vcmp.ge.s32.totalorder %v3159, %v5723
        %vm5735 = vcmp.ge.s32.totalorder %v3160, %v5723
        %vm5736 = vcmp.ge.s32.totalorder %v3161, %v5723
        %vm5737 = vcmp.ge.s32.totalorder %v3162, %v5723
        %vm5738 = vcmp.ge.s32.totalorder %v3163, %v5723
        %vm5739 = vcmp.ge.s32.totalorder %v3164, %v5723
        %vm5740 = vcmp.ge.s32.totalorder %v5707, %v5723
        %vm5741 = vcmp.ge.s32.totalorder %v5708, %v5723
        %vm5742 = vcmp.ge.s32.totalorder %v5709, %v5723
        %vm5743 = vcmp.ge.s32.totalorder %v5710, %v5723
        %vm5744 = vcmp.ge.s32.totalorder %v5711, %v5723
        %vm5745 = vcmp.ge.s32.totalorder %v5712, %v5723
        %vm5746 = vcmp.ge.s32.totalorder %v5713, %v5723
        %vm5747 = vcmp.ge.s32.totalorder %v5714, %v5723
        %vm5748 = vcmp.ge.s32.totalorder %v5715, %v5723
        %vm5749 = vcmp.ge.s32.totalorder %v5716, %v5723
        %vm5750 = vcmp.ge.s32.totalorder %v5717, %v5723
        %vm5751 = vcmp.ge.s32.totalorder %v5718, %v5723
        %vm5752 = vcmp.ge.s32.totalorder %v5719, %v5723
        %vm5753 = vcmp.ge.s32.totalorder %v5720, %v5723
        %vm5754 = vcmp.ge.s32.totalorder %v5721, %v5723
        %vm5755 = vcmp.ge.s32.totalorder %v5722, %v5723
        %v5756 = vadd.s32 %v5723, 8
        %vm5757 = vcmp.lt.s32.totalorder %v3149, %v5756
        %vm5758 = vcmp.lt.s32.totalorder %v3150, %v5756
        %vm5759 = vcmp.lt.s32.totalorder %v3151, %v5756
        %vm5760 = vcmp.lt.s32.totalorder %v3152, %v5756
        %vm5761 = vcmp.lt.s32.totalorder %v3153, %v5756
        %vm5762 = vcmp.lt.s32.totalorder %v3154, %v5756
        %vm5763 = vcmp.lt.s32.totalorder %v3155, %v5756
        %vm5764 = vcmp.lt.s32.totalorder %v3156, %v5756
        %vm5765 = vcmp.lt.s32.totalorder %v3157, %v5756
        %vm5766 = vcmp.lt.s32.totalorder %v3158, %v5756
        %vm5767 = vcmp.lt.s32.totalorder %v3159, %v5756
        %vm5768 = vcmp.lt.s32.totalorder %v3160, %v5756
        %vm5769 = vcmp.lt.s32.totalorder %v3161, %v5756
        %vm5770 = vcmp.lt.s32.totalorder %v3162, %v5756
        %vm5771 = vcmp.lt.s32.totalorder %v3163, %v5756
        %vm5772 = vcmp.lt.s32.totalorder %v3164, %v5756
        %vm5773 = vcmp.lt.s32.totalorder %v5707, %v5756
        %vm5774 = vcmp.lt.s32.totalorder %v5708, %v5756
        %vm5775 = vcmp.lt.s32.totalorder %v5709, %v5756
        %vm5776 = vcmp.lt.s32.totalorder %v5710, %v5756
        %vm5777 = vcmp.lt.s32.totalorder %v5711, %v5756
        %vm5778 = vcmp.lt.s32.totalorder %v5712, %v5756
        %vm5779 = vcmp.lt.s32.totalorder %v5713, %v5756
        %vm5780 = vcmp.lt.s32.totalorder %v5714, %v5756
        %vm5781 = vcmp.lt.s32.totalorder %v5715, %v5756
        %vm5782 = vcmp.lt.s32.totalorder %v5716, %v5756
        %vm5783 = vcmp.lt.s32.totalorder %v5717, %v5756
        %vm5784 = vcmp.lt.s32.totalorder %v5718, %v5756
        %vm5785 = vcmp.lt.s32.totalorder %v5719, %v5756
        %vm5786 = vcmp.lt.s32.totalorder %v5720, %v5756
        %vm5787 = vcmp.lt.s32.totalorder %v5721, %v5756
        %vm5788 = vcmp.lt.s32.totalorder %v5722, %v5756
        %vm5789 = vmand %vm5724, %vm5757
        %vm5790 = vmand %vm5725, %vm5758
        %vm5791 = vmand %vm5726, %vm5759
        %vm5792 = vmand %vm5727, %vm5760
        %vm5793 = vmand %vm5728, %vm5761
        %vm5794 = vmand %vm5729, %vm5762
        %vm5795 = vmand %vm5730, %vm5763
        %vm5796 = vmand %vm5731, %vm5764
        %vm5797 = vmand %vm5732, %vm5765
        %vm5798 = vmand %vm5733, %vm5766
        %vm5799 = vmand %vm5734, %vm5767
        %vm5800 = vmand %vm5735, %vm5768
        %vm5801 = vmand %vm5736, %vm5769
        %vm5802 = vmand %vm5737, %vm5770
        %vm5803 = vmand %vm5738, %vm5771
        %vm5804 = vmand %vm5739, %vm5772
        %vm5805 = vmand %vm5740, %vm5773
        %vm5806 = vmand %vm5741, %vm5774
        %vm5807 = vmand %vm5742, %vm5775
        %vm5808 = vmand %vm5743, %vm5776
        %vm5809 = vmand %vm5744, %vm5777
        %vm5810 = vmand %vm5745, %vm5778
        %vm5811 = vmand %vm5746, %vm5779
        %vm5812 = vmand %vm5747, %vm5780
        %vm5813 = vmand %vm5748, %vm5781
        %vm5814 = vmand %vm5749, %vm5782
        %vm5815 = vmand %vm5750, %vm5783
        %vm5816 = vmand %vm5751, %vm5784
        %vm5817 = vmand %vm5752, %vm5785
        %vm5818 = vmand %vm5753, %vm5786
        %vm5819 = vmand %vm5754, %vm5787
        %vm5820 = vmand %vm5755, %vm5788
        %v5821 = vsel %vm5789, 0.125, 0.0
        %v5822 = vsel %vm5790, 0.125, 0.0
        %v5823 = vsel %vm5791, 0.125, 0.0
        %v5824 = vsel %vm5792, 0.125, 0.0
        %v5825 = vsel %vm5793, 0.125, 0.0
        %v5826 = vsel %vm5794, 0.125, 0.0
        %v5827 = vsel %vm5795, 0.125, 0.0
        %v5828 = vsel %vm5796, 0.125, 0.0
        %v5829 = vsel %vm5797, 0.125, 0.0
        %v5830 = vsel %vm5798, 0.125, 0.0
        %v5831 = vsel %vm5799, 0.125, 0.0
        %v5832 = vsel %vm5800, 0.125, 0.0
        %v5833 = vsel %vm5801, 0.125, 0.0
        %v5834 = vsel %vm5802, 0.125, 0.0
        %v5835 = vsel %vm5803, 0.125, 0.0
        %v5836 = vsel %vm5804, 0.125, 0.0
        %v5837 = vsel %vm5805, 0.125, 0.0
        %v5838 = vsel %vm5806, 0.125, 0.0
        %v5839 = vsel %vm5807, 0.125, 0.0
        %v5840 = vsel %vm5808, 0.125, 0.0
        %v5841 = vsel %vm5809, 0.125, 0.0
        %v5842 = vsel %vm5810, 0.125, 0.0
        %v5843 = vsel %vm5811, 0.125, 0.0
        %v5844 = vsel %vm5812, 0.125, 0.0
        %v5845 = vsel %vm5813, 0.125, 0.0
        %v5846 = vsel %vm5814, 0.125, 0.0
        %v5847 = vsel %vm5815, 0.125, 0.0
        %v5848 = vsel %vm5816, 0.125, 0.0
        %v5849 = vsel %vm5817, 0.125, 0.0
        %v5850 = vsel %vm5818, 0.125, 0.0
        %v5851 = vsel %vm5819, 0.125, 0.0
        %v5852 = vsel %vm5820, 0.125, 0.0
        %5853 = vmatprep.subr.mxu0 0.0
        %5854 = vmatpush1.msra.mxu0 %v5821
        %5855 = vmatprep.subr.mxu0 0.0
        %5856 = vmatpush1.msra.mxu0 %v5822
        %5857 = vmatprep.subr.mxu0 0.0
        %5858 = vmatpush1.msra.mxu0 %v5823
        %5859 = vmatprep.subr.mxu0 0.0
        %5860 = vmatpush1.msra.mxu0 %v5824
        %5861 = vmatprep.subr.mxu0 0.0
        %5862 = vmatpush1.msra.mxu0 %v5825
        %5863 = vmatprep.subr.mxu0 0.0
        %5864 = vmatpush1.msra.mxu0 %v5826
        %5865 = vmatprep.subr.mxu0 0.0
        %5866 = vmatpush1.msra.mxu0 %v5827
        %5867 = vmatprep.subr.mxu0 0.0
        %5868 = vmatpush1.msra.mxu0 %v5828
        %5869 = vmatprep.subr.mxu0 0.0
        %5870 = vmatpush1.msra.mxu0 %v5829
        %5871 = vmatprep.subr.mxu0 0.0
        %5872 = vmatpush1.msra.mxu0 %v5830
        %5873 = vmatprep.subr.mxu0 0.0
        %5874 = vmatpush1.msra.mxu0 %v5831
        %5875 = vmatprep.subr.mxu0 0.0
        %5876 = vmatpush1.msra.mxu0 %v5832
        %5877 = vmatprep.subr.mxu0 0.0
        %5878 = vmatpush1.msra.mxu0 %v5833
        %5879 = vmatprep.subr.mxu0 0.0
        %5880 = vmatpush1.msra.mxu0 %v5834
        %5881 = vmatprep.subr.mxu0 0.0
        %5882 = vmatpush1.msra.mxu0 %v5835
        %5883 = vmatprep.subr.mxu0 0.0
        %5884 = vmatpush1.msra.mxu0 %v5836
        %5885 = vmatprep.subr.mxu0 0.0
        %5886 = vmatpush1.msra.mxu0 %v5837
        %5887 = vmatprep.subr.mxu0 0.0
        %5888 = vmatpush1.msra.mxu0 %v5838
        %5889 = vmatprep.subr.mxu0 0.0
        %5890 = vmatpush1.msra.mxu0 %v5839
        %5891 = vmatprep.subr.mxu0 0.0
        %5892 = vmatpush1.msra.mxu0 %v5840
        %5893 = vmatprep.subr.mxu0 0.0
        %5894 = vmatpush1.msra.mxu0 %v5841
        %5895 = vmatprep.subr.mxu0 0.0
        %5896 = vmatpush1.msra.mxu0 %v5842
        %5897 = vmatprep.subr.mxu0 0.0
        %5898 = vmatpush1.msra.mxu0 %v5843
        %5899 = vmatprep.subr.mxu0 0.0
        %5900 = vmatpush1.msra.mxu0 %v5844
        %5901 = vmatprep.subr.mxu0 0.0
        %5902 = vmatpush1.msra.mxu0 %v5845
        %5903 = vmatprep.subr.mxu0 0.0
        %5904 = vmatpush1.msra.mxu0 %v5846
        %5905 = vmatprep.subr.mxu0 0.0
        %5906 = vmatpush1.msra.mxu0 %v5847
        %5907 = vmatprep.subr.mxu0 0.0
        %5908 = vmatpush1.msra.mxu0 %v5848
        %5909 = vmatprep.subr.mxu0 0.0
        %5910 = vmatpush1.msra.mxu0 %v5849
        %5911 = vmatprep.subr.mxu0 0.0
        %5912 = vmatpush1.msra.mxu0 %v5850
        %5913 = vmatprep.subr.mxu0 0.0
        %5914 = vmatpush1.msra.mxu0 %v5851
        %5915 = vmatprep.subr.mxu0 0.0
        %5916 = vmatpush1.msra.mxu0 %v5852
        %5917 = vmatprep.mubr.f32.mxu0 %v5704
        %5918 = vmatmul.mubr.f32.gmra.mrb[0].mxu0 %v5703
        %v5919 = vpop.f32.mrb[0].mxu0
        %v5920 = vadd.f32 0.0, %v5919
        %v5921 = vpop.f32.mrb[0].mxu0
        %5922 = vmatprep.mubr.f32.mxu0 %v5706
        %5923 = vmatmul.mubr.f32.gmra.mrb[0].mxu0 %v5705
        %v5924 = vpop.f32.mrb[0].mxu0
        %v5925 = vadd.f32 0.0, %v5924
        %v5926 = vpop.f32.mrb[0].mxu0
        %5927 = vdwg.mxu0
        %5928 = vst [vmem:[#allocation3] sm:$0xff] 0.0
        %5929 = vst [vmem:[#allocation3 + $0x8] sm:$0xff] 0.0
        %5930 = vst [vmem:[#allocation3 + $0x10] sm:$0xff] 0.0
        %5931 = vst [vmem:[#allocation3 + $0x18] sm:$0xff] 0.0
        %5932 = vst.msk [vmem:[#allocation3 + $0x8] sm:$0xff] %vm3316, %v5920
        %5933 = vst.msk [vmem:[#allocation3 + $0x18] sm:$0xff] %vm3316, %v5925
        %v5934 = vld [vmem:[#allocation3] sm:$0xff]
        %v5935 = vld [vmem:[#allocation3 + $0x8] sm:$0xff]
        %v5936 = vld [vmem:[#allocation3 + $0x10] sm:$0xff]
        %v5937 = vld [vmem:[#allocation3 + $0x18] sm:$0xff]
        %v5938 = vld [vmem:[%s6] sm:$0xff]
        %v5939 = vld [vmem:[%s6 + $0x8] sm:$0xff]
        %v5940 = vld [vmem:[%s6 + $0x10] sm:$0xff]
        %v5941 = vld [vmem:[%s6 + $0x18] sm:$0xff]
        %s5942 = scalar_lea.vmem %s6, 32
        %v5943 = vld [vmem:[%s5942] sm:$0xff]
        %v5944 = vld [vmem:[%s5942 + $0x8] sm:$0xff]
        %v5945 = vld [vmem:[%s5942 + $0x10] sm:$0xff]
        %v5946 = vld [vmem:[%s5942 + $0x18] sm:$0xff]
        %5951 = vrot.lane.b32.xlu0 %v5934, 6
        %v5952 = vpop.permute.xlu0 %5951
        %5953 = vrot.lane.b32.xlu0 %v5935, 6
        %v5954 = vpop.permute.xlu0 %5953
        %5955 = vrot.lane.b32.xlu0 %v5936, 6
        %v5956 = vpop.permute.xlu0 %5955
        %5957 = vrot.lane.b32.xlu0 %v5937, 6
        %v5958 = vpop.permute.xlu0 %5957
        %v5959 = vsel %vm3940, %v5952, %v5954
        %v5960 = vsel %vm3940, %v5956, %v5958
        %v5964 = vsel %vm3949, %v5943, 0
        %v5967 = vsel %vm3949, %v5944, 0
        %v5970 = vsel %vm3949, %v5945, 0
        %v5973 = vsel %vm3949, %v5946, 0
        %5975 = vmatprep.subr.mxu0 0.0
        %5976 = vmatpush1.msra.mxu0 %v5959
        %5977 = vmatprep.subr.mxu0 0.0
        %5978 = vmatpush1.msra.mxu0 %v5960
        %5979 = vmatprep.subr.mxu0 0.0
        %5980 = vmatpush1.msra.mxu0 0.0
        %5981 = vmatprep.subr.mxu0 0.0
        %5982 = vmatpush1.msra.mxu0 0.0
        %5983 = vmatprep.subr.mxu0 0.0
        %5984 = vmatpush1.msra.mxu0 0.0
        %5985 = vmatprep.subr.mxu0 0.0
        %5986 = vmatpush1.msra.mxu0 0.0
        %5987 = vmatprep.subr.mxu0 0.0
        %5988 = vmatpush1.msra.mxu0 0.0
        %5989 = vmatprep.subr.mxu0 0.0
        %5990 = vmatpush1.msra.mxu0 0.0
        %5991 = vmatprep.subr.mxu0 0.0
        %5992 = vmatpush1.msra.mxu0 0.0
        %5993 = vmatprep.subr.mxu0 0.0
        %5994 = vmatpush1.msra.mxu0 0.0
        %5995 = vmatprep.subr.mxu0 0.0
        %5996 = vmatpush1.msra.mxu0 0.0
        %5997 = vmatprep.subr.mxu0 0.0
        %5998 = vmatpush1.msra.mxu0 0.0
        %5999 = vmatprep.subr.mxu0 0.0
        %6000 = vmatpush1.msra.mxu0 0.0
        %6001 = vmatprep.subr.mxu0 0.0
        %6002 = vmatpush1.msra.mxu0 0.0
        %6003 = vmatprep.subr.mxu0 0.0
        %6004 = vmatpush1.msra.mxu0 0.0
        %6005 = vmatprep.subr.mxu0 0.0
        %6006 = vmatpush1.msra.mxu0 0.0
        %6007 = vmatprep.subr.mxu0 0.0
        %6008 = vmatpush1.msra.mxu0 0.0
        %6009 = vmatprep.subr.mxu0 0.0
        %6010 = vmatpush1.msra.mxu0 0.0
        %6011 = vmatprep.subr.mxu0 0.0
        %6012 = vmatpush1.msra.mxu0 0.0
        %6013 = vmatprep.subr.mxu0 0.0
        %6014 = vmatpush1.msra.mxu0 0.0
        %6015 = vmatprep.subr.mxu0 0.0
        %6016 = vmatpush1.msra.mxu0 0.0
        %6017 = vmatprep.subr.mxu0 0.0
        %6018 = vmatpush1.msra.mxu0 0.0
        %6019 = vmatprep.subr.mxu0 0.0
        %6020 = vmatpush1.msra.mxu0 0.0
        %6021 = vmatprep.subr.mxu0 0.0
        %6022 = vmatpush1.msra.mxu0 0.0
        %6023 = vmatprep.subr.mxu0 0.0
        %6024 = vmatpush1.msra.mxu0 0.0
        %6025 = vmatprep.subr.mxu0 0.0
        %6026 = vmatpush1.msra.mxu0 0.0
        %6027 = vmatprep.subr.mxu0 0.0
        %6028 = vmatpush1.msra.mxu0 0.0
        %6029 = vmatprep.subr.mxu0 0.0
        %6030 = vmatpush1.msra.mxu0 0.0
        %6031 = vmatprep.subr.mxu0 0.0
        %6032 = vmatpush1.msra.mxu0 0.0
        %6033 = vmatprep.subr.mxu0 0.0
        %6034 = vmatpush1.msra.mxu0 0.0
        %6035 = vmatprep.subr.mxu0 0.0
        %6036 = vmatpush1.msra.mxu0 0.0
        %6037 = vmatprep.subr.mxu0 0.0
        %6038 = vmatpush1.msra.mxu0 0.0
        %6039 = vmatprep.mubr.f32.mxu0 0.0
        %6040 = vmatmul.mubr.f32.gmra.mrb[0].mxu0 %v5964
        %v6041 = vpop.f32.mrb[0].mxu0
        %v6042 = vadd.f32 0.0, %v6041
        %v6043 = vpop.f32.mrb[0].mxu0
        %6044 = vmatprep.mubr.f32.mxu0 0.0
        %6045 = vmatmul.mubr.f32.gmra.mrb[0].mxu0 %v5967
        %v6046 = vpop.f32.mrb[0].mxu0
        %v6047 = vadd.f32 0.0, %v6046
        %v6048 = vpop.f32.mrb[0].mxu0
        %6049 = vmatprep.mubr.f32.mxu0 0.0
        %6050 = vmatmul.mubr.f32.gmra.mrb[0].mxu0 %v5970
        %v6051 = vpop.f32.mrb[0].mxu0
        %v6052 = vadd.f32 0.0, %v6051
        %v6053 = vpop.f32.mrb[0].mxu0
        %6054 = vmatprep.mubr.f32.mxu0 0.0
        %6055 = vmatmul.mubr.f32.gmra.mrb[0].mxu0 %v5973
        %v6056 = vpop.f32.mrb[0].mxu0
        %v6057 = vadd.f32 0.0, %v6056
        %v6058 = vpop.f32.mrb[0].mxu0
        %6059 = vdwg.mxu0
        %6060 = vrot.lane.b32.xlu0 %v5934, 7
        %v6061 = vpop.permute.xlu0 %6060
        %6062 = vrot.lane.b32.xlu0 %v5935, 7
        %v6063 = vpop.permute.xlu0 %6062
        %6064 = vrot.lane.b32.xlu0 %v5936, 7
        %v6065 = vpop.permute.xlu0 %6064
        %6066 = vrot.lane.b32.xlu0 %v5937, 7
        %v6067 = vpop.permute.xlu0 %6066
        %v6068 = vsel %vm4045, %v6061, %v6063
        %v6069 = vsel %vm4045, %v6065, %v6067
        %v6073 = vsel %vm3949, %v5938, 0
        %v6076 = vsel %vm3949, %v5939, 0
        %v6079 = vsel %vm3949, %v5940, 0
        %v6082 = vsel %vm3949, %v5941, 0
        %6084 = vmatprep.subr.mxu0 0.0
        %6085 = vmatpush1.msra.mxu0 %v6068
        %6086 = vmatprep.subr.mxu0 0.0
        %6087 = vmatpush1.msra.mxu0 %v6069
        %6088 = vmatprep.subr.mxu0 0.0
        %6089 = vmatpush1.msra.mxu0 0.0
        %6090 = vmatprep.subr.mxu0 0.0
        %6091 = vmatpush1.msra.mxu0 0.0
        %6092 = vmatprep.subr.mxu0 0.0
        %6093 = vmatpush1.msra.mxu0 0.0
        %6094 = vmatprep.subr.mxu0 0.0
        %6095 = vmatpush1.msra.mxu0 0.0
        %6096 = vmatprep.subr.mxu0 0.0
        %6097 = vmatpush1.msra.mxu0 0.0
        %6098 = vmatprep.subr.mxu0 0.0
        %6099 = vmatpush1.msra.mxu0 0.0
        %6100 = vmatprep.subr.mxu0 0.0
        %6101 = vmatpush1.msra.mxu0 0.0
        %6102 = vmatprep.subr.mxu0 0.0
        %6103 = vmatpush1.msra.mxu0 0.0
        %6104 = vmatprep.subr.mxu0 0.0
        %6105 = vmatpush1.msra.mxu0 0.0
        %6106 = vmatprep.subr.mxu0 0.0
        %6107 = vmatpush1.msra.mxu0 0.0
        %6108 = vmatprep.subr.mxu0 0.0
        %6109 = vmatpush1.msra.mxu0 0.0
        %6110 = vmatprep.subr.mxu0 0.0
        %6111 = vmatpush1.msra.mxu0 0.0
        %6112 = vmatprep.subr.mxu0 0.0
        %6113 = vmatpush1.msra.mxu0 0.0
        %6114 = vmatprep.subr.mxu0 0.0
        %6115 = vmatpush1.msra.mxu0 0.0
        %6116 = vmatprep.subr.mxu0 0.0
        %6117 = vmatpush1.msra.mxu0 0.0
        %6118 = vmatprep.subr.mxu0 0.0
        %6119 = vmatpush1.msra.mxu0 0.0
        %6120 = vmatprep.subr.mxu0 0.0
        %6121 = vmatpush1.msra.mxu0 0.0
        %6122 = vmatprep.subr.mxu0 0.0
        %6123 = vmatpush1.msra.mxu0 0.0
        %6124 = vmatprep.subr.mxu0 0.0
        %6125 = vmatpush1.msra.mxu0 0.0
        %6126 = vmatprep.subr.mxu0 0.0
        %6127 = vmatpush1.msra.mxu0 0.0
        %6128 = vmatprep.subr.mxu0 0.0
        %6129 = vmatpush1.msra.mxu0 0.0
        %6130 = vmatprep.subr.mxu0 0.0
        %6131 = vmatpush1.msra.mxu0 0.0
        %6132 = vmatprep.subr.mxu0 0.0
        %6133 = vmatpush1.msra.mxu0 0.0
        %6134 = vmatprep.subr.mxu0 0.0
        %6135 = vmatpush1.msra.mxu0 0.0
        %6136 = vmatprep.subr.mxu0 0.0
        %6137 = vmatpush1.msra.mxu0 0.0
        %6138 = vmatprep.subr.mxu0 0.0
        %6139 = vmatpush1.msra.mxu0 0.0
        %6140 = vmatprep.subr.mxu0 0.0
        %6141 = vmatpush1.msra.mxu0 0.0
        %6142 = vmatprep.subr.mxu0 0.0
        %6143 = vmatpush1.msra.mxu0 0.0
        %6144 = vmatprep.subr.mxu0 0.0
        %6145 = vmatpush1.msra.mxu0 0.0
        %6146 = vmatprep.subr.mxu0 0.0
        %6147 = vmatpush1.msra.mxu0 0.0
        %6148 = vmatprep.mubr.f32.mxu0 0.0
        %6149 = vmatmul.mubr.f32.gmra.mrb[0].mxu0 %v6073
        %v6150 = vpop.f32.mrb[0].mxu0
        %v6151 = vadd.f32 %v6042, %v6150
        %v6152 = vpop.f32.mrb[0].mxu0
        %6153 = vmatprep.mubr.f32.mxu0 0.0
        %6154 = vmatmul.mubr.f32.gmra.mrb[0].mxu0 %v6076
        %v6155 = vpop.f32.mrb[0].mxu0
        %v6156 = vadd.f32 %v6047, %v6155
        %v6157 = vpop.f32.mrb[0].mxu0
        %6158 = vmatprep.mubr.f32.mxu0 0.0
        %6159 = vmatmul.mubr.f32.gmra.mrb[0].mxu0 %v6079
        %v6160 = vpop.f32.mrb[0].mxu0
        %v6161 = vadd.f32 %v6052, %v6160
        %v6162 = vpop.f32.mrb[0].mxu0
        %6163 = vmatprep.mubr.f32.mxu0 0.0
        %6164 = vmatmul.mubr.f32.gmra.mrb[0].mxu0 %v6082
        %v6165 = vpop.f32.mrb[0].mxu0
        %v6166 = vadd.f32 %v6057, %v6165
        %v6167 = vpop.f32.mrb[0].mxu0
        %6168 = vdwg.mxu0
        %s6169 = scalar_lea.vmem %s6, 64
        %v6170 = vld [vmem:[%s6169] sm:$0xff]
        %v6171 = vld [vmem:[%s6169 + $0x8] sm:$0xff]
        %v6172 = vld [vmem:[%s6169 + $0x10] sm:$0xff]
        %v6173 = vld [vmem:[%s6169 + $0x18] sm:$0xff]
        %6174 = vrot.lane.b32.xlu0 %v5934, 5
        %v6175 = vpop.permute.xlu0 %6174
        %6176 = vrot.lane.b32.xlu0 %v5935, 5
        %v6177 = vpop.permute.xlu0 %6176
        %6178 = vrot.lane.b32.xlu0 %v5936, 5
        %v6179 = vpop.permute.xlu0 %6178
        %6180 = vrot.lane.b32.xlu0 %v5937, 5
        %v6181 = vpop.permute.xlu0 %6180
        %v6182 = vsel %vm4152, %v6175, %v6177
        %v6183 = vsel %vm4152, %v6179, %v6181
        %v6187 = vsel %vm3949, %v6170, 0
        %v6190 = vsel %vm3949, %v6171, 0
        %v6193 = vsel %vm3949, %v6172, 0
        %v6196 = vsel %vm3949, %v6173, 0
        %6198 = vmatprep.subr.mxu0 0.0
        %6199 = vmatpush1.msra.mxu0 %v6182
        %6200 = vmatprep.subr.mxu0 0.0
        %6201 = vmatpush1.msra.mxu0 %v6183
        %6202 = vmatprep.subr.mxu0 0.0
        %6203 = vmatpush1.msra.mxu0 0.0
        %6204 = vmatprep.subr.mxu0 0.0
        %6205 = vmatpush1.msra.mxu0 0.0
        %6206 = vmatprep.subr.mxu0 0.0
        %6207 = vmatpush1.msra.mxu0 0.0
        %6208 = vmatprep.subr.mxu0 0.0
        %6209 = vmatpush1.msra.mxu0 0.0
        %6210 = vmatprep.subr.mxu0 0.0
        %6211 = vmatpush1.msra.mxu0 0.0
        %6212 = vmatprep.subr.mxu0 0.0
        %6213 = vmatpush1.msra.mxu0 0.0
        %6214 = vmatprep.subr.mxu0 0.0
        %6215 = vmatpush1.msra.mxu0 0.0
        %6216 = vmatprep.subr.mxu0 0.0
        %6217 = vmatpush1.msra.mxu0 0.0
        %6218 = vmatprep.subr.mxu0 0.0
        %6219 = vmatpush1.msra.mxu0 0.0
        %6220 = vmatprep.subr.mxu0 0.0
        %6221 = vmatpush1.msra.mxu0 0.0
        %6222 = vmatprep.subr.mxu0 0.0
        %6223 = vmatpush1.msra.mxu0 0.0
        %6224 = vmatprep.subr.mxu0 0.0
        %6225 = vmatpush1.msra.mxu0 0.0
        %6226 = vmatprep.subr.mxu0 0.0
        %6227 = vmatpush1.msra.mxu0 0.0
        %6228 = vmatprep.subr.mxu0 0.0
        %6229 = vmatpush1.msra.mxu0 0.0
        %6230 = vmatprep.subr.mxu0 0.0
        %6231 = vmatpush1.msra.mxu0 0.0
        %6232 = vmatprep.subr.mxu0 0.0
        %6233 = vmatpush1.msra.mxu0 0.0
        %6234 = vmatprep.subr.mxu0 0.0
        %6235 = vmatpush1.msra.mxu0 0.0
        %6236 = vmatprep.subr.mxu0 0.0
        %6237 = vmatpush1.msra.mxu0 0.0
        %6238 = vmatprep.subr.mxu0 0.0
        %6239 = vmatpush1.msra.mxu0 0.0
        %6240 = vmatprep.subr.mxu0 0.0
        %6241 = vmatpush1.msra.mxu0 0.0
        %6242 = vmatprep.subr.mxu0 0.0
        %6243 = vmatpush1.msra.mxu0 0.0
        %6244 = vmatprep.subr.mxu0 0.0
        %6245 = vmatpush1.msra.mxu0 0.0
        %6246 = vmatprep.subr.mxu0 0.0
        %6247 = vmatpush1.msra.mxu0 0.0
        %6248 = vmatprep.subr.mxu0 0.0
        %6249 = vmatpush1.msra.mxu0 0.0
        %6250 = vmatprep.subr.mxu0 0.0
        %6251 = vmatpush1.msra.mxu0 0.0
        %6252 = vmatprep.subr.mxu0 0.0
        %6253 = vmatpush1.msra.mxu0 0.0
        %6254 = vmatprep.subr.mxu0 0.0
        %6255 = vmatpush1.msra.mxu0 0.0
        %6256 = vmatprep.subr.mxu0 0.0
        %6257 = vmatpush1.msra.mxu0 0.0
        %6258 = vmatprep.subr.mxu0 0.0
        %6259 = vmatpush1.msra.mxu0 0.0
        %6260 = vmatprep.subr.mxu0 0.0
        %6261 = vmatpush1.msra.mxu0 0.0
        %6262 = vmatprep.mubr.f32.mxu0 0.0
        %6263 = vmatmul.mubr.f32.gmra.mrb[0].mxu0 %v6187
        %v6264 = vpop.f32.mrb[0].mxu0
        %v6265 = vadd.f32 0.0, %v6264
        %v6266 = vpop.f32.mrb[0].mxu0
        %6267 = vmatprep.mubr.f32.mxu0 0.0
        %6268 = vmatmul.mubr.f32.gmra.mrb[0].mxu0 %v6190
        %v6269 = vpop.f32.mrb[0].mxu0
        %v6270 = vadd.f32 0.0, %v6269
        %v6271 = vpop.f32.mrb[0].mxu0
        %6272 = vmatprep.mubr.f32.mxu0 0.0
        %6273 = vmatmul.mubr.f32.gmra.mrb[0].mxu0 %v6193
        %v6274 = vpop.f32.mrb[0].mxu0
        %v6275 = vadd.f32 0.0, %v6274
        %v6276 = vpop.f32.mrb[0].mxu0
        %6277 = vmatprep.mubr.f32.mxu0 0.0
        %6278 = vmatmul.mubr.f32.gmra.mrb[0].mxu0 %v6196
        %v6279 = vpop.f32.mrb[0].mxu0
        %v6280 = vadd.f32 0.0, %v6279
        %v6281 = vpop.f32.mrb[0].mxu0
        %6282 = vdwg.mxu0
        %v6283 = vadd.f32 %v6151, %v6265
        %v6284 = vadd.f32 %v6156, %v6270
        %v6285 = vadd.f32 %v6161, %v6275
        %v6286 = vadd.f32 %v6166, %v6280
        %s6287 = scalar_lea.vmem %s6, 96
        %v6288 = vld [vmem:[%s6287] sm:$0xff]
        %v6289 = vld [vmem:[%s6287 + $0x8] sm:$0xff]
        %v6290 = vld [vmem:[%s6287 + $0x10] sm:$0xff]
        %v6291 = vld [vmem:[%s6287 + $0x18] sm:$0xff]
        %6292 = vrot.lane.b32.xlu0 %v5934, 4
        %v6293 = vpop.permute.xlu0 %6292
        %6294 = vrot.lane.b32.xlu0 %v5935, 4
        %v6295 = vpop.permute.xlu0 %6294
        %6296 = vrot.lane.b32.xlu0 %v5936, 4
        %v6297 = vpop.permute.xlu0 %6296
        %6298 = vrot.lane.b32.xlu0 %v5937, 4
        %v6299 = vpop.permute.xlu0 %6298
        %v6300 = vsel %vm4263, %v6293, %v6295
        %v6301 = vsel %vm4263, %v6297, %v6299
        %v6305 = vsel %vm3949, %v6288, 0
        %v6308 = vsel %vm3949, %v6289, 0
        %v6311 = vsel %vm3949, %v6290, 0
        %v6314 = vsel %vm3949, %v6291, 0
        %6316 = vmatprep.subr.mxu0 0.0
        %6317 = vmatpush1.msra.mxu0 %v6300
        %6318 = vmatprep.subr.mxu0 0.0
        %6319 = vmatpush1.msra.mxu0 %v6301
        %6320 = vmatprep.subr.mxu0 0.0
        %6321 = vmatpush1.msra.mxu0 0.0
        %6322 = vmatprep.subr.mxu0 0.0
        %6323 = vmatpush1.msra.mxu0 0.0
        %6324 = vmatprep.subr.mxu0 0.0
        %6325 = vmatpush1.msra.mxu0 0.0
        %6326 = vmatprep.subr.mxu0 0.0
        %6327 = vmatpush1.msra.mxu0 0.0
        %6328 = vmatprep.subr.mxu0 0.0
        %6329 = vmatpush1.msra.mxu0 0.0
        %6330 = vmatprep.subr.mxu0 0.0
        %6331 = vmatpush1.msra.mxu0 0.0
        %6332 = vmatprep.subr.mxu0 0.0
        %6333 = vmatpush1.msra.mxu0 0.0
        %6334 = vmatprep.subr.mxu0 0.0
        %6335 = vmatpush1.msra.mxu0 0.0
        %6336 = vmatprep.subr.mxu0 0.0
        %6337 = vmatpush1.msra.mxu0 0.0
        %6338 = vmatprep.subr.mxu0 0.0
        %6339 = vmatpush1.msra.mxu0 0.0
        %6340 = vmatprep.subr.mxu0 0.0
        %6341 = vmatpush1.msra.mxu0 0.0
        %6342 = vmatprep.subr.mxu0 0.0
        %6343 = vmatpush1.msra.mxu0 0.0
        %6344 = vmatprep.subr.mxu0 0.0
        %6345 = vmatpush1.msra.mxu0 0.0
        %6346 = vmatprep.subr.mxu0 0.0
        %6347 = vmatpush1.msra.mxu0 0.0
        %6348 = vmatprep.subr.mxu0 0.0
        %6349 = vmatpush1.msra.mxu0 0.0
        %6350 = vmatprep.subr.mxu0 0.0
        %6351 = vmatpush1.msra.mxu0 0.0
        %6352 = vmatprep.subr.mxu0 0.0
        %6353 = vmatpush1.msra.mxu0 0.0
        %6354 = vmatprep.subr.mxu0 0.0
        %6355 = vmatpush1.msra.mxu0 0.0
        %6356 = vmatprep.subr.mxu0 0.0
        %6357 = vmatpush1.msra.mxu0 0.0
        %6358 = vmatprep.subr.mxu0 0.0
        %6359 = vmatpush1.msra.mxu0 0.0
        %6360 = vmatprep.subr.mxu0 0.0
        %6361 = vmatpush1.msra.mxu0 0.0
        %6362 = vmatprep.subr.mxu0 0.0
        %6363 = vmatpush1.msra.mxu0 0.0
        %6364 = vmatprep.subr.mxu0 0.0
        %6365 = vmatpush1.msra.mxu0 0.0
        %6366 = vmatprep.subr.mxu0 0.0
        %6367 = vmatpush1.msra.mxu0 0.0
        %6368 = vmatprep.subr.mxu0 0.0
        %6369 = vmatpush1.msra.mxu0 0.0
        %6370 = vmatprep.subr.mxu0 0.0
        %6371 = vmatpush1.msra.mxu0 0.0
        %6372 = vmatprep.subr.mxu0 0.0
        %6373 = vmatpush1.msra.mxu0 0.0
        %6374 = vmatprep.subr.mxu0 0.0
        %6375 = vmatpush1.msra.mxu0 0.0
        %6376 = vmatprep.subr.mxu0 0.0
        %6377 = vmatpush1.msra.mxu0 0.0
        %6378 = vmatprep.subr.mxu0 0.0
        %6379 = vmatpush1.msra.mxu0 0.0
        %6380 = vmatprep.mubr.f32.mxu0 0.0
        %6381 = vmatmul.mubr.f32.gmra.mrb[0].mxu0 %v6305
        %v6382 = vpop.f32.mrb[0].mxu0
        %v6383 = vadd.f32 0.0, %v6382
        %v6384 = vpop.f32.mrb[0].mxu0
        %6385 = vmatprep.mubr.f32.mxu0 0.0
        %6386 = vmatmul.mubr.f32.gmra.mrb[0].mxu0 %v6308
        %v6387 = vpop.f32.mrb[0].mxu0
        %v6388 = vadd.f32 0.0, %v6387
        %v6389 = vpop.f32.mrb[0].mxu0
        %6390 = vmatprep.mubr.f32.mxu0 0.0
        %6391 = vmatmul.mubr.f32.gmra.mrb[0].mxu0 %v6311
        %v6392 = vpop.f32.mrb[0].mxu0
        %v6393 = vadd.f32 0.0, %v6392
        %v6394 = vpop.f32.mrb[0].mxu0
        %6395 = vmatprep.mubr.f32.mxu0 0.0
        %6396 = vmatmul.mubr.f32.gmra.mrb[0].mxu0 %v6314
        %v6397 = vpop.f32.mrb[0].mxu0
        %v6398 = vadd.f32 0.0, %v6397
        %v6399 = vpop.f32.mrb[0].mxu0
        %6400 = vdwg.mxu0
        %v6401 = vadd.f32 %v6283, %v6383
        %v6402 = vadd.f32 %v6284, %v6388
        %v6403 = vadd.f32 %v6285, %v6393
        %v6404 = vadd.f32 %v6286, %v6398
        %s6405 = scalar_lea.vmem %s6, 128
        %v6406 = vld [vmem:[%s6405] sm:$0xff]
        %v6407 = vld [vmem:[%s6405 + $0x8] sm:$0xff]
        %v6408 = vld [vmem:[%s6405 + $0x10] sm:$0xff]
        %v6409 = vld [vmem:[%s6405 + $0x18] sm:$0xff]
        %6410 = vrot.lane.b32.xlu0 %v5934, 3
        %v6411 = vpop.permute.xlu0 %6410
        %6412 = vrot.lane.b32.xlu0 %v5935, 3
        %v6413 = vpop.permute.xlu0 %6412
        %6414 = vrot.lane.b32.xlu0 %v5936, 3
        %v6415 = vpop.permute.xlu0 %6414
        %6416 = vrot.lane.b32.xlu0 %v5937, 3
        %v6417 = vpop.permute.xlu0 %6416
        %v6418 = vsel %vm4374, %v6411, %v6413
        %v6419 = vsel %vm4374, %v6415, %v6417
        %v6423 = vsel %vm3949, %v6406, 0
        %v6426 = vsel %vm3949, %v6407, 0
        %v6429 = vsel %vm3949, %v6408, 0
        %v6432 = vsel %vm3949, %v6409, 0
        %6434 = vmatprep.subr.mxu0 0.0
        %6435 = vmatpush1.msra.mxu0 %v6418
        %6436 = vmatprep.subr.mxu0 0.0
        %6437 = vmatpush1.msra.mxu0 %v6419
        %6438 = vmatprep.subr.mxu0 0.0
        %6439 = vmatpush1.msra.mxu0 0.0
        %6440 = vmatprep.subr.mxu0 0.0
        %6441 = vmatpush1.msra.mxu0 0.0
        %6442 = vmatprep.subr.mxu0 0.0
        %6443 = vmatpush1.msra.mxu0 0.0
        %6444 = vmatprep.subr.mxu0 0.0
        %6445 = vmatpush1.msra.mxu0 0.0
        %6446 = vmatprep.subr.mxu0 0.0
        %6447 = vmatpush1.msra.mxu0 0.0
        %6448 = vmatprep.subr.mxu0 0.0
        %6449 = vmatpush1.msra.mxu0 0.0
        %6450 = vmatprep.subr.mxu0 0.0
        %6451 = vmatpush1.msra.mxu0 0.0
        %6452 = vmatprep.subr.mxu0 0.0
        %6453 = vmatpush1.msra.mxu0 0.0
        %6454 = vmatprep.subr.mxu0 0.0
        %6455 = vmatpush1.msra.mxu0 0.0
        %6456 = vmatprep.subr.mxu0 0.0
        %6457 = vmatpush1.msra.mxu0 0.0
        %6458 = vmatprep.subr.mxu0 0.0
        %6459 = vmatpush1.msra.mxu0 0.0
        %6460 = vmatprep.subr.mxu0 0.0
        %6461 = vmatpush1.msra.mxu0 0.0
        %6462 = vmatprep.subr.mxu0 0.0
        %6463 = vmatpush1.msra.mxu0 0.0
        %6464 = vmatprep.subr.mxu0 0.0
        %6465 = vmatpush1.msra.mxu0 0.0
        %6466 = vmatprep.subr.mxu0 0.0
        %6467 = vmatpush1.msra.mxu0 0.0
        %6468 = vmatprep.subr.mxu0 0.0
        %6469 = vmatpush1.msra.mxu0 0.0
        %6470 = vmatprep.subr.mxu0 0.0
        %6471 = vmatpush1.msra.mxu0 0.0
        %6472 = vmatprep.subr.mxu0 0.0
        %6473 = vmatpush1.msra.mxu0 0.0
        %6474 = vmatprep.subr.mxu0 0.0
        %6475 = vmatpush1.msra.mxu0 0.0
        %6476 = vmatprep.subr.mxu0 0.0
        %6477 = vmatpush1.msra.mxu0 0.0
        %6478 = vmatprep.subr.mxu0 0.0
        %6479 = vmatpush1.msra.mxu0 0.0
        %6480 = vmatprep.subr.mxu0 0.0
        %6481 = vmatpush1.msra.mxu0 0.0
        %6482 = vmatprep.subr.mxu0 0.0
        %6483 = vmatpush1.msra.mxu0 0.0
        %6484 = vmatprep.subr.mxu0 0.0
        %6485 = vmatpush1.msra.mxu0 0.0
        %6486 = vmatprep.subr.mxu0 0.0
        %6487 = vmatpush1.msra.mxu0 0.0
        %6488 = vmatprep.subr.mxu0 0.0
        %6489 = vmatpush1.msra.mxu0 0.0
        %6490 = vmatprep.subr.mxu0 0.0
        %6491 = vmatpush1.msra.mxu0 0.0
        %6492 = vmatprep.subr.mxu0 0.0
        %6493 = vmatpush1.msra.mxu0 0.0
        %6494 = vmatprep.subr.mxu0 0.0
        %6495 = vmatpush1.msra.mxu0 0.0
        %6496 = vmatprep.subr.mxu0 0.0
        %6497 = vmatpush1.msra.mxu0 0.0
        %6498 = vmatprep.mubr.f32.mxu0 0.0
        %6499 = vmatmul.mubr.f32.gmra.mrb[0].mxu0 %v6423
        %v6500 = vpop.f32.mrb[0].mxu0
        %v6501 = vadd.f32 0.0, %v6500
        %v6502 = vpop.f32.mrb[0].mxu0
        %6503 = vmatprep.mubr.f32.mxu0 0.0
        %6504 = vmatmul.mubr.f32.gmra.mrb[0].mxu0 %v6426
        %v6505 = vpop.f32.mrb[0].mxu0
        %v6506 = vadd.f32 0.0, %v6505
        %v6507 = vpop.f32.mrb[0].mxu0
        %6508 = vmatprep.mubr.f32.mxu0 0.0
        %6509 = vmatmul.mubr.f32.gmra.mrb[0].mxu0 %v6429
        %v6510 = vpop.f32.mrb[0].mxu0
        %v6511 = vadd.f32 0.0, %v6510
        %v6512 = vpop.f32.mrb[0].mxu0
        %6513 = vmatprep.mubr.f32.mxu0 0.0
        %6514 = vmatmul.mubr.f32.gmra.mrb[0].mxu0 %v6432
        %v6515 = vpop.f32.mrb[0].mxu0
        %v6516 = vadd.f32 0.0, %v6515
        %v6517 = vpop.f32.mrb[0].mxu0
        %6518 = vdwg.mxu0
        %v6519 = vadd.f32 %v6401, %v6501
        %v6520 = vadd.f32 %v6402, %v6506
        %v6521 = vadd.f32 %v6403, %v6511
        %v6522 = vadd.f32 %v6404, %v6516
        %s6523 = scalar_lea.vmem %s6, 160
        %v6524 = vld [vmem:[%s6523] sm:$0xff]
        %v6525 = vld [vmem:[%s6523 + $0x8] sm:$0xff]
        %v6526 = vld [vmem:[%s6523 + $0x10] sm:$0xff]
        %v6527 = vld [vmem:[%s6523 + $0x18] sm:$0xff]
        %6528 = vrot.lane.b32.xlu0 %v5934, 2
        %v6529 = vpop.permute.xlu0 %6528
        %6530 = vrot.lane.b32.xlu0 %v5935, 2
        %v6531 = vpop.permute.xlu0 %6530
        %6532 = vrot.lane.b32.xlu0 %v5936, 2
        %v6533 = vpop.permute.xlu0 %6532
        %6534 = vrot.lane.b32.xlu0 %v5937, 2
        %v6535 = vpop.permute.xlu0 %6534
        %v6536 = vsel %vm4485, %v6529, %v6531
        %v6537 = vsel %vm4485, %v6533, %v6535
        %v6541 = vsel %vm3949, %v6524, 0
        %v6544 = vsel %vm3949, %v6525, 0
        %v6547 = vsel %vm3949, %v6526, 0
        %v6550 = vsel %vm3949, %v6527, 0
        %6552 = vmatprep.subr.mxu0 0.0
        %6553 = vmatpush1.msra.mxu0 %v6536
        %6554 = vmatprep.subr.mxu0 0.0
        %6555 = vmatpush1.msra.mxu0 %v6537
        %6556 = vmatprep.subr.mxu0 0.0
        %6557 = vmatpush1.msra.mxu0 0.0
        %6558 = vmatprep.subr.mxu0 0.0
        %6559 = vmatpush1.msra.mxu0 0.0
        %6560 = vmatprep.subr.mxu0 0.0
        %6561 = vmatpush1.msra.mxu0 0.0
        %6562 = vmatprep.subr.mxu0 0.0
        %6563 = vmatpush1.msra.mxu0 0.0
        %6564 = vmatprep.subr.mxu0 0.0
        %6565 = vmatpush1.msra.mxu0 0.0
        %6566 = vmatprep.subr.mxu0 0.0
        %6567 = vmatpush1.msra.mxu0 0.0
        %6568 = vmatprep.subr.mxu0 0.0
        %6569 = vmatpush1.msra.mxu0 0.0
        %6570 = vmatprep.subr.mxu0 0.0
        %6571 = vmatpush1.msra.mxu0 0.0
        %6572 = vmatprep.subr.mxu0 0.0
        %6573 = vmatpush1.msra.mxu0 0.0
        %6574 = vmatprep.subr.mxu0 0.0
        %6575 = vmatpush1.msra.mxu0 0.0
        %6576 = vmatprep.subr.mxu0 0.0
        %6577 = vmatpush1.msra.mxu0 0.0
        %6578 = vmatprep.subr.mxu0 0.0
        %6579 = vmatpush1.msra.mxu0 0.0
        %6580 = vmatprep.subr.mxu0 0.0
        %6581 = vmatpush1.msra.mxu0 0.0
        %6582 = vmatprep.subr.mxu0 0.0
        %6583 = vmatpush1.msra.mxu0 0.0
        %6584 = vmatprep.subr.mxu0 0.0
        %6585 = vmatpush1.msra.mxu0 0.0
        %6586 = vmatprep.subr.mxu0 0.0
        %6587 = vmatpush1.msra.mxu0 0.0
        %6588 = vmatprep.subr.mxu0 0.0
        %6589 = vmatpush1.msra.mxu0 0.0
        %6590 = vmatprep.subr.mxu0 0.0
        %6591 = vmatpush1.msra.mxu0 0.0
        %6592 = vmatprep.subr.mxu0 0.0
        %6593 = vmatpush1.msra.mxu0 0.0
        %6594 = vmatprep.subr.mxu0 0.0
        %6595 = vmatpush1.msra.mxu0 0.0
        %6596 = vmatprep.subr.mxu0 0.0
        %6597 = vmatpush1.msra.mxu0 0.0
        %6598 = vmatprep.subr.mxu0 0.0
        %6599 = vmatpush1.msra.mxu0 0.0
        %6600 = vmatprep.subr.mxu0 0.0
        %6601 = vmatpush1.msra.mxu0 0.0
        %6602 = vmatprep.subr.mxu0 0.0
        %6603 = vmatpush1.msra.mxu0 0.0
        %6604 = vmatprep.subr.mxu0 0.0
        %6605 = vmatpush1.msra.mxu0 0.0
        %6606 = vmatprep.subr.mxu0 0.0
        %6607 = vmatpush1.msra.mxu0 0.0
        %6608 = vmatprep.subr.mxu0 0.0
        %6609 = vmatpush1.msra.mxu0 0.0
        %6610 = vmatprep.subr.mxu0 0.0
        %6611 = vmatpush1.msra.mxu0 0.0
        %6612 = vmatprep.subr.mxu0 0.0
        %6613 = vmatpush1.msra.mxu0 0.0
        %6614 = vmatprep.subr.mxu0 0.0
        %6615 = vmatpush1.msra.mxu0 0.0
        %6616 = vmatprep.mubr.f32.mxu0 0.0
        %6617 = vmatmul.mubr.f32.gmra.mrb[0].mxu0 %v6541
        %v6618 = vpop.f32.mrb[0].mxu0
        %v6619 = vadd.f32 0.0, %v6618
        %v6620 = vpop.f32.mrb[0].mxu0
        %6621 = vmatprep.mubr.f32.mxu0 0.0
        %6622 = vmatmul.mubr.f32.gmra.mrb[0].mxu0 %v6544
        %v6623 = vpop.f32.mrb[0].mxu0
        %v6624 = vadd.f32 0.0, %v6623
        %v6625 = vpop.f32.mrb[0].mxu0
        %6626 = vmatprep.mubr.f32.mxu0 0.0
        %6627 = vmatmul.mubr.f32.gmra.mrb[0].mxu0 %v6547
        %v6628 = vpop.f32.mrb[0].mxu0
        %v6629 = vadd.f32 0.0, %v6628
        %v6630 = vpop.f32.mrb[0].mxu0
        %6631 = vmatprep.mubr.f32.mxu0 0.0
        %6632 = vmatmul.mubr.f32.gmra.mrb[0].mxu0 %v6550
        %v6633 = vpop.f32.mrb[0].mxu0
        %v6634 = vadd.f32 0.0, %v6633
        %v6635 = vpop.f32.mrb[0].mxu0
        %6636 = vdwg.mxu0
        %v6637 = vadd.f32 %v6519, %v6619
        %v6638 = vadd.f32 %v6520, %v6624
        %v6639 = vadd.f32 %v6521, %v6629
        %v6640 = vadd.f32 %v6522, %v6634
        %s6641 = scalar_lea.vmem %s6, 192
        %v6642 = vld [vmem:[%s6641] sm:$0xff]
        %v6643 = vld [vmem:[%s6641 + $0x8] sm:$0xff]
        %v6644 = vld [vmem:[%s6641 + $0x10] sm:$0xff]
        %v6645 = vld [vmem:[%s6641 + $0x18] sm:$0xff]
        %6646 = vrot.lane.b32.xlu0 %v5934, 1
        %v6647 = vpop.permute.xlu0 %6646
        %6648 = vrot.lane.b32.xlu0 %v5935, 1
        %v6649 = vpop.permute.xlu0 %6648
        %6650 = vrot.lane.b32.xlu0 %v5936, 1
        %v6651 = vpop.permute.xlu0 %6650
        %6652 = vrot.lane.b32.xlu0 %v5937, 1
        %v6653 = vpop.permute.xlu0 %6652
        %v6654 = vsel %vm4596, %v6647, %v6649
        %v6655 = vsel %vm4596, %v6651, %v6653
        %v6659 = vsel %vm3949, %v6642, 0
        %v6662 = vsel %vm3949, %v6643, 0
        %v6665 = vsel %vm3949, %v6644, 0
        %v6668 = vsel %vm3949, %v6645, 0
        %6670 = vmatprep.subr.mxu0 0.0
        %6671 = vmatpush1.msra.mxu0 %v6654
        %6672 = vmatprep.subr.mxu0 0.0
        %6673 = vmatpush1.msra.mxu0 %v6655
        %6674 = vmatprep.subr.mxu0 0.0
        %6675 = vmatpush1.msra.mxu0 0.0
        %6676 = vmatprep.subr.mxu0 0.0
        %6677 = vmatpush1.msra.mxu0 0.0
        %6678 = vmatprep.subr.mxu0 0.0
        %6679 = vmatpush1.msra.mxu0 0.0
        %6680 = vmatprep.subr.mxu0 0.0
        %6681 = vmatpush1.msra.mxu0 0.0
        %6682 = vmatprep.subr.mxu0 0.0
        %6683 = vmatpush1.msra.mxu0 0.0
        %6684 = vmatprep.subr.mxu0 0.0
        %6685 = vmatpush1.msra.mxu0 0.0
        %6686 = vmatprep.subr.mxu0 0.0
        %6687 = vmatpush1.msra.mxu0 0.0
        %6688 = vmatprep.subr.mxu0 0.0
        %6689 = vmatpush1.msra.mxu0 0.0
        %6690 = vmatprep.subr.mxu0 0.0
        %6691 = vmatpush1.msra.mxu0 0.0
        %6692 = vmatprep.subr.mxu0 0.0
        %6693 = vmatpush1.msra.mxu0 0.0
        %6694 = vmatprep.subr.mxu0 0.0
        %6695 = vmatpush1.msra.mxu0 0.0
        %6696 = vmatprep.subr.mxu0 0.0
        %6697 = vmatpush1.msra.mxu0 0.0
        %6698 = vmatprep.subr.mxu0 0.0
        %6699 = vmatpush1.msra.mxu0 0.0
        %6700 = vmatprep.subr.mxu0 0.0
        %6701 = vmatpush1.msra.mxu0 0.0
        %6702 = vmatprep.subr.mxu0 0.0
        %6703 = vmatpush1.msra.mxu0 0.0
        %6704 = vmatprep.subr.mxu0 0.0
        %6705 = vmatpush1.msra.mxu0 0.0
        %6706 = vmatprep.subr.mxu0 0.0
        %6707 = vmatpush1.msra.mxu0 0.0
        %6708 = vmatprep.subr.mxu0 0.0
        %6709 = vmatpush1.msra.mxu0 0.0
        %6710 = vmatprep.subr.mxu0 0.0
        %6711 = vmatpush1.msra.mxu0 0.0
        %6712 = vmatprep.subr.mxu0 0.0
        %6713 = vmatpush1.msra.mxu0 0.0
        %6714 = vmatprep.subr.mxu0 0.0
        %6715 = vmatpush1.msra.mxu0 0.0
        %6716 = vmatprep.subr.mxu0 0.0
        %6717 = vmatpush1.msra.mxu0 0.0
        %6718 = vmatprep.subr.mxu0 0.0
        %6719 = vmatpush1.msra.mxu0 0.0
        %6720 = vmatprep.subr.mxu0 0.0
        %6721 = vmatpush1.msra.mxu0 0.0
        %6722 = vmatprep.subr.mxu0 0.0
        %6723 = vmatpush1.msra.mxu0 0.0
        %6724 = vmatprep.subr.mxu0 0.0
        %6725 = vmatpush1.msra.mxu0 0.0
        %6726 = vmatprep.subr.mxu0 0.0
        %6727 = vmatpush1.msra.mxu0 0.0
        %6728 = vmatprep.subr.mxu0 0.0
        %6729 = vmatpush1.msra.mxu0 0.0
        %6730 = vmatprep.subr.mxu0 0.0
        %6731 = vmatpush1.msra.mxu0 0.0
        %6732 = vmatprep.subr.mxu0 0.0
        %6733 = vmatpush1.msra.mxu0 0.0
        %6734 = vmatprep.mubr.f32.mxu0 0.0
        %6735 = vmatmul.mubr.f32.gmra.mrb[0].mxu0 %v6659
        %v6736 = vpop.f32.mrb[0].mxu0
        %v6737 = vadd.f32 0.0, %v6736
        %v6738 = vpop.f32.mrb[0].mxu0
        %6739 = vmatprep.mubr.f32.mxu0 0.0
        %6740 = vmatmul.mubr.f32.gmra.mrb[0].mxu0 %v6662
        %v6741 = vpop.f32.mrb[0].mxu0
        %v6742 = vadd.f32 0.0, %v6741
        %v6743 = vpop.f32.mrb[0].mxu0
        %6744 = vmatprep.mubr.f32.mxu0 0.0
        %6745 = vmatmul.mubr.f32.gmra.mrb[0].mxu0 %v6665
        %v6746 = vpop.f32.mrb[0].mxu0
        %v6747 = vadd.f32 0.0, %v6746
        %v6748 = vpop.f32.mrb[0].mxu0
        %6749 = vmatprep.mubr.f32.mxu0 0.0
        %6750 = vmatmul.mubr.f32.gmra.mrb[0].mxu0 %v6668
        %v6751 = vpop.f32.mrb[0].mxu0
        %v6752 = vadd.f32 0.0, %v6751
        %v6753 = vpop.f32.mrb[0].mxu0
        %6754 = vdwg.mxu0
        %v6755 = vadd.f32 %v6637, %v6737
        %v6756 = vadd.f32 %v6638, %v6742
        %v6757 = vadd.f32 %v6639, %v6747
        %v6758 = vadd.f32 %v6640, %v6752
        %s6759 = scalar_lea.vmem %s6, 224
        %v6760 = vld [vmem:[%s6759] sm:$0xff]
        %v6761 = vld [vmem:[%s6759 + $0x8] sm:$0xff]
        %v6762 = vld [vmem:[%s6759 + $0x10] sm:$0xff]
        %v6763 = vld [vmem:[%s6759 + $0x18] sm:$0xff]
        %v6765 = vsel %vm3949, %v6760, 0
        %v6768 = vsel %vm3949, %v6761, 0
        %v6771 = vsel %vm3949, %v6762, 0
        %v6774 = vsel %vm3949, %v6763, 0
        %6776 = vmatprep.subr.mxu0 0.0
        %6777 = vmatpush1.msra.mxu0 %v5935
        %6778 = vmatprep.subr.mxu0 0.0
        %6779 = vmatpush1.msra.mxu0 %v5937
        %6780 = vmatprep.subr.mxu0 0.0
        %6781 = vmatpush1.msra.mxu0 0.0
        %6782 = vmatprep.subr.mxu0 0.0
        %6783 = vmatpush1.msra.mxu0 0.0
        %6784 = vmatprep.subr.mxu0 0.0
        %6785 = vmatpush1.msra.mxu0 0.0
        %6786 = vmatprep.subr.mxu0 0.0
        %6787 = vmatpush1.msra.mxu0 0.0
        %6788 = vmatprep.subr.mxu0 0.0
        %6789 = vmatpush1.msra.mxu0 0.0
        %6790 = vmatprep.subr.mxu0 0.0
        %6791 = vmatpush1.msra.mxu0 0.0
        %6792 = vmatprep.subr.mxu0 0.0
        %6793 = vmatpush1.msra.mxu0 0.0
        %6794 = vmatprep.subr.mxu0 0.0
        %6795 = vmatpush1.msra.mxu0 0.0
        %6796 = vmatprep.subr.mxu0 0.0
        %6797 = vmatpush1.msra.mxu0 0.0
        %6798 = vmatprep.subr.mxu0 0.0
        %6799 = vmatpush1.msra.mxu0 0.0
        %6800 = vmatprep.subr.mxu0 0.0
        %6801 = vmatpush1.msra.mxu0 0.0
        %6802 = vmatprep.subr.mxu0 0.0
        %6803 = vmatpush1.msra.mxu0 0.0
        %6804 = vmatprep.subr.mxu0 0.0
        %6805 = vmatpush1.msra.mxu0 0.0
        %6806 = vmatprep.subr.mxu0 0.0
        %6807 = vmatpush1.msra.mxu0 0.0
        %6808 = vmatprep.subr.mxu0 0.0
        %6809 = vmatpush1.msra.mxu0 0.0
        %6810 = vmatprep.subr.mxu0 0.0
        %6811 = vmatpush1.msra.mxu0 0.0
        %6812 = vmatprep.subr.mxu0 0.0
        %6813 = vmatpush1.msra.mxu0 0.0
        %6814 = vmatprep.subr.mxu0 0.0
        %6815 = vmatpush1.msra.mxu0 0.0
        %6816 = vmatprep.subr.mxu0 0.0
        %6817 = vmatpush1.msra.mxu0 0.0
        %6818 = vmatprep.subr.mxu0 0.0
        %6819 = vmatpush1.msra.mxu0 0.0
        %6820 = vmatprep.subr.mxu0 0.0
        %6821 = vmatpush1.msra.mxu0 0.0
        %6822 = vmatprep.subr.mxu0 0.0
        %6823 = vmatpush1.msra.mxu0 0.0
        %6824 = vmatprep.subr.mxu0 0.0
        %6825 = vmatpush1.msra.mxu0 0.0
        %6826 = vmatprep.subr.mxu0 0.0
        %6827 = vmatpush1.msra.mxu0 0.0
        %6828 = vmatprep.subr.mxu0 0.0
        %6829 = vmatpush1.msra.mxu0 0.0
        %6830 = vmatprep.subr.mxu0 0.0
        %6831 = vmatpush1.msra.mxu0 0.0
        %6832 = vmatprep.subr.mxu0 0.0
        %6833 = vmatpush1.msra.mxu0 0.0
        %6834 = vmatprep.subr.mxu0 0.0
        %6835 = vmatpush1.msra.mxu0 0.0
        %6836 = vmatprep.subr.mxu0 0.0
        %6837 = vmatpush1.msra.mxu0 0.0
        %6838 = vmatprep.subr.mxu0 0.0
        %6839 = vmatpush1.msra.mxu0 0.0
        %6840 = vmatprep.mubr.f32.mxu0 0.0
        %6841 = vmatmul.mubr.f32.gmra.mrb[0].mxu0 %v6765
        %v6842 = vpop.f32.mrb[0].mxu0
        %v6843 = vadd.f32 0.0, %v6842
        %v6844 = vpop.f32.mrb[0].mxu0
        %6845 = vmatprep.mubr.f32.mxu0 0.0
        %6846 = vmatmul.mubr.f32.gmra.mrb[0].mxu0 %v6768
        %v6847 = vpop.f32.mrb[0].mxu0
        %v6848 = vadd.f32 0.0, %v6847
        %v6849 = vpop.f32.mrb[0].mxu0
        %6850 = vmatprep.mubr.f32.mxu0 0.0
        %6851 = vmatmul.mubr.f32.gmra.mrb[0].mxu0 %v6771
        %v6852 = vpop.f32.mrb[0].mxu0
        %v6853 = vadd.f32 0.0, %v6852
        %v6854 = vpop.f32.mrb[0].mxu0
        %6855 = vmatprep.mubr.f32.mxu0 0.0
        %6856 = vmatmul.mubr.f32.gmra.mrb[0].mxu0 %v6774
        %v6857 = vpop.f32.mrb[0].mxu0
        %v6858 = vadd.f32 0.0, %v6857
        %v6859 = vpop.f32.mrb[0].mxu0
        %6860 = vdwg.mxu0
        %v6861 = vadd.f32 %v6755, %v6843
        %v6862 = vadd.f32 %v6756, %v6848
        %v6863 = vadd.f32 %v6757, %v6853
        %v6864 = vadd.f32 %v6758, %v6858
        %s6865 = scalar_lea.vmem %s6, 256
        %v6866 = vld [vmem:[%s6865] sm:$0xff]
        %v6867 = vld [vmem:[%s6865 + $0x8] sm:$0xff]
        %v6868 = vld [vmem:[%s6865 + $0x10] sm:$0xff]
        %v6869 = vld [vmem:[%s6865 + $0x18] sm:$0xff]
        %6870 = vrot.lane.b32.xlu0 %v5935, 127
        %v6871 = vpop.permute.xlu0 %6870
        %6872 = vrot.lane.b32.xlu0 %v5937, 127
        %v6873 = vpop.permute.xlu0 %6872
        %v6877 = vsel %vm3949, %v6866, 0
        %v6880 = vsel %vm3949, %v6867, 0
        %v6883 = vsel %vm3949, %v6868, 0
        %v6886 = vsel %vm3949, %v6869, 0
        %6888 = vmatprep.subr.mxu0 0.0
        %6889 = vmatpush1.msra.mxu0 %v6871
        %6890 = vmatprep.subr.mxu0 0.0
        %6891 = vmatpush1.msra.mxu0 %v6873
        %6892 = vmatprep.subr.mxu0 0.0
        %6893 = vmatpush1.msra.mxu0 0.0
        %6894 = vmatprep.subr.mxu0 0.0
        %6895 = vmatpush1.msra.mxu0 0.0
        %6896 = vmatprep.subr.mxu0 0.0
        %6897 = vmatpush1.msra.mxu0 0.0
        %6898 = vmatprep.subr.mxu0 0.0
        %6899 = vmatpush1.msra.mxu0 0.0
        %6900 = vmatprep.subr.mxu0 0.0
        %6901 = vmatpush1.msra.mxu0 0.0
        %6902 = vmatprep.subr.mxu0 0.0
        %6903 = vmatpush1.msra.mxu0 0.0
        %6904 = vmatprep.subr.mxu0 0.0
        %6905 = vmatpush1.msra.mxu0 0.0
        %6906 = vmatprep.subr.mxu0 0.0
        %6907 = vmatpush1.msra.mxu0 0.0
        %6908 = vmatprep.subr.mxu0 0.0
        %6909 = vmatpush1.msra.mxu0 0.0
        %6910 = vmatprep.subr.mxu0 0.0
        %6911 = vmatpush1.msra.mxu0 0.0
        %6912 = vmatprep.subr.mxu0 0.0
        %6913 = vmatpush1.msra.mxu0 0.0
        %6914 = vmatprep.subr.mxu0 0.0
        %6915 = vmatpush1.msra.mxu0 0.0
        %6916 = vmatprep.subr.mxu0 0.0
        %6917 = vmatpush1.msra.mxu0 0.0
        %6918 = vmatprep.subr.mxu0 0.0
        %6919 = vmatpush1.msra.mxu0 0.0
        %6920 = vmatprep.subr.mxu0 0.0
        %6921 = vmatpush1.msra.mxu0 0.0
        %6922 = vmatprep.subr.mxu0 0.0
        %6923 = vmatpush1.msra.mxu0 0.0
        %6924 = vmatprep.subr.mxu0 0.0
        %6925 = vmatpush1.msra.mxu0 0.0
        %6926 = vmatprep.subr.mxu0 0.0
        %6927 = vmatpush1.msra.mxu0 0.0
        %6928 = vmatprep.subr.mxu0 0.0
        %6929 = vmatpush1.msra.mxu0 0.0
        %6930 = vmatprep.subr.mxu0 0.0
        %6931 = vmatpush1.msra.mxu0 0.0
        %6932 = vmatprep.subr.mxu0 0.0
        %6933 = vmatpush1.msra.mxu0 0.0
        %6934 = vmatprep.subr.mxu0 0.0
        %6935 = vmatpush1.msra.mxu0 0.0
        %6936 = vmatprep.subr.mxu0 0.0
        %6937 = vmatpush1.msra.mxu0 0.0
        %6938 = vmatprep.subr.mxu0 0.0
        %6939 = vmatpush1.msra.mxu0 0.0
        %6940 = vmatprep.subr.mxu0 0.0
        %6941 = vmatpush1.msra.mxu0 0.0
        %6942 = vmatprep.subr.mxu0 0.0
        %6943 = vmatpush1.msra.mxu0 0.0
        %6944 = vmatprep.subr.mxu0 0.0
        %6945 = vmatpush1.msra.mxu0 0.0
        %6946 = vmatprep.subr.mxu0 0.0
        %6947 = vmatpush1.msra.mxu0 0.0
        %6948 = vmatprep.subr.mxu0 0.0
        %6949 = vmatpush1.msra.mxu0 0.0
        %6950 = vmatprep.subr.mxu0 0.0
        %6951 = vmatpush1.msra.mxu0 0.0
        %6952 = vmatprep.mubr.f32.mxu0 0.0
        %6953 = vmatmul.mubr.f32.gmra.mrb[0].mxu0 %v6877
        %v6954 = vpop.f32.mrb[0].mxu0
        %v6955 = vadd.f32 0.0, %v6954
        %v6956 = vpop.f32.mrb[0].mxu0
        %6957 = vmatprep.mubr.f32.mxu0 0.0
        %6958 = vmatmul.mubr.f32.gmra.mrb[0].mxu0 %v6880
        %v6959 = vpop.f32.mrb[0].mxu0
        %v6960 = vadd.f32 0.0, %v6959
        %v6961 = vpop.f32.mrb[0].mxu0
        %6962 = vmatprep.mubr.f32.mxu0 0.0
        %6963 = vmatmul.mubr.f32.gmra.mrb[0].mxu0 %v6883
        %v6964 = vpop.f32.mrb[0].mxu0
        %v6965 = vadd.f32 0.0, %v6964
        %v6966 = vpop.f32.mrb[0].mxu0
        %6967 = vmatprep.mubr.f32.mxu0 0.0
        %6968 = vmatmul.mubr.f32.gmra.mrb[0].mxu0 %v6886
        %v6969 = vpop.f32.mrb[0].mxu0
        %v6970 = vadd.f32 0.0, %v6969
        %v6971 = vpop.f32.mrb[0].mxu0
        %6972 = vdwg.mxu0
        %v6973 = vadd.f32 %v6861, %v6955
        %v6974 = vadd.f32 %v6862, %v6960
        %v6975 = vadd.f32 %v6863, %v6965
        %v6976 = vadd.f32 %v6864, %v6970
        %s6977 = scalar_lea.vmem %s6, 288
        %v6978 = vld [vmem:[%s6977] sm:$0xff]
        %v6979 = vld [vmem:[%s6977 + $0x8] sm:$0xff]
        %v6980 = vld [vmem:[%s6977 + $0x10] sm:$0xff]
        %v6981 = vld [vmem:[%s6977 + $0x18] sm:$0xff]
        %6982 = vrot.lane.b32.xlu0 %v5935, 126
        %v6983 = vpop.permute.xlu0 %6982
        %6984 = vrot.lane.b32.xlu0 %v5937, 126
        %v6985 = vpop.permute.xlu0 %6984
        %v6989 = vsel %vm3949, %v6978, 0
        %v6992 = vsel %vm3949, %v6979, 0
        %v6995 = vsel %vm3949, %v6980, 0
        %v6998 = vsel %vm3949, %v6981, 0
        %7000 = vmatprep.subr.mxu0 0.0
        %7001 = vmatpush1.msra.mxu0 %v6983
        %7002 = vmatprep.subr.mxu0 0.0
        %7003 = vmatpush1.msra.mxu0 %v6985
        %7004 = vmatprep.subr.mxu0 0.0
        %7005 = vmatpush1.msra.mxu0 0.0
        %7006 = vmatprep.subr.mxu0 0.0
        %7007 = vmatpush1.msra.mxu0 0.0
        %7008 = vmatprep.subr.mxu0 0.0
        %7009 = vmatpush1.msra.mxu0 0.0
        %7010 = vmatprep.subr.mxu0 0.0
        %7011 = vmatpush1.msra.mxu0 0.0
        %7012 = vmatprep.subr.mxu0 0.0
        %7013 = vmatpush1.msra.mxu0 0.0
        %7014 = vmatprep.subr.mxu0 0.0
        %7015 = vmatpush1.msra.mxu0 0.0
        %7016 = vmatprep.subr.mxu0 0.0
        %7017 = vmatpush1.msra.mxu0 0.0
        %7018 = vmatprep.subr.mxu0 0.0
        %7019 = vmatpush1.msra.mxu0 0.0
        %7020 = vmatprep.subr.mxu0 0.0
        %7021 = vmatpush1.msra.mxu0 0.0
        %7022 = vmatprep.subr.mxu0 0.0
        %7023 = vmatpush1.msra.mxu0 0.0
        %7024 = vmatprep.subr.mxu0 0.0
        %7025 = vmatpush1.msra.mxu0 0.0
        %7026 = vmatprep.subr.mxu0 0.0
        %7027 = vmatpush1.msra.mxu0 0.0
        %7028 = vmatprep.subr.mxu0 0.0
        %7029 = vmatpush1.msra.mxu0 0.0
        %7030 = vmatprep.subr.mxu0 0.0
        %7031 = vmatpush1.msra.mxu0 0.0
        %7032 = vmatprep.subr.mxu0 0.0
        %7033 = vmatpush1.msra.mxu0 0.0
        %7034 = vmatprep.subr.mxu0 0.0
        %7035 = vmatpush1.msra.mxu0 0.0
        %7036 = vmatprep.subr.mxu0 0.0
        %7037 = vmatpush1.msra.mxu0 0.0
        %7038 = vmatprep.subr.mxu0 0.0
        %7039 = vmatpush1.msra.mxu0 0.0
        %7040 = vmatprep.subr.mxu0 0.0
        %7041 = vmatpush1.msra.mxu0 0.0
        %7042 = vmatprep.subr.mxu0 0.0
        %7043 = vmatpush1.msra.mxu0 0.0
        %7044 = vmatprep.subr.mxu0 0.0
        %7045 = vmatpush1.msra.mxu0 0.0
        %7046 = vmatprep.subr.mxu0 0.0
        %7047 = vmatpush1.msra.mxu0 0.0
        %7048 = vmatprep.subr.mxu0 0.0
        %7049 = vmatpush1.msra.mxu0 0.0
        %7050 = vmatprep.subr.mxu0 0.0
        %7051 = vmatpush1.msra.mxu0 0.0
        %7052 = vmatprep.subr.mxu0 0.0
        %7053 = vmatpush1.msra.mxu0 0.0
        %7054 = vmatprep.subr.mxu0 0.0
        %7055 = vmatpush1.msra.mxu0 0.0
        %7056 = vmatprep.subr.mxu0 0.0
        %7057 = vmatpush1.msra.mxu0 0.0
        %7058 = vmatprep.subr.mxu0 0.0
        %7059 = vmatpush1.msra.mxu0 0.0
        %7060 = vmatprep.subr.mxu0 0.0
        %7061 = vmatpush1.msra.mxu0 0.0
        %7062 = vmatprep.subr.mxu0 0.0
        %7063 = vmatpush1.msra.mxu0 0.0
        %7064 = vmatprep.mubr.f32.mxu0 0.0
        %7065 = vmatmul.mubr.f32.gmra.mrb[0].mxu0 %v6989
        %v7066 = vpop.f32.mrb[0].mxu0
        %v7067 = vadd.f32 0.0, %v7066
        %v7068 = vpop.f32.mrb[0].mxu0
        %7069 = vmatprep.mubr.f32.mxu0 0.0
        %7070 = vmatmul.mubr.f32.gmra.mrb[0].mxu0 %v6992
        %v7071 = vpop.f32.mrb[0].mxu0
        %v7072 = vadd.f32 0.0, %v7071
        %v7073 = vpop.f32.mrb[0].mxu0
        %7074 = vmatprep.mubr.f32.mxu0 0.0
        %7075 = vmatmul.mubr.f32.gmra.mrb[0].mxu0 %v6995
        %v7076 = vpop.f32.mrb[0].mxu0
        %v7077 = vadd.f32 0.0, %v7076
        %v7078 = vpop.f32.mrb[0].mxu0
        %7079 = vmatprep.mubr.f32.mxu0 0.0
        %7080 = vmatmul.mubr.f32.gmra.mrb[0].mxu0 %v6998
        %v7081 = vpop.f32.mrb[0].mxu0
        %v7082 = vadd.f32 0.0, %v7081
        %v7083 = vpop.f32.mrb[0].mxu0
        %7084 = vdwg.mxu0
        %v7085 = vadd.f32 %v6973, %v7067
        %v7086 = vadd.f32 %v6974, %v7072
        %v7087 = vadd.f32 %v6975, %v7077
        %v7088 = vadd.f32 %v6976, %v7082
        %s7089 = scalar_lea.vmem %s6, 320
        %v7090 = vld [vmem:[%s7089] sm:$0xff]
        %v7091 = vld [vmem:[%s7089 + $0x8] sm:$0xff]
        %v7092 = vld [vmem:[%s7089 + $0x10] sm:$0xff]
        %v7093 = vld [vmem:[%s7089 + $0x18] sm:$0xff]
        %7094 = vrot.lane.b32.xlu0 %v5935, 125
        %v7095 = vpop.permute.xlu0 %7094
        %7096 = vrot.lane.b32.xlu0 %v5937, 125
        %v7097 = vpop.permute.xlu0 %7096
        %v7101 = vsel %vm3949, %v7090, 0
        %v7104 = vsel %vm3949, %v7091, 0
        %v7107 = vsel %vm3949, %v7092, 0
        %v7110 = vsel %vm3949, %v7093, 0
        %7112 = vmatprep.subr.mxu0 0.0
        %7113 = vmatpush1.msra.mxu0 %v7095
        %7114 = vmatprep.subr.mxu0 0.0
        %7115 = vmatpush1.msra.mxu0 %v7097
        %7116 = vmatprep.subr.mxu0 0.0
        %7117 = vmatpush1.msra.mxu0 0.0
        %7118 = vmatprep.subr.mxu0 0.0
        %7119 = vmatpush1.msra.mxu0 0.0
        %7120 = vmatprep.subr.mxu0 0.0
        %7121 = vmatpush1.msra.mxu0 0.0
        %7122 = vmatprep.subr.mxu0 0.0
        %7123 = vmatpush1.msra.mxu0 0.0
        %7124 = vmatprep.subr.mxu0 0.0
        %7125 = vmatpush1.msra.mxu0 0.0
        %7126 = vmatprep.subr.mxu0 0.0
        %7127 = vmatpush1.msra.mxu0 0.0
        %7128 = vmatprep.subr.mxu0 0.0
        %7129 = vmatpush1.msra.mxu0 0.0
        %7130 = vmatprep.subr.mxu0 0.0
        %7131 = vmatpush1.msra.mxu0 0.0
        %7132 = vmatprep.subr.mxu0 0.0
        %7133 = vmatpush1.msra.mxu0 0.0
        %7134 = vmatprep.subr.mxu0 0.0
        %7135 = vmatpush1.msra.mxu0 0.0
        %7136 = vmatprep.subr.mxu0 0.0
        %7137 = vmatpush1.msra.mxu0 0.0
        %7138 = vmatprep.subr.mxu0 0.0
        %7139 = vmatpush1.msra.mxu0 0.0
        %7140 = vmatprep.subr.mxu0 0.0
        %7141 = vmatpush1.msra.mxu0 0.0
        %7142 = vmatprep.subr.mxu0 0.0
        %7143 = vmatpush1.msra.mxu0 0.0
        %7144 = vmatprep.subr.mxu0 0.0
        %7145 = vmatpush1.msra.mxu0 0.0
        %7146 = vmatprep.subr.mxu0 0.0
        %7147 = vmatpush1.msra.mxu0 0.0
        %7148 = vmatprep.subr.mxu0 0.0
        %7149 = vmatpush1.msra.mxu0 0.0
        %7150 = vmatprep.subr.mxu0 0.0
        %7151 = vmatpush1.msra.mxu0 0.0
        %7152 = vmatprep.subr.mxu0 0.0
        %7153 = vmatpush1.msra.mxu0 0.0
        %7154 = vmatprep.subr.mxu0 0.0
        %7155 = vmatpush1.msra.mxu0 0.0
        %7156 = vmatprep.subr.mxu0 0.0
        %7157 = vmatpush1.msra.mxu0 0.0
        %7158 = vmatprep.subr.mxu0 0.0
        %7159 = vmatpush1.msra.mxu0 0.0
        %7160 = vmatprep.subr.mxu0 0.0
        %7161 = vmatpush1.msra.mxu0 0.0
        %7162 = vmatprep.subr.mxu0 0.0
        %7163 = vmatpush1.msra.mxu0 0.0
        %7164 = vmatprep.subr.mxu0 0.0
        %7165 = vmatpush1.msra.mxu0 0.0
        %7166 = vmatprep.subr.mxu0 0.0
        %7167 = vmatpush1.msra.mxu0 0.0
        %7168 = vmatprep.subr.mxu0 0.0
        %7169 = vmatpush1.msra.mxu0 0.0
        %7170 = vmatprep.subr.mxu0 0.0
        %7171 = vmatpush1.msra.mxu0 0.0
        %7172 = vmatprep.subr.mxu0 0.0
        %7173 = vmatpush1.msra.mxu0 0.0
        %7174 = vmatprep.subr.mxu0 0.0
        %7175 = vmatpush1.msra.mxu0 0.0
        %7176 = vmatprep.mubr.f32.mxu0 0.0
        %7177 = vmatmul.mubr.f32.gmra.mrb[0].mxu0 %v7101
        %v7178 = vpop.f32.mrb[0].mxu0
        %v7179 = vadd.f32 0.0, %v7178
        %v7180 = vpop.f32.mrb[0].mxu0
        %7181 = vmatprep.mubr.f32.mxu0 0.0
        %7182 = vmatmul.mubr.f32.gmra.mrb[0].mxu0 %v7104
        %v7183 = vpop.f32.mrb[0].mxu0
        %v7184 = vadd.f32 0.0, %v7183
        %v7185 = vpop.f32.mrb[0].mxu0
        %7186 = vmatprep.mubr.f32.mxu0 0.0
        %7187 = vmatmul.mubr.f32.gmra.mrb[0].mxu0 %v7107
        %v7188 = vpop.f32.mrb[0].mxu0
        %v7189 = vadd.f32 0.0, %v7188
        %v7190 = vpop.f32.mrb[0].mxu0
        %7191 = vmatprep.mubr.f32.mxu0 0.0
        %7192 = vmatmul.mubr.f32.gmra.mrb[0].mxu0 %v7110
        %v7193 = vpop.f32.mrb[0].mxu0
        %v7194 = vadd.f32 0.0, %v7193
        %v7195 = vpop.f32.mrb[0].mxu0
        %7196 = vdwg.mxu0
        %v7197 = vadd.f32 %v7085, %v7179
        %v7198 = vadd.f32 %v7086, %v7184
        %v7199 = vadd.f32 %v7087, %v7189
        %v7200 = vadd.f32 %v7088, %v7194
        %s7201 = scalar_lea.vmem %s6, 352
        %v7202 = vld [vmem:[%s7201] sm:$0xff]
        %v7203 = vld [vmem:[%s7201 + $0x8] sm:$0xff]
        %v7204 = vld [vmem:[%s7201 + $0x10] sm:$0xff]
        %v7205 = vld [vmem:[%s7201 + $0x18] sm:$0xff]
        %7206 = vrot.lane.b32.xlu0 %v5935, 124
        %v7207 = vpop.permute.xlu0 %7206
        %7208 = vrot.lane.b32.xlu0 %v5937, 124
        %v7209 = vpop.permute.xlu0 %7208
        %v7213 = vsel %vm3949, %v7202, 0
        %v7216 = vsel %vm3949, %v7203, 0
        %v7219 = vsel %vm3949, %v7204, 0
        %v7222 = vsel %vm3949, %v7205, 0
        %7224 = vmatprep.subr.mxu0 0.0
        %7225 = vmatpush1.msra.mxu0 %v7207
        %7226 = vmatprep.subr.mxu0 0.0
        %7227 = vmatpush1.msra.mxu0 %v7209
        %7228 = vmatprep.subr.mxu0 0.0
        %7229 = vmatpush1.msra.mxu0 0.0
        %7230 = vmatprep.subr.mxu0 0.0
        %7231 = vmatpush1.msra.mxu0 0.0
        %7232 = vmatprep.subr.mxu0 0.0
        %7233 = vmatpush1.msra.mxu0 0.0
        %7234 = vmatprep.subr.mxu0 0.0
        %7235 = vmatpush1.msra.mxu0 0.0
        %7236 = vmatprep.subr.mxu0 0.0
        %7237 = vmatpush1.msra.mxu0 0.0
        %7238 = vmatprep.subr.mxu0 0.0
        %7239 = vmatpush1.msra.mxu0 0.0
        %7240 = vmatprep.subr.mxu0 0.0
        %7241 = vmatpush1.msra.mxu0 0.0
        %7242 = vmatprep.subr.mxu0 0.0
        %7243 = vmatpush1.msra.mxu0 0.0
        %7244 = vmatprep.subr.mxu0 0.0
        %7245 = vmatpush1.msra.mxu0 0.0
        %7246 = vmatprep.subr.mxu0 0.0
        %7247 = vmatpush1.msra.mxu0 0.0
        %7248 = vmatprep.subr.mxu0 0.0
        %7249 = vmatpush1.msra.mxu0 0.0
        %7250 = vmatprep.subr.mxu0 0.0
        %7251 = vmatpush1.msra.mxu0 0.0
        %7252 = vmatprep.subr.mxu0 0.0
        %7253 = vmatpush1.msra.mxu0 0.0
        %7254 = vmatprep.subr.mxu0 0.0
        %7255 = vmatpush1.msra.mxu0 0.0
        %7256 = vmatprep.subr.mxu0 0.0
        %7257 = vmatpush1.msra.mxu0 0.0
        %7258 = vmatprep.subr.mxu0 0.0
        %7259 = vmatpush1.msra.mxu0 0.0
        %7260 = vmatprep.subr.mxu0 0.0
        %7261 = vmatpush1.msra.mxu0 0.0
        %7262 = vmatprep.subr.mxu0 0.0
        %7263 = vmatpush1.msra.mxu0 0.0
        %7264 = vmatprep.subr.mxu0 0.0
        %7265 = vmatpush1.msra.mxu0 0.0
        %7266 = vmatprep.subr.mxu0 0.0
        %7267 = vmatpush1.msra.mxu0 0.0
        %7268 = vmatprep.subr.mxu0 0.0
        %7269 = vmatpush1.msra.mxu0 0.0
        %7270 = vmatprep.subr.mxu0 0.0
        %7271 = vmatpush1.msra.mxu0 0.0
        %7272 = vmatprep.subr.mxu0 0.0
        %7273 = vmatpush1.msra.mxu0 0.0
        %7274 = vmatprep.subr.mxu0 0.0
        %7275 = vmatpush1.msra.mxu0 0.0
        %7276 = vmatprep.subr.mxu0 0.0
        %7277 = vmatpush1.msra.mxu0 0.0
        %7278 = vmatprep.subr.mxu0 0.0
        %7279 = vmatpush1.msra.mxu0 0.0
        %7280 = vmatprep.subr.mxu0 0.0
        %7281 = vmatpush1.msra.mxu0 0.0
        %7282 = vmatprep.subr.mxu0 0.0
        %7283 = vmatpush1.msra.mxu0 0.0
        %7284 = vmatprep.subr.mxu0 0.0
        %7285 = vmatpush1.msra.mxu0 0.0
        %7286 = vmatprep.subr.mxu0 0.0
        %7287 = vmatpush1.msra.mxu0 0.0
        %7288 = vmatprep.mubr.f32.mxu0 0.0
        %7289 = vmatmul.mubr.f32.gmra.mrb[0].mxu0 %v7213
        %v7290 = vpop.f32.mrb[0].mxu0
        %v7291 = vadd.f32 0.0, %v7290
        %v7292 = vpop.f32.mrb[0].mxu0
        %7293 = vmatprep.mubr.f32.mxu0 0.0
        %7294 = vmatmul.mubr.f32.gmra.mrb[0].mxu0 %v7216
        %v7295 = vpop.f32.mrb[0].mxu0
        %v7296 = vadd.f32 0.0, %v7295
        %v7297 = vpop.f32.mrb[0].mxu0
        %7298 = vmatprep.mubr.f32.mxu0 0.0
        %7299 = vmatmul.mubr.f32.gmra.mrb[0].mxu0 %v7219
        %v7300 = vpop.f32.mrb[0].mxu0
        %v7301 = vadd.f32 0.0, %v7300
        %v7302 = vpop.f32.mrb[0].mxu0
        %7303 = vmatprep.mubr.f32.mxu0 0.0
        %7304 = vmatmul.mubr.f32.gmra.mrb[0].mxu0 %v7222
        %v7305 = vpop.f32.mrb[0].mxu0
        %v7306 = vadd.f32 0.0, %v7305
        %v7307 = vpop.f32.mrb[0].mxu0
        %7308 = vdwg.mxu0
        %v7309 = vadd.f32 %v7197, %v7291
        %v7310 = vadd.f32 %v7198, %v7296
        %v7311 = vadd.f32 %v7199, %v7301
        %v7312 = vadd.f32 %v7200, %v7306
        %s7313 = scalar_lea.vmem %s6, 384
        %v7314 = vld [vmem:[%s7313] sm:$0xff]
        %v7315 = vld [vmem:[%s7313 + $0x8] sm:$0xff]
        %v7316 = vld [vmem:[%s7313 + $0x10] sm:$0xff]
        %v7317 = vld [vmem:[%s7313 + $0x18] sm:$0xff]
        %7318 = vrot.lane.b32.xlu0 %v5935, 123
        %v7319 = vpop.permute.xlu0 %7318
        %7320 = vrot.lane.b32.xlu0 %v5937, 123
        %v7321 = vpop.permute.xlu0 %7320
        %v7325 = vsel %vm3949, %v7314, 0
        %v7328 = vsel %vm3949, %v7315, 0
        %v7331 = vsel %vm3949, %v7316, 0
        %v7334 = vsel %vm3949, %v7317, 0
        %7336 = vmatprep.subr.mxu0 0.0
        %7337 = vmatpush1.msra.mxu0 %v7319
        %7338 = vmatprep.subr.mxu0 0.0
        %7339 = vmatpush1.msra.mxu0 %v7321
        %7340 = vmatprep.subr.mxu0 0.0
        %7341 = vmatpush1.msra.mxu0 0.0
        %7342 = vmatprep.subr.mxu0 0.0
        %7343 = vmatpush1.msra.mxu0 0.0
        %7344 = vmatprep.subr.mxu0 0.0
        %7345 = vmatpush1.msra.mxu0 0.0
        %7346 = vmatprep.subr.mxu0 0.0
        %7347 = vmatpush1.msra.mxu0 0.0
        %7348 = vmatprep.subr.mxu0 0.0
        %7349 = vmatpush1.msra.mxu0 0.0
        %7350 = vmatprep.subr.mxu0 0.0
        %7351 = vmatpush1.msra.mxu0 0.0
        %7352 = vmatprep.subr.mxu0 0.0
        %7353 = vmatpush1.msra.mxu0 0.0
        %7354 = vmatprep.subr.mxu0 0.0
        %7355 = vmatpush1.msra.mxu0 0.0
        %7356 = vmatprep.subr.mxu0 0.0
        %7357 = vmatpush1.msra.mxu0 0.0
        %7358 = vmatprep.subr.mxu0 0.0
        %7359 = vmatpush1.msra.mxu0 0.0
        %7360 = vmatprep.subr.mxu0 0.0
        %7361 = vmatpush1.msra.mxu0 0.0
        %7362 = vmatprep.subr.mxu0 0.0
        %7363 = vmatpush1.msra.mxu0 0.0
        %7364 = vmatprep.subr.mxu0 0.0
        %7365 = vmatpush1.msra.mxu0 0.0
        %7366 = vmatprep.subr.mxu0 0.0
        %7367 = vmatpush1.msra.mxu0 0.0
        %7368 = vmatprep.subr.mxu0 0.0
        %7369 = vmatpush1.msra.mxu0 0.0
        %7370 = vmatprep.subr.mxu0 0.0
        %7371 = vmatpush1.msra.mxu0 0.0
        %7372 = vmatprep.subr.mxu0 0.0
        %7373 = vmatpush1.msra.mxu0 0.0
        %7374 = vmatprep.subr.mxu0 0.0
        %7375 = vmatpush1.msra.mxu0 0.0
        %7376 = vmatprep.subr.mxu0 0.0
        %7377 = vmatpush1.msra.mxu0 0.0
        %7378 = vmatprep.subr.mxu0 0.0
        %7379 = vmatpush1.msra.mxu0 0.0
        %7380 = vmatprep.subr.mxu0 0.0
        %7381 = vmatpush1.msra.mxu0 0.0
        %7382 = vmatprep.subr.mxu0 0.0
        %7383 = vmatpush1.msra.mxu0 0.0
        %7384 = vmatprep.subr.mxu0 0.0
        %7385 = vmatpush1.msra.mxu0 0.0
        %7386 = vmatprep.subr.mxu0 0.0
        %7387 = vmatpush1.msra.mxu0 0.0
        %7388 = vmatprep.subr.mxu0 0.0
        %7389 = vmatpush1.msra.mxu0 0.0
        %7390 = vmatprep.subr.mxu0 0.0
        %7391 = vmatpush1.msra.mxu0 0.0
        %7392 = vmatprep.subr.mxu0 0.0
        %7393 = vmatpush1.msra.mxu0 0.0
        %7394 = vmatprep.subr.mxu0 0.0
        %7395 = vmatpush1.msra.mxu0 0.0
        %7396 = vmatprep.subr.mxu0 0.0
        %7397 = vmatpush1.msra.mxu0 0.0
        %7398 = vmatprep.subr.mxu0 0.0
        %7399 = vmatpush1.msra.mxu0 0.0
        %7400 = vmatprep.mubr.f32.mxu0 0.0
        %7401 = vmatmul.mubr.f32.gmra.mrb[0].mxu0 %v7325
        %v7402 = vpop.f32.mrb[0].mxu0
        %v7403 = vadd.f32 0.0, %v7402
        %v7404 = vpop.f32.mrb[0].mxu0
        %7405 = vmatprep.mubr.f32.mxu0 0.0
        %7406 = vmatmul.mubr.f32.gmra.mrb[0].mxu0 %v7328
        %v7407 = vpop.f32.mrb[0].mxu0
        %v7408 = vadd.f32 0.0, %v7407
        %v7409 = vpop.f32.mrb[0].mxu0
        %7410 = vmatprep.mubr.f32.mxu0 0.0
        %7411 = vmatmul.mubr.f32.gmra.mrb[0].mxu0 %v7331
        %v7412 = vpop.f32.mrb[0].mxu0
        %v7413 = vadd.f32 0.0, %v7412
        %v7414 = vpop.f32.mrb[0].mxu0
        %7415 = vmatprep.mubr.f32.mxu0 0.0
        %7416 = vmatmul.mubr.f32.gmra.mrb[0].mxu0 %v7334
        %v7417 = vpop.f32.mrb[0].mxu0
        %v7418 = vadd.f32 0.0, %v7417
        %v7419 = vpop.f32.mrb[0].mxu0
        %7420 = vdwg.mxu0
        %v7421 = vadd.f32 %v7309, %v7403
        %v7422 = vadd.f32 %v7310, %v7408
        %v7423 = vadd.f32 %v7311, %v7413
        %v7424 = vadd.f32 %v7312, %v7418
        %s7425 = scalar_lea.vmem %s6, 416
        %v7426 = vld [vmem:[%s7425] sm:$0xff]
        %v7427 = vld [vmem:[%s7425 + $0x8] sm:$0xff]
        %v7428 = vld [vmem:[%s7425 + $0x10] sm:$0xff]
        %v7429 = vld [vmem:[%s7425 + $0x18] sm:$0xff]
        %7430 = vrot.lane.b32.xlu0 %v5935, 122
        %v7431 = vpop.permute.xlu0 %7430
        %7432 = vrot.lane.b32.xlu0 %v5937, 122
        %v7433 = vpop.permute.xlu0 %7432
        %v7437 = vsel %vm3949, %v7426, 0
        %v7440 = vsel %vm3949, %v7427, 0
        %v7443 = vsel %vm3949, %v7428, 0
        %v7446 = vsel %vm3949, %v7429, 0
        %7448 = vmatprep.subr.mxu0 0.0
        %7449 = vmatpush1.msra.mxu0 %v7431
        %7450 = vmatprep.subr.mxu0 0.0
        %7451 = vmatpush1.msra.mxu0 %v7433
        %7452 = vmatprep.subr.mxu0 0.0
        %7453 = vmatpush1.msra.mxu0 0.0
        %7454 = vmatprep.subr.mxu0 0.0
        %7455 = vmatpush1.msra.mxu0 0.0
        %7456 = vmatprep.subr.mxu0 0.0
        %7457 = vmatpush1.msra.mxu0 0.0
        %7458 = vmatprep.subr.mxu0 0.0
        %7459 = vmatpush1.msra.mxu0 0.0
        %7460 = vmatprep.subr.mxu0 0.0
        %7461 = vmatpush1.msra.mxu0 0.0
        %7462 = vmatprep.subr.mxu0 0.0
        %7463 = vmatpush1.msra.mxu0 0.0
        %7464 = vmatprep.subr.mxu0 0.0
        %7465 = vmatpush1.msra.mxu0 0.0
        %7466 = vmatprep.subr.mxu0 0.0
        %7467 = vmatpush1.msra.mxu0 0.0
        %7468 = vmatprep.subr.mxu0 0.0
        %7469 = vmatpush1.msra.mxu0 0.0
        %7470 = vmatprep.subr.mxu0 0.0
        %7471 = vmatpush1.msra.mxu0 0.0
        %7472 = vmatprep.subr.mxu0 0.0
        %7473 = vmatpush1.msra.mxu0 0.0
        %7474 = vmatprep.subr.mxu0 0.0
        %7475 = vmatpush1.msra.mxu0 0.0
        %7476 = vmatprep.subr.mxu0 0.0
        %7477 = vmatpush1.msra.mxu0 0.0
        %7478 = vmatprep.subr.mxu0 0.0
        %7479 = vmatpush1.msra.mxu0 0.0
        %7480 = vmatprep.subr.mxu0 0.0
        %7481 = vmatpush1.msra.mxu0 0.0
        %7482 = vmatprep.subr.mxu0 0.0
        %7483 = vmatpush1.msra.mxu0 0.0
        %7484 = vmatprep.subr.mxu0 0.0
        %7485 = vmatpush1.msra.mxu0 0.0
        %7486 = vmatprep.subr.mxu0 0.0
        %7487 = vmatpush1.msra.mxu0 0.0
        %7488 = vmatprep.subr.mxu0 0.0
        %7489 = vmatpush1.msra.mxu0 0.0
        %7490 = vmatprep.subr.mxu0 0.0
        %7491 = vmatpush1.msra.mxu0 0.0
        %7492 = vmatprep.subr.mxu0 0.0
        %7493 = vmatpush1.msra.mxu0 0.0
        %7494 = vmatprep.subr.mxu0 0.0
        %7495 = vmatpush1.msra.mxu0 0.0
        %7496 = vmatprep.subr.mxu0 0.0
        %7497 = vmatpush1.msra.mxu0 0.0
        %7498 = vmatprep.subr.mxu0 0.0
        %7499 = vmatpush1.msra.mxu0 0.0
        %7500 = vmatprep.subr.mxu0 0.0
        %7501 = vmatpush1.msra.mxu0 0.0
        %7502 = vmatprep.subr.mxu0 0.0
        %7503 = vmatpush1.msra.mxu0 0.0
        %7504 = vmatprep.subr.mxu0 0.0
        %7505 = vmatpush1.msra.mxu0 0.0
        %7506 = vmatprep.subr.mxu0 0.0
        %7507 = vmatpush1.msra.mxu0 0.0
        %7508 = vmatprep.subr.mxu0 0.0
        %7509 = vmatpush1.msra.mxu0 0.0
        %7510 = vmatprep.subr.mxu0 0.0
        %7511 = vmatpush1.msra.mxu0 0.0
        %7512 = vmatprep.mubr.f32.mxu0 0.0
        %7513 = vmatmul.mubr.f32.gmra.mrb[0].mxu0 %v7437
        %v7514 = vpop.f32.mrb[0].mxu0
        %v7515 = vadd.f32 0.0, %v7514
        %v7516 = vpop.f32.mrb[0].mxu0
        %7517 = vmatprep.mubr.f32.mxu0 0.0
        %7518 = vmatmul.mubr.f32.gmra.mrb[0].mxu0 %v7440
        %v7519 = vpop.f32.mrb[0].mxu0
        %v7520 = vadd.f32 0.0, %v7519
        %v7521 = vpop.f32.mrb[0].mxu0
        %7522 = vmatprep.mubr.f32.mxu0 0.0
        %7523 = vmatmul.mubr.f32.gmra.mrb[0].mxu0 %v7443
        %v7524 = vpop.f32.mrb[0].mxu0
        %v7525 = vadd.f32 0.0, %v7524
        %v7526 = vpop.f32.mrb[0].mxu0
        %7527 = vmatprep.mubr.f32.mxu0 0.0
        %7528 = vmatmul.mubr.f32.gmra.mrb[0].mxu0 %v7446
        %v7529 = vpop.f32.mrb[0].mxu0
        %v7530 = vadd.f32 0.0, %v7529
        %v7531 = vpop.f32.mrb[0].mxu0
        %7532 = vdwg.mxu0
        %v7533 = vadd.f32 %v7421, %v7515
        %v7534 = vadd.f32 %v7422, %v7520
        %v7535 = vadd.f32 %v7423, %v7525
        %v7536 = vadd.f32 %v7424, %v7530
        %s7537 = scalar_lea.vmem %s6, 448
        %v7538 = vld [vmem:[%s7537] sm:$0xff]
        %v7539 = vld [vmem:[%s7537 + $0x8] sm:$0xff]
        %v7540 = vld [vmem:[%s7537 + $0x10] sm:$0xff]
        %v7541 = vld [vmem:[%s7537 + $0x18] sm:$0xff]
        %7542 = vrot.lane.b32.xlu0 %v5935, 121
        %v7543 = vpop.permute.xlu0 %7542
        %7544 = vrot.lane.b32.xlu0 %v5937, 121
        %v7545 = vpop.permute.xlu0 %7544
        %v7549 = vsel %vm3949, %v7538, 0
        %v7552 = vsel %vm3949, %v7539, 0
        %v7555 = vsel %vm3949, %v7540, 0
        %v7558 = vsel %vm3949, %v7541, 0
        %7560 = vmatprep.subr.mxu0 0.0
        %7561 = vmatpush1.msra.mxu0 %v7543
        %7562 = vmatprep.subr.mxu0 0.0
        %7563 = vmatpush1.msra.mxu0 %v7545
        %7564 = vmatprep.subr.mxu0 0.0
        %7565 = vmatpush1.msra.mxu0 0.0
        %7566 = vmatprep.subr.mxu0 0.0
        %7567 = vmatpush1.msra.mxu0 0.0
        %7568 = vmatprep.subr.mxu0 0.0
        %7569 = vmatpush1.msra.mxu0 0.0
        %7570 = vmatprep.subr.mxu0 0.0
        %7571 = vmatpush1.msra.mxu0 0.0
        %7572 = vmatprep.subr.mxu0 0.0
        %7573 = vmatpush1.msra.mxu0 0.0
        %7574 = vmatprep.subr.mxu0 0.0
        %7575 = vmatpush1.msra.mxu0 0.0
        %7576 = vmatprep.subr.mxu0 0.0
        %7577 = vmatpush1.msra.mxu0 0.0
        %7578 = vmatprep.subr.mxu0 0.0
        %7579 = vmatpush1.msra.mxu0 0.0
        %7580 = vmatprep.subr.mxu0 0.0
        %7581 = vmatpush1.msra.mxu0 0.0
        %7582 = vmatprep.subr.mxu0 0.0
        %7583 = vmatpush1.msra.mxu0 0.0
        %7584 = vmatprep.subr.mxu0 0.0
        %7585 = vmatpush1.msra.mxu0 0.0
        %7586 = vmatprep.subr.mxu0 0.0
        %7587 = vmatpush1.msra.mxu0 0.0
        %7588 = vmatprep.subr.mxu0 0.0
        %7589 = vmatpush1.msra.mxu0 0.0
        %7590 = vmatprep.subr.mxu0 0.0
        %7591 = vmatpush1.msra.mxu0 0.0
        %7592 = vmatprep.subr.mxu0 0.0
        %7593 = vmatpush1.msra.mxu0 0.0
        %7594 = vmatprep.subr.mxu0 0.0
        %7595 = vmatpush1.msra.mxu0 0.0
        %7596 = vmatprep.subr.mxu0 0.0
        %7597 = vmatpush1.msra.mxu0 0.0
        %7598 = vmatprep.subr.mxu0 0.0
        %7599 = vmatpush1.msra.mxu0 0.0
        %7600 = vmatprep.subr.mxu0 0.0
        %7601 = vmatpush1.msra.mxu0 0.0
        %7602 = vmatprep.subr.mxu0 0.0
        %7603 = vmatpush1.msra.mxu0 0.0
        %7604 = vmatprep.subr.mxu0 0.0
        %7605 = vmatpush1.msra.mxu0 0.0
        %7606 = vmatprep.subr.mxu0 0.0
        %7607 = vmatpush1.msra.mxu0 0.0
        %7608 = vmatprep.subr.mxu0 0.0
        %7609 = vmatpush1.msra.mxu0 0.0
        %7610 = vmatprep.subr.mxu0 0.0
        %7611 = vmatpush1.msra.mxu0 0.0
        %7612 = vmatprep.subr.mxu0 0.0
        %7613 = vmatpush1.msra.mxu0 0.0
        %7614 = vmatprep.subr.mxu0 0.0
        %7615 = vmatpush1.msra.mxu0 0.0
        %7616 = vmatprep.subr.mxu0 0.0
        %7617 = vmatpush1.msra.mxu0 0.0
        %7618 = vmatprep.subr.mxu0 0.0
        %7619 = vmatpush1.msra.mxu0 0.0
        %7620 = vmatprep.subr.mxu0 0.0
        %7621 = vmatpush1.msra.mxu0 0.0
        %7622 = vmatprep.subr.mxu0 0.0
        %7623 = vmatpush1.msra.mxu0 0.0
        %7624 = vmatprep.mubr.f32.mxu0 0.0
        %7625 = vmatmul.mubr.f32.gmra.mrb[0].mxu0 %v7549
        %v7626 = vpop.f32.mrb[0].mxu0
        %v7627 = vadd.f32 0.0, %v7626
        %v7628 = vpop.f32.mrb[0].mxu0
        %7629 = vmatprep.mubr.f32.mxu0 0.0
        %7630 = vmatmul.mubr.f32.gmra.mrb[0].mxu0 %v7552
        %v7631 = vpop.f32.mrb[0].mxu0
        %v7632 = vadd.f32 0.0, %v7631
        %v7633 = vpop.f32.mrb[0].mxu0
        %7634 = vmatprep.mubr.f32.mxu0 0.0
        %7635 = vmatmul.mubr.f32.gmra.mrb[0].mxu0 %v7555
        %v7636 = vpop.f32.mrb[0].mxu0
        %v7637 = vadd.f32 0.0, %v7636
        %v7638 = vpop.f32.mrb[0].mxu0
        %7639 = vmatprep.mubr.f32.mxu0 0.0
        %7640 = vmatmul.mubr.f32.gmra.mrb[0].mxu0 %v7558
        %v7641 = vpop.f32.mrb[0].mxu0
        %v7642 = vadd.f32 0.0, %v7641
        %v7643 = vpop.f32.mrb[0].mxu0
        %7644 = vdwg.mxu0
        %v7645 = vadd.f32 %v7533, %v7627
        %v7646 = vadd.f32 %v7534, %v7632
        %v7647 = vadd.f32 %v7535, %v7637
        %v7648 = vadd.f32 %v7536, %v7642
        %s7649 = scalar_lea.vmem %s6, 480
        %v7650 = vld [vmem:[%s7649] sm:$0xff]
        %v7651 = vld [vmem:[%s7649 + $0x8] sm:$0xff]
        %v7652 = vld [vmem:[%s7649 + $0x10] sm:$0xff]
        %v7653 = vld [vmem:[%s7649 + $0x18] sm:$0xff]
        %7654 = vrot.lane.b32.xlu0 %v5935, 120
        %v7655 = vpop.permute.xlu0 %7654
        %7656 = vrot.lane.b32.xlu0 %v5937, 120
        %v7657 = vpop.permute.xlu0 %7656
        %v7661 = vsel %vm3949, %v7650, 0
        %v7664 = vsel %vm3949, %v7651, 0
        %v7667 = vsel %vm3949, %v7652, 0
        %v7670 = vsel %vm3949, %v7653, 0
        %7672 = vmatprep.subr.mxu0 0.0
        %7673 = vmatpush1.msra.mxu0 %v7655
        %7674 = vmatprep.subr.mxu0 0.0
        %7675 = vmatpush1.msra.mxu0 %v7657
        %7676 = vmatprep.subr.mxu0 0.0
        %7677 = vmatpush1.msra.mxu0 0.0
        %7678 = vmatprep.subr.mxu0 0.0
        %7679 = vmatpush1.msra.mxu0 0.0
        %7680 = vmatprep.subr.mxu0 0.0
        %7681 = vmatpush1.msra.mxu0 0.0
        %7682 = vmatprep.subr.mxu0 0.0
        %7683 = vmatpush1.msra.mxu0 0.0
        %7684 = vmatprep.subr.mxu0 0.0
        %7685 = vmatpush1.msra.mxu0 0.0
        %7686 = vmatprep.subr.mxu0 0.0
        %7687 = vmatpush1.msra.mxu0 0.0
        %7688 = vmatprep.subr.mxu0 0.0
        %7689 = vmatpush1.msra.mxu0 0.0
        %7690 = vmatprep.subr.mxu0 0.0
        %7691 = vmatpush1.msra.mxu0 0.0
        %7692 = vmatprep.subr.mxu0 0.0
        %7693 = vmatpush1.msra.mxu0 0.0
        %7694 = vmatprep.subr.mxu0 0.0
        %7695 = vmatpush1.msra.mxu0 0.0
        %7696 = vmatprep.subr.mxu0 0.0
        %7697 = vmatpush1.msra.mxu0 0.0
        %7698 = vmatprep.subr.mxu0 0.0
        %7699 = vmatpush1.msra.mxu0 0.0
        %7700 = vmatprep.subr.mxu0 0.0
        %7701 = vmatpush1.msra.mxu0 0.0
        %7702 = vmatprep.subr.mxu0 0.0
        %7703 = vmatpush1.msra.mxu0 0.0
        %7704 = vmatprep.subr.mxu0 0.0
        %7705 = vmatpush1.msra.mxu0 0.0
        %7706 = vmatprep.subr.mxu0 0.0
        %7707 = vmatpush1.msra.mxu0 0.0
        %7708 = vmatprep.subr.mxu0 0.0
        %7709 = vmatpush1.msra.mxu0 0.0
        %7710 = vmatprep.subr.mxu0 0.0
        %7711 = vmatpush1.msra.mxu0 0.0
        %7712 = vmatprep.subr.mxu0 0.0
        %7713 = vmatpush1.msra.mxu0 0.0
        %7714 = vmatprep.subr.mxu0 0.0
        %7715 = vmatpush1.msra.mxu0 0.0
        %7716 = vmatprep.subr.mxu0 0.0
        %7717 = vmatpush1.msra.mxu0 0.0
        %7718 = vmatprep.subr.mxu0 0.0
        %7719 = vmatpush1.msra.mxu0 0.0
        %7720 = vmatprep.subr.mxu0 0.0
        %7721 = vmatpush1.msra.mxu0 0.0
        %7722 = vmatprep.subr.mxu0 0.0
        %7723 = vmatpush1.msra.mxu0 0.0
        %7724 = vmatprep.subr.mxu0 0.0
        %7725 = vmatpush1.msra.mxu0 0.0
        %7726 = vmatprep.subr.mxu0 0.0
        %7727 = vmatpush1.msra.mxu0 0.0
        %7728 = vmatprep.subr.mxu0 0.0
        %7729 = vmatpush1.msra.mxu0 0.0
        %7730 = vmatprep.subr.mxu0 0.0
        %7731 = vmatpush1.msra.mxu0 0.0
        %7732 = vmatprep.subr.mxu0 0.0
        %7733 = vmatpush1.msra.mxu0 0.0
        %7734 = vmatprep.subr.mxu0 0.0
        %7735 = vmatpush1.msra.mxu0 0.0
        %7736 = vmatprep.mubr.f32.mxu0 0.0
        %7737 = vmatmul.mubr.f32.gmra.mrb[0].mxu0 %v7661
        %v7738 = vpop.f32.mrb[0].mxu0
        %v7739 = vadd.f32 0.0, %v7738
        %v7740 = vpop.f32.mrb[0].mxu0
        %7741 = vmatprep.mubr.f32.mxu0 0.0
        %7742 = vmatmul.mubr.f32.gmra.mrb[0].mxu0 %v7664
        %v7743 = vpop.f32.mrb[0].mxu0
        %v7744 = vadd.f32 0.0, %v7743
        %v7745 = vpop.f32.mrb[0].mxu0
        %7746 = vmatprep.mubr.f32.mxu0 0.0
        %7747 = vmatmul.mubr.f32.gmra.mrb[0].mxu0 %v7667
        %v7748 = vpop.f32.mrb[0].mxu0
        %v7749 = vadd.f32 0.0, %v7748
        %v7750 = vpop.f32.mrb[0].mxu0
        %7751 = vmatprep.mubr.f32.mxu0 0.0
        %7752 = vmatmul.mubr.f32.gmra.mrb[0].mxu0 %v7670
        %v7753 = vpop.f32.mrb[0].mxu0
        %v7754 = vadd.f32 0.0, %v7753
        %v7755 = vpop.f32.mrb[0].mxu0
        %7756 = vdwg.mxu0
        %v7757 = vadd.f32 %v7645, %v7739
        %v7758 = vadd.f32 %v7646, %v7744
        %v7759 = vadd.f32 %v7647, %v7749
        %v7760 = vadd.f32 %v7648, %v7754
        %v7761 = vld [vmem:[%s7] sm:$0xff]
        %v7762 = vld [vmem:[%s7 + $0x8] sm:$0xff]
        %v7763 = vld [vmem:[%s7 + $0x10] sm:$0xff]
        %v7764 = vld [vmem:[%s7 + $0x18] sm:$0xff]
        %7766 = vset.pattern.permute.xlu0 0
        %7767 = vperm.xlu0 %7766, %v7761
        %v7768 = vpop.permute.xlu0 %7767
        %7771 = vset.pattern.permute.xlu0 0
        %7772 = vperm.xlu0 %7771, %v7762
        %v7773 = vpop.permute.xlu0 %7772
        %7776 = vset.pattern.permute.xlu0 0
        %7777 = vperm.xlu0 %7776, %v7763
        %v7778 = vpop.permute.xlu0 %7777
        %7781 = vset.pattern.permute.xlu0 0
        %7782 = vperm.xlu0 %7781, %v7764
        %v7783 = vpop.permute.xlu0 %7782
        %v7785 = vadd.f32 %v7757, %v7768
        %v7786 = vadd.f32 %v7758, %v7773
        %v7787 = vadd.f32 %v7759, %v7778
        %v7788 = vadd.f32 %v7760, %v7783
        %vm7789 = vcmp.gt.f32.partialorder %v7785, 0.0
        %vm7790 = vcmp.gt.f32.partialorder %v7786, 0.0
        %vm7791 = vcmp.gt.f32.partialorder %v7787, 0.0
        %vm7792 = vcmp.gt.f32.partialorder %v7788, 0.0
        %v7793 = vmin.f32 %v7785, 0.0
        %v7794 = vmin.f32 %v7786, 0.0
        %v7795 = vmin.f32 %v7787, 0.0
        %v7796 = vmin.f32 %v7788, 0.0
        %v7797 = vmul.f32 %v7793, 1.442695
        %v7798 = vpow.pop %v7797
        %v7799 = vmul.f32 %v7794, 1.442695
        %v7800 = vpow.pop %v7799
        %v7801 = vmul.f32 %v7795, 1.442695
        %v7802 = vpow.pop %v7801
        %v7803 = vmul.f32 %v7796, 1.442695
        %v7804 = vpow.pop %v7803
        %v7805 = vsub.f32 %v7798, 1.0
        %v7806 = vsub.f32 %v7800, 1.0
        %v7807 = vsub.f32 %v7802, 1.0
        %v7808 = vsub.f32 %v7804, 1.0
        %v7809 = vsel %vm7789, %v7785, %v7805
        %v7810 = vsel %vm7790, %v7786, %v7806
        %v7811 = vsel %vm7791, %v7787, %v7807
        %v7812 = vsel %vm7792, %v7788, %v7808
        %v7814 = vsel %vm3316, %v7809, 0
        %v7817 = vsel %vm3316, %v7810, 0
        %v7820 = vsel %vm3316, %v7811, 0
        %v7823 = vsel %vm3316, %v7812, 0
        %7825 = vmatprep.subr.mxu0 0.0
        %7826 = vmatpush1.msra.mxu0 %v5821
        %7827 = vmatprep.subr.mxu0 0.0
        %7828 = vmatpush1.msra.mxu0 %v5822
        %7829 = vmatprep.subr.mxu0 0.0
        %7830 = vmatpush1.msra.mxu0 %v5823
        %7831 = vmatprep.subr.mxu0 0.0
        %7832 = vmatpush1.msra.mxu0 %v5824
        %7833 = vmatprep.subr.mxu0 0.0
        %7834 = vmatpush1.msra.mxu0 0.0
        %7835 = vmatprep.subr.mxu0 0.0
        %7836 = vmatpush1.msra.mxu0 0.0
        %7837 = vmatprep.subr.mxu0 0.0
        %7838 = vmatpush1.msra.mxu0 0.0
        %7839 = vmatprep.subr.mxu0 0.0
        %7840 = vmatpush1.msra.mxu0 0.0
        %7841 = vmatprep.subr.mxu0 0.0
        %7842 = vmatpush1.msra.mxu0 0.0
        %7843 = vmatprep.subr.mxu0 0.0
        %7844 = vmatpush1.msra.mxu0 0.0
        %7845 = vmatprep.subr.mxu0 0.0
        %7846 = vmatpush1.msra.mxu0 0.0
        %7847 = vmatprep.subr.mxu0 0.0
        %7848 = vmatpush1.msra.mxu0 0.0
        %7849 = vmatprep.subr.mxu0 0.0
        %7850 = vmatpush1.msra.mxu0 0.0
        %7851 = vmatprep.subr.mxu0 0.0
        %7852 = vmatpush1.msra.mxu0 0.0
        %7853 = vmatprep.subr.mxu0 0.0
        %7854 = vmatpush1.msra.mxu0 0.0
        %7855 = vmatprep.subr.mxu0 0.0
        %7856 = vmatpush1.msra.mxu0 0.0
        %7857 = vmatprep.subr.mxu0 0.0
        %7858 = vmatpush1.msra.mxu0 0.0
        %7859 = vmatprep.subr.mxu0 0.0
        %7860 = vmatpush1.msra.mxu0 0.0
        %7861 = vmatprep.subr.mxu0 0.0
        %7862 = vmatpush1.msra.mxu0 0.0
        %7863 = vmatprep.subr.mxu0 0.0
        %7864 = vmatpush1.msra.mxu0 0.0
        %7865 = vmatprep.subr.mxu0 0.0
        %7866 = vmatpush1.msra.mxu0 0.0
        %7867 = vmatprep.subr.mxu0 0.0
        %7868 = vmatpush1.msra.mxu0 0.0
        %7869 = vmatprep.subr.mxu0 0.0
        %7870 = vmatpush1.msra.mxu0 0.0
        %7871 = vmatprep.subr.mxu0 0.0
        %7872 = vmatpush1.msra.mxu0 0.0
        %7873 = vmatprep.subr.mxu0 0.0
        %7874 = vmatpush1.msra.mxu0 0.0
        %7875 = vmatprep.subr.mxu0 0.0
        %7876 = vmatpush1.msra.mxu0 0.0
        %7877 = vmatprep.subr.mxu0 0.0
        %7878 = vmatpush1.msra.mxu0 0.0
        %7879 = vmatprep.subr.mxu0 0.0
        %7880 = vmatpush1.msra.mxu0 0.0
        %7881 = vmatprep.subr.mxu0 0.0
        %7882 = vmatpush1.msra.mxu0 0.0
        %7883 = vmatprep.subr.mxu0 0.0
        %7884 = vmatpush1.msra.mxu0 0.0
        %7885 = vmatprep.subr.mxu0 0.0
        %7886 = vmatpush1.msra.mxu0 0.0
        %7887 = vmatprep.subr.mxu0 0.0
        %7888 = vmatpush1.msra.mxu0 0.0
        %7889 = vmatprep.mubr.f32.mxu0 0.0
        %7890 = vmatmul.mubr.f32.gmra.mrb[0].mxu0 %v7814
        %v7891 = vpop.f32.mrb[0].mxu0
        %v7892 = vadd.f32 0.0, %v7891
        %v7893 = vpop.f32.mrb[0].mxu0
        %7894 = vmatprep.mubr.f32.mxu0 0.0
        %7895 = vmatmul.mubr.f32.gmra.mrb[0].mxu0 %v7817
        %v7896 = vpop.f32.mrb[0].mxu0
        %v7897 = vadd.f32 0.0, %v7896
        %v7898 = vpop.f32.mrb[0].mxu0
        %7899 = vmatprep.mubr.f32.mxu0 0.0
        %7900 = vmatmul.mubr.f32.gmra.mrb[0].mxu0 %v7820
        %v7901 = vpop.f32.mrb[0].mxu0
        %v7902 = vadd.f32 0.0, %v7901
        %v7903 = vpop.f32.mrb[0].mxu0
        %7904 = vmatprep.mubr.f32.mxu0 0.0
        %7905 = vmatmul.mubr.f32.gmra.mrb[0].mxu0 %v7823
        %v7906 = vpop.f32.mrb[0].mxu0
        %v7907 = vadd.f32 0.0, %v7906
        %v7908 = vpop.f32.mrb[0].mxu0
        %7909 = vdwg.mxu0
        %7910 = vxpose.xlu0.b32.start [1/16] %v7892, 128
        %7911 = vxpose.xlu0.b32.cont [2/16] %v7897, 128
        %7912 = vxpose.xlu0.b32.cont [3/16] %v7902, 128
        %7913 = vxpose.xlu0.b32.cont [4/16] %v7907, 128
        %7914 = vxpose.xlu0.b32.cont [5/16] 0.0, 128
        %7915 = vxpose.xlu0.b32.cont [6/16] 0.0, 128
        %7916 = vxpose.xlu0.b32.cont [7/16] 0.0, 128
        %7917 = vxpose.xlu0.b32.cont [8/16] 0.0, 128
        %7918 = vxpose.xlu0.b32.cont [9/16] 0.0, 128
        %7919 = vxpose.xlu0.b32.cont [10/16] 0.0, 128
        %7920 = vxpose.xlu0.b32.cont [11/16] 0.0, 128
        %7921 = vxpose.xlu0.b32.cont [12/16] 0.0, 128
        %7922 = vxpose.xlu0.b32.cont [13/16] 0.0, 128
        %7923 = vxpose.xlu0.b32.cont [14/16] 0.0, 128
        %7924 = vxpose.xlu0.b32.cont [15/16] 0.0, 128
        %7925 = vxpose.xlu0.b32.end [16/16] 0.0, 128
        %v7926 = vpop.trf.xlu0
        %v7927 = vpop.trf.xlu0
        %v7928 = vpop.trf.xlu0
        %v7929 = vpop.trf.xlu0
        %v7930 = vpop.trf.xlu0
        %v7931 = vpop.trf.xlu0
        %v7932 = vpop.trf.xlu0
        %v7933 = vpop.trf.xlu0
        %v7934 = vpop.trf.xlu0
        %v7935 = vpop.trf.xlu0
        %v7936 = vpop.trf.xlu0
        %v7937 = vpop.trf.xlu0
        %v7938 = vpop.trf.xlu0
        %v7939 = vpop.trf.xlu0
        %v7940 = vpop.trf.xlu0
        %v7941 = vpop.trf.xlu0
        %v7942 = vld [vmem:[%s8] sm:$0xff]
        %v7943 = vld [vmem:[%s8 + $0x8] sm:$0xff]
        %v7944 = vld [vmem:[%s8 + $0x10] sm:$0xff]
        %v7945 = vld [vmem:[%s8 + $0x18] sm:$0xff]
        %v7946 = vld [vmem:[%s9] sm:$0x1]
        %v7948 = vlaneseq
        %v7949 = vshrl.u32 %v7948, 7
        %v7950 = vsub.s32 0, %v7949
        %v7951 = vrot.slane %v7946, %v7950
        %v7954 = vsel %vm3316, %v7926, 0
        %7956 = vmatprep.subr.mxu0 0.0
        %7957 = vmatpush1.msra.mxu0 %v7942
        %7958 = vmatprep.subr.mxu0 0.0
        %7959 = vmatpush1.msra.mxu0 %v7943
        %7960 = vmatprep.subr.mxu0 0.0
        %7961 = vmatpush1.msra.mxu0 %v7944
        %7962 = vmatprep.subr.mxu0 0.0
        %7963 = vmatpush1.msra.mxu0 %v7945
        %7964 = vmatprep.subr.mxu0 0.0
        %7965 = vmatpush1.msra.mxu0 0.0
        %7966 = vmatprep.subr.mxu0 0.0
        %7967 = vmatpush1.msra.mxu0 0.0
        %7968 = vmatprep.subr.mxu0 0.0
        %7969 = vmatpush1.msra.mxu0 0.0
        %7970 = vmatprep.subr.mxu0 0.0
        %7971 = vmatpush1.msra.mxu0 0.0
        %7972 = vmatprep.subr.mxu0 0.0
        %7973 = vmatpush1.msra.mxu0 0.0
        %7974 = vmatprep.subr.mxu0 0.0
        %7975 = vmatpush1.msra.mxu0 0.0
        %7976 = vmatprep.subr.mxu0 0.0
        %7977 = vmatpush1.msra.mxu0 0.0
        %7978 = vmatprep.subr.mxu0 0.0
        %7979 = vmatpush1.msra.mxu0 0.0
        %7980 = vmatprep.subr.mxu0 0.0
        %7981 = vmatpush1.msra.mxu0 0.0
        %7982 = vmatprep.subr.mxu0 0.0
        %7983 = vmatpush1.msra.mxu0 0.0
        %7984 = vmatprep.subr.mxu0 0.0
        %7985 = vmatpush1.msra.mxu0 0.0
        %7986 = vmatprep.subr.mxu0 0.0
        %7987 = vmatpush1.msra.mxu0 0.0
        %7988 = vmatprep.subr.mxu0 0.0
        %7989 = vmatpush1.msra.mxu0 0.0
        %7990 = vmatprep.subr.mxu0 0.0
        %7991 = vmatpush1.msra.mxu0 0.0
        %7992 = vmatprep.subr.mxu0 0.0
        %7993 = vmatpush1.msra.mxu0 0.0
        %7994 = vmatprep.subr.mxu0 0.0
        %7995 = vmatpush1.msra.mxu0 0.0
        %7996 = vmatprep.subr.mxu0 0.0
        %7997 = vmatpush1.msra.mxu0 0.0
        %7998 = vmatprep.subr.mxu0 0.0
        %7999 = vmatpush1.msra.mxu0 0.0
        %8000 = vmatprep.subr.mxu0 0.0
        %8001 = vmatpush1.msra.mxu0 0.0
        %8002 = vmatprep.subr.mxu0 0.0
        %8003 = vmatpush1.msra.mxu0 0.0
        %8004 = vmatprep.subr.mxu0 0.0
        %8005 = vmatpush1.msra.mxu0 0.0
        %8006 = vmatprep.subr.mxu0 0.0
        %8007 = vmatpush1.msra.mxu0 0.0
        %8008 = vmatprep.subr.mxu0 0.0
        %8009 = vmatpush1.msra.mxu0 0.0
        %8010 = vmatprep.subr.mxu0 0.0
        %8011 = vmatpush1.msra.mxu0 0.0
        %8012 = vmatprep.subr.mxu0 0.0
        %8013 = vmatpush1.msra.mxu0 0.0
        %8014 = vmatprep.subr.mxu0 0.0
        %8015 = vmatpush1.msra.mxu0 0.0
        %8016 = vmatprep.subr.mxu0 0.0
        %8017 = vmatpush1.msra.mxu0 0.0
        %8018 = vmatprep.subr.mxu0 0.0
        %8019 = vmatpush1.msra.mxu0 0.0
        %8020 = vmatprep.mubr.f32.mxu0 0.0
        %8021 = vmatmul.mubr.f32.gmra.mrb[0].mxu0 %v7954
        %v8022 = vpop.f32.mrb[0].mxu0
        %v8023 = vadd.f32 %v7951, %v8022
        %v8024 = vpop.f32.mrb[0].mxu0
        %8025 = vdwg.mxu0
        %8027 = vrot.lane.b32.xlu0 %v8023, 96
        %v8028 = vpop.permute.xlu0 %8027
        %v8029 = vsel %vm3316, %v8023, 0
        %v8031 = vsel %vm3316, %v8028, 0
        %8033 = vmatprep.subr.mxu0 0.0
        %8034 = vmatpush1.xpose.msra.mxu0 %v8031
        %8035 = vmatprep.subr.mxu0 0.0
        %8036 = vmatpush1.xpose.msra.mxu0 0.0
        %8037 = vmatprep.subr.mxu0 0.0
        %8038 = vmatpush1.xpose.msra.mxu0 0.0
        %8039 = vmatprep.subr.mxu0 0.0
        %8040 = vmatpush1.xpose.msra.mxu0 0.0
        %8041 = vmatprep.subr.mxu0 0.0
        %8042 = vmatpush1.xpose.msra.mxu0 0.0
        %8043 = vmatprep.subr.mxu0 0.0
        %8044 = vmatpush1.xpose.msra.mxu0 0.0
        %8045 = vmatprep.subr.mxu0 0.0
        %8046 = vmatpush1.xpose.msra.mxu0 0.0
        %8047 = vmatprep.subr.mxu0 0.0
        %8048 = vmatpush1.xpose.msra.mxu0 0.0
        %8049 = vmatprep.subr.mxu0 0.0
        %8050 = vmatpush1.xpose.msra.mxu0 0.0
        %8051 = vmatprep.subr.mxu0 0.0
        %8052 = vmatpush1.xpose.msra.mxu0 0.0
        %8053 = vmatprep.subr.mxu0 0.0
        %8054 = vmatpush1.xpose.msra.mxu0 0.0
        %8055 = vmatprep.subr.mxu0 0.0
        %8056 = vmatpush1.xpose.msra.mxu0 0.0
        %8057 = vmatprep.subr.mxu0 0.0
        %8058 = vmatpush1.xpose.msra.mxu0 0.0
        %8059 = vmatprep.subr.mxu0 0.0
        %8060 = vmatpush1.xpose.msra.mxu0 0.0
        %8061 = vmatprep.subr.mxu0 0.0
        %8062 = vmatpush1.xpose.msra.mxu0 0.0
        %8063 = vmatprep.subr.mxu0 0.0
        %8064 = vmatpush1.xpose.msra.mxu0 0.0
        %8065 = vmatprep.subr.mxu0 0.0
        %8066 = vmatpush1.xpose.msra.mxu0 0.0
        %8067 = vmatprep.subr.mxu0 0.0
        %8068 = vmatpush1.xpose.msra.mxu0 0.0
        %8069 = vmatprep.subr.mxu0 0.0
        %8070 = vmatpush1.xpose.msra.mxu0 0.0
        %8071 = vmatprep.subr.mxu0 0.0
        %8072 = vmatpush1.xpose.msra.mxu0 0.0
        %8073 = vmatprep.subr.mxu0 0.0
        %8074 = vmatpush1.xpose.msra.mxu0 0.0
        %8075 = vmatprep.subr.mxu0 0.0
        %8076 = vmatpush1.xpose.msra.mxu0 0.0
        %8077 = vmatprep.subr.mxu0 0.0
        %8078 = vmatpush1.xpose.msra.mxu0 0.0
        %8079 = vmatprep.subr.mxu0 0.0
        %8080 = vmatpush1.xpose.msra.mxu0 0.0
        %8081 = vmatprep.subr.mxu0 0.0
        %8082 = vmatpush1.xpose.msra.mxu0 0.0
        %8083 = vmatprep.subr.mxu0 0.0
        %8084 = vmatpush1.xpose.msra.mxu0 0.0
        %8085 = vmatprep.subr.mxu0 0.0
        %8086 = vmatpush1.xpose.msra.mxu0 0.0
        %8087 = vmatprep.subr.mxu0 0.0
        %8088 = vmatpush1.xpose.msra.mxu0 0.0
        %8089 = vmatprep.subr.mxu0 0.0
        %8090 = vmatpush1.xpose.msra.mxu0 0.0
        %8091 = vmatprep.subr.mxu0 0.0
        %8092 = vmatpush1.xpose.msra.mxu0 0.0
        %8093 = vmatprep.subr.mxu0 0.0
        %8094 = vmatpush1.xpose.msra.mxu0 0.0
        %8095 = vmatprep.subr.mxu0 0.0
        %8096 = vmatpush1.xpose.msra.mxu0 0.0
        %8097 = vmatprep.mubr.f32.mxu0 0.0
        %8098 = vmatmul.mubr.f32.gmra.mrb[0].mxu0 %v8029
        %v8099 = vpop.f32.mrb[0].mxu0
        %v8100 = vadd.f32 0.0, %v8099
        %v8101 = vpop.f32.mrb[0].mxu0
        %8102 = vdwg.mxu0
        %v8103 = vmul.f32 %v8100, 0.17677669
        %vm8104 = vcmask 27648
        %v8105 = vsel %vm8104, %v8103, -inf
        %8106 = vmax.xlane.f32.xlu0 %v8105
        %v8107 = vpop.xlane.xlu0 %8106
        %v8108 = vsub.f32 %v8103, %v8107
        %v8109 = vmul.f32 %v8108, 1.442695
        %v8110 = vpow.pop %v8109
        %v8111 = vsel %vm8104, %v8110, 0.0
        %8112 = vadd.xlane.f32.xlu0 %v8111
        %v8113 = vpop.xlane.xlu0 %8112
        %v8114 = vrcp.pop %v8113
        %v8115 = vmul.f32 %v8110, %v8114
        %8116 = vrot.lane.b32.xlu0 %v8023, 64
        %v8117 = vpop.permute.xlu0 %8116
        %v8119 = vsel %vm4263, %v8115, 0
        %vm8121 = vcmask 1043456
        %v8122 = vsel %vm8121, %v8117, 0
        %8124 = vmatprep.subr.mxu0 0.0
        %8125 = vmatpush1.msra.mxu0 %v8122
        %8126 = vmatprep.subr.mxu0 0.0
        %8127 = vmatpush1.msra.mxu0 0.0
        %8128 = vmatprep.subr.mxu0 0.0
        %8129 = vmatpush1.msra.mxu0 0.0
        %8130 = vmatprep.subr.mxu0 0.0
        %8131 = vmatpush1.msra.mxu0 0.0
        %8132 = vmatprep.subr.mxu0 0.0
        %8133 = vmatpush1.msra.mxu0 0.0
        %8134 = vmatprep.subr.mxu0 0.0
        %8135 = vmatpush1.msra.mxu0 0.0
        %8136 = vmatprep.subr.mxu0 0.0
        %8137 = vmatpush1.msra.mxu0 0.0
        %8138 = vmatprep.subr.mxu0 0.0
        %8139 = vmatpush1.msra.mxu0 0.0
        %8140 = vmatprep.subr.mxu0 0.0
        %8141 = vmatpush1.msra.mxu0 0.0
        %8142 = vmatprep.subr.mxu0 0.0
        %8143 = vmatpush1.msra.mxu0 0.0
        %8144 = vmatprep.subr.mxu0 0.0
        %8145 = vmatpush1.msra.mxu0 0.0
        %8146 = vmatprep.subr.mxu0 0.0
        %8147 = vmatpush1.msra.mxu0 0.0
        %8148 = vmatprep.subr.mxu0 0.0
        %8149 = vmatpush1.msra.mxu0 0.0
        %8150 = vmatprep.subr.mxu0 0.0
        %8151 = vmatpush1.msra.mxu0 0.0
        %8152 = vmatprep.subr.mxu0 0.0
        %8153 = vmatpush1.msra.mxu0 0.0
        %8154 = vmatprep.subr.mxu0 0.0
        %8155 = vmatpush1.msra.mxu0 0.0
        %8156 = vmatprep.subr.mxu0 0.0
        %8157 = vmatpush1.msra.mxu0 0.0
        %8158 = vmatprep.subr.mxu0 0.0
        %8159 = vmatpush1.msra.mxu0 0.0
        %8160 = vmatprep.subr.mxu0 0.0
        %8161 = vmatpush1.msra.mxu0 0.0
        %8162 = vmatprep.subr.mxu0 0.0
        %8163 = vmatpush1.msra.mxu0 0.0
        %8164 = vmatprep.subr.mxu0 0.0
        %8165 = vmatpush1.msra.mxu0 0.0
        %8166 = vmatprep.subr.mxu0 0.0
        %8167 = vmatpush1.msra.mxu0 0.0
        %8168 = vmatprep.subr.mxu0 0.0
        %8169 = vmatpush1.msra.mxu0 0.0
        %8170 = vmatprep.subr.mxu0 0.0
        %8171 = vmatpush1.msra.mxu0 0.0
        %8172 = vmatprep.subr.mxu0 0.0
        %8173 = vmatpush1.msra.mxu0 0.0
        %8174 = vmatprep.subr.mxu0 0.0
        %8175 = vmatpush1.msra.mxu0 0.0
        %8176 = vmatprep.subr.mxu0 0.0
        %8177 = vmatpush1.msra.mxu0 0.0
        %8178 = vmatprep.subr.mxu0 0.0
        %8179 = vmatpush1.msra.mxu0 0.0
        %8180 = vmatprep.subr.mxu0 0.0
        %8181 = vmatpush1.msra.mxu0 0.0
        %8182 = vmatprep.subr.mxu0 0.0
        %8183 = vmatpush1.msra.mxu0 0.0
        %8184 = vmatprep.subr.mxu0 0.0
        %8185 = vmatpush1.msra.mxu0 0.0
        %8186 = vmatprep.subr.mxu0 0.0
        %8187 = vmatpush1.msra.mxu0 0.0
        %8188 = vmatprep.mubr.f32.mxu0 0.0
        %8189 = vmatmul.mubr.f32.gmra.mrb[0].mxu0 %v8119
        %v8190 = vpop.f32.mrb[0].mxu0
        %v8191 = vadd.f32 0.0, %v8190
        %v8192 = vpop.f32.mrb[0].mxu0
        %8193 = vdwg.mxu0
        %v8194 = vld [vmem:[%s11] sm:$0x1]
        %v8195 = vld [vmem:[%s10] sm:$0xff]
        %v8196 = vld [vmem:[%s10 + $0x8] sm:$0xff]
        %v8197 = vld [vmem:[%s10 + $0x10] sm:$0xff]
        %v8198 = vld [vmem:[%s10 + $0x18] sm:$0xff]
        %v8200 = vsel %vm3316, %v8191, 0
        %8202 = vmatprep.subr.mxu0 0.0
        %8203 = vmatpush1.msra.mxu0 %v8195
        %8204 = vmatprep.subr.mxu0 0.0
        %8205 = vmatpush1.msra.mxu0 %v8196
        %8206 = vmatprep.subr.mxu0 0.0
        %8207 = vmatpush1.msra.mxu0 %v8197
        %8208 = vmatprep.subr.mxu0 0.0
        %8209 = vmatpush1.msra.mxu0 %v8198
        %8210 = vmatprep.subr.mxu0 0.0
        %8211 = vmatpush1.msra.mxu0 0.0
        %8212 = vmatprep.subr.mxu0 0.0
        %8213 = vmatpush1.msra.mxu0 0.0
        %8214 = vmatprep.subr.mxu0 0.0
        %8215 = vmatpush1.msra.mxu0 0.0
        %8216 = vmatprep.subr.mxu0 0.0
        %8217 = vmatpush1.msra.mxu0 0.0
        %8218 = vmatprep.subr.mxu0 0.0
        %8219 = vmatpush1.msra.mxu0 0.0
        %8220 = vmatprep.subr.mxu0 0.0
        %8221 = vmatpush1.msra.mxu0 0.0
        %8222 = vmatprep.subr.mxu0 0.0
        %8223 = vmatpush1.msra.mxu0 0.0
        %8224 = vmatprep.subr.mxu0 0.0
        %8225 = vmatpush1.msra.mxu0 0.0
        %8226 = vmatprep.subr.mxu0 0.0
        %8227 = vmatpush1.msra.mxu0 0.0
        %8228 = vmatprep.subr.mxu0 0.0
        %8229 = vmatpush1.msra.mxu0 0.0
        %8230 = vmatprep.subr.mxu0 0.0
        %8231 = vmatpush1.msra.mxu0 0.0
        %8232 = vmatprep.subr.mxu0 0.0
        %8233 = vmatpush1.msra.mxu0 0.0
        %8234 = vmatprep.subr.mxu0 0.0
        %8235 = vmatpush1.msra.mxu0 0.0
        %8236 = vmatprep.subr.mxu0 0.0
        %8237 = vmatpush1.msra.mxu0 0.0
        %8238 = vmatprep.subr.mxu0 0.0
        %8239 = vmatpush1.msra.mxu0 0.0
        %8240 = vmatprep.subr.mxu0 0.0
        %8241 = vmatpush1.msra.mxu0 0.0
        %8242 = vmatprep.subr.mxu0 0.0
        %8243 = vmatpush1.msra.mxu0 0.0
        %8244 = vmatprep.subr.mxu0 0.0
        %8245 = vmatpush1.msra.mxu0 0.0
        %8246 = vmatprep.subr.mxu0 0.0
        %8247 = vmatpush1.msra.mxu0 0.0
        %8248 = vmatprep.subr.mxu0 0.0
        %8249 = vmatpush1.msra.mxu0 0.0
        %8250 = vmatprep.subr.mxu0 0.0
        %8251 = vmatpush1.msra.mxu0 0.0
        %8252 = vmatprep.subr.mxu0 0.0
        %8253 = vmatpush1.msra.mxu0 0.0
        %8254 = vmatprep.subr.mxu0 0.0
        %8255 = vmatpush1.msra.mxu0 0.0
        %8256 = vmatprep.subr.mxu0 0.0
        %8257 = vmatpush1.msra.mxu0 0.0
        %8258 = vmatprep.subr.mxu0 0.0
        %8259 = vmatpush1.msra.mxu0 0.0
        %8260 = vmatprep.subr.mxu0 0.0
        %8261 = vmatpush1.msra.mxu0 0.0
        %8262 = vmatprep.subr.mxu0 0.0
        %8263 = vmatpush1.msra.mxu0 0.0
        %8264 = vmatprep.subr.mxu0 0.0
        %8265 = vmatpush1.msra.mxu0 0.0
        %8266 = vmatprep.mubr.f32.mxu0 0.0
        %8267 = vmatmul.mubr.f32.gmra.mrb[0].mxu0 %v8200
        %v8268 = vpop.f32.mrb[0].mxu0
        %v8269 = vadd.f32 0.0, %v8268
        %v8270 = vpop.f32.mrb[0].mxu0
        %8271 = vdwg.mxu0
        %v8272 = vadd.f32 %v8194, %v8269
        %s8273 = scalar_lea.vmem %s10, 32
        %v8274 = vld [vmem:[%s8273] sm:$0xff]
        %v8275 = vld [vmem:[%s8273 + $0x8] sm:$0xff]
        %v8276 = vld [vmem:[%s8273 + $0x10] sm:$0xff]
        %v8277 = vld [vmem:[%s8273 + $0x18] sm:$0xff]
        %v8278 = vrot.slane %v8191, 1
        %v8279 = vsel %vm3316, %v8278, 0
        %8281 = vmatprep.subr.mxu0 0.0
        %8282 = vmatpush1.msra.mxu0 %v8274
        %8283 = vmatprep.subr.mxu0 0.0
        %8284 = vmatpush1.msra.mxu0 %v8275
        %8285 = vmatprep.subr.mxu0 0.0
        %8286 = vmatpush1.msra.mxu0 %v8276
        %8287 = vmatprep.subr.mxu0 0.0
        %8288 = vmatpush1.msra.mxu0 %v8277
        %8289 = vmatprep.subr.mxu0 0.0
        %8290 = vmatpush1.msra.mxu0 0.0
        %8291 = vmatprep.subr.mxu0 0.0
        %8292 = vmatpush1.msra.mxu0 0.0
        %8293 = vmatprep.subr.mxu0 0.0
        %8294 = vmatpush1.msra.mxu0 0.0
        %8295 = vmatprep.subr.mxu0 0.0
        %8296 = vmatpush1.msra.mxu0 0.0
        %8297 = vmatprep.subr.mxu0 0.0
        %8298 = vmatpush1.msra.mxu0 0.0
        %8299 = vmatprep.subr.mxu0 0.0
        %8300 = vmatpush1.msra.mxu0 0.0
        %8301 = vmatprep.subr.mxu0 0.0
        %8302 = vmatpush1.msra.mxu0 0.0
        %8303 = vmatprep.subr.mxu0 0.0
        %8304 = vmatpush1.msra.mxu0 0.0
        %8305 = vmatprep.subr.mxu0 0.0
        %8306 = vmatpush1.msra.mxu0 0.0
        %8307 = vmatprep.subr.mxu0 0.0
        %8308 = vmatpush1.msra.mxu0 0.0
        %8309 = vmatprep.subr.mxu0 0.0
        %8310 = vmatpush1.msra.mxu0 0.0
        %8311 = vmatprep.subr.mxu0 0.0
        %8312 = vmatpush1.msra.mxu0 0.0
        %8313 = vmatprep.subr.mxu0 0.0
        %8314 = vmatpush1.msra.mxu0 0.0
        %8315 = vmatprep.subr.mxu0 0.0
        %8316 = vmatpush1.msra.mxu0 0.0
        %8317 = vmatprep.subr.mxu0 0.0
        %8318 = vmatpush1.msra.mxu0 0.0
        %8319 = vmatprep.subr.mxu0 0.0
        %8320 = vmatpush1.msra.mxu0 0.0
        %8321 = vmatprep.subr.mxu0 0.0
        %8322 = vmatpush1.msra.mxu0 0.0
        %8323 = vmatprep.subr.mxu0 0.0
        %8324 = vmatpush1.msra.mxu0 0.0
        %8325 = vmatprep.subr.mxu0 0.0
        %8326 = vmatpush1.msra.mxu0 0.0
        %8327 = vmatprep.subr.mxu0 0.0
        %8328 = vmatpush1.msra.mxu0 0.0
        %8329 = vmatprep.subr.mxu0 0.0
        %8330 = vmatpush1.msra.mxu0 0.0
        %8331 = vmatprep.subr.mxu0 0.0
        %8332 = vmatpush1.msra.mxu0 0.0
        %8333 = vmatprep.subr.mxu0 0.0
        %8334 = vmatpush1.msra.mxu0 0.0
        %8335 = vmatprep.subr.mxu0 0.0
        %8336 = vmatpush1.msra.mxu0 0.0
        %8337 = vmatprep.subr.mxu0 0.0
        %8338 = vmatpush1.msra.mxu0 0.0
        %8339 = vmatprep.subr.mxu0 0.0
        %8340 = vmatpush1.msra.mxu0 0.0
        %8341 = vmatprep.subr.mxu0 0.0
        %8342 = vmatpush1.msra.mxu0 0.0
        %8343 = vmatprep.subr.mxu0 0.0
        %8344 = vmatpush1.msra.mxu0 0.0
        %8345 = vmatprep.mubr.f32.mxu0 0.0
        %8346 = vmatmul.mubr.f32.gmra.mrb[0].mxu0 %v8279
        %v8347 = vpop.f32.mrb[0].mxu0
        %v8348 = vadd.f32 0.0, %v8347
        %v8349 = vpop.f32.mrb[0].mxu0
        %8350 = vdwg.mxu0
        %v8351 = vadd.f32 %v8272, %v8348
        %s8352 = scalar_lea.vmem %s10, 64
        %v8353 = vld [vmem:[%s8352] sm:$0xff]
        %v8354 = vld [vmem:[%s8352 + $0x8] sm:$0xff]
        %v8355 = vld [vmem:[%s8352 + $0x10] sm:$0xff]
        %v8356 = vld [vmem:[%s8352 + $0x18] sm:$0xff]
        %v8357 = vrot.slane %v8191, 2
        %v8358 = vsel %vm3316, %v8357, 0
        %8360 = vmatprep.subr.mxu0 0.0
        %8361 = vmatpush1.msra.mxu0 %v8353
        %8362 = vmatprep.subr.mxu0 0.0
        %8363 = vmatpush1.msra.mxu0 %v8354
        %8364 = vmatprep.subr.mxu0 0.0
        %8365 = vmatpush1.msra.mxu0 %v8355
        %8366 = vmatprep.subr.mxu0 0.0
        %8367 = vmatpush1.msra.mxu0 %v8356
        %8368 = vmatprep.subr.mxu0 0.0
        %8369 = vmatpush1.msra.mxu0 0.0
        %8370 = vmatprep.subr.mxu0 0.0
        %8371 = vmatpush1.msra.mxu0 0.0
        %8372 = vmatprep.subr.mxu0 0.0
        %8373 = vmatpush1.msra.mxu0 0.0
        %8374 = vmatprep.subr.mxu0 0.0
        %8375 = vmatpush1.msra.mxu0 0.0
        %8376 = vmatprep.subr.mxu0 0.0
        %8377 = vmatpush1.msra.mxu0 0.0
        %8378 = vmatprep.subr.mxu0 0.0
        %8379 = vmatpush1.msra.mxu0 0.0
        %8380 = vmatprep.subr.mxu0 0.0
        %8381 = vmatpush1.msra.mxu0 0.0
        %8382 = vmatprep.subr.mxu0 0.0
        %8383 = vmatpush1.msra.mxu0 0.0
        %8384 = vmatprep.subr.mxu0 0.0
        %8385 = vmatpush1.msra.mxu0 0.0
        %8386 = vmatprep.subr.mxu0 0.0
        %8387 = vmatpush1.msra.mxu0 0.0
        %8388 = vmatprep.subr.mxu0 0.0
        %8389 = vmatpush1.msra.mxu0 0.0
        %8390 = vmatprep.subr.mxu0 0.0
        %8391 = vmatpush1.msra.mxu0 0.0
        %8392 = vmatprep.subr.mxu0 0.0
        %8393 = vmatpush1.msra.mxu0 0.0
        %8394 = vmatprep.subr.mxu0 0.0
        %8395 = vmatpush1.msra.mxu0 0.0
        %8396 = vmatprep.subr.mxu0 0.0
        %8397 = vmatpush1.msra.mxu0 0.0
        %8398 = vmatprep.subr.mxu0 0.0
        %8399 = vmatpush1.msra.mxu0 0.0
        %8400 = vmatprep.subr.mxu0 0.0
        %8401 = vmatpush1.msra.mxu0 0.0
        %8402 = vmatprep.subr.mxu0 0.0
        %8403 = vmatpush1.msra.mxu0 0.0
        %8404 = vmatprep.subr.mxu0 0.0
        %8405 = vmatpush1.msra.mxu0 0.0
        %8406 = vmatprep.subr.mxu0 0.0
        %8407 = vmatpush1.msra.mxu0 0.0
        %8408 = vmatprep.subr.mxu0 0.0
        %8409 = vmatpush1.msra.mxu0 0.0
        %8410 = vmatprep.subr.mxu0 0.0
        %8411 = vmatpush1.msra.mxu0 0.0
        %8412 = vmatprep.subr.mxu0 0.0
        %8413 = vmatpush1.msra.mxu0 0.0
        %8414 = vmatprep.subr.mxu0 0.0
        %8415 = vmatpush1.msra.mxu0 0.0
        %8416 = vmatprep.subr.mxu0 0.0
        %8417 = vmatpush1.msra.mxu0 0.0
        %8418 = vmatprep.subr.mxu0 0.0
        %8419 = vmatpush1.msra.mxu0 0.0
        %8420 = vmatprep.subr.mxu0 0.0
        %8421 = vmatpush1.msra.mxu0 0.0
        %8422 = vmatprep.subr.mxu0 0.0
        %8423 = vmatpush1.msra.mxu0 0.0
        %8424 = vmatprep.mubr.f32.mxu0 0.0
        %8425 = vmatmul.mubr.f32.gmra.mrb[0].mxu0 %v8358
        %v8426 = vpop.f32.mrb[0].mxu0
        %v8427 = vadd.f32 0.0, %v8426
        %v8428 = vpop.f32.mrb[0].mxu0
        %8429 = vdwg.mxu0
        %v8430 = vadd.f32 %v8351, %v8427
        %s8431 = scalar_lea.vmem %s10, 96
        %v8432 = vld [vmem:[%s8431] sm:$0xff]
        %v8433 = vld [vmem:[%s8431 + $0x8] sm:$0xff]
        %v8434 = vld [vmem:[%s8431 + $0x10] sm:$0xff]
        %v8435 = vld [vmem:[%s8431 + $0x18] sm:$0xff]
        %v8436 = vrot.slane %v8191, 3
        %v8437 = vsel %vm3316, %v8436, 0
        %8439 = vmatprep.subr.mxu0 0.0
        %8440 = vmatpush1.msra.mxu0 %v8432
        %8441 = vmatprep.subr.mxu0 0.0
        %8442 = vmatpush1.msra.mxu0 %v8433
        %8443 = vmatprep.subr.mxu0 0.0
        %8444 = vmatpush1.msra.mxu0 %v8434
        %8445 = vmatprep.subr.mxu0 0.0
        %8446 = vmatpush1.msra.mxu0 %v8435
        %8447 = vmatprep.subr.mxu0 0.0
        %8448 = vmatpush1.msra.mxu0 0.0
        %8449 = vmatprep.subr.mxu0 0.0
        %8450 = vmatpush1.msra.mxu0 0.0
        %8451 = vmatprep.subr.mxu0 0.0
        %8452 = vmatpush1.msra.mxu0 0.0
        %8453 = vmatprep.subr.mxu0 0.0
        %8454 = vmatpush1.msra.mxu0 0.0
        %8455 = vmatprep.subr.mxu0 0.0
        %8456 = vmatpush1.msra.mxu0 0.0
        %8457 = vmatprep.subr.mxu0 0.0
        %8458 = vmatpush1.msra.mxu0 0.0
        %8459 = vmatprep.subr.mxu0 0.0
        %8460 = vmatpush1.msra.mxu0 0.0
        %8461 = vmatprep.subr.mxu0 0.0
        %8462 = vmatpush1.msra.mxu0 0.0
        %8463 = vmatprep.subr.mxu0 0.0
        %8464 = vmatpush1.msra.mxu0 0.0
        %8465 = vmatprep.subr.mxu0 0.0
        %8466 = vmatpush1.msra.mxu0 0.0
        %8467 = vmatprep.subr.mxu0 0.0
        %8468 = vmatpush1.msra.mxu0 0.0
        %8469 = vmatprep.subr.mxu0 0.0
        %8470 = vmatpush1.msra.mxu0 0.0
        %8471 = vmatprep.subr.mxu0 0.0
        %8472 = vmatpush1.msra.mxu0 0.0
        %8473 = vmatprep.subr.mxu0 0.0
        %8474 = vmatpush1.msra.mxu0 0.0
        %8475 = vmatprep.subr.mxu0 0.0
        %8476 = vmatpush1.msra.mxu0 0.0
        %8477 = vmatprep.subr.mxu0 0.0
        %8478 = vmatpush1.msra.mxu0 0.0
        %8479 = vmatprep.subr.mxu0 0.0
        %8480 = vmatpush1.msra.mxu0 0.0
        %8481 = vmatprep.subr.mxu0 0.0
        %8482 = vmatpush1.msra.mxu0 0.0
        %8483 = vmatprep.subr.mxu0 0.0
        %8484 = vmatpush1.msra.mxu0 0.0
        %8485 = vmatprep.subr.mxu0 0.0
        %8486 = vmatpush1.msra.mxu0 0.0
        %8487 = vmatprep.subr.mxu0 0.0
        %8488 = vmatpush1.msra.mxu0 0.0
        %8489 = vmatprep.subr.mxu0 0.0
        %8490 = vmatpush1.msra.mxu0 0.0
        %8491 = vmatprep.subr.mxu0 0.0
        %8492 = vmatpush1.msra.mxu0 0.0
        %8493 = vmatprep.subr.mxu0 0.0
        %8494 = vmatpush1.msra.mxu0 0.0
        %8495 = vmatprep.subr.mxu0 0.0
        %8496 = vmatpush1.msra.mxu0 0.0
        %8497 = vmatprep.subr.mxu0 0.0
        %8498 = vmatpush1.msra.mxu0 0.0
        %8499 = vmatprep.subr.mxu0 0.0
        %8500 = vmatpush1.msra.mxu0 0.0
        %8501 = vmatprep.subr.mxu0 0.0
        %8502 = vmatpush1.msra.mxu0 0.0
        %8503 = vmatprep.mubr.f32.mxu0 0.0
        %8504 = vmatmul.mubr.f32.gmra.mrb[0].mxu0 %v8437
        %v8505 = vpop.f32.mrb[0].mxu0
        %v8506 = vadd.f32 0.0, %v8505
        %v8507 = vpop.f32.mrb[0].mxu0
        %8508 = vdwg.mxu0
        %v8509 = vadd.f32 %v8430, %v8506
        %v8510 = vld [vmem:[%s12] sm:$0xff]
        %v8511 = vld [vmem:[%s12 + $0x8] sm:$0xff]
        %v8512 = vld [vmem:[%s12 + $0x10] sm:$0xff]
        %v8513 = vld [vmem:[%s12 + $0x18] sm:$0xff]
        %v8514 = vld [vmem:[%s12 + $0x20] sm:$0xff]
        %v8515 = vld [vmem:[%s12 + $0x28] sm:$0xff]
        %v8516 = vld [vmem:[%s12 + $0x30] sm:$0xff]
        %v8517 = vld [vmem:[%s12 + $0x38] sm:$0xff]
        %v8518 = vld [vmem:[%s12 + $0x40] sm:$0xff]
        %v8519 = vld [vmem:[%s12 + $0x48] sm:$0xff]
        %v8520 = vld [vmem:[%s12 + $0x50] sm:$0xff]
        %v8521 = vld [vmem:[%s12 + $0x58] sm:$0xff]
        %v8522 = vld [vmem:[%s12 + $0x60] sm:$0xff]
        %v8523 = vld [vmem:[%s12 + $0x68] sm:$0xff]
        %v8524 = vld [vmem:[%s12 + $0x70] sm:$0xff]
        %v8525 = vld [vmem:[%s12 + $0x78] sm:$0xff]
        %v8526 = vld [vmem:[%s13] sm:$0x1]
        %8527 = vmatprep.subr.mxu0 0.0
        %8528 = vmatpush1.msra.mxu0 %v8510
        %8529 = vmatprep.subr.mxu0 0.0
        %8530 = vmatpush1.msra.mxu0 %v8511
        %8531 = vmatprep.subr.mxu0 0.0
        %8532 = vmatpush1.msra.mxu0 %v8512
        %8533 = vmatprep.subr.mxu0 0.0
        %8534 = vmatpush1.msra.mxu0 %v8513
        %8535 = vmatprep.subr.mxu0 0.0
        %8536 = vmatpush1.msra.mxu0 %v8514
        %8537 = vmatprep.subr.mxu0 0.0
        %8538 = vmatpush1.msra.mxu0 %v8515
        %8539 = vmatprep.subr.mxu0 0.0
        %8540 = vmatpush1.msra.mxu0 %v8516
        %8541 = vmatprep.subr.mxu0 0.0
        %8542 = vmatpush1.msra.mxu0 %v8517
        %8543 = vmatprep.subr.mxu0 0.0
        %8544 = vmatpush1.msra.mxu0 %v8518
        %8545 = vmatprep.subr.mxu0 0.0
        %8546 = vmatpush1.msra.mxu0 %v8519
        %8547 = vmatprep.subr.mxu0 0.0
        %8548 = vmatpush1.msra.mxu0 %v8520
        %8549 = vmatprep.subr.mxu0 0.0
        %8550 = vmatpush1.msra.mxu0 %v8521
        %8551 = vmatprep.subr.mxu0 0.0
        %8552 = vmatpush1.msra.mxu0 %v8522
        %8553 = vmatprep.subr.mxu0 0.0
        %8554 = vmatpush1.msra.mxu0 %v8523
        %8555 = vmatprep.subr.mxu0 0.0
        %8556 = vmatpush1.msra.mxu0 %v8524
        %8557 = vmatprep.subr.mxu0 0.0
        %8558 = vmatpush1.msra.mxu0 %v8525
        %8559 = vmatprep.subr.mxu0 0.0
        %8560 = vmatpush1.msra.mxu0 0.0
        %8561 = vmatprep.subr.mxu0 0.0
        %8562 = vmatpush1.msra.mxu0 0.0
        %8563 = vmatprep.subr.mxu0 0.0
        %8564 = vmatpush1.msra.mxu0 0.0
        %8565 = vmatprep.subr.mxu0 0.0
        %8566 = vmatpush1.msra.mxu0 0.0
        %8567 = vmatprep.subr.mxu0 0.0
        %8568 = vmatpush1.msra.mxu0 0.0
        %8569 = vmatprep.subr.mxu0 0.0
        %8570 = vmatpush1.msra.mxu0 0.0
        %8571 = vmatprep.subr.mxu0 0.0
        %8572 = vmatpush1.msra.mxu0 0.0
        %8573 = vmatprep.subr.mxu0 0.0
        %8574 = vmatpush1.msra.mxu0 0.0
        %8575 = vmatprep.subr.mxu0 0.0
        %8576 = vmatpush1.msra.mxu0 0.0
        %8577 = vmatprep.subr.mxu0 0.0
        %8578 = vmatpush1.msra.mxu0 0.0
        %8579 = vmatprep.subr.mxu0 0.0
        %8580 = vmatpush1.msra.mxu0 0.0
        %8581 = vmatprep.subr.mxu0 0.0
        %8582 = vmatpush1.msra.mxu0 0.0
        %8583 = vmatprep.subr.mxu0 0.0
        %8584 = vmatpush1.msra.mxu0 0.0
        %8585 = vmatprep.subr.mxu0 0.0
        %8586 = vmatpush1.msra.mxu0 0.0
        %8587 = vmatprep.subr.mxu0 0.0
        %8588 = vmatpush1.msra.mxu0 0.0
        %8589 = vmatprep.subr.mxu0 0.0
        %8590 = vmatpush1.msra.mxu0 0.0
        %8591 = vmatprep.mubr.f32.mxu0 0.0
        %8592 = vmatmul.mubr.f32.gmra.mrb[0].mxu0 %v8509
        %v8593 = vpop.f32.mrb[0].mxu0
        %v8594 = vadd.f32 %v8526, %v8593
        %v8595 = vpop.f32.mrb[0].mxu0
        %8596 = vdwg.mxu0
        %vm8597 = vcmask 24576
        %v8598 = vsel %vm8597, %v8594, -inf
        %8599 = vmax.xlane.f32.xlu0 %v8598
        %v8600 = vpop.xlane.xlu0 %8599
        %v8601 = vsub.f32 %v8594, %v8600
        %v8602 = vmul.f32 %v8601, 1.442695
        %v8603 = vpow.pop %v8602
        %v8604 = vsel %vm8597, %v8603, 0.0
        %8605 = vadd.xlane.f32.xlu0 %v8604
        %v8606 = vpop.xlane.xlu0 %8605
        %v8607 = vlog2.pop %v8606
        %v8608 = vmul.f32 %v8607, 0.6931472
        %v8609 = vadd.f32 %v8608, %v8600
        %v8610 = vsub.f32 %v8594, %v8609
        %8611 = vst.msk [vmem:[%s459] sm:$0x1] %vm8597, %v8610
        %s8612 = sand.u32 %s335, 1
        %s8613 = scalar_lea.sflag [#allocation5], %s8612
        %s8614 = sand.u32 %s335, 1
        %s8615 = scalar_lea.vmem [#allocation4], %s8614
        // Predicated region
        $region77: #{eegnet_attention_deep_forward.1} parent=75 // pred_check
          %p8616 = pneg %p345
        $region78: #{eegnet_attention_deep_forward.1} parent=75 // pred_check_branch
          %8618 = sbr.rel (%p8616) target = $region80
        $region79: #{eegnet_attention_deep_forward.1} parent=75 // pred_region
          %s8620 = ssub.s32 16, 16
          %8621 = vsyncadd %s8613, %s8620
          %s8622 = smul.addr %s28, 16
          %s8623 = scalar_lea.hbm %s14, %s8622
          %s8625 = sshll.u32 %s8615, 4
          %s8626 = int_to_ptr.vmem [resolvable:$true] %s8625
          %8628 = dma.vmem_to_hbm [thread:$0]  %s8626, 16, %s8623, %s8613
        $region80: #{eegnet_attention_deep_forward.1} parent=75 // pred_fallthru
          _
      $region76: #{eegnet_attention_deep_forward.1} parent=5 // pred_fallthru
        _
      %p8629 = scmp.le.s32.totalorder 2, %s23
      // Predicated region
      $region81: #{eegnet_attention_deep_forward.1} parent=5 // pred_check
        %p8630 = pneg %p8629
      $region82: #{eegnet_attention_deep_forward.1} parent=5 // pred_check_branch
        %8632 = sbr.rel (%p8630) target = $region84
      $region83: #{eegnet_attention_deep_forward.1} parent=5 // pred_region
        %s8633 = ssub.s32 %s23, 2
        // Predicated region
        $region85: #{eegnet_attention_deep_forward.1} parent=83 // pred_check
          %p8634 = pneg %p351
        $region86: #{eegnet_attention_deep_forward.1} parent=83 // pred_check_branch
          %8636 = sbr.rel (%p8634) target = $region88
        $region87: #{eegnet_attention_deep_forward.1} parent=83 // pred_region
          %s8637 = sand.u32 %s336, 1
          %s8638 = scalar_lea.sflag [#allocation5], %s8637
          %s8639 = sand.u32 %s336, 1
          %s8640 = scalar_lea.vmem [#allocation4], %s8639
          %8641 = dma.done %s8638, 16
        $region88: #{eegnet_attention_deep_forward.1} parent=83 // pred_fallthru
          _
      $region84: #{eegnet_attention_deep_forward.1} parent=5 // pred_fallthru
        _
    $region6: #{eegnet_attention_deep_forward.1} parent=1 // loop_footer
      %s27 = sadd.s32 1, %s23
    $region7: #{eegnet_attention_deep_forward.1} parent=1 // loop_footer_branch
      %22 = sbr.rel target = $region3
    $region8: #{eegnet_attention_deep_forward.1} parent=1 // loop_exit
      _
    %8642 = vsyncpa [#allocation5], 1
    %s8643 = scalar_lea.sflag [#allocation5], 1
    %8644 = vsyncpa %s8643, 1

</llo_original>
